<compile_context>
chip_gen: v5e
topology: v5e:2x2
jax: 0.10.0
libtpu: 0.0.40
codegen_flags: <defaults>
</compile_context>

<pallas_src>
import functools

import jax
import jax.numpy as jnp
from jax.experimental import pallas as pl
from jax.experimental.pallas import tpu as pltpu

IN_PLANES = 512
OUT_PLANES = 128
HEAD = 2
HEAD_DIM = OUT_PLANES // HEAD     # 64
K_ATT = 3
K_CONV = 3
KK = K_ATT * K_ATT                # 9

_VMEM_LIMIT = 32 * 1024 * 1024


# ----------------------- kernel 1: fused q/k/v 1x1 convs (matmul + bias) -------------
def _matmul_bias_kernel(x_ref, w_ref, b_ref, o_ref):
    acc = jnp.dot(x_ref[...], w_ref[...], preferred_element_type=jnp.float32)
    o_ref[...] = acc + b_ref[...]


def matmul_bias(x, w, b):
    M, K = x.shape
    N = w.shape[1]
    tm = M
    for cand in (256, 128, 64, 32, 16, 8):   # cap the tile, keep >= 2 grid steps
        if M % cand == 0 and M // cand >= 2:
            tm = cand
            break
    return pl.pallas_call(
        _matmul_bias_kernel,
        out_shape=jax.ShapeDtypeStruct((M, N), jnp.float32),
        grid_spec=pltpu.PrefetchScalarGridSpec(
            num_scalar_prefetch=0,
            grid=(M // tm,),
            in_specs=[
                pl.BlockSpec((tm, K), lambda i: (i, 0)),
                pl.BlockSpec((K, N), lambda i: (0, 0)),
                pl.BlockSpec((1, N), lambda i: (0, 0)),
            ],
            out_specs=pl.BlockSpec((tm, N), lambda i: (i, 0)),
        ),
        compiler_params=pltpu.CompilerParams(
            dimension_semantics=("parallel",),
            vmem_limit_bytes=_VMEM_LIMIT),
    )(x, w, b)


# ----------------------- kernel 2: fused ACmix (attention + conv + combine) ----------
def _acmix_kernel(qkv_ref, pe_ref, selred_ref, selexp_ref, ssum_ref, sexp_ref,
                  mconv_ref, bdep_ref, o_ref, rpad_ref, zpad_ref, *, H, W, scale):
    C = OUT_PLANES
    Hp, Wp = H + 2, W + 2
    HW = H * W

    qkv = qkv_ref[0]                              # (H, W, 384) f32
    pe = pe_ref[0]                                # (H, W, 128) f32
    q = qkv[:, :, 0:C]
    k = qkv[:, :, C:2 * C]
    v = qkv[:, :, 2 * C:3 * C]

    # reflect-padded [k - pe | v] in VMEM (q·pe is window-independent -> cancels in
    # the softmax, so only k - pe is needed for the scores)
    rpad_ref[1:H + 1, 1:W + 1, 0:C] = k - pe
    rpad_ref[1:H + 1, 1:W + 1, C:2 * C] = v
    rpad_ref[1:H + 1, 0:1, :] = rpad_ref[1:H + 1, 2:3, :]
    rpad_ref[1:H + 1, Wp - 1:Wp, :] = rpad_ref[1:H + 1, Wp - 3:Wp - 2, :]
    rpad_ref[0:1, :, :] = rpad_ref[2:3, :, :]
    rpad_ref[Hp - 1:Hp, :, :] = rpad_ref[Hp - 3:Hp - 2, :, :]

    # zero-padded [q | k | v] for the conv-branch taps
    zpad_ref[...] = jnp.zeros_like(zpad_ref)
    zpad_ref[1:H + 1, 1:W + 1, :] = qkv

    # ---- attention scores: per-window VPU product, per-head reduction on the MXU ----
    qs = (q * scale).reshape(HW, C)
    scores = jnp.zeros((HW, 2 * KK), jnp.float32)          # cols: head*9 + window
    for t in range(KK):
        dy, dx = t // K_ATT, t % K_ATT
        ke_win = rpad_ref[dy:dy + H, dx:dx + W, 0:C].reshape(HW, C)
        scores = scores + jnp.dot(qs * ke_win, selred_ref[t],
                                  preferred_element_type=jnp.float32)

    # softmax over the 9 window positions (shared per-pixel max across heads is exact)
    m = jnp.max(scores, axis=-1, keepdims=True)
    e = jnp.exp(scores - m)                                              # (HW, 18)
    denom = jnp.dot(e, ssum_ref[...], preferred_element_type=jnp.float32)   # (HW, 2)
    inv128 = jnp.dot(pl.reciprocal(denom, approx=True), sexp_ref[...],
                     preferred_element_type=jnp.float32)      # (HW, 128), rate1 folded

    # ---- weighted-V sum + conv branch (fc / rate2 folded into mconv) ----------------
    att = jnp.zeros((HW, C), jnp.float32)
    conv = jnp.zeros((HW, C), jnp.float32) + bdep_ref[...]
    for t in range(KK):
        dy, dx = t // K_ATT, t % K_ATT
        w128 = jnp.dot(e, selexp_ref[t], preferred_element_type=jnp.float32)  # (HW,128)
        v_win = rpad_ref[dy:dy + H, dx:dx + W, C:2 * C].reshape(HW, C)
        att = att + w128 * v_win
        zwin = zpad_ref[dy:dy + H, dx:dx + W, :].reshape(HW, 3 * C)
        conv = conv + jnp.dot(zwin.astype(jnp.bfloat16), mconv_ref[t],
                              preferred_element_type=jnp.float32)

    out = (att * inv128 + conv).reshape(H, W, C)

    # emit the ACmix output already zero-padded (feeds stream2's 3x3 conv directly)
    o_ref[...] = jnp.zeros_like(o_ref)
    o_ref[0, 1:H + 1, 1:W + 1, :] = out


def acmix_fused(qkv, pe128, selred, selexp, ssum, sexp, mconv, bdep):
    B, H, W, _ = qkv.shape
    C = OUT_PLANES
    Hp, Wp = H + 2, W + 2
    kern = functools.partial(_acmix_kernel, H=H, W=W, scale=float(HEAD_DIM) ** -0.5)
    # TODO(synk): for large H/W add a row-strip grid axis (1-row halos) so the per-step
    # VMEM footprint stays within v7x's 64 MiB; whole-image-per-batch is fine here.
    return pl.pallas_call(
        kern,
        out_shape=jax.ShapeDtypeStruct((B, Hp, Wp, C), jnp.float32),
        grid_spec=pltpu.PrefetchScalarGridSpec(
            num_scalar_prefetch=0,
            grid=(B,),
            in_specs=[
                pl.BlockSpec((1, H, W, 3 * C), lambda i: (i, 0, 0, 0)),
                pl.BlockSpec((1, H, W, C), lambda i: (0, 0, 0, 0)),
                pl.BlockSpec((KK, C, 2 * KK), lambda i: (0, 0, 0)),
                pl.BlockSpec((KK, 2 * KK, C), lambda i: (0, 0, 0)),
                pl.BlockSpec((2 * KK, 2), lambda i: (0, 0)),
                pl.BlockSpec((2, C), lambda i: (0, 0)),
                pl.BlockSpec((KK, 3 * C, C), lambda i: (0, 0, 0)),
                pl.BlockSpec((1, C), lambda i: (0, 0)),
            ],
            out_specs=pl.BlockSpec((1, Hp, Wp, C), lambda i: (i, 0, 0, 0)),
            scratch_shapes=[
                pltpu.VMEM((Hp, Wp, 2 * C), jnp.float32),   # reflect-padded [k-pe | v]
                pltpu.VMEM((Hp, Wp, 3 * C), jnp.float32),   # zero-padded   [q | k | v]
            ],
        ),
        compiler_params=pltpu.CompilerParams(
            dimension_semantics=("parallel",),
            vmem_limit_bytes=_VMEM_LIMIT),
    )(qkv, pe128, selred, selexp, ssum, sexp, mconv, bdep)


# ----------------------- kernel 3: stream2 = Conv3x3 + ReLU + MaxPool(2,1) -----------
def _stream2_kernel(x_ref, w_ref, b_ref, o_ref, *, BB, H, W, C):
    xb = x_ref[...].astype(jnp.bfloat16)                    # (BB, H+2, W+2, C)
    wins = [xb[:, dy:dy + H, dx:dx + W, :] for dy in range(3) for dx in range(3)]
    xcat = jnp.concatenate(wins, axis=-1).reshape(BB * H * W, 9 * C)   # aligned concat
    acc = jnp.dot(xcat, w_ref[...], preferred_element_type=jnp.float32) + b_ref[...]
    y = jnp.maximum(acc, 0.0).reshape(BB, H, W, C)          # ReLU
    p = jnp.maximum(jnp.maximum(y[:, 0:H - 1, 0:W - 1, :], y[:, 0:H - 1, 1:W, :]),
                    jnp.maximum(y[:, 1:H, 0:W - 1, :], y[:, 1:H, 1:W, :]))
    o_ref[...] = p


def _pick_bb(B, HW):
    divisors = [d for d in range(1, B + 1) if B % d == 0]
    for d in divisors:                      # >= 2 grid steps and >= 128 matmul rows
        if B // d >= 2 and d * HW >= 128:
            return d
    for d in divisors:                      # >= 2 grid steps (v7x has 2 TensorCores)
        if B // d >= 2:
            return d
    return divisors[0]


def stream2(x_pad, w, b):
    B, Hp, Wp, C = x_pad.shape
    H, W = Hp - 2, Wp - 2
    bb = _pick_bb(B, H * W)
    kern = functools.partial(_stream2_kernel, BB=bb, H=H, W=W, C=C)
    return pl.pallas_call(
        kern,
        out_shape=jax.ShapeDtypeStruct((B, H - 1, W - 1, C), jnp.float32),
        grid_spec=pltpu.PrefetchScalarGridSpec(
            num_scalar_prefetch=0,
            grid=(B // bb,),
            in_specs=[
                pl.BlockSpec((bb, Hp, Wp, C), lambda i: (i, 0, 0, 0)),
                pl.BlockSpec((9 * C, C), lambda i: (0, 0)),
                pl.BlockSpec((1, C), lambda i: (0, 0)),
            ],
            out_specs=pl.BlockSpec((bb, H - 1, W - 1, C), lambda i: (i, 0, 0, 0)),
        ),
        compiler_params=pltpu.CompilerParams(
            dimension_semantics=("parallel",),
            vmem_limit_bytes=_VMEM_LIMIT),
    )(x_pad, w, b)


# --------------------------- selector / folded-weight tables -------------------------
def _build_acmix_tables(params):
    C, D = OUT_PLANES, HEAD_DIM
    lane = jnp.arange(C)
    head_of_lane = lane // D                                            # (128,)

    # attention selectors (column layout: head*9 + window)
    col_target = KK * head_of_lane[None, :, None] + jnp.arange(KK)[:, None, None]
    selred = (jnp.arange(2 * KK)[None, None, :] == col_target).astype(jnp.float32)
    selexp = jnp.transpose(selred, (0, 2, 1))                           # (9, 18, 128)
    ssum = (jnp.arange(2)[None, :] ==
            (jnp.arange(2 * KK)[:, None] // KK)).astype(jnp.float32)    # (18, 2)
    sexp = params["rate1"] * (head_of_lane[None, :] ==
                              jnp.arange(2)[:, None]).astype(jnp.float32)   # (2, 128)

    # conv branch: fold fc (1x1, 6->9, no bias) + rate2 into per-tap (384,128) weights
    # mconv[t, 128*kind + j, i] = rate2 * w_eff[2*kind + j//64, t, i] * (j%64 == i//2)
    w_dep_r = params["w_dep"].reshape(C, KK, KK)                        # (i, j, tap)
    w_eff = jnp.einsum("jm,ijt->mti", params["w_fc"], w_dep_r) * params["rate2"]
    m_index = 2 * jnp.arange(3)[:, None] + head_of_lane[None, :]        # (3, 128)
    w_gath = w_eff[m_index]                                             # (3,128,9,128)
    delta = ((lane % D)[:, None] == (lane // 2)[None, :]).astype(jnp.float32)
    mconv = w_gath * delta[None, :, None, :]
    mconv = jnp.transpose(mconv, (2, 0, 1, 3)).reshape(KK, 3 * C, C).astype(jnp.bfloat16)
    bdep = (params["rate2"] * params["b_dep"])[None, :]                 # (1, 128)
    return selred, selexp, ssum, sexp, mconv, bdep


# ------------------------------------ forward ----------------------------------------
def single_forward(x_nchw, params):
    B, Cin, H, W = x_nchw.shape
    assert Cin == IN_PLANES
    x = jnp.transpose(x_nchw, (0, 2, 3, 1)).astype(jnp.float32)         # NCHW -> NHWC

    # ---- ACmix q/k/v: three 1x1 convs fused into one bf16 matmul (512 -> 384) ----
    x_flat = x.reshape(B * H * W, Cin).astype(jnp.bfloat16)
    qkv = matmul_bias(x_flat, params["w_qkv"].astype(jnp.bfloat16), params["b_qkv"])
    qkv = qkv.reshape(B, H, W, 3 * OUT_PLANES)

    # positional encoding pe = conv_p(position(h, w))  (tiny 2->64 1x1 conv; JAX glue)
    loc_w = jnp.linspace(-1.0, 1.0, W, dtype=jnp.float32)
    loc_h = jnp.linspace(-1.0, 1.0, H, dtype=jnp.float32)
    pos = jnp.stack([jnp.broadcast_to(loc_w[None, :], (H, W)),
                     jnp.broadcast_to(loc_h[:, None], (H, W))], axis=-1)
    pe = pos @ params["w_p"] + params["b_p"]                            # (H, W, 64)
    pe128 = jnp.concatenate([pe, pe], axis=-1)[None]                    # (1, H, W, 128)

    tables = _build_acmix_tables(params)
    out_pad = acmix_fused(qkv, pe128, *tables)                          # (B, H+2, W+2, 128)

    # ---- stream2: Conv2d(128,128,3,p=1) + ReLU + MaxPool2d(2, stride=1) ----
    w_s2 = params["w_s2"].reshape(9 * OUT_PLANES, OUT_PLANES).astype(jnp.bfloat16)
    out = stream2(out_pad, w_s2, params["b_s2"])                        # (B, H-1, W-1, 128)
    return jnp.transpose(out, (0, 3, 1, 2))                             # back to NCHW


# --------------------------- deterministic parameter init ----------------------------
def init_params(key):
    ks = jax.random.split(key, 11)
    std = 0.02
    w_q = jax.random.normal(ks[0], (OUT_PLANES, IN_PLANES), jnp.float32) * std
    w_k = jax.random.normal(ks[1], (OUT_PLANES, IN_PLANES), jnp.float32) * std
    w_v = jax.random.normal(ks[2], (OUT_PLANES, IN_PLANES), jnp.float32) * std
    b_q = jax.random.normal(ks[3], (OUT_PLANES,), jnp.float32) * 0.01
    b_k = jax.random.normal(ks[4], (OUT_PLANES,), jnp.float32) * 0.01
    b_v = jax.random.normal(ks[5], (OUT_PLANES,), jnp.float32) * 0.01
    w_qkv = jnp.concatenate([w_q.T, w_k.T, w_v.T], axis=1)              # (512, 384)
    b_qkv = jnp.concatenate([b_q, b_k, b_v])[None, :]                   # (1, 384)

    w_p = jax.random.normal(ks[6], (2, HEAD_DIM), jnp.float32) * std    # conv_p (2->64)
    b_p = jax.random.normal(ks[7], (HEAD_DIM,), jnp.float32) * 0.01

    w_fc = jax.random.normal(ks[8], (K_CONV * K_CONV, 3 * HEAD), jnp.float32) * std

    # dep_conv weights exactly as ACmix.reset_parameters(): one-hot "shift" kernels,
    # identical for every output channel (torch layout (128, 9, 3, 3)); bias is zero.
    onehot = jnp.zeros((9, 3, 3), jnp.float32)
    for j in range(9):
        onehot = onehot.at[j, j // 3, j % 3].set(1.0)
    w_dep = jnp.broadcast_to(onehot[None], (OUT_PLANES, 9, 3, 3))
    b_dep = jnp.zeros((OUT_PLANES,), jnp.float32)

    w_s2_t = jax.random.normal(ks[9], (OUT_PLANES, OUT_PLANES, 3, 3), jnp.float32) * std
    w_s2 = jnp.transpose(w_s2_t, (2, 3, 1, 0))                          # (3,3,Cin,Cout)
    b_s2 = (jax.random.normal(ks[10], (OUT_PLANES,), jnp.float32) * 0.01)[None, :]

    return dict(w_qkv=w_qkv, b_qkv=b_qkv, w_p=w_p, b_p=b_p, w_fc=w_fc,
                w_dep=w_dep, b_dep=b_dep,
                rate1=jnp.float32(0.5), rate2=jnp.float32(0.5),   # init_rate_half
                w_s2=w_s2, b_s2=b_s2)


if __name__ == "__main__":
    key = jax.random.PRNGKey(0)
    k_params, k_x = jax.random.split(key)
    params = init_params(k_params)
    # ACmix requires 512 input channels; keep batch/spatial small.
    image = jax.random.normal(k_x, (2, IN_PLANES, 8, 8), dtype=jnp.float32)
    out = jax.jit(single_forward)(image, params)
    out = jax.block_until_ready(out)
    assert out.shape == (2, OUT_PLANES, 7, 7), out.shape
    assert bool(jnp.all(jnp.isfinite(out)))
    print("KERNEL_OK")
</pallas_src>

<mosaic_0001>
module attributes {stable_mosaic.version = 11 : i64} {
  func.func @_matmul_bias_kernel(%arg0: i32, %arg1: memref<64x512xbf16, #tpu.memory_space<vmem>>, %arg2: memref<512x384xbf16, #tpu.memory_space<vmem>>, %arg3: memref<1x384xf32, #tpu.memory_space<vmem>>, %arg4: memref<64x384xf32, #tpu.memory_space<vmem>>) attributes {dimension_semantics = [#tpu.dimension_semantics<parallel>], iteration_bounds = array<i64: 2>, scalar_prefetch = 0 : i64, scratch_operands = 0 : i64, tpu.core_type = #tpu.core_type<tc>, window_params = [{transform_indices = @transform_0, window_bounds = array<i64: 64, 512>}, {pipeline_mode = #tpu.pipeline_mode<synchronous>, transform_indices = @transform_1, window_bounds = array<i64: 512, 384>}, {pipeline_mode = #tpu.pipeline_mode<synchronous>, transform_indices = @transform_2, window_bounds = array<i64: 1, 384>}, {transform_indices = @transform_3, window_bounds = array<i64: 64, 384>}]} {
    %c0 = arith.constant 0 : index
    %c0_0 = arith.constant 0 : index
    %0 = vector.load %arg1[%c0, %c0_0] : memref<64x512xbf16, #tpu.memory_space<vmem>>, vector<64x512xbf16>
    %c0_1 = arith.constant 0 : index
    %c0_2 = arith.constant 0 : index
    %1 = vector.load %arg2[%c0_1, %c0_2] : memref<512x384xbf16, #tpu.memory_space<vmem>>, vector<512x384xbf16>
    %cst = arith.constant dense<0.000000e+00> : vector<64x384xf32>
    %2 = tpu.matmul %0, %1, %cst {dimension_numbers = #tpu.dot_dimension_numbers<[1], [0], [0], [1], [0, 0, 1, 1], [], []>} : vector<64x512xbf16>, vector<512x384xbf16>, vector<64x384xf32> -> vector<64x384xf32>
    %c0_3 = arith.constant 0 : index
    %c0_4 = arith.constant 0 : index
    %3 = vector.load %arg3[%c0_3, %c0_4] : memref<1x384xf32, #tpu.memory_space<vmem>>, vector<1x384xf32>
    %4 = vector.broadcast %3 : vector<1x384xf32> to vector<64x384xf32>
    %5 = arith.addf %2, %4 : vector<64x384xf32>
    %c0_5 = arith.constant 0 : index
    %c0_6 = arith.constant 0 : index
    %6 = vector.load %arg4[%c0_5, %c0_6] : memref<64x384xf32, #tpu.memory_space<vmem>>, vector<64x384xf32>
    tpu.vector_store %arg4[%c0_5, %c0_6], %5 {strides = array<i32>} : memref<64x384xf32, #tpu.memory_space<vmem>>, vector<64x384xf32>,
    return
  }
  func.func @transform_0(%arg0: i32) -> (i32, i32) {
    %c0_i32 = arith.constant 0 : i32
    %c0_i32_0 = arith.constant 0 : i32
    return %arg0, %c0_i32 : i32, i32
  }
  func.func @transform_1(%arg0: i32) -> (i32, i32) {
    %c0_i32 = arith.constant 0 : i32
    %c0_i32_0 = arith.constant 0 : i32
    %c0_i32_1 = arith.constant 0 : i32
    return %c0_i32, %c0_i32_0 : i32, i32
  }
  func.func @transform_2(%arg0: i32) -> (i32, i32) {
    %c0_i32 = arith.constant 0 : i32
    %c0_i32_0 = arith.constant 0 : i32
    %c0_i32_1 = arith.constant 0 : i32
    return %c0_i32, %c0_i32_0 : i32, i32
  }
  func.func @transform_3(%arg0: i32) -> (i32, i32) {
    %c0_i32 = arith.constant 0 : i32
    %c0_i32_0 = arith.constant 0 : i32
    return %arg0, %c0_i32 : i32, i32
  }
}

module attributes {stable_mosaic.version = 11 : i64} {
  func.func @_acmix_kernel(%arg0: i32, %arg1: memref<1x8x8x384xf32, #tpu.memory_space<vmem>>, %arg2: memref<1x8x8x128xf32, #tpu.memory_space<vmem>>, %arg3: memref<9x128x18xf32, #tpu.memory_space<vmem>>, %arg4: memref<9x18x128xf32, #tpu.memory_space<vmem>>, %arg5: memref<18x2xf32, #tpu.memory_space<vmem>>, %arg6: memref<2x128xf32, #tpu.memory_space<vmem>>, %arg7: memref<9x384x128xbf16, #tpu.memory_space<vmem>>, %arg8: memref<1x128xf32, #tpu.memory_space<vmem>>, %arg9: memref<1x10x10x128xf32, #tpu.memory_space<vmem>>, %arg10: memref<10x10x256xf32, #tpu.memory_space<vmem>>, %arg11: memref<10x10x384xf32, #tpu.memory_space<vmem>>) attributes {dimension_semantics = [#tpu.dimension_semantics<parallel>], iteration_bounds = array<i64: 2>, scalar_prefetch = 0 : i64, scratch_operands = 2 : i64, tpu.core_type = #tpu.core_type<tc>, window_params = [{transform_indices = @transform_0, window_bounds = array<i64: 1, 8, 8, 384>}, {pipeline_mode = #tpu.pipeline_mode<synchronous>, transform_indices = @transform_1, window_bounds = array<i64: 1, 8, 8, 128>}, {pipeline_mode = #tpu.pipeline_mode<synchronous>, transform_indices = @transform_2, window_bounds = array<i64: 9, 128, 18>}, {pipeline_mode = #tpu.pipeline_mode<synchronous>, transform_indices = @transform_3, window_bounds = array<i64: 9, 18, 128>}, {pipeline_mode = #tpu.pipeline_mode<synchronous>, transform_indices = @transform_4, window_bounds = array<i64: 18, 2>}, {pipeline_mode = #tpu.pipeline_mode<synchronous>, transform_indices = @transform_5, window_bounds = array<i64: 2, 128>}, {pipeline_mode = #tpu.pipeline_mode<synchronous>, transform_indices = @transform_6, window_bounds = array<i64: 9, 384, 128>}, {pipeline_mode = #tpu.pipeline_mode<synchronous>, transform_indices = @transform_7, window_bounds = array<i64: 1, 128>}, {transform_indices = @transform_8, window_bounds = array<i64: 1, 10, 10, 128>}]} {
    %c0 = arith.constant 0 : index
    %c0_0 = arith.constant 0 : index
    %c0_1 = arith.constant 0 : index
    %c0_2 = arith.constant 0 : index
    %0 = vector.load %arg1[%c0, %c0_0, %c0_1, %c0_2] : memref<1x8x8x384xf32, #tpu.memory_space<vmem>>, vector<1x8x8x384xf32>
    %1 = vector.shape_cast %0 : vector<1x8x8x384xf32> to vector<8x8x384xf32>
    %c0_3 = arith.constant 0 : index
    %c0_4 = arith.constant 0 : index
    %c0_5 = arith.constant 0 : index
    %c0_6 = arith.constant 0 : index
    %2 = vector.load %arg2[%c0_3, %c0_4, %c0_5, %c0_6] : memref<1x8x8x128xf32, #tpu.memory_space<vmem>>, vector<1x8x8x128xf32>
    %3 = vector.shape_cast %2 : vector<1x8x8x128xf32> to vector<8x8x128xf32>
    %4 = vector.extract_strided_slice %1 {offsets = [0, 0, 0], sizes = [8, 8, 128], strides = [1, 1, 1]} : vector<8x8x384xf32> to vector<8x8x128xf32>
    %5 = vector.extract_strided_slice %1 {offsets = [0, 0, 128], sizes = [8, 8, 128], strides = [1, 1, 1]} : vector<8x8x384xf32> to vector<8x8x128xf32>
    %6 = vector.extract_strided_slice %1 {offsets = [0, 0, 256], sizes = [8, 8, 128], strides = [1, 1, 1]} : vector<8x8x384xf32> to vector<8x8x128xf32>
    %7 = arith.subf %5, %3 : vector<8x8x128xf32>
    %c1 = arith.constant 1 : index
    %c1_7 = arith.constant 1 : index
    %c0_8 = arith.constant 0 : index
    %8 = vector.load %arg10[%c1, %c1_7, %c0_8] : memref<10x10x256xf32, #tpu.memory_space<vmem>>, vector<8x8x128xf32>
    tpu.vector_store %arg10[%c1, %c1_7, %c0_8], %7 {strides = array<i32>} : memref<10x10x256xf32, #tpu.memory_space<vmem>>, vector<8x8x128xf32>,
    %c1_9 = arith.constant 1 : index
    %c1_10 = arith.constant 1 : index
    %c128 = arith.constant 128 : index
    %9 = vector.load %arg10[%c1_9, %c1_10, %c128] : memref<10x10x256xf32, #tpu.memory_space<vmem>>, vector<8x8x128xf32>
    tpu.vector_store %arg10[%c1_9, %c1_10, %c128], %6 {strides = array<i32>} : memref<10x10x256xf32, #tpu.memory_space<vmem>>, vector<8x8x128xf32>,
    %c1_11 = arith.constant 1 : index
    %c2 = arith.constant 2 : index
    %c0_12 = arith.constant 0 : index
    %10 = vector.load %arg10[%c1_11, %c2, %c0_12] : memref<10x10x256xf32, #tpu.memory_space<vmem>>, vector<8x1x256xf32>
    %c1_13 = arith.constant 1 : index
    %c0_14 = arith.constant 0 : index
    %c0_15 = arith.constant 0 : index
    %11 = vector.load %arg10[%c1_13, %c0_14, %c0_15] : memref<10x10x256xf32, #tpu.memory_space<vmem>>, vector<8x1x256xf32>
    tpu.vector_store %arg10[%c1_13, %c0_14, %c0_15], %10 {strides = array<i32>} : memref<10x10x256xf32, #tpu.memory_space<vmem>>, vector<8x1x256xf32>,
    %c1_16 = arith.constant 1 : index
    %c7 = arith.constant 7 : index
    %c0_17 = arith.constant 0 : index
    %12 = vector.load %arg10[%c1_16, %c7, %c0_17] : memref<10x10x256xf32, #tpu.memory_space<vmem>>, vector<8x1x256xf32>
    %c1_18 = arith.constant 1 : index
    %c9 = arith.constant 9 : index
    %c0_19 = arith.constant 0 : index
    %13 = vector.load %arg10[%c1_18, %c9, %c0_19] : memref<10x10x256xf32, #tpu.memory_space<vmem>>, vector<8x1x256xf32>
    tpu.vector_store %arg10[%c1_18, %c9, %c0_19], %12 {strides = array<i32>} : memref<10x10x256xf32, #tpu.memory_space<vmem>>, vector<8x1x256xf32>,
    %c2_20 = arith.constant 2 : index
    %c0_21 = arith.constant 0 : index
    %c0_22 = arith.constant 0 : index
    %14 = vector.load %arg10[%c2_20, %c0_21, %c0_22] : memref<10x10x256xf32, #tpu.memory_space<vmem>>, vector<1x10x256xf32>
    %c0_23 = arith.constant 0 : index
    %c0_24 = arith.constant 0 : index
    %c0_25 = arith.constant 0 : index
    %15 = vector.load %arg10[%c0_23, %c0_24, %c0_25] : memref<10x10x256xf32, #tpu.memory_space<vmem>>, vector<1x10x256xf32>
    tpu.vector_store %arg10[%c0_23, %c0_24, %c0_25], %14 {strides = array<i32>} : memref<10x10x256xf32, #tpu.memory_space<vmem>>, vector<1x10x256xf32>,
    %c7_26 = arith.constant 7 : index
    %c0_27 = arith.constant 0 : index
    %c0_28 = arith.constant 0 : index
    %16 = vector.load %arg10[%c7_26, %c0_27, %c0_28] : memref<10x10x256xf32, #tpu.memory_space<vmem>>, vector<1x10x256xf32>
    %c9_29 = arith.constant 9 : index
    %c0_30 = arith.constant 0 : index
    %c0_31 = arith.constant 0 : index
    %17 = vector.load %arg10[%c9_29, %c0_30, %c0_31] : memref<10x10x256xf32, #tpu.memory_space<vmem>>, vector<1x10x256xf32>
    tpu.vector_store %arg10[%c9_29, %c0_30, %c0_31], %16 {strides = array<i32>} : memref<10x10x256xf32, #tpu.memory_space<vmem>>, vector<1x10x256xf32>,
    %cst = arith.constant 0.000000e+00 : f32
    %18 = vector.broadcast %cst : f32 to vector<10x10x384xf32>
    %c0_32 = arith.constant 0 : index
    %c0_33 = arith.constant 0 : index
    %c0_34 = arith.constant 0 : index
    %19 = vector.load %arg11[%c0_32, %c0_33, %c0_34] : memref<10x10x384xf32, #tpu.memory_space<vmem>>, vector<10x10x384xf32>
    tpu.vector_store %arg11[%c0_32, %c0_33, %c0_34], %18 {strides = array<i32>} : memref<10x10x384xf32, #tpu.memory_space<vmem>>, vector<10x10x384xf32>,
    %c1_35 = arith.constant 1 : index
    %c1_36 = arith.constant 1 : index
    %c0_37 = arith.constant 0 : index
    %20 = vector.load %arg11[%c1_35, %c1_36, %c0_37] : memref<10x10x384xf32, #tpu.memory_space<vmem>>, vector<8x8x384xf32>
    tpu.vector_store %arg11[%c1_35, %c1_36, %c0_37], %1 {strides = array<i32>} : memref<10x10x384xf32, #tpu.memory_space<vmem>>, vector<8x8x384xf32>,
    %cst_38 = arith.constant 1.250000e-01 : f32
    %21 = vector.broadcast %cst_38 : f32 to vector<8x8x128xf32>
    %22 = arith.mulf %4, %21 : vector<8x8x128xf32>
    %23 = vector.shape_cast %22 : vector<8x8x128xf32> to vector<64x128xf32>
    %cst_39 = arith.constant 0.000000e+00 : f32
    %24 = vector.broadcast %cst_39 : f32 to vector<64x18xf32>
    %c0_40 = arith.constant 0 : index
    %c0_41 = arith.constant 0 : index
    %c0_42 = arith.constant 0 : index
    %25 = vector.load %arg10[%c0_40, %c0_41, %c0_42] : memref<10x10x256xf32, #tpu.memory_space<vmem>>, vector<8x8x128xf32>
    %26 = vector.shape_cast %25 : vector<8x8x128xf32> to vector<64x128xf32>
    %27 = arith.mulf %23, %26 : vector<64x128xf32>
    %c0_43 = arith.constant 0 : index
    %c0_44 = arith.constant 0 : index
    %c0_45 = arith.constant 0 : index
    %28 = vector.load %arg3[%c0_43, %c0_44, %c0_45] : memref<9x128x18xf32, #tpu.memory_space<vmem>>, vector<1x128x18xf32>
    %29 = vector.shape_cast %28 : vector<1x128x18xf32> to vector<128x18xf32>
    %cst_46 = arith.constant dense<0.000000e+00> : vector<64x18xf32>
    %30 = tpu.matmul %27, %29, %cst_46 {dimension_numbers = #tpu.dot_dimension_numbers<[1], [0], [0], [1], [0, 0, 1, 1], [], []>} : vector<64x128xf32>, vector<128x18xf32>, vector<64x18xf32> -> vector<64x18xf32>
    %31 = arith.addf %24, %30 : vector<64x18xf32>
    %c0_47 = arith.constant 0 : index
    %c1_48 = arith.constant 1 : index
    %c0_49 = arith.constant 0 : index
    %32 = vector.load %arg10[%c0_47, %c1_48, %c0_49] : memref<10x10x256xf32, #tpu.memory_space<vmem>>, vector<8x8x128xf32>
    %33 = vector.shape_cast %32 : vector<8x8x128xf32> to vector<64x128xf32>
    %34 = arith.mulf %23, %33 : vector<64x128xf32>
    %c1_50 = arith.constant 1 : index
    %c0_51 = arith.constant 0 : index
    %c0_52 = arith.constant 0 : index
    %35 = vector.load %arg3[%c1_50, %c0_51, %c0_52] : memref<9x128x18xf32, #tpu.memory_space<vmem>>, vector<1x128x18xf32>
    %36 = vector.shape_cast %35 : vector<1x128x18xf32> to vector<128x18xf32>
    %cst_53 = arith.constant dense<0.000000e+00> : vector<64x18xf32>
    %37 = tpu.matmul %34, %36, %cst_53 {dimension_numbers = #tpu.dot_dimension_numbers<[1], [0], [0], [1], [0, 0, 1, 1], [], []>} : vector<64x128xf32>, vector<128x18xf32>, vector<64x18xf32> -> vector<64x18xf32>
    %38 = arith.addf %31, %37 : vector<64x18xf32>
    %c0_54 = arith.constant 0 : index
    %c2_55 = arith.constant 2 : index
    %c0_56 = arith.constant 0 : index
    %39 = vector.load %arg10[%c0_54, %c2_55, %c0_56] : memref<10x10x256xf32, #tpu.memory_space<vmem>>, vector<8x8x128xf32>
    %40 = vector.shape_cast %39 : vector<8x8x128xf32> to vector<64x128xf32>
    %41 = arith.mulf %23, %40 : vector<64x128xf32>
    %c2_57 = arith.constant 2 : index
    %c0_58 = arith.constant 0 : index
    %c0_59 = arith.constant 0 : index
    %42 = vector.load %arg3[%c2_57, %c0_58, %c0_59] : memref<9x128x18xf32, #tpu.memory_space<vmem>>, vector<1x128x18xf32>
    %43 = vector.shape_cast %42 : vector<1x128x18xf32> to vector<128x18xf32>
    %cst_60 = arith.constant dense<0.000000e+00> : vector<64x18xf32>
    %44 = tpu.matmul %41, %43, %cst_60 {dimension_numbers = #tpu.dot_dimension_numbers<[1], [0], [0], [1], [0, 0, 1, 1], [], []>} : vector<64x128xf32>, vector<128x18xf32>, vector<64x18xf32> -> vector<64x18xf32>
    %45 = arith.addf %38, %44 : vector<64x18xf32>
    %c1_61 = arith.constant 1 : index
    %c0_62 = arith.constant 0 : index
    %c0_63 = arith.constant 0 : index
    %46 = vector.load %arg10[%c1_61, %c0_62, %c0_63] : memref<10x10x256xf32, #tpu.memory_space<vmem>>, vector<8x8x128xf32>
    %47 = vector.shape_cast %46 : vector<8x8x128xf32> to vector<64x128xf32>
    %48 = arith.mulf %23, %47 : vector<64x128xf32>
    %c3 = arith.constant 3 : index
    %c0_64 = arith.constant 0 : index
    %c0_65 = arith.constant 0 : index
    %49 = vector.load %arg3[%c3, %c0_64, %c0_65] : memref<9x128x18xf32, #tpu.memory_space<vmem>>, vector<1x128x18xf32>
    %50 = vector.shape_cast %49 : vector<1x128x18xf32> to vector<128x18xf32>
    %cst_66 = arith.constant dense<0.000000e+00> : vector<64x18xf32>
    %51 = tpu.matmul %48, %50, %cst_66 {dimension_numbers = #tpu.dot_dimension_numbers<[1], [0], [0], [1], [0, 0, 1, 1], [], []>} : vector<64x128xf32>, vector<128x18xf32>, vector<64x18xf32> -> vector<64x18xf32>
    %52 = arith.addf %45, %51 : vector<64x18xf32>
    %c1_67 = arith.constant 1 : index
    %c1_68 = arith.constant 1 : index
    %c0_69 = arith.constant 0 : index
    %53 = vector.load %arg10[%c1_67, %c1_68, %c0_69] : memref<10x10x256xf32, #tpu.memory_space<vmem>>, vector<8x8x128xf32>
    %54 = vector.shape_cast %53 : vector<8x8x128xf32> to vector<64x128xf32>
    %55 = arith.mulf %23, %54 : vector<64x128xf32>
    %c4 = arith.constant 4 : index
    %c0_70 = arith.constant 0 : index
    %c0_71 = arith.constant 0 : index
    %56 = vector.load %arg3[%c4, %c0_70, %c0_71] : memref<9x128x18xf32, #tpu.memory_space<vmem>>, vector<1x128x18xf32>
    %57 = vector.shape_cast %56 : vector<1x128x18xf32> to vector<128x18xf32>
    %cst_72 = arith.constant dense<0.000000e+00> : vector<64x18xf32>
    %58 = tpu.matmul %55, %57, %cst_72 {dimension_numbers = #tpu.dot_dimension_numbers<[1], [0], [0], [1], [0, 0, 1, 1], [], []>} : vector<64x128xf32>, vector<128x18xf32>, vector<64x18xf32> -> vector<64x18xf32>
    %59 = arith.addf %52, %58 : vector<64x18xf32>
    %c1_73 = arith.constant 1 : index
    %c2_74 = arith.constant 2 : index
    %c0_75 = arith.constant 0 : index
    %60 = vector.load %arg10[%c1_73, %c2_74, %c0_75] : memref<10x10x256xf32, #tpu.memory_space<vmem>>, vector<8x8x128xf32>
    %61 = vector.shape_cast %60 : vector<8x8x128xf32> to vector<64x128xf32>
    %62 = arith.mulf %23, %61 : vector<64x128xf32>
    %c5 = arith.constant 5 : index
    %c0_76 = arith.constant 0 : index
    %c0_77 = arith.constant 0 : index
    %63 = vector.load %arg3[%c5, %c0_76, %c0_77] : memref<9x128x18xf32, #tpu.memory_space<vmem>>, vector<1x128x18xf32>
    %64 = vector.shape_cast %63 : vector<1x128x18xf32> to vector<128x18xf32>
    %cst_78 = arith.constant dense<0.000000e+00> : vector<64x18xf32>
    %65 = tpu.matmul %62, %64, %cst_78 {dimension_numbers = #tpu.dot_dimension_numbers<[1], [0], [0], [1], [0, 0, 1, 1], [], []>} : vector<64x128xf32>, vector<128x18xf32>, vector<64x18xf32> -> vector<64x18xf32>
    %66 = arith.addf %59, %65 : vector<64x18xf32>
    %c2_79 = arith.constant 2 : index
    %c0_80 = arith.constant 0 : index
    %c0_81 = arith.constant 0 : index
    %67 = vector.load %arg10[%c2_79, %c0_80, %c0_81] : memref<10x10x256xf32, #tpu.memory_space<vmem>>, vector<8x8x128xf32>
    %68 = vector.shape_cast %67 : vector<8x8x128xf32> to vector<64x128xf32>
    %69 = arith.mulf %23, %68 : vector<64x128xf32>
    %c6 = arith.constant 6 : index
    %c0_82 = arith.constant 0 : index
    %c0_83 = arith.constant 0 : index
    %70 = vector.load %arg3[%c6, %c0_82, %c0_83] : memref<9x128x18xf32, #tpu.memory_space<vmem>>, vector<1x128x18xf32>
    %71 = vector.shape_cast %70 : vector<1x128x18xf32> to vector<128x18xf32>
    %cst_84 = arith.constant dense<0.000000e+00> : vector<64x18xf32>
    %72 = tpu.matmul %69, %71, %cst_84 {dimension_numbers = #tpu.dot_dimension_numbers<[1], [0], [0], [1], [0, 0, 1, 1], [], []>} : vector<64x128xf32>, vector<128x18xf32>, vector<64x18xf32> -> vector<64x18xf32>
    %73 = arith.addf %66, %72 : vector<64x18xf32>
    %c2_85 = arith.constant 2 : index
    %c1_86 = arith.constant 1 : index
    %c0_87 = arith.constant 0 : index
    %74 = vector.load %arg10[%c2_85, %c1_86, %c0_87] : memref<10x10x256xf32, #tpu.memory_space<vmem>>, vector<8x8x128xf32>
    %75 = vector.shape_cast %74 : vector<8x8x128xf32> to vector<64x128xf32>
    %76 = arith.mulf %23, %75 : vector<64x128xf32>
    %c7_88 = arith.constant 7 : index
    %c0_89 = arith.constant 0 : index
    %c0_90 = arith.constant 0 : index
    %77 = vector.load %arg3[%c7_88, %c0_89, %c0_90] : memref<9x128x18xf32, #tpu.memory_space<vmem>>, vector<1x128x18xf32>
    %78 = vector.shape_cast %77 : vector<1x128x18xf32> to vector<128x18xf32>
    %cst_91 = arith.constant dense<0.000000e+00> : vector<64x18xf32>
    %79 = tpu.matmul %76, %78, %cst_91 {dimension_numbers = #tpu.dot_dimension_numbers<[1], [0], [0], [1], [0, 0, 1, 1], [], []>} : vector<64x128xf32>, vector<128x18xf32>, vector<64x18xf32> -> vector<64x18xf32>
    %80 = arith.addf %73, %79 : vector<64x18xf32>
    %c2_92 = arith.constant 2 : index
    %c2_93 = arith.constant 2 : index
    %c0_94 = arith.constant 0 : index
    %81 = vector.load %arg10[%c2_92, %c2_93, %c0_94] : memref<10x10x256xf32, #tpu.memory_space<vmem>>, vector<8x8x128xf32>
    %82 = vector.shape_cast %81 : vector<8x8x128xf32> to vector<64x128xf32>
    %83 = arith.mulf %23, %82 : vector<64x128xf32>
    %c8 = arith.constant 8 : index
    %c0_95 = arith.constant 0 : index
    %c0_96 = arith.constant 0 : index
    %84 = vector.load %arg3[%c8, %c0_95, %c0_96] : memref<9x128x18xf32, #tpu.memory_space<vmem>>, vector<1x128x18xf32>
    %85 = vector.shape_cast %84 : vector<1x128x18xf32> to vector<128x18xf32>
    %cst_97 = arith.constant dense<0.000000e+00> : vector<64x18xf32>
    %86 = tpu.matmul %83, %85, %cst_97 {dimension_numbers = #tpu.dot_dimension_numbers<[1], [0], [0], [1], [0, 0, 1, 1], [], []>} : vector<64x128xf32>, vector<128x18xf32>, vector<64x18xf32> -> vector<64x18xf32>
    %87 = arith.addf %80, %86 : vector<64x18xf32>
    %cst_98 = arith.constant dense<0xFF800000> : vector<64xf32>
    %88 = vector.multi_reduction <maximumf>, %87, %cst_98 [1] : vector<64x18xf32> to vector<64xf32>
    %89 = vector.shape_cast %88 : vector<64xf32> to vector<64x1xf32>
    %90 = vector.broadcast %89 : vector<64x1xf32> to vector<64x18xf32>
    %91 = arith.subf %87, %90 : vector<64x18xf32>
    %92 = math.exp %91 : vector<64x18xf32>
    %c0_99 = arith.constant 0 : index
    %c0_100 = arith.constant 0 : index
    %93 = vector.load %arg5[%c0_99, %c0_100] : memref<18x2xf32, #tpu.memory_space<vmem>>, vector<18x2xf32>
    %cst_101 = arith.constant dense<0.000000e+00> : vector<64x2xf32>
    %94 = tpu.matmul %92, %93, %cst_101 {dimension_numbers = #tpu.dot_dimension_numbers<[1], [0], [0], [1], [0, 0, 1, 1], [], []>} : vector<64x18xf32>, vector<18x2xf32>, vector<64x2xf32> -> vector<64x2xf32>
    %95 = tpu.reciprocal %94 {approx = true} : vector<64x2xf32> -> vector<64x2xf32>
    %c0_102 = arith.constant 0 : index
    %c0_103 = arith.constant 0 : index
    %96 = vector.load %arg6[%c0_102, %c0_103] : memref<2x128xf32, #tpu.memory_space<vmem>>, vector<2x128xf32>
    %cst_104 = arith.constant dense<0.000000e+00> : vector<64x128xf32>
    %97 = tpu.matmul %95, %96, %cst_104 {dimension_numbers = #tpu.dot_dimension_numbers<[1], [0], [0], [1], [0, 0, 1, 1], [], []>} : vector<64x2xf32>, vector<2x128xf32>, vector<64x128xf32> -> vector<64x128xf32>
    %cst_105 = arith.constant 0.000000e+00 : f32
    %98 = vector.broadcast %cst_105 : f32 to vector<64x128xf32>
    %cst_106 = arith.constant 0.000000e+00 : f32
    %99 = vector.broadcast %cst_106 : f32 to vector<64x128xf32>
    %c0_107 = arith.constant 0 : index
    %c0_108 = arith.constant 0 : index
    %100 = vector.load %arg8[%c0_107, %c0_108] : memref<1x128xf32, #tpu.memory_space<vmem>>, vector<1x128xf32>
    %101 = vector.broadcast %100 : vector<1x128xf32> to vector<64x128xf32>
    %102 = arith.addf %99, %101 : vector<64x128xf32>
    %c0_109 = arith.constant 0 : index
    %c0_110 = arith.constant 0 : index
    %c0_111 = arith.constant 0 : index
    %103 = vector.load %arg4[%c0_109, %c0_110, %c0_111] : memref<9x18x128xf32, #tpu.memory_space<vmem>>, vector<1x18x128xf32>
    %104 = vector.shape_cast %103 : vector<1x18x128xf32> to vector<18x128xf32>
    %cst_112 = arith.constant dense<0.000000e+00> : vector<64x128xf32>
    %105 = tpu.matmul %92, %104, %cst_112 {dimension_numbers = #tpu.dot_dimension_numbers<[1], [0], [0], [1], [0, 0, 1, 1], [], []>} : vector<64x18xf32>, vector<18x128xf32>, vector<64x128xf32> -> vector<64x128xf32>
    %c0_113 = arith.constant 0 : index
    %c0_114 = arith.constant 0 : index
    %c128_115 = arith.constant 128 : index
    %106 = vector.load %arg10[%c0_113, %c0_114, %c128_115] : memref<10x10x256xf32, #tpu.memory_space<vmem>>, vector<8x8x128xf32>
    %107 = vector.shape_cast %106 : vector<8x8x128xf32> to vector<64x128xf32>
    %108 = arith.mulf %105, %107 : vector<64x128xf32>
    %109 = arith.addf %98, %108 : vector<64x128xf32>
    %c0_116 = arith.constant 0 : index
    %c0_117 = arith.constant 0 : index
    %c0_118 = arith.constant 0 : index
    %110 = vector.load %arg11[%c0_116, %c0_117, %c0_118] : memref<10x10x384xf32, #tpu.memory_space<vmem>>, vector<8x8x384xf32>
    %111 = vector.shape_cast %110 : vector<8x8x384xf32> to vector<64x384xf32>
    %112 = arith.truncf %111 : vector<64x384xf32> to vector<64x384xbf16>
    %c0_119 = arith.constant 0 : index
    %c0_120 = arith.constant 0 : index
    %c0_121 = arith.constant 0 : index
    %113 = vector.load %arg7[%c0_119, %c0_120, %c0_121] : memref<9x384x128xbf16, #tpu.memory_space<vmem>>, vector<1x384x128xbf16>
    %114 = vector.shape_cast %113 : vector<1x384x128xbf16> to vector<384x128xbf16>
    %cst_122 = arith.constant dense<0.000000e+00> : vector<64x128xf32>
    %115 = tpu.matmul %112, %114, %cst_122 {dimension_numbers = #tpu.dot_dimension_numbers<[1], [0], [0], [1], [0, 0, 1, 1], [], []>} : vector<64x384xbf16>, vector<384x128xbf16>, vector<64x128xf32> -> vector<64x128xf32>
    %116 = arith.addf %102, %115 : vector<64x128xf32>
    %c1_123 = arith.constant 1 : index
    %c0_124 = arith.constant 0 : index
    %c0_125 = arith.constant 0 : index
    %117 = vector.load %arg4[%c1_123, %c0_124, %c0_125] : memref<9x18x128xf32, #tpu.memory_space<vmem>>, vector<1x18x128xf32>
    %118 = vector.shape_cast %117 : vector<1x18x128xf32> to vector<18x128xf32>
    %cst_126 = arith.constant dense<0.000000e+00> : vector<64x128xf32>
    %119 = tpu.matmul %92, %118, %cst_126 {dimension_numbers = #tpu.dot_dimension_numbers<[1], [0], [0], [1], [0, 0, 1, 1], [], []>} : vector<64x18xf32>, vector<18x128xf32>, vector<64x128xf32> -> vector<64x128xf32>
    %c0_127 = arith.constant 0 : index
    %c1_128 = arith.constant 1 : index
    %c128_129 = arith.constant 128 : index
    %120 = vector.load %arg10[%c0_127, %c1_128, %c128_129] : memref<10x10x256xf32, #tpu.memory_space<vmem>>, vector<8x8x128xf32>
    %121 = vector.shape_cast %120 : vector<8x8x128xf32> to vector<64x128xf32>
    %122 = arith.mulf %119, %121 : vector<64x128xf32>
    %123 = arith.addf %109, %122 : vector<64x128xf32>
    %c0_130 = arith.constant 0 : index
    %c1_131 = arith.constant 1 : index
    %c0_132 = arith.constant 0 : index
    %124 = vector.load %arg11[%c0_130, %c1_131, %c0_132] : memref<10x10x384xf32, #tpu.memory_space<vmem>>, vector<8x8x384xf32>
    %125 = vector.shape_cast %124 : vector<8x8x384xf32> to vector<64x384xf32>
    %126 = arith.truncf %125 : vector<64x384xf32> to vector<64x384xbf16>
    %c1_133 = arith.constant 1 : index
    %c0_134 = arith.constant 0 : index
    %c0_135 = arith.constant 0 : index
    %127 = vector.load %arg7[%c1_133, %c0_134, %c0_135] : memref<9x384x128xbf16, #tpu.memory_space<vmem>>, vector<1x384x128xbf16>
    %128 = vector.shape_cast %127 : vector<1x384x128xbf16> to vector<384x128xbf16>
    %cst_136 = arith.constant dense<0.000000e+00> : vector<64x128xf32>
    %129 = tpu.matmul %126, %128, %cst_136 {dimension_numbers = #tpu.dot_dimension_numbers<[1], [0], [0], [1], [0, 0, 1, 1], [], []>} : vector<64x384xbf16>, vector<384x128xbf16>, vector<64x128xf32> -> vector<64x128xf32>
    %130 = arith.addf %116, %129 : vector<64x128xf32>
    %c2_137 = arith.constant 2 : index
    %c0_138 = arith.constant 0 : index
    %c0_139 = arith.constant 0 : index
    %131 = vector.load %arg4[%c2_137, %c0_138, %c0_139] : memref<9x18x128xf32, #tpu.memory_space<vmem>>, vector<1x18x128xf32>
    %132 = vector.shape_cast %131 : vector<1x18x128xf32> to vector<18x128xf32>
    %cst_140 = arith.constant dense<0.000000e+00> : vector<64x128xf32>
    %133 = tpu.matmul %92, %132, %cst_140 {dimension_numbers = #tpu.dot_dimension_numbers<[1], [0], [0], [1], [0, 0, 1, 1], [], []>} : vector<64x18xf32>, vector<18x128xf32>, vector<64x128xf32> -> vector<64x128xf32>
    %c0_141 = arith.constant 0 : index
    %c2_142 = arith.constant 2 : index
    %c128_143 = arith.constant 128 : index
    %134 = vector.load %arg10[%c0_141, %c2_142, %c128_143] : memref<10x10x256xf32, #tpu.memory_space<vmem>>, vector<8x8x128xf32>
    %135 = vector.shape_cast %134 : vector<8x8x128xf32> to vector<64x128xf32>
    %136 = arith.mulf %133, %135 : vector<64x128xf32>
    %137 = arith.addf %123, %136 : vector<64x128xf32>
    %c0_144 = arith.constant 0 : index
    %c2_145 = arith.constant 2 : index
    %c0_146 = arith.constant 0 : index
    %138 = vector.load %arg11[%c0_144, %c2_145, %c0_146] : memref<10x10x384xf32, #tpu.memory_space<vmem>>, vector<8x8x384xf32>
    %139 = vector.shape_cast %138 : vector<8x8x384xf32> to vector<64x384xf32>
    %140 = arith.truncf %139 : vector<64x384xf32> to vector<64x384xbf16>
    %c2_147 = arith.constant 2 : index
    %c0_148 = arith.constant 0 : index
    %c0_149 = arith.constant 0 : index
    %141 = vector.load %arg7[%c2_147, %c0_148, %c0_149] : memref<9x384x128xbf16, #tpu.memory_space<vmem>>, vector<1x384x128xbf16>
    %142 = vector.shape_cast %141 : vector<1x384x128xbf16> to vector<384x128xbf16>
    %cst_150 = arith.constant dense<0.000000e+00> : vector<64x128xf32>
    %143 = tpu.matmul %140, %142, %cst_150 {dimension_numbers = #tpu.dot_dimension_numbers<[1], [0], [0], [1], [0, 0, 1, 1], [], []>} : vector<64x384xbf16>, vector<384x128xbf16>, vector<64x128xf32> -> vector<64x128xf32>
    %144 = arith.addf %130, %143 : vector<64x128xf32>
    %c3_151 = arith.constant 3 : index
    %c0_152 = arith.constant 0 : index
    %c0_153 = arith.constant 0 : index
    %145 = vector.load %arg4[%c3_151, %c0_152, %c0_153] : memref<9x18x128xf32, #tpu.memory_space<vmem>>, vector<1x18x128xf32>
    %146 = vector.shape_cast %145 : vector<1x18x128xf32> to vector<18x128xf32>
    %cst_154 = arith.constant dense<0.000000e+00> : vector<64x128xf32>
    %147 = tpu.matmul %92, %146, %cst_154 {dimension_numbers = #tpu.dot_dimension_numbers<[1], [0], [0], [1], [0, 0, 1, 1], [], []>} : vector<64x18xf32>, vector<18x128xf32>, vector<64x128xf32> -> vector<64x128xf32>
    %c1_155 = arith.constant 1 : index
    %c0_156 = arith.constant 0 : index
    %c128_157 = arith.constant 128 : index
    %148 = vector.load %arg10[%c1_155, %c0_156, %c128_157] : memref<10x10x256xf32, #tpu.memory_space<vmem>>, vector<8x8x128xf32>
    %149 = vector.shape_cast %148 : vector<8x8x128xf32> to vector<64x128xf32>
    %150 = arith.mulf %147, %149 : vector<64x128xf32>
    %151 = arith.addf %137, %150 : vector<64x128xf32>
    %c1_158 = arith.constant 1 : index
    %c0_159 = arith.constant 0 : index
    %c0_160 = arith.constant 0 : index
    %152 = vector.load %arg11[%c1_158, %c0_159, %c0_160] : memref<10x10x384xf32, #tpu.memory_space<vmem>>, vector<8x8x384xf32>
    %153 = vector.shape_cast %152 : vector<8x8x384xf32> to vector<64x384xf32>
    %154 = arith.truncf %153 : vector<64x384xf32> to vector<64x384xbf16>
    %c3_161 = arith.constant 3 : index
    %c0_162 = arith.constant 0 : index
    %c0_163 = arith.constant 0 : index
    %155 = vector.load %arg7[%c3_161, %c0_162, %c0_163] : memref<9x384x128xbf16, #tpu.memory_space<vmem>>, vector<1x384x128xbf16>
    %156 = vector.shape_cast %155 : vector<1x384x128xbf16> to vector<384x128xbf16>
    %cst_164 = arith.constant dense<0.000000e+00> : vector<64x128xf32>
    %157 = tpu.matmul %154, %156, %cst_164 {dimension_numbers = #tpu.dot_dimension_numbers<[1], [0], [0], [1], [0, 0, 1, 1], [], []>} : vector<64x384xbf16>, vector<384x128xbf16>, vector<64x128xf32> -> vector<64x128xf32>
    %158 = arith.addf %144, %157 : vector<64x128xf32>
    %c4_165 = arith.constant 4 : index
    %c0_166 = arith.constant 0 : index
    %c0_167 = arith.constant 0 : index
    %159 = vector.load %arg4[%c4_165, %c0_166, %c0_167] : memref<9x18x128xf32, #tpu.memory_space<vmem>>, vector<1x18x128xf32>
    %160 = vector.shape_cast %159 : vector<1x18x128xf32> to vector<18x128xf32>
    %cst_168 = arith.constant dense<0.000000e+00> : vector<64x128xf32>
    %161 = tpu.matmul %92, %160, %cst_168 {dimension_numbers = #tpu.dot_dimension_numbers<[1], [0], [0], [1], [0, 0, 1, 1], [], []>} : vector<64x18xf32>, vector<18x128xf32>, vector<64x128xf32> -> vector<64x128xf32>
    %c1_169 = arith.constant 1 : index
    %c1_170 = arith.constant 1 : index
    %c128_171 = arith.constant 128 : index
    %162 = vector.load %arg10[%c1_169, %c1_170, %c128_171] : memref<10x10x256xf32, #tpu.memory_space<vmem>>, vector<8x8x128xf32>
    %163 = vector.shape_cast %162 : vector<8x8x128xf32> to vector<64x128xf32>
    %164 = arith.mulf %161, %163 : vector<64x128xf32>
    %165 = arith.addf %151, %164 : vector<64x128xf32>
    %c1_172 = arith.constant 1 : index
    %c1_173 = arith.constant 1 : index
    %c0_174 = arith.constant 0 : index
    %166 = vector.load %arg11[%c1_172, %c1_173, %c0_174] : memref<10x10x384xf32, #tpu.memory_space<vmem>>, vector<8x8x384xf32>
    %167 = vector.shape_cast %166 : vector<8x8x384xf32> to vector<64x384xf32>
    %168 = arith.truncf %167 : vector<64x384xf32> to vector<64x384xbf16>
    %c4_175 = arith.constant 4 : index
    %c0_176 = arith.constant 0 : index
    %c0_177 = arith.constant 0 : index
    %169 = vector.load %arg7[%c4_175, %c0_176, %c0_177] : memref<9x384x128xbf16, #tpu.memory_space<vmem>>, vector<1x384x128xbf16>
    %170 = vector.shape_cast %169 : vector<1x384x128xbf16> to vector<384x128xbf16>
    %cst_178 = arith.constant dense<0.000000e+00> : vector<64x128xf32>
    %171 = tpu.matmul %168, %170, %cst_178 {dimension_numbers = #tpu.dot_dimension_numbers<[1], [0], [0], [1], [0, 0, 1, 1], [], []>} : vector<64x384xbf16>, vector<384x128xbf16>, vector<64x128xf32> -> vector<64x128xf32>
    %172 = arith.addf %158, %171 : vector<64x128xf32>
    %c5_179 = arith.constant 5 : index
    %c0_180 = arith.constant 0 : index
    %c0_181 = arith.constant 0 : index
    %173 = vector.load %arg4[%c5_179, %c0_180, %c0_181] : memref<9x18x128xf32, #tpu.memory_space<vmem>>, vector<1x18x128xf32>
    %174 = vector.shape_cast %173 : vector<1x18x128xf32> to vector<18x128xf32>
    %cst_182 = arith.constant dense<0.000000e+00> : vector<64x128xf32>
    %175 = tpu.matmul %92, %174, %cst_182 {dimension_numbers = #tpu.dot_dimension_numbers<[1], [0], [0], [1], [0, 0, 1, 1], [], []>} : vector<64x18xf32>, vector<18x128xf32>, vector<64x128xf32> -> vector<64x128xf32>
    %c1_183 = arith.constant 1 : index
    %c2_184 = arith.constant 2 : index
    %c128_185 = arith.constant 128 : index
    %176 = vector.load %arg10[%c1_183, %c2_184, %c128_185] : memref<10x10x256xf32, #tpu.memory_space<vmem>>, vector<8x8x128xf32>
    %177 = vector.shape_cast %176 : vector<8x8x128xf32> to vector<64x128xf32>
    %178 = arith.mulf %175, %177 : vector<64x128xf32>
    %179 = arith.addf %165, %178 : vector<64x128xf32>
    %c1_186 = arith.constant 1 : index
    %c2_187 = arith.constant 2 : index
    %c0_188 = arith.constant 0 : index
    %180 = vector.load %arg11[%c1_186, %c2_187, %c0_188] : memref<10x10x384xf32, #tpu.memory_space<vmem>>, vector<8x8x384xf32>
    %181 = vector.shape_cast %180 : vector<8x8x384xf32> to vector<64x384xf32>
    %182 = arith.truncf %181 : vector<64x384xf32> to vector<64x384xbf16>
    %c5_189 = arith.constant 5 : index
    %c0_190 = arith.constant 0 : index
    %c0_191 = arith.constant 0 : index
    %183 = vector.load %arg7[%c5_189, %c0_190, %c0_191] : memref<9x384x128xbf16, #tpu.memory_space<vmem>>, vector<1x384x128xbf16>
    %184 = vector.shape_cast %183 : vector<1x384x128xbf16> to vector<384x128xbf16>
    %cst_192 = arith.constant dense<0.000000e+00> : vector<64x128xf32>
    %185 = tpu.matmul %182, %184, %cst_192 {dimension_numbers = #tpu.dot_dimension_numbers<[1], [0], [0], [1], [0, 0, 1, 1], [], []>} : vector<64x384xbf16>, vector<384x128xbf16>, vector<64x128xf32> -> vector<64x128xf32>
    %186 = arith.addf %172, %185 : vector<64x128xf32>
    %c6_193 = arith.constant 6 : index
    %c0_194 = arith.constant 0 : index
    %c0_195 = arith.constant 0 : index
    %187 = vector.load %arg4[%c6_193, %c0_194, %c0_195] : memref<9x18x128xf32, #tpu.memory_space<vmem>>, vector<1x18x128xf32>
    %188 = vector.shape_cast %187 : vector<1x18x128xf32> to vector<18x128xf32>
    %cst_196 = arith.constant dense<0.000000e+00> : vector<64x128xf32>
    %189 = tpu.matmul %92, %188, %cst_196 {dimension_numbers = #tpu.dot_dimension_numbers<[1], [0], [0], [1], [0, 0, 1, 1], [], []>} : vector<64x18xf32>, vector<18x128xf32>, vector<64x128xf32> -> vector<64x128xf32>
    %c2_197 = arith.constant 2 : index
    %c0_198 = arith.constant 0 : index
    %c128_199 = arith.constant 128 : index
    %190 = vector.load %arg10[%c2_197, %c0_198, %c128_199] : memref<10x10x256xf32, #tpu.memory_space<vmem>>, vector<8x8x128xf32>
    %191 = vector.shape_cast %190 : vector<8x8x128xf32> to vector<64x128xf32>
    %192 = arith.mulf %189, %191 : vector<64x128xf32>
    %193 = arith.addf %179, %192 : vector<64x128xf32>
    %c2_200 = arith.constant 2 : index
    %c0_201 = arith.constant 0 : index
    %c0_202 = arith.constant 0 : index
    %194 = vector.load %arg11[%c2_200, %c0_201, %c0_202] : memref<10x10x384xf32, #tpu.memory_space<vmem>>, vector<8x8x384xf32>
    %195 = vector.shape_cast %194 : vector<8x8x384xf32> to vector<64x384xf32>
    %196 = arith.truncf %195 : vector<64x384xf32> to vector<64x384xbf16>
    %c6_203 = arith.constant 6 : index
    %c0_204 = arith.constant 0 : index
    %c0_205 = arith.constant 0 : index
    %197 = vector.load %arg7[%c6_203, %c0_204, %c0_205] : memref<9x384x128xbf16, #tpu.memory_space<vmem>>, vector<1x384x128xbf16>
    %198 = vector.shape_cast %197 : vector<1x384x128xbf16> to vector<384x128xbf16>
    %cst_206 = arith.constant dense<0.000000e+00> : vector<64x128xf32>
    %199 = tpu.matmul %196, %198, %cst_206 {dimension_numbers = #tpu.dot_dimension_numbers<[1], [0], [0], [1], [0, 0, 1, 1], [], []>} : vector<64x384xbf16>, vector<384x128xbf16>, vector<64x128xf32> -> vector<64x128xf32>
    %200 = arith.addf %186, %199 : vector<64x128xf32>
    %c7_207 = arith.constant 7 : index
    %c0_208 = arith.constant 0 : index
    %c0_209 = arith.constant 0 : index
    %201 = vector.load %arg4[%c7_207, %c0_208, %c0_209] : memref<9x18x128xf32, #tpu.memory_space<vmem>>, vector<1x18x128xf32>
    %202 = vector.shape_cast %201 : vector<1x18x128xf32> to vector<18x128xf32>
    %cst_210 = arith.constant dense<0.000000e+00> : vector<64x128xf32>
    %203 = tpu.matmul %92, %202, %cst_210 {dimension_numbers = #tpu.dot_dimension_numbers<[1], [0], [0], [1], [0, 0, 1, 1], [], []>} : vector<64x18xf32>, vector<18x128xf32>, vector<64x128xf32> -> vector<64x128xf32>
    %c2_211 = arith.constant 2 : index
    %c1_212 = arith.constant 1 : index
    %c128_213 = arith.constant 128 : index
    %204 = vector.load %arg10[%c2_211, %c1_212, %c128_213] : memref<10x10x256xf32, #tpu.memory_space<vmem>>, vector<8x8x128xf32>
    %205 = vector.shape_cast %204 : vector<8x8x128xf32> to vector<64x128xf32>
    %206 = arith.mulf %203, %205 : vector<64x128xf32>
    %207 = arith.addf %193, %206 : vector<64x128xf32>
    %c2_214 = arith.constant 2 : index
    %c1_215 = arith.constant 1 : index
    %c0_216 = arith.constant 0 : index
    %208 = vector.load %arg11[%c2_214, %c1_215, %c0_216] : memref<10x10x384xf32, #tpu.memory_space<vmem>>, vector<8x8x384xf32>
    %209 = vector.shape_cast %208 : vector<8x8x384xf32> to vector<64x384xf32>
    %210 = arith.truncf %209 : vector<64x384xf32> to vector<64x384xbf16>
    %c7_217 = arith.constant 7 : index
    %c0_218 = arith.constant 0 : index
    %c0_219 = arith.constant 0 : index
    %211 = vector.load %arg7[%c7_217, %c0_218, %c0_219] : memref<9x384x128xbf16, #tpu.memory_space<vmem>>, vector<1x384x128xbf16>
    %212 = vector.shape_cast %211 : vector<1x384x128xbf16> to vector<384x128xbf16>
    %cst_220 = arith.constant dense<0.000000e+00> : vector<64x128xf32>
    %213 = tpu.matmul %210, %212, %cst_220 {dimension_numbers = #tpu.dot_dimension_numbers<[1], [0], [0], [1], [0, 0, 1, 1], [], []>} : vector<64x384xbf16>, vector<384x128xbf16>, vector<64x128xf32> -> vector<64x128xf32>
    %214 = arith.addf %200, %213 : vector<64x128xf32>
    %c8_221 = arith.constant 8 : index
    %c0_222 = arith.constant 0 : index
    %c0_223 = arith.constant 0 : index
    %215 = vector.load %arg4[%c8_221, %c0_222, %c0_223] : memref<9x18x128xf32, #tpu.memory_space<vmem>>, vector<1x18x128xf32>
    %216 = vector.shape_cast %215 : vector<1x18x128xf32> to vector<18x128xf32>
    %cst_224 = arith.constant dense<0.000000e+00> : vector<64x128xf32>
    %217 = tpu.matmul %92, %216, %cst_224 {dimension_numbers = #tpu.dot_dimension_numbers<[1], [0], [0], [1], [0, 0, 1, 1], [], []>} : vector<64x18xf32>, vector<18x128xf32>, vector<64x128xf32> -> vector<64x128xf32>
    %c2_225 = arith.constant 2 : index
    %c2_226 = arith.constant 2 : index
    %c128_227 = arith.constant 128 : index
    %218 = vector.load %arg10[%c2_225, %c2_226, %c128_227] : memref<10x10x256xf32, #tpu.memory_space<vmem>>, vector<8x8x128xf32>
    %219 = vector.shape_cast %218 : vector<8x8x128xf32> to vector<64x128xf32>
    %220 = arith.mulf %217, %219 : vector<64x128xf32>
    %221 = arith.addf %207, %220 : vector<64x128xf32>
    %c2_228 = arith.constant 2 : index
    %c2_229 = arith.constant 2 : index
    %c0_230 = arith.constant 0 : index
    %222 = vector.load %arg11[%c2_228, %c2_229, %c0_230] : memref<10x10x384xf32, #tpu.memory_space<vmem>>, vector<8x8x384xf32>
    %223 = vector.shape_cast %222 : vector<8x8x384xf32> to vector<64x384xf32>
    %224 = arith.truncf %223 : vector<64x384xf32> to vector<64x384xbf16>
    %c8_231 = arith.constant 8 : index
    %c0_232 = arith.constant 0 : index
    %c0_233 = arith.constant 0 : index
    %225 = vector.load %arg7[%c8_231, %c0_232, %c0_233] : memref<9x384x128xbf16, #tpu.memory_space<vmem>>, vector<1x384x128xbf16>
    %226 = vector.shape_cast %225 : vector<1x384x128xbf16> to vector<384x128xbf16>
    %cst_234 = arith.constant dense<0.000000e+00> : vector<64x128xf32>
    %227 = tpu.matmul %224, %226, %cst_234 {dimension_numbers = #tpu.dot_dimension_numbers<[1], [0], [0], [1], [0, 0, 1, 1], [], []>} : vector<64x384xbf16>, vector<384x128xbf16>, vector<64x128xf32> -> vector<64x128xf32>
    %228 = arith.addf %214, %227 : vector<64x128xf32>
    %229 = arith.mulf %221, %97 : vector<64x128xf32>
    %230 = arith.addf %229, %228 : vector<64x128xf32>
    %231 = vector.shape_cast %230 : vector<64x128xf32> to vector<8x8x128xf32>
    %cst_235 = arith.constant 0.000000e+00 : f32
    %232 = vector.broadcast %cst_235 : f32 to vector<1x10x10x128xf32>
    %c0_236 = arith.constant 0 : index
    %c0_237 = arith.constant 0 : index
    %c0_238 = arith.constant 0 : index
    %c0_239 = arith.constant 0 : index
    %233 = vector.load %arg9[%c0_236, %c0_237, %c0_238, %c0_239] : memref<1x10x10x128xf32, #tpu.memory_space<vmem>>, vector<1x10x10x128xf32>
    tpu.vector_store %arg9[%c0_236, %c0_237, %c0_238, %c0_239], %232 {strides = array<i32>} : memref<1x10x10x128xf32, #tpu.memory_space<vmem>>, vector<1x10x10x128xf32>,
    %c0_240 = arith.constant 0 : index
    %c1_241 = arith.constant 1 : index
    %c1_242 = arith.constant 1 : index
    %c0_243 = arith.constant 0 : index
    %234 = vector.load %arg9[%c0_240, %c1_241, %c1_242, %c0_243] : memref<1x10x10x128xf32, #tpu.memory_space<vmem>>, vector<1x8x8x128xf32>
    %235 = vector.shape_cast %234 : vector<1x8x8x128xf32> to vector<8x8x128xf32>
    %236 = vector.shape_cast %231 : vector<8x8x128xf32> to vector<1x8x8x128xf32>
    tpu.vector_store %arg9[%c0_240, %c1_241, %c1_242, %c0_243], %236 {strides = array<i32>} : memref<1x10x10x128xf32, #tpu.memory_space<vmem>>, vector<1x8x8x128xf32>,
    return
  }
  func.func @transform_0(%arg0: i32) -> (i32, i32, i32, i32) {
    %c0_i32 = arith.constant 0 : i32
    %c0_i32_0 = arith.constant 0 : i32
    %c0_i32_1 = arith.constant 0 : i32
    %c0_i32_2 = arith.constant 0 : i32
    return %arg0, %c0_i32, %c0_i32_0, %c0_i32_1 : i32, i32, i32, i32
  }
  func.func @transform_1(%arg0: i32) -> (i32, i32, i32, i32) {
    %c0_i32 = arith.constant 0 : i32
    %c0_i32_0 = arith.constant 0 : i32
    %c0_i32_1 = arith.constant 0 : i32
    %c0_i32_2 = arith.constant 0 : i32
    %c0_i32_3 = arith.constant 0 : i32
    return %c0_i32, %c0_i32_0, %c0_i32_1, %c0_i32_2 : i32, i32, i32, i32
  }
  func.func @transform_2(%arg0: i32) -> (i32, i32, i32) {
    %c0_i32 = arith.constant 0 : i32
    %c0_i32_0 = arith.constant 0 : i32
    %c0_i32_1 = arith.constant 0 : i32
    %c0_i32_2 = arith.constant 0 : i32
    return %c0_i32, %c0_i32_0, %c0_i32_1 : i32, i32, i32
  }
  func.func @transform_3(%arg0: i32) -> (i32, i32, i32) {
    %c0_i32 = arith.constant 0 : i32
    %c0_i32_0 = arith.constant 0 : i32
    %c0_i32_1 = arith.constant 0 : i32
    %c0_i32_2 = arith.constant 0 : i32
    return %c0_i32, %c0_i32_0, %c0_i32_1 : i32, i32, i32
  }
  func.func @transform_4(%arg0: i32) -> (i32, i32) {
    %c0_i32 = arith.constant 0 : i32
    %c0_i32_0 = arith.constant 0 : i32
    %c0_i32_1 = arith.constant 0 : i32
    return %c0_i32, %c0_i32_0 : i32, i32
  }
  func.func @transform_5(%arg0: i32) -> (i32, i32) {
    %c0_i32 = arith.constant 0 : i32
    %c0_i32_0 = arith.constant 0 : i32
    %c0_i32_1 = arith.constant 0 : i32
    return %c0_i32, %c0_i32_0 : i32, i32
  }
  func.func @transform_6(%arg0: i32) -> (i32, i32, i32) {
    %c0_i32 = arith.constant 0 : i32
    %c0_i32_0 = arith.constant 0 : i32
    %c0_i32_1 = arith.constant 0 : i32
    %c0_i32_2 = arith.constant 0 : i32
    return %c0_i32, %c0_i32_0, %c0_i32_1 : i32, i32, i32
  }
  func.func @transform_7(%arg0: i32) -> (i32, i32) {
    %c0_i32 = arith.constant 0 : i32
    %c0_i32_0 = arith.constant 0 : i32
    %c0_i32_1 = arith.constant 0 : i32
    return %c0_i32, %c0_i32_0 : i32, i32
  }
  func.func @transform_8(%arg0: i32) -> (i32, i32, i32, i32) {
    %c0_i32 = arith.constant 0 : i32
    %c0_i32_0 = arith.constant 0 : i32
    %c0_i32_1 = arith.constant 0 : i32
    %c0_i32_2 = arith.constant 0 : i32
    return %arg0, %c0_i32, %c0_i32_0, %c0_i32_1 : i32, i32, i32, i32
  }
}

module attributes {stable_mosaic.version = 11 : i64} {
  func.func @_stream2_kernel(%arg0: i32, %arg1: memref<1x10x10x128xf32, #tpu.memory_space<vmem>>, %arg2: memref<1152x128xbf16, #tpu.memory_space<vmem>>, %arg3: memref<1x128xf32, #tpu.memory_space<vmem>>, %arg4: memref<1x7x7x128xf32, #tpu.memory_space<vmem>>) attributes {dimension_semantics = [#tpu.dimension_semantics<parallel>], iteration_bounds = array<i64: 2>, scalar_prefetch = 0 : i64, scratch_operands = 0 : i64, tpu.core_type = #tpu.core_type<tc>, window_params = [{transform_indices = @transform_0, window_bounds = array<i64: 1, 10, 10, 128>}, {pipeline_mode = #tpu.pipeline_mode<synchronous>, transform_indices = @transform_1, window_bounds = array<i64: 1152, 128>}, {pipeline_mode = #tpu.pipeline_mode<synchronous>, transform_indices = @transform_2, window_bounds = array<i64: 1, 128>}, {transform_indices = @transform_3, window_bounds = array<i64: 1, 7, 7, 128>}]} {
    %c0 = arith.constant 0 : index
    %c0_0 = arith.constant 0 : index
    %c0_1 = arith.constant 0 : index
    %c0_2 = arith.constant 0 : index
    %0 = vector.load %arg1[%c0, %c0_0, %c0_1, %c0_2] : memref<1x10x10x128xf32, #tpu.memory_space<vmem>>, vector<1x10x10x128xf32>
    %1 = arith.truncf %0 : vector<1x10x10x128xf32> to vector<1x10x10x128xbf16>
    %2 = vector.extract_strided_slice %1 {offsets = [0, 0, 0, 0], sizes = [1, 8, 8, 128], strides = [1, 1, 1, 1]} : vector<1x10x10x128xbf16> to vector<1x8x8x128xbf16>
    %3 = vector.extract_strided_slice %1 {offsets = [0, 0, 1, 0], sizes = [1, 8, 8, 128], strides = [1, 1, 1, 1]} : vector<1x10x10x128xbf16> to vector<1x8x8x128xbf16>
    %4 = vector.extract_strided_slice %1 {offsets = [0, 0, 2, 0], sizes = [1, 8, 8, 128], strides = [1, 1, 1, 1]} : vector<1x10x10x128xbf16> to vector<1x8x8x128xbf16>
    %5 = vector.extract_strided_slice %1 {offsets = [0, 1, 0, 0], sizes = [1, 8, 8, 128], strides = [1, 1, 1, 1]} : vector<1x10x10x128xbf16> to vector<1x8x8x128xbf16>
    %6 = vector.extract_strided_slice %1 {offsets = [0, 1, 1, 0], sizes = [1, 8, 8, 128], strides = [1, 1, 1, 1]} : vector<1x10x10x128xbf16> to vector<1x8x8x128xbf16>
    %7 = vector.extract_strided_slice %1 {offsets = [0, 1, 2, 0], sizes = [1, 8, 8, 128], strides = [1, 1, 1, 1]} : vector<1x10x10x128xbf16> to vector<1x8x8x128xbf16>
    %8 = vector.extract_strided_slice %1 {offsets = [0, 2, 0, 0], sizes = [1, 8, 8, 128], strides = [1, 1, 1, 1]} : vector<1x10x10x128xbf16> to vector<1x8x8x128xbf16>
    %9 = vector.extract_strided_slice %1 {offsets = [0, 2, 1, 0], sizes = [1, 8, 8, 128], strides = [1, 1, 1, 1]} : vector<1x10x10x128xbf16> to vector<1x8x8x128xbf16>
    %10 = vector.extract_strided_slice %1 {offsets = [0, 2, 2, 0], sizes = [1, 8, 8, 128], strides = [1, 1, 1, 1]} : vector<1x10x10x128xbf16> to vector<1x8x8x128xbf16>
    %11 = tpu.concatenate %2, %3, %4, %5, %6, %7, %8, %9, %10 in 3 : vector<1x8x8x128xbf16>, vector<1x8x8x128xbf16>, vector<1x8x8x128xbf16>, vector<1x8x8x128xbf16>, vector<1x8x8x128xbf16>, vector<1x8x8x128xbf16>, vector<1x8x8x128xbf16>, vector<1x8x8x128xbf16>, vector<1x8x8x128xbf16> -> vector<1x8x8x1152xbf16>
    %12 = vector.shape_cast %11 : vector<1x8x8x1152xbf16> to vector<64x1152xbf16>
    %c0_3 = arith.constant 0 : index
    %c0_4 = arith.constant 0 : index
    %13 = vector.load %arg2[%c0_3, %c0_4] : memref<1152x128xbf16, #tpu.memory_space<vmem>>, vector<1152x128xbf16>
    %cst = arith.constant dense<0.000000e+00> : vector<64x128xf32>
    %14 = tpu.matmul %12, %13, %cst {dimension_numbers = #tpu.dot_dimension_numbers<[1], [0], [0], [1], [0, 0, 1, 1], [], []>} : vector<64x1152xbf16>, vector<1152x128xbf16>, vector<64x128xf32> -> vector<64x128xf32>
    %c0_5 = arith.constant 0 : index
    %c0_6 = arith.constant 0 : index
    %15 = vector.load %arg3[%c0_5, %c0_6] : memref<1x128xf32, #tpu.memory_space<vmem>>, vector<1x128xf32>
    %16 = vector.broadcast %15 : vector<1x128xf32> to vector<64x128xf32>
    %17 = arith.addf %14, %16 : vector<64x128xf32>
    %cst_7 = arith.constant 0.000000e+00 : f32
    %18 = vector.broadcast %cst_7 : f32 to vector<64x128xf32>
    %19 = arith.maximumf %17, %18 : vector<64x128xf32>
    %20 = vector.shape_cast %19 : vector<64x128xf32> to vector<1x8x8x128xf32>
    %21 = vector.extract_strided_slice %20 {offsets = [0, 0, 0, 0], sizes = [1, 7, 7, 128], strides = [1, 1, 1, 1]} : vector<1x8x8x128xf32> to vector<1x7x7x128xf32>
    %22 = vector.extract_strided_slice %20 {offsets = [0, 0, 1, 0], sizes = [1, 7, 7, 128], strides = [1, 1, 1, 1]} : vector<1x8x8x128xf32> to vector<1x7x7x128xf32>
    %23 = arith.maximumf %21, %22 : vector<1x7x7x128xf32>
    %24 = vector.extract_strided_slice %20 {offsets = [0, 1, 0, 0], sizes = [1, 7, 7, 128], strides = [1, 1, 1, 1]} : vector<1x8x8x128xf32> to vector<1x7x7x128xf32>
    %25 = vector.extract_strided_slice %20 {offsets = [0, 1, 1, 0], sizes = [1, 7, 7, 128], strides = [1, 1, 1, 1]} : vector<1x8x8x128xf32> to vector<1x7x7x128xf32>
    %26 = arith.maximumf %24, %25 : vector<1x7x7x128xf32>
    %27 = arith.maximumf %23, %26 : vector<1x7x7x128xf32>
    %c0_8 = arith.constant 0 : index
    %c0_9 = arith.constant 0 : index
    %c0_10 = arith.constant 0 : index
    %c0_11 = arith.constant 0 : index
    %28 = vector.load %arg4[%c0_8, %c0_9, %c0_10, %c0_11] : memref<1x7x7x128xf32, #tpu.memory_space<vmem>>, vector<1x7x7x128xf32>
    tpu.vector_store %arg4[%c0_8, %c0_9, %c0_10, %c0_11], %27 {strides = array<i32>} : memref<1x7x7x128xf32, #tpu.memory_space<vmem>>, vector<1x7x7x128xf32>,
    return
  }
  func.func @transform_0(%arg0: i32) -> (i32, i32, i32, i32) {
    %c0_i32 = arith.constant 0 : i32
    %c0_i32_0 = arith.constant 0 : i32
    %c0_i32_1 = arith.constant 0 : i32
    %c0_i32_2 = arith.constant 0 : i32
    return %arg0, %c0_i32, %c0_i32_0, %c0_i32_1 : i32, i32, i32, i32
  }
  func.func @transform_1(%arg0: i32) -> (i32, i32) {
    %c0_i32 = arith.constant 0 : i32
    %c0_i32_0 = arith.constant 0 : i32
    %c0_i32_1 = arith.constant 0 : i32
    return %c0_i32, %c0_i32_0 : i32, i32
  }
  func.func @transform_2(%arg0: i32) -> (i32, i32) {
    %c0_i32 = arith.constant 0 : i32
    %c0_i32_0 = arith.constant 0 : i32
    %c0_i32_1 = arith.constant 0 : i32
    return %c0_i32, %c0_i32_0 : i32, i32
  }
  func.func @transform_3(%arg0: i32) -> (i32, i32, i32, i32) {
    %c0_i32 = arith.constant 0 : i32
    %c0_i32_0 = arith.constant 0 : i32
    %c0_i32_1 = arith.constant 0 : i32
    %c0_i32_2 = arith.constant 0 : i32
    return %arg0, %c0_i32, %c0_i32_0, %c0_i32_1 : i32, i32, i32, i32
  }
}

</mosaic_0001>

<llo_original>
// kernel: single_forward.3
$region0: #{single_forward.3}
  #allocation0 [shape = 'u32[]', space=smem, size = 0x4, offset = 0x4, fixed_abs, tag = 'smem constant byte address 0x4 - core index']
  #allocation1 [shape = 'u32[72,128]{1,0:T(1,128)}', space=vmem, size = 0x9000, scoped, tag = 'internal scratch']
  %s0 = inlined_call_operand.vmem [shape: bf16[128,512], index: 0, kind: input, shape index: {}]
  %s1 = inlined_call_operand.vmem [shape: bf16[512,384], index: 1, kind: input, shape index: {}]
  %s2 = inlined_call_operand.vmem [shape: f32[1,384], index: 2, kind: input, shape index: {}]
  %s3 = inlined_call_operand.vmem [shape: f32[128,384], index: 3, kind: output, shape index: {}]
  %s4 = sld [smem:[#allocation0]]
  $region45: #{single_forward.3} parent=0
    _
  %s6 = ssub.s32 1, %s4
  %s7 = scalar_select 0, %s6, %s4
  loop: start=0, step=1, limit=4
  $region2: #{single_forward.3} parent=0 // loop_pre_header
    _
  $region3: #{single_forward.3} parent=0 // loop_header
    %s9 = sphi 0, %s13
    %p10 = scmp.ge.s32.totalorder %s9, 4
    %s19 = sphi 0, %s21
    %s22 = sphi 0, %s19
    %s23 = sphi 0, %s22
    %s39 = sphi 0, %s23
    %s43 = sphi 0, %s43
    %s45 = sphi 0, %s43
    %s46 = sphi 0, %s45
    %s60 = sphi 0, %s46
    %s64 = sphi 0, %s64
    %s66 = sphi 0, %s64
    %s67 = sphi 0, %s66
    %s81 = sphi 0, %s67
    %s87 = sphi 0, %s89
    %s90 = sphi 0, %s87
    %s91 = sphi 0, %s90
    %s107 = sphi 0, %s91
  $region4: #{single_forward.3} parent=0 // loop_header_branch
    %12 = sbr.rel (%p10) target = $region8
  $region5: #{single_forward.3} parent=0 // loop_body
    %s14 = ssub.s32 %s9, 1
    %s15 = ssub.s32 %s9, 2
    %s16 = sadd.s32 %s9, 1
    %s17 = ssub.s32 %s9, %s16
    %p18 = scmp.eq.s32.totalorder %s17, 0
    %s20 = sadd.s32 %s19, 1
    %s21 = scalar_select %p18, %s19, %s20
    %p24 = pneg %p18
    %p25 = scmp.eq.s32.totalorder %s9, 1
    %p26 = por %p24, %p25
    %p27 = scmp.ne.s32.totalorder %s19, %s22
    %p28 = scmp.eq.s32.totalorder %s9, 0
    %p29 = por %p27, %p28
    %p30 = scmp.ne.s32.totalorder %s19, %s22
    %p31 = scmp.eq.s32.totalorder %s14, 1
    %p32 = por %p30, %p31
    %p33 = scmp.ne.s32.totalorder %s22, %s23
    %p34 = scmp.eq.s32.totalorder %s14, 0
    %p35 = por %p33, %p34
    %p36 = scmp.ne.s32.totalorder %s22, %s23
    %p37 = scmp.eq.s32.totalorder %s15, 1
    %p38 = por %p36, %p37
    %p40 = scmp.ne.s32.totalorder %s23, %s39
    %p41 = scmp.eq.s32.totalorder %s15, 0
    %p42 = por %p40, %p41
    %s44 = sadd.s32 %s43, 1
    %p47 = scmp.eq.s32.totalorder %s9, 1
    %p48 = scmp.ne.s32.totalorder %s43, %s45
    %p49 = scmp.eq.s32.totalorder %s9, 0
    %p50 = por %p48, %p49
    %p51 = scmp.ne.s32.totalorder %s43, %s45
    %p52 = scmp.eq.s32.totalorder %s14, 1
    %p53 = por %p51, %p52
    %p54 = scmp.ne.s32.totalorder %s45, %s46
    %p55 = scmp.eq.s32.totalorder %s14, 0
    %p56 = por %p54, %p55
    %p57 = scmp.ne.s32.totalorder %s45, %s46
    %p58 = scmp.eq.s32.totalorder %s15, 1
    %p59 = por %p57, %p58
    %p61 = scmp.ne.s32.totalorder %s46, %s60
    %p62 = scmp.eq.s32.totalorder %s15, 0
    %p63 = por %p61, %p62
    %s65 = sadd.s32 %s64, 1
    %p68 = scmp.eq.s32.totalorder %s9, 1
    %p69 = scmp.ne.s32.totalorder %s64, %s66
    %p70 = scmp.eq.s32.totalorder %s9, 0
    %p71 = por %p69, %p70
    %p72 = scmp.ne.s32.totalorder %s64, %s66
    %p73 = scmp.eq.s32.totalorder %s14, 1
    %p74 = por %p72, %p73
    %p75 = scmp.ne.s32.totalorder %s66, %s67
    %p76 = scmp.eq.s32.totalorder %s14, 0
    %p77 = por %p75, %p76
    %p78 = scmp.ne.s32.totalorder %s66, %s67
    %p79 = scmp.eq.s32.totalorder %s15, 1
    %p80 = por %p78, %p79
    %p82 = scmp.ne.s32.totalorder %s67, %s81
    %p83 = scmp.eq.s32.totalorder %s15, 0
    %p84 = por %p82, %p83
    %s85 = ssub.s32 %s9, %s16
    %p86 = scmp.eq.s32.totalorder %s85, 0
    %s88 = sadd.s32 %s87, 1
    %s89 = scalar_select %p86, %s87, %s88
    %p92 = pneg %p86
    %p93 = scmp.eq.s32.totalorder %s9, 1
    %p94 = por %p92, %p93
    %p95 = scmp.ne.s32.totalorder %s87, %s90
    %p96 = scmp.eq.s32.totalorder %s9, 0
    %p97 = por %p95, %p96
    %p98 = scmp.ne.s32.totalorder %s87, %s90
    %p99 = scmp.eq.s32.totalorder %s14, 1
    %p100 = por %p98, %p99
    %p101 = scmp.ne.s32.totalorder %s90, %s91
    %p102 = scmp.eq.s32.totalorder %s14, 0
    %p103 = por %p101, %p102
    %p104 = scmp.ne.s32.totalorder %s90, %s91
    %p105 = scmp.eq.s32.totalorder %s15, 1
    %p106 = por %p104, %p105
    %p108 = scmp.ne.s32.totalorder %s91, %s107
    %p109 = scmp.eq.s32.totalorder %s15, 0
    %p110 = por %p108, %p109
    %p111 = scmp.le.s32.totalorder 1, %s9
    %p112 = scmp.lt.s32.totalorder %s9, 3
    %p113 = pnand %p111, %p112
    %p114 = pneg %p113
    // Predicated region
    $region9: #{single_forward.3} parent=5 // pred_check
      _
    $region10: #{single_forward.3} parent=5 // pred_check_branch
      %116 = sbr.rel (%p113) target = $region12
    $region11: #{single_forward.3} parent=5 // pred_region
      %s117 = ssub.s32 %s9, 1
      // Predicated region
      $region13: #{single_forward.3} parent=11 // pred_check
        %p118 = pneg %p56
      $region14: #{single_forward.3} parent=11 // pred_check_branch
        %120 = sbr.rel (%p118) target = $region16
      $region15: #{single_forward.3} parent=11 // pred_region
        _
      $region16: #{single_forward.3} parent=11 // pred_fallthru
        _
      // Predicated region
      $region17: #{single_forward.3} parent=11 // pred_check
        %p121 = pneg %p77
      $region18: #{single_forward.3} parent=11 // pred_check_branch
        %123 = sbr.rel (%p121) target = $region20
      $region19: #{single_forward.3} parent=11 // pred_region
        _
      $region20: #{single_forward.3} parent=11 // pred_fallthru
        _
    $region12: #{single_forward.3} parent=5 // pred_fallthru
      _
    %p124 = scmp.lt.s32.totalorder %s9, 2
    // Predicated region
    $region21: #{single_forward.3} parent=5 // pred_check
      %p125 = pneg %p124
    $region22: #{single_forward.3} parent=5 // pred_check_branch
      %127 = sbr.rel (%p125) target = $region24
    $region23: #{single_forward.3} parent=5 // pred_region
      // Predicated region
      $region25: #{single_forward.3} parent=23 // pred_check
        %p128 = pneg %p29
      $region26: #{single_forward.3} parent=23 // pred_check_branch
        %130 = sbr.rel (%p128) target = $region28
      $region27: #{single_forward.3} parent=23 // pred_region
        %s131 = smul.u32 8, %s9
        %p132 = scmp.lt.s32.totalorder %s131, 15
        %s133 = scalar_select %p132, %s131, 15
        %s134 = smul.addr %s133, 4
        %s135 = smul.addr %s134, 4
        %s136 = scalar_lea.vmem %s0, %s135
        %s137 = smul.u32 8, %s9
      $region28: #{single_forward.3} parent=23 // pred_fallthru
        _
    $region24: #{single_forward.3} parent=5 // pred_fallthru
      _
    %p138 = scmp.le.s32.totalorder 1, %s9
    %p139 = scmp.lt.s32.totalorder %s9, 3
    %p140 = pnand %p138, %p139
    %p141 = pneg %p140
    // Predicated region
    $region29: #{single_forward.3} parent=5 // pred_check
      _
    $region30: #{single_forward.3} parent=5 // pred_check_branch
      %143 = sbr.rel (%p140) target = $region32
    $region31: #{single_forward.3} parent=5 // pred_region
      %s144 = ssub.s32 %s9, 1
      %s145 = smul.u32 8, %s14
      %p146 = scmp.lt.s32.totalorder %s145, 15
      %s147 = scalar_select %p146, %s145, 15
      %s148 = smul.addr %s147, 4
      %s149 = smul.addr %s148, 4
      %s150 = scalar_lea.vmem %s0, %s149
      %p151 = pneg %p35
      %p152 = pneg %p32
      %p153 = pneg %p56
      %p154 = pneg %p53
      %p155 = pneg %p77
      %p156 = pneg %p74
      %p157 = pneg %p103
      %p158 = pneg %p100
      %s159 = smul.u32 8, %s14
      %p160 = scmp.lt.s32.totalorder %s159, 15
      %s161 = scalar_select %p160, %s159, 15
      %s162 = smul.addr %s161, 3
      %s163 = smul.addr %s162, 8
      %s164 = scalar_lea.vmem %s3, %s163
      %s165 = smul.u32 8, %s14
      %p166 = scmp.lt.s32.totalorder %s165, 15
      %s167 = scalar_select %p166, %s165, 15
      %s168 = smul.addr %s167, 4
      %s169 = smul.addr %s168, 4
      %s170 = scalar_lea.vmem %s0, %s169
      %s171 = smul.u32 8, %s14
      %s172 = smul.u32 8, %s14
      %p173 = scmp.lt.s32.totalorder %s172, 15
      %s174 = scalar_select %p173, %s172, 15
      %s175 = smul.addr %s174, 3
      %s176 = smul.addr %s175, 8
      %s177 = scalar_lea.vmem %s3, %s176
      %s178 = smul.u32 8, %s14
      %v179 = vld [vmem:[%s170] sm:$0xff]
      %v180 = vld [vmem:[%s170 + $0x8] sm:$0xff]
      %v181 = vld [vmem:[%s170 + $0x10] sm:$0xff]
      %v182 = vld [vmem:[%s170 + $0x18] sm:$0xff]
      %v183 = vld [vmem:[%s170 + $0x20] sm:$0xff]
      %v184 = vld [vmem:[%s170 + $0x28] sm:$0xff]
      %v185 = vld [vmem:[%s170 + $0x30] sm:$0xff]
      %v186 = vld [vmem:[%s170 + $0x38] sm:$0xff]
      %v187 = vld [vmem:[%s170 + $0x40] sm:$0xff]
      %v188 = vld [vmem:[%s170 + $0x48] sm:$0xff]
      %v189 = vld [vmem:[%s170 + $0x50] sm:$0xff]
      %v190 = vld [vmem:[%s170 + $0x58] sm:$0xff]
      %v191 = vld [vmem:[%s170 + $0x60] sm:$0xff]
      %v192 = vld [vmem:[%s170 + $0x68] sm:$0xff]
      %v193 = vld [vmem:[%s170 + $0x70] sm:$0xff]
      %v194 = vld [vmem:[%s170 + $0x78] sm:$0xff]
      %v195 = vld [vmem:[%s1] sm:$0xff]
      %v196 = vld [vmem:[%s1 + $0x8] sm:$0xf]
      %v197 = vld [vmem:[%s1 + $0xc] sm:$0xff]
      %v198 = vld [vmem:[%s1 + $0x14] sm:$0xf]
      %v199 = vld [vmem:[%s1 + $0x18] sm:$0xff]
      %v200 = vld [vmem:[%s1 + $0x20] sm:$0xf]
      %v201 = vld [vmem:[%s1 + $0x24] sm:$0xff]
      %v202 = vld [vmem:[%s1 + $0x2c] sm:$0xf]
      %v203 = vld [vmem:[%s1 + $0x30] sm:$0xff]
      %v204 = vld [vmem:[%s1 + $0x38] sm:$0xf]
      %v205 = vld [vmem:[%s1 + $0x3c] sm:$0xff]
      %v206 = vld [vmem:[%s1 + $0x44] sm:$0xf]
      %v207 = vld [vmem:[%s1 + $0x48] sm:$0xff]
      %v208 = vld [vmem:[%s1 + $0x50] sm:$0xf]
      %v209 = vld [vmem:[%s1 + $0x54] sm:$0xff]
      %v210 = vld [vmem:[%s1 + $0x5c] sm:$0xf]
      %v211 = vld [vmem:[%s1 + $0x60] sm:$0xff]
      %v212 = vld [vmem:[%s1 + $0x68] sm:$0xf]
      %v213 = vld [vmem:[%s1 + $0x6c] sm:$0xff]
      %v214 = vld [vmem:[%s1 + $0x74] sm:$0xf]
      %v215 = vld [vmem:[%s1 + $0x78] sm:$0xff]
      %v216 = vld [vmem:[%s1 + $0x80] sm:$0xf]
      %v217 = vld [vmem:[%s1 + $0x84] sm:$0xff]
      %v218 = vld [vmem:[%s1 + $0x8c] sm:$0xf]
      %v219 = vld [vmem:[%s1 + $0x90] sm:$0xff]
      %v220 = vld [vmem:[%s1 + $0x98] sm:$0xf]
      %v221 = vld [vmem:[%s1 + $0x9c] sm:$0xff]
      %v222 = vld [vmem:[%s1 + $0xa4] sm:$0xf]
      %v223 = vld [vmem:[%s1 + $0xa8] sm:$0xff]
      %v224 = vld [vmem:[%s1 + $0xb0] sm:$0xf]
      %v225 = vld [vmem:[%s1 + $0xb4] sm:$0xff]
      %v226 = vld [vmem:[%s1 + $0xbc] sm:$0xf]
      %v227 = vld [vmem:[%s1 + $0xc0] sm:$0xff]
      %v228 = vld [vmem:[%s1 + $0xc8] sm:$0xf]
      %v229 = vld [vmem:[%s1 + $0xcc] sm:$0xff]
      %v230 = vld [vmem:[%s1 + $0xd4] sm:$0xf]
      %v231 = vld [vmem:[%s1 + $0xd8] sm:$0xff]
      %v232 = vld [vmem:[%s1 + $0xe0] sm:$0xf]
      %v233 = vld [vmem:[%s1 + $0xe4] sm:$0xff]
      %v234 = vld [vmem:[%s1 + $0xec] sm:$0xf]
      %v235 = vld [vmem:[%s1 + $0xf0] sm:$0xff]
      %v236 = vld [vmem:[%s1 + $0xf8] sm:$0xf]
      %v237 = vld [vmem:[%s1 + $0xfc] sm:$0xff]
      %v238 = vld [vmem:[%s1 + $0x104] sm:$0xf]
      %v239 = vld [vmem:[%s1 + $0x108] sm:$0xff]
      %v240 = vld [vmem:[%s1 + $0x110] sm:$0xf]
      %v241 = vld [vmem:[%s1 + $0x114] sm:$0xff]
      %v242 = vld [vmem:[%s1 + $0x11c] sm:$0xf]
      %v243 = vld [vmem:[%s1 + $0x120] sm:$0xff]
      %v244 = vld [vmem:[%s1 + $0x128] sm:$0xf]
      %v245 = vld [vmem:[%s1 + $0x12c] sm:$0xff]
      %v246 = vld [vmem:[%s1 + $0x134] sm:$0xf]
      %v247 = vld [vmem:[%s1 + $0x138] sm:$0xff]
      %v248 = vld [vmem:[%s1 + $0x140] sm:$0xf]
      %v249 = vld [vmem:[%s1 + $0x144] sm:$0xff]
      %v250 = vld [vmem:[%s1 + $0x14c] sm:$0xf]
      %v251 = vld [vmem:[%s1 + $0x150] sm:$0xff]
      %v252 = vld [vmem:[%s1 + $0x158] sm:$0xf]
      %v253 = vld [vmem:[%s1 + $0x15c] sm:$0xff]
      %v254 = vld [vmem:[%s1 + $0x164] sm:$0xf]
      %v255 = vld [vmem:[%s1 + $0x168] sm:$0xff]
      %v256 = vld [vmem:[%s1 + $0x170] sm:$0xf]
      %v257 = vld [vmem:[%s1 + $0x174] sm:$0xff]
      %v258 = vld [vmem:[%s1 + $0x17c] sm:$0xf]
      %v259 = vld [vmem:[%s1 + $0x180] sm:$0xff]
      %v260 = vld [vmem:[%s1 + $0x188] sm:$0xf]
      %v261 = vld [vmem:[%s1 + $0x18c] sm:$0xff]
      %v262 = vld [vmem:[%s1 + $0x194] sm:$0xf]
      %v263 = vld [vmem:[%s1 + $0x198] sm:$0xff]
      %v264 = vld [vmem:[%s1 + $0x1a0] sm:$0xf]
      %v265 = vld [vmem:[%s1 + $0x1a4] sm:$0xff]
      %v266 = vld [vmem:[%s1 + $0x1ac] sm:$0xf]
      %v267 = vld [vmem:[%s1 + $0x1b0] sm:$0xff]
      %v268 = vld [vmem:[%s1 + $0x1b8] sm:$0xf]
      %v269 = vld [vmem:[%s1 + $0x1bc] sm:$0xff]
      %v270 = vld [vmem:[%s1 + $0x1c4] sm:$0xf]
      %v271 = vld [vmem:[%s1 + $0x1c8] sm:$0xff]
      %v272 = vld [vmem:[%s1 + $0x1d0] sm:$0xf]
      %v273 = vld [vmem:[%s1 + $0x1d4] sm:$0xff]
      %v274 = vld [vmem:[%s1 + $0x1dc] sm:$0xf]
      %v275 = vld [vmem:[%s1 + $0x1e0] sm:$0xff]
      %v276 = vld [vmem:[%s1 + $0x1e8] sm:$0xf]
      %v277 = vld [vmem:[%s1 + $0x1ec] sm:$0xff]
      %v278 = vld [vmem:[%s1 + $0x1f4] sm:$0xf]
      %v279 = vld [vmem:[%s1 + $0x1f8] sm:$0xff]
      %v280 = vld [vmem:[%s1 + $0x200] sm:$0xf]
      %v281 = vld [vmem:[%s1 + $0x204] sm:$0xff]
      %v282 = vld [vmem:[%s1 + $0x20c] sm:$0xf]
      %v283 = vld [vmem:[%s1 + $0x210] sm:$0xff]
      %v284 = vld [vmem:[%s1 + $0x218] sm:$0xf]
      %v285 = vld [vmem:[%s1 + $0x21c] sm:$0xff]
      %v286 = vld [vmem:[%s1 + $0x224] sm:$0xf]
      %v287 = vld [vmem:[%s1 + $0x228] sm:$0xff]
      %v288 = vld [vmem:[%s1 + $0x230] sm:$0xf]
      %v289 = vld [vmem:[%s1 + $0x234] sm:$0xff]
      %v290 = vld [vmem:[%s1 + $0x23c] sm:$0xf]
      %v291 = vld [vmem:[%s1 + $0x240] sm:$0xff]
      %v292 = vld [vmem:[%s1 + $0x248] sm:$0xf]
      %v293 = vld [vmem:[%s1 + $0x24c] sm:$0xff]
      %v294 = vld [vmem:[%s1 + $0x254] sm:$0xf]
      %v295 = vld [vmem:[%s1 + $0x258] sm:$0xff]
      %v296 = vld [vmem:[%s1 + $0x260] sm:$0xf]
      %v297 = vld [vmem:[%s1 + $0x264] sm:$0xff]
      %v298 = vld [vmem:[%s1 + $0x26c] sm:$0xf]
      %v299 = vld [vmem:[%s1 + $0x270] sm:$0xff]
      %v300 = vld [vmem:[%s1 + $0x278] sm:$0xf]
      %v301 = vld [vmem:[%s1 + $0x27c] sm:$0xff]
      %v302 = vld [vmem:[%s1 + $0x284] sm:$0xf]
      %v303 = vld [vmem:[%s1 + $0x288] sm:$0xff]
      %v304 = vld [vmem:[%s1 + $0x290] sm:$0xf]
      %v305 = vld [vmem:[%s1 + $0x294] sm:$0xff]
      %v306 = vld [vmem:[%s1 + $0x29c] sm:$0xf]
      %v307 = vld [vmem:[%s1 + $0x2a0] sm:$0xff]
      %v308 = vld [vmem:[%s1 + $0x2a8] sm:$0xf]
      %v309 = vld [vmem:[%s1 + $0x2ac] sm:$0xff]
      %v310 = vld [vmem:[%s1 + $0x2b4] sm:$0xf]
      %v311 = vld [vmem:[%s1 + $0x2b8] sm:$0xff]
      %v312 = vld [vmem:[%s1 + $0x2c0] sm:$0xf]
      %v313 = vld [vmem:[%s1 + $0x2c4] sm:$0xff]
      %v314 = vld [vmem:[%s1 + $0x2cc] sm:$0xf]
      %v315 = vld [vmem:[%s1 + $0x2d0] sm:$0xff]
      %v316 = vld [vmem:[%s1 + $0x2d8] sm:$0xf]
      %v317 = vld [vmem:[%s1 + $0x2dc] sm:$0xff]
      %v318 = vld [vmem:[%s1 + $0x2e4] sm:$0xf]
      %v319 = vld [vmem:[%s1 + $0x2e8] sm:$0xff]
      %v320 = vld [vmem:[%s1 + $0x2f0] sm:$0xf]
      %v321 = vld [vmem:[%s1 + $0x2f4] sm:$0xff]
      %v322 = vld [vmem:[%s1 + $0x2fc] sm:$0xf]
      %v323 = vld [vmem:[%s2] sm:$0x7]
      %v325 = vperm.slane %v323, 0
      %v326 = vperm.slane %v323, 1
      %v327 = vperm.slane %v323, 2
      %v347 = vunpack.c.l.b16 %v179
      %v348 = vunpack.c.h.b16 %v179
      %v349 = vunpack.c.l.b16 %v180
      %v350 = vunpack.c.h.b16 %v180
      %v351 = vunpack.c.l.b16 %v181
      %v352 = vunpack.c.h.b16 %v181
      %v353 = vunpack.c.l.b16 %v182
      %v354 = vunpack.c.h.b16 %v182
      %v355 = vunpack.c.l.b16 %v183
      %v356 = vunpack.c.h.b16 %v183
      %v357 = vunpack.c.l.b16 %v184
      %v358 = vunpack.c.h.b16 %v184
      %v359 = vunpack.c.l.b16 %v185
      %v360 = vunpack.c.h.b16 %v185
      %v361 = vunpack.c.l.b16 %v186
      %v362 = vunpack.c.h.b16 %v186
      %v363 = vunpack.c.l.b16 %v187
      %v364 = vunpack.c.h.b16 %v187
      %v365 = vunpack.c.l.b16 %v188
      %v366 = vunpack.c.h.b16 %v188
      %v367 = vunpack.c.l.b16 %v189
      %v368 = vunpack.c.h.b16 %v189
      %v369 = vunpack.c.l.b16 %v190
      %v370 = vunpack.c.h.b16 %v190
      %v371 = vunpack.c.l.b16 %v191
      %v372 = vunpack.c.h.b16 %v191
      %v373 = vunpack.c.l.b16 %v192
      %v374 = vunpack.c.h.b16 %v192
      %v375 = vunpack.c.l.b16 %v193
      %v376 = vunpack.c.h.b16 %v193
      %v377 = vunpack.c.l.b16 %v194
      %v378 = vunpack.c.h.b16 %v194
      %v379 = vpack.c.b16 %v351, %v347
      %v380 = vpack.c.b16 %v352, %v348
      %v381 = vpack.c.b16 %v353, %v349
      %v382 = vpack.c.b16 %v354, %v350
      %v383 = vpack.c.b16 %v359, %v355
      %v384 = vpack.c.b16 %v360, %v356
      %v385 = vpack.c.b16 %v361, %v357
      %v386 = vpack.c.b16 %v362, %v358
      %v387 = vpack.c.b16 %v367, %v363
      %v388 = vpack.c.b16 %v368, %v364
      %v389 = vpack.c.b16 %v369, %v365
      %v390 = vpack.c.b16 %v370, %v366
      %v391 = vpack.c.b16 %v375, %v371
      %v392 = vpack.c.b16 %v376, %v372
      %v393 = vpack.c.b16 %v377, %v373
      %v394 = vpack.c.b16 %v378, %v374
      %v539 = vunpack.c.l.b16 %v195
      %v540 = vunpack.c.h.b16 %v195
      %v541 = vunpack.c.l.b16 %v196
      %v542 = vunpack.c.l.b16 %v197
      %v543 = vunpack.c.h.b16 %v197
      %v544 = vunpack.c.l.b16 %v198
      %v545 = vunpack.c.l.b16 %v199
      %v546 = vunpack.c.h.b16 %v199
      %v547 = vunpack.c.l.b16 %v200
      %v548 = vunpack.c.l.b16 %v201
      %v549 = vunpack.c.h.b16 %v201
      %v550 = vunpack.c.l.b16 %v202
      %v551 = vunpack.c.l.b16 %v203
      %v552 = vunpack.c.h.b16 %v203
      %v553 = vunpack.c.l.b16 %v204
      %v554 = vunpack.c.l.b16 %v205
      %v555 = vunpack.c.h.b16 %v205
      %v556 = vunpack.c.l.b16 %v206
      %v557 = vunpack.c.l.b16 %v207
      %v558 = vunpack.c.h.b16 %v207
      %v559 = vunpack.c.l.b16 %v208
      %v560 = vunpack.c.l.b16 %v209
      %v561 = vunpack.c.h.b16 %v209
      %v562 = vunpack.c.l.b16 %v210
      %v563 = vunpack.c.l.b16 %v211
      %v564 = vunpack.c.h.b16 %v211
      %v565 = vunpack.c.l.b16 %v212
      %v566 = vunpack.c.l.b16 %v213
      %v567 = vunpack.c.h.b16 %v213
      %v568 = vunpack.c.l.b16 %v214
      %v569 = vunpack.c.l.b16 %v215
      %v570 = vunpack.c.h.b16 %v215
      %v571 = vunpack.c.l.b16 %v216
      %v572 = vunpack.c.l.b16 %v217
      %v573 = vunpack.c.h.b16 %v217
      %v574 = vunpack.c.l.b16 %v218
      %v575 = vunpack.c.l.b16 %v219
      %v576 = vunpack.c.h.b16 %v219
      %v577 = vunpack.c.l.b16 %v220
      %v578 = vunpack.c.l.b16 %v221
      %v579 = vunpack.c.h.b16 %v221
      %v580 = vunpack.c.l.b16 %v222
      %v581 = vunpack.c.l.b16 %v223
      %v582 = vunpack.c.h.b16 %v223
      %v583 = vunpack.c.l.b16 %v224
      %v584 = vunpack.c.l.b16 %v225
      %v585 = vunpack.c.h.b16 %v225
      %v586 = vunpack.c.l.b16 %v226
      %v587 = vunpack.c.l.b16 %v227
      %v588 = vunpack.c.h.b16 %v227
      %v589 = vunpack.c.l.b16 %v228
      %v590 = vunpack.c.l.b16 %v229
      %v591 = vunpack.c.h.b16 %v229
      %v592 = vunpack.c.l.b16 %v230
      %v593 = vunpack.c.l.b16 %v231
      %v594 = vunpack.c.h.b16 %v231
      %v595 = vunpack.c.l.b16 %v232
      %v596 = vunpack.c.l.b16 %v233
      %v597 = vunpack.c.h.b16 %v233
      %v598 = vunpack.c.l.b16 %v234
      %v599 = vunpack.c.l.b16 %v235
      %v600 = vunpack.c.h.b16 %v235
      %v601 = vunpack.c.l.b16 %v236
      %v602 = vunpack.c.l.b16 %v237
      %v603 = vunpack.c.h.b16 %v237
      %v604 = vunpack.c.l.b16 %v238
      %v605 = vunpack.c.l.b16 %v239
      %v606 = vunpack.c.h.b16 %v239
      %v607 = vunpack.c.l.b16 %v240
      %v608 = vunpack.c.l.b16 %v241
      %v609 = vunpack.c.h.b16 %v241
      %v610 = vunpack.c.l.b16 %v242
      %v611 = vunpack.c.l.b16 %v243
      %v612 = vunpack.c.h.b16 %v243
      %v613 = vunpack.c.l.b16 %v244
      %v614 = vunpack.c.l.b16 %v245
      %v615 = vunpack.c.h.b16 %v245
      %v616 = vunpack.c.l.b16 %v246
      %v617 = vunpack.c.l.b16 %v247
      %v618 = vunpack.c.h.b16 %v247
      %v619 = vunpack.c.l.b16 %v248
      %v620 = vunpack.c.l.b16 %v249
      %v621 = vunpack.c.h.b16 %v249
      %v622 = vunpack.c.l.b16 %v250
      %v623 = vunpack.c.l.b16 %v251
      %v624 = vunpack.c.h.b16 %v251
      %v625 = vunpack.c.l.b16 %v252
      %v626 = vunpack.c.l.b16 %v253
      %v627 = vunpack.c.h.b16 %v253
      %v628 = vunpack.c.l.b16 %v254
      %v629 = vunpack.c.l.b16 %v255
      %v630 = vunpack.c.h.b16 %v255
      %v631 = vunpack.c.l.b16 %v256
      %v632 = vunpack.c.l.b16 %v257
      %v633 = vunpack.c.h.b16 %v257
      %v634 = vunpack.c.l.b16 %v258
      %v635 = vunpack.c.l.b16 %v259
      %v636 = vunpack.c.h.b16 %v259
      %v637 = vunpack.c.l.b16 %v260
      %v638 = vunpack.c.l.b16 %v261
      %v639 = vunpack.c.h.b16 %v261
      %v640 = vunpack.c.l.b16 %v262
      %v641 = vunpack.c.l.b16 %v263
      %v642 = vunpack.c.h.b16 %v263
      %v643 = vunpack.c.l.b16 %v264
      %v644 = vunpack.c.l.b16 %v265
      %v645 = vunpack.c.h.b16 %v265
      %v646 = vunpack.c.l.b16 %v266
      %v647 = vunpack.c.l.b16 %v267
      %v648 = vunpack.c.h.b16 %v267
      %v649 = vunpack.c.l.b16 %v268
      %v650 = vunpack.c.l.b16 %v269
      %v651 = vunpack.c.h.b16 %v269
      %v652 = vunpack.c.l.b16 %v270
      %v653 = vunpack.c.l.b16 %v271
      %v654 = vunpack.c.h.b16 %v271
      %v655 = vunpack.c.l.b16 %v272
      %v656 = vunpack.c.l.b16 %v273
      %v657 = vunpack.c.h.b16 %v273
      %v658 = vunpack.c.l.b16 %v274
      %v659 = vunpack.c.l.b16 %v275
      %v660 = vunpack.c.h.b16 %v275
      %v661 = vunpack.c.l.b16 %v276
      %v662 = vunpack.c.l.b16 %v277
      %v663 = vunpack.c.h.b16 %v277
      %v664 = vunpack.c.l.b16 %v278
      %v665 = vunpack.c.l.b16 %v279
      %v666 = vunpack.c.h.b16 %v279
      %v667 = vunpack.c.l.b16 %v280
      %v668 = vunpack.c.l.b16 %v281
      %v669 = vunpack.c.h.b16 %v281
      %v670 = vunpack.c.l.b16 %v282
      %v671 = vunpack.c.l.b16 %v283
      %v672 = vunpack.c.h.b16 %v283
      %v673 = vunpack.c.l.b16 %v284
      %v674 = vunpack.c.l.b16 %v285
      %v675 = vunpack.c.h.b16 %v285
      %v676 = vunpack.c.l.b16 %v286
      %v677 = vunpack.c.l.b16 %v287
      %v678 = vunpack.c.h.b16 %v287
      %v679 = vunpack.c.l.b16 %v288
      %v680 = vunpack.c.l.b16 %v289
      %v681 = vunpack.c.h.b16 %v289
      %v682 = vunpack.c.l.b16 %v290
      %v683 = vunpack.c.l.b16 %v291
      %v684 = vunpack.c.h.b16 %v291
      %v685 = vunpack.c.l.b16 %v292
      %v686 = vunpack.c.l.b16 %v293
      %v687 = vunpack.c.h.b16 %v293
      %v688 = vunpack.c.l.b16 %v294
      %v689 = vunpack.c.l.b16 %v295
      %v690 = vunpack.c.h.b16 %v295
      %v691 = vunpack.c.l.b16 %v296
      %v692 = vunpack.c.l.b16 %v297
      %v693 = vunpack.c.h.b16 %v297
      %v694 = vunpack.c.l.b16 %v298
      %v695 = vunpack.c.l.b16 %v299
      %v696 = vunpack.c.h.b16 %v299
      %v697 = vunpack.c.l.b16 %v300
      %v698 = vunpack.c.l.b16 %v301
      %v699 = vunpack.c.h.b16 %v301
      %v700 = vunpack.c.l.b16 %v302
      %v701 = vunpack.c.l.b16 %v303
      %v702 = vunpack.c.h.b16 %v303
      %v703 = vunpack.c.l.b16 %v304
      %v704 = vunpack.c.l.b16 %v305
      %v705 = vunpack.c.h.b16 %v305
      %v706 = vunpack.c.l.b16 %v306
      %v707 = vunpack.c.l.b16 %v307
      %v708 = vunpack.c.h.b16 %v307
      %v709 = vunpack.c.l.b16 %v308
      %v710 = vunpack.c.l.b16 %v309
      %v711 = vunpack.c.h.b16 %v309
      %v712 = vunpack.c.l.b16 %v310
      %v713 = vunpack.c.l.b16 %v311
      %v714 = vunpack.c.h.b16 %v311
      %v715 = vunpack.c.l.b16 %v312
      %v716 = vunpack.c.l.b16 %v313
      %v717 = vunpack.c.h.b16 %v313
      %v718 = vunpack.c.l.b16 %v314
      %v719 = vunpack.c.l.b16 %v315
      %v720 = vunpack.c.h.b16 %v315
      %v721 = vunpack.c.l.b16 %v316
      %v722 = vunpack.c.l.b16 %v317
      %v723 = vunpack.c.h.b16 %v317
      %v724 = vunpack.c.l.b16 %v318
      %v725 = vunpack.c.l.b16 %v319
      %v726 = vunpack.c.h.b16 %v319
      %v727 = vunpack.c.l.b16 %v320
      %v728 = vunpack.c.l.b16 %v321
      %v729 = vunpack.c.h.b16 %v321
      %v730 = vunpack.c.l.b16 %v322
      %v731 = vpack.c.b16 %v542, %v539
      %v732 = vpack.c.b16 %v543, %v540
      %v733 = vpack.c.b16 %v544, %v541
      %v734 = vpack.c.b16 %v548, %v545
      %v735 = vpack.c.b16 %v549, %v546
      %v736 = vpack.c.b16 %v550, %v547
      %v737 = vpack.c.b16 %v554, %v551
      %v738 = vpack.c.b16 %v555, %v552
      %v739 = vpack.c.b16 %v556, %v553
      %v740 = vpack.c.b16 %v560, %v557
      %v741 = vpack.c.b16 %v561, %v558
      %v742 = vpack.c.b16 %v562, %v559
      %v743 = vpack.c.b16 %v566, %v563
      %v744 = vpack.c.b16 %v567, %v564
      %v745 = vpack.c.b16 %v568, %v565
      %v746 = vpack.c.b16 %v572, %v569
      %v747 = vpack.c.b16 %v573, %v570
      %v748 = vpack.c.b16 %v574, %v571
      %v749 = vpack.c.b16 %v578, %v575
      %v750 = vpack.c.b16 %v579, %v576
      %v751 = vpack.c.b16 %v580, %v577
      %v752 = vpack.c.b16 %v584, %v581
      %v753 = vpack.c.b16 %v585, %v582
      %v754 = vpack.c.b16 %v586, %v583
      %v755 = vpack.c.b16 %v590, %v587
      %v756 = vpack.c.b16 %v591, %v588
      %v757 = vpack.c.b16 %v592, %v589
      %v758 = vpack.c.b16 %v596, %v593
      %v759 = vpack.c.b16 %v597, %v594
      %v760 = vpack.c.b16 %v598, %v595
      %v761 = vpack.c.b16 %v602, %v599
      %v762 = vpack.c.b16 %v603, %v600
      %v763 = vpack.c.b16 %v604, %v601
      %v764 = vpack.c.b16 %v608, %v605
      %v765 = vpack.c.b16 %v609, %v606
      %v766 = vpack.c.b16 %v610, %v607
      %v767 = vpack.c.b16 %v614, %v611
      %v768 = vpack.c.b16 %v615, %v612
      %v769 = vpack.c.b16 %v616, %v613
      %v770 = vpack.c.b16 %v620, %v617
      %v771 = vpack.c.b16 %v621, %v618
      %v772 = vpack.c.b16 %v622, %v619
      %v773 = vpack.c.b16 %v626, %v623
      %v774 = vpack.c.b16 %v627, %v624
      %v775 = vpack.c.b16 %v628, %v625
      %v776 = vpack.c.b16 %v632, %v629
      %v777 = vpack.c.b16 %v633, %v630
      %v778 = vpack.c.b16 %v634, %v631
      %v779 = vpack.c.b16 %v638, %v635
      %v780 = vpack.c.b16 %v639, %v636
      %v781 = vpack.c.b16 %v640, %v637
      %v782 = vpack.c.b16 %v644, %v641
      %v783 = vpack.c.b16 %v645, %v642
      %v784 = vpack.c.b16 %v646, %v643
      %v785 = vpack.c.b16 %v650, %v647
      %v786 = vpack.c.b16 %v651, %v648
      %v787 = vpack.c.b16 %v652, %v649
      %v788 = vpack.c.b16 %v656, %v653
      %v789 = vpack.c.b16 %v657, %v654
      %v790 = vpack.c.b16 %v658, %v655
      %v791 = vpack.c.b16 %v662, %v659
      %v792 = vpack.c.b16 %v663, %v660
      %v793 = vpack.c.b16 %v664, %v661
      %v794 = vpack.c.b16 %v668, %v665
      %v795 = vpack.c.b16 %v669, %v666
      %v796 = vpack.c.b16 %v670, %v667
      %v797 = vpack.c.b16 %v674, %v671
      %v798 = vpack.c.b16 %v675, %v672
      %v799 = vpack.c.b16 %v676, %v673
      %v800 = vpack.c.b16 %v680, %v677
      %v801 = vpack.c.b16 %v681, %v678
      %v802 = vpack.c.b16 %v682, %v679
      %v803 = vpack.c.b16 %v686, %v683
      %v804 = vpack.c.b16 %v687, %v684
      %v805 = vpack.c.b16 %v688, %v685
      %v806 = vpack.c.b16 %v692, %v689
      %v807 = vpack.c.b16 %v693, %v690
      %v808 = vpack.c.b16 %v694, %v691
      %v809 = vpack.c.b16 %v698, %v695
      %v810 = vpack.c.b16 %v699, %v696
      %v811 = vpack.c.b16 %v700, %v697
      %v812 = vpack.c.b16 %v704, %v701
      %v813 = vpack.c.b16 %v705, %v702
      %v814 = vpack.c.b16 %v706, %v703
      %v815 = vpack.c.b16 %v710, %v707
      %v816 = vpack.c.b16 %v711, %v708
      %v817 = vpack.c.b16 %v712, %v709
      %v818 = vpack.c.b16 %v716, %v713
      %v819 = vpack.c.b16 %v717, %v714
      %v820 = vpack.c.b16 %v718, %v715
      %v821 = vpack.c.b16 %v722, %v719
      %v822 = vpack.c.b16 %v723, %v720
      %v823 = vpack.c.b16 %v724, %v721
      %v824 = vpack.c.b16 %v728, %v725
      %v825 = vpack.c.b16 %v729, %v726
      %v826 = vpack.c.b16 %v730, %v727
      %923 = vmatpush.bf16.msra.mxu0 %v752
      %924 = vmatpush.bf16.msra.mxu0 %v749
      %925 = vmatpush.bf16.msra.mxu0 %v746
      %926 = vmatpush.bf16.msra.mxu0 %v743
      %927 = vmatpush.bf16.msra.mxu0 %v740
      %928 = vmatpush.bf16.msra.mxu0 %v737
      %929 = vmatpush.bf16.msra.mxu0 %v734
      %930 = vmatpush.bf16.msra.mxu0 %v731
      %931 = vmatmul.bf16.gmra.mxu0 %v379
      %v932 = vpop.f32.mrf.mxu0
      %v933 = vadd.f32 %v325, %v932
      %v934 = vpop.f32.mrf.mxu0
      %v935 = vadd.f32 %v325, %v934
      %936 = vmatmul.bf16.gmra.mxu0 %v383
      %v937 = vpop.f32.mrf.mxu0
      %v938 = vadd.f32 %v325, %v937
      %v939 = vpop.f32.mrf.mxu0
      %v940 = vadd.f32 %v325, %v939
      %941 = vmatmul.bf16.gmra.mxu0 %v387
      %v942 = vpop.f32.mrf.mxu0
      %v943 = vadd.f32 %v325, %v942
      %v944 = vpop.f32.mrf.mxu0
      %v945 = vadd.f32 %v325, %v944
      %946 = vmatmul.bf16.gmra.mxu0 %v391
      %v947 = vpop.f32.mrf.mxu0
      %v948 = vadd.f32 %v325, %v947
      %v949 = vpop.f32.mrf.mxu0
      %v950 = vadd.f32 %v325, %v949
      %951 = vdwg.mxu0
      %952 = vmatpush.bf16.msra.mxu0 %v776
      %953 = vmatpush.bf16.msra.mxu0 %v773
      %954 = vmatpush.bf16.msra.mxu0 %v770
      %955 = vmatpush.bf16.msra.mxu0 %v767
      %956 = vmatpush.bf16.msra.mxu0 %v764
      %957 = vmatpush.bf16.msra.mxu0 %v761
      %958 = vmatpush.bf16.msra.mxu0 %v758
      %959 = vmatpush.bf16.msra.mxu0 %v755
      %960 = vmatmul.bf16.gmra.mxu0 %v380
      %v961 = vpop.f32.mrf.mxu0
      %v962 = vadd.f32 %v933, %v961
      %v963 = vpop.f32.mrf.mxu0
      %v964 = vadd.f32 %v935, %v963
      %965 = vmatmul.bf16.gmra.mxu0 %v384
      %v966 = vpop.f32.mrf.mxu0
      %v967 = vadd.f32 %v938, %v966
      %v968 = vpop.f32.mrf.mxu0
      %v969 = vadd.f32 %v940, %v968
      %970 = vmatmul.bf16.gmra.mxu0 %v388
      %v971 = vpop.f32.mrf.mxu0
      %v972 = vadd.f32 %v943, %v971
      %v973 = vpop.f32.mrf.mxu0
      %v974 = vadd.f32 %v945, %v973
      %975 = vmatmul.bf16.gmra.mxu0 %v392
      %v976 = vpop.f32.mrf.mxu0
      %v977 = vadd.f32 %v948, %v976
      %v978 = vpop.f32.mrf.mxu0
      %v979 = vadd.f32 %v950, %v978
      %980 = vdwg.mxu0
      %981 = vmatpush.bf16.msra.mxu0 %v800
      %982 = vmatpush.bf16.msra.mxu0 %v797
      %983 = vmatpush.bf16.msra.mxu0 %v794
      %984 = vmatpush.bf16.msra.mxu0 %v791
      %985 = vmatpush.bf16.msra.mxu0 %v788
      %986 = vmatpush.bf16.msra.mxu0 %v785
      %987 = vmatpush.bf16.msra.mxu0 %v782
      %988 = vmatpush.bf16.msra.mxu0 %v779
      %989 = vmatmul.bf16.gmra.mxu0 %v381
      %v990 = vpop.f32.mrf.mxu0
      %v991 = vadd.f32 %v962, %v990
      %v992 = vpop.f32.mrf.mxu0
      %v993 = vadd.f32 %v964, %v992
      %994 = vmatmul.bf16.gmra.mxu0 %v385
      %v995 = vpop.f32.mrf.mxu0
      %v996 = vadd.f32 %v967, %v995
      %v997 = vpop.f32.mrf.mxu0
      %v998 = vadd.f32 %v969, %v997
      %999 = vmatmul.bf16.gmra.mxu0 %v389
      %v1000 = vpop.f32.mrf.mxu0
      %v1001 = vadd.f32 %v972, %v1000
      %v1002 = vpop.f32.mrf.mxu0
      %v1003 = vadd.f32 %v974, %v1002
      %1004 = vmatmul.bf16.gmra.mxu0 %v393
      %v1005 = vpop.f32.mrf.mxu0
      %v1006 = vadd.f32 %v977, %v1005
      %v1007 = vpop.f32.mrf.mxu0
      %v1008 = vadd.f32 %v979, %v1007
      %1009 = vdwg.mxu0
      %1010 = vmatpush.bf16.msra.mxu0 %v824
      %1011 = vmatpush.bf16.msra.mxu0 %v821
      %1012 = vmatpush.bf16.msra.mxu0 %v818
      %1013 = vmatpush.bf16.msra.mxu0 %v815
      %1014 = vmatpush.bf16.msra.mxu0 %v812
      %1015 = vmatpush.bf16.msra.mxu0 %v809
      %1016 = vmatpush.bf16.msra.mxu0 %v806
      %1017 = vmatpush.bf16.msra.mxu0 %v803
      %1018 = vmatmul.bf16.gmra.mxu0 %v382
      %v1019 = vpop.f32.mrf.mxu0
      %v1020 = vadd.f32 %v991, %v1019
      %v1021 = vpop.f32.mrf.mxu0
      %v1022 = vadd.f32 %v993, %v1021
      %1023 = vmatmul.bf16.gmra.mxu0 %v386
      %v1024 = vpop.f32.mrf.mxu0
      %v1025 = vadd.f32 %v996, %v1024
      %v1026 = vpop.f32.mrf.mxu0
      %v1027 = vadd.f32 %v998, %v1026
      %1028 = vmatmul.bf16.gmra.mxu0 %v390
      %v1029 = vpop.f32.mrf.mxu0
      %v1030 = vadd.f32 %v1001, %v1029
      %v1031 = vpop.f32.mrf.mxu0
      %v1032 = vadd.f32 %v1003, %v1031
      %1033 = vmatmul.bf16.gmra.mxu0 %v394
      %v1034 = vpop.f32.mrf.mxu0
      %v1035 = vadd.f32 %v1006, %v1034
      %v1036 = vpop.f32.mrf.mxu0
      %v1037 = vadd.f32 %v1008, %v1036
      %1038 = vdwg.mxu0
      %1039 = vmatpush.bf16.msra.mxu0 %v753
      %1040 = vmatpush.bf16.msra.mxu0 %v750
      %1041 = vmatpush.bf16.msra.mxu0 %v747
      %1042 = vmatpush.bf16.msra.mxu0 %v744
      %1043 = vmatpush.bf16.msra.mxu0 %v741
      %1044 = vmatpush.bf16.msra.mxu0 %v738
      %1045 = vmatpush.bf16.msra.mxu0 %v735
      %1046 = vmatpush.bf16.msra.mxu0 %v732
      %1047 = vmatmul.bf16.gmra.mxu0 %v379
      %v1048 = vpop.f32.mrf.mxu0
      %v1049 = vadd.f32 %v326, %v1048
      %v1050 = vpop.f32.mrf.mxu0
      %v1051 = vadd.f32 %v326, %v1050
      %1052 = vmatmul.bf16.gmra.mxu0 %v383
      %v1053 = vpop.f32.mrf.mxu0
      %v1054 = vadd.f32 %v326, %v1053
      %v1055 = vpop.f32.mrf.mxu0
      %v1056 = vadd.f32 %v326, %v1055
      %1057 = vmatmul.bf16.gmra.mxu0 %v387
      %v1058 = vpop.f32.mrf.mxu0
      %v1059 = vadd.f32 %v326, %v1058
      %v1060 = vpop.f32.mrf.mxu0
      %v1061 = vadd.f32 %v326, %v1060
      %1062 = vmatmul.bf16.gmra.mxu0 %v391
      %v1063 = vpop.f32.mrf.mxu0
      %v1064 = vadd.f32 %v326, %v1063
      %v1065 = vpop.f32.mrf.mxu0
      %v1066 = vadd.f32 %v326, %v1065
      %1067 = vdwg.mxu0
      %1068 = vmatpush.bf16.msra.mxu0 %v777
      %1069 = vmatpush.bf16.msra.mxu0 %v774
      %1070 = vmatpush.bf16.msra.mxu0 %v771
      %1071 = vmatpush.bf16.msra.mxu0 %v768
      %1072 = vmatpush.bf16.msra.mxu0 %v765
      %1073 = vmatpush.bf16.msra.mxu0 %v762
      %1074 = vmatpush.bf16.msra.mxu0 %v759
      %1075 = vmatpush.bf16.msra.mxu0 %v756
      %1076 = vmatmul.bf16.gmra.mxu0 %v380
      %v1077 = vpop.f32.mrf.mxu0
      %v1078 = vadd.f32 %v1049, %v1077
      %v1079 = vpop.f32.mrf.mxu0
      %v1080 = vadd.f32 %v1051, %v1079
      %1081 = vmatmul.bf16.gmra.mxu0 %v384
      %v1082 = vpop.f32.mrf.mxu0
      %v1083 = vadd.f32 %v1054, %v1082
      %v1084 = vpop.f32.mrf.mxu0
      %v1085 = vadd.f32 %v1056, %v1084
      %1086 = vmatmul.bf16.gmra.mxu0 %v388
      %v1087 = vpop.f32.mrf.mxu0
      %v1088 = vadd.f32 %v1059, %v1087
      %v1089 = vpop.f32.mrf.mxu0
      %v1090 = vadd.f32 %v1061, %v1089
      %1091 = vmatmul.bf16.gmra.mxu0 %v392
      %v1092 = vpop.f32.mrf.mxu0
      %v1093 = vadd.f32 %v1064, %v1092
      %v1094 = vpop.f32.mrf.mxu0
      %v1095 = vadd.f32 %v1066, %v1094
      %1096 = vdwg.mxu0
      %1097 = vmatpush.bf16.msra.mxu0 %v801
      %1098 = vmatpush.bf16.msra.mxu0 %v798
      %1099 = vmatpush.bf16.msra.mxu0 %v795
      %1100 = vmatpush.bf16.msra.mxu0 %v792
      %1101 = vmatpush.bf16.msra.mxu0 %v789
      %1102 = vmatpush.bf16.msra.mxu0 %v786
      %1103 = vmatpush.bf16.msra.mxu0 %v783
      %1104 = vmatpush.bf16.msra.mxu0 %v780
      %1105 = vmatmul.bf16.gmra.mxu0 %v381
      %v1106 = vpop.f32.mrf.mxu0
      %v1107 = vadd.f32 %v1078, %v1106
      %v1108 = vpop.f32.mrf.mxu0
      %v1109 = vadd.f32 %v1080, %v1108
      %1110 = vmatmul.bf16.gmra.mxu0 %v385
      %v1111 = vpop.f32.mrf.mxu0
      %v1112 = vadd.f32 %v1083, %v1111
      %v1113 = vpop.f32.mrf.mxu0
      %v1114 = vadd.f32 %v1085, %v1113
      %1115 = vmatmul.bf16.gmra.mxu0 %v389
      %v1116 = vpop.f32.mrf.mxu0
      %v1117 = vadd.f32 %v1088, %v1116
      %v1118 = vpop.f32.mrf.mxu0
      %v1119 = vadd.f32 %v1090, %v1118
      %1120 = vmatmul.bf16.gmra.mxu0 %v393
      %v1121 = vpop.f32.mrf.mxu0
      %v1122 = vadd.f32 %v1093, %v1121
      %v1123 = vpop.f32.mrf.mxu0
      %v1124 = vadd.f32 %v1095, %v1123
      %1125 = vdwg.mxu0
      %1126 = vmatpush.bf16.msra.mxu0 %v825
      %1127 = vmatpush.bf16.msra.mxu0 %v822
      %1128 = vmatpush.bf16.msra.mxu0 %v819
      %1129 = vmatpush.bf16.msra.mxu0 %v816
      %1130 = vmatpush.bf16.msra.mxu0 %v813
      %1131 = vmatpush.bf16.msra.mxu0 %v810
      %1132 = vmatpush.bf16.msra.mxu0 %v807
      %1133 = vmatpush.bf16.msra.mxu0 %v804
      %1134 = vmatmul.bf16.gmra.mxu0 %v382
      %v1135 = vpop.f32.mrf.mxu0
      %v1136 = vadd.f32 %v1107, %v1135
      %v1137 = vpop.f32.mrf.mxu0
      %v1138 = vadd.f32 %v1109, %v1137
      %1139 = vmatmul.bf16.gmra.mxu0 %v386
      %v1140 = vpop.f32.mrf.mxu0
      %v1141 = vadd.f32 %v1112, %v1140
      %v1142 = vpop.f32.mrf.mxu0
      %v1143 = vadd.f32 %v1114, %v1142
      %1144 = vmatmul.bf16.gmra.mxu0 %v390
      %v1145 = vpop.f32.mrf.mxu0
      %v1146 = vadd.f32 %v1117, %v1145
      %v1147 = vpop.f32.mrf.mxu0
      %v1148 = vadd.f32 %v1119, %v1147
      %1149 = vmatmul.bf16.gmra.mxu0 %v394
      %v1150 = vpop.f32.mrf.mxu0
      %v1151 = vadd.f32 %v1122, %v1150
      %v1152 = vpop.f32.mrf.mxu0
      %v1153 = vadd.f32 %v1124, %v1152
      %1154 = vdwg.mxu0
      %1155 = vmatpush.bf16.msra.mxu0 %v754
      %1156 = vmatpush.bf16.msra.mxu0 %v751
      %1157 = vmatpush.bf16.msra.mxu0 %v748
      %1158 = vmatpush.bf16.msra.mxu0 %v745
      %1159 = vmatpush.bf16.msra.mxu0 %v742
      %1160 = vmatpush.bf16.msra.mxu0 %v739
      %1161 = vmatpush.bf16.msra.mxu0 %v736
      %1162 = vmatpush.bf16.msra.mxu0 %v733
      %1163 = vmatmul.bf16.gmra.mxu0 %v379
      %v1164 = vpop.f32.mrf.mxu0
      %v1165 = vadd.f32 %v327, %v1164
      %v1166 = vpop.f32.mrf.mxu0
      %v1167 = vadd.f32 %v327, %v1166
      %1168 = vmatmul.bf16.gmra.mxu0 %v383
      %v1169 = vpop.f32.mrf.mxu0
      %v1170 = vadd.f32 %v327, %v1169
      %v1171 = vpop.f32.mrf.mxu0
      %v1172 = vadd.f32 %v327, %v1171
      %1173 = vmatmul.bf16.gmra.mxu0 %v387
      %v1174 = vpop.f32.mrf.mxu0
      %v1175 = vadd.f32 %v327, %v1174
      %v1176 = vpop.f32.mrf.mxu0
      %v1177 = vadd.f32 %v327, %v1176
      %1178 = vmatmul.bf16.gmra.mxu0 %v391
      %v1179 = vpop.f32.mrf.mxu0
      %v1180 = vadd.f32 %v327, %v1179
      %v1181 = vpop.f32.mrf.mxu0
      %v1182 = vadd.f32 %v327, %v1181
      %1183 = vdwg.mxu0
      %1184 = vmatpush.bf16.msra.mxu0 %v778
      %1185 = vmatpush.bf16.msra.mxu0 %v775
      %1186 = vmatpush.bf16.msra.mxu0 %v772
      %1187 = vmatpush.bf16.msra.mxu0 %v769
      %1188 = vmatpush.bf16.msra.mxu0 %v766
      %1189 = vmatpush.bf16.msra.mxu0 %v763
      %1190 = vmatpush.bf16.msra.mxu0 %v760
      %1191 = vmatpush.bf16.msra.mxu0 %v757
      %1192 = vmatmul.bf16.gmra.mxu0 %v380
      %v1193 = vpop.f32.mrf.mxu0
      %v1194 = vadd.f32 %v1165, %v1193
      %v1195 = vpop.f32.mrf.mxu0
      %v1196 = vadd.f32 %v1167, %v1195
      %1197 = vmatmul.bf16.gmra.mxu0 %v384
      %v1198 = vpop.f32.mrf.mxu0
      %v1199 = vadd.f32 %v1170, %v1198
      %v1200 = vpop.f32.mrf.mxu0
      %v1201 = vadd.f32 %v1172, %v1200
      %1202 = vmatmul.bf16.gmra.mxu0 %v388
      %v1203 = vpop.f32.mrf.mxu0
      %v1204 = vadd.f32 %v1175, %v1203
      %v1205 = vpop.f32.mrf.mxu0
      %v1206 = vadd.f32 %v1177, %v1205
      %1207 = vmatmul.bf16.gmra.mxu0 %v392
      %v1208 = vpop.f32.mrf.mxu0
      %v1209 = vadd.f32 %v1180, %v1208
      %v1210 = vpop.f32.mrf.mxu0
      %v1211 = vadd.f32 %v1182, %v1210
      %1212 = vdwg.mxu0
      %1213 = vmatpush.bf16.msra.mxu0 %v802
      %1214 = vmatpush.bf16.msra.mxu0 %v799
      %1215 = vmatpush.bf16.msra.mxu0 %v796
      %1216 = vmatpush.bf16.msra.mxu0 %v793
      %1217 = vmatpush.bf16.msra.mxu0 %v790
      %1218 = vmatpush.bf16.msra.mxu0 %v787
      %1219 = vmatpush.bf16.msra.mxu0 %v784
      %1220 = vmatpush.bf16.msra.mxu0 %v781
      %1221 = vmatmul.bf16.gmra.mxu0 %v381
      %v1222 = vpop.f32.mrf.mxu0
      %v1223 = vadd.f32 %v1194, %v1222
      %v1224 = vpop.f32.mrf.mxu0
      %v1225 = vadd.f32 %v1196, %v1224
      %1226 = vmatmul.bf16.gmra.mxu0 %v385
      %v1227 = vpop.f32.mrf.mxu0
      %v1228 = vadd.f32 %v1199, %v1227
      %v1229 = vpop.f32.mrf.mxu0
      %v1230 = vadd.f32 %v1201, %v1229
      %1231 = vmatmul.bf16.gmra.mxu0 %v389
      %v1232 = vpop.f32.mrf.mxu0
      %v1233 = vadd.f32 %v1204, %v1232
      %v1234 = vpop.f32.mrf.mxu0
      %v1235 = vadd.f32 %v1206, %v1234
      %1236 = vmatmul.bf16.gmra.mxu0 %v393
      %v1237 = vpop.f32.mrf.mxu0
      %v1238 = vadd.f32 %v1209, %v1237
      %v1239 = vpop.f32.mrf.mxu0
      %v1240 = vadd.f32 %v1211, %v1239
      %1241 = vdwg.mxu0
      %1242 = vmatpush.bf16.msra.mxu0 %v826
      %1243 = vmatpush.bf16.msra.mxu0 %v823
      %1244 = vmatpush.bf16.msra.mxu0 %v820
      %1245 = vmatpush.bf16.msra.mxu0 %v817
      %1246 = vmatpush.bf16.msra.mxu0 %v814
      %1247 = vmatpush.bf16.msra.mxu0 %v811
      %1248 = vmatpush.bf16.msra.mxu0 %v808
      %1249 = vmatpush.bf16.msra.mxu0 %v805
      %1250 = vmatmul.bf16.gmra.mxu0 %v382
      %v1251 = vpop.f32.mrf.mxu0
      %v1252 = vadd.f32 %v1223, %v1251
      %v1253 = vpop.f32.mrf.mxu0
      %v1254 = vadd.f32 %v1225, %v1253
      %1255 = vmatmul.bf16.gmra.mxu0 %v386
      %v1256 = vpop.f32.mrf.mxu0
      %v1257 = vadd.f32 %v1228, %v1256
      %v1258 = vpop.f32.mrf.mxu0
      %v1259 = vadd.f32 %v1230, %v1258
      %1260 = vmatmul.bf16.gmra.mxu0 %v390
      %v1261 = vpop.f32.mrf.mxu0
      %v1262 = vadd.f32 %v1233, %v1261
      %v1263 = vpop.f32.mrf.mxu0
      %v1264 = vadd.f32 %v1235, %v1263
      %1265 = vmatmul.bf16.gmra.mxu0 %v394
      %v1266 = vpop.f32.mrf.mxu0
      %v1267 = vadd.f32 %v1238, %v1266
      %v1268 = vpop.f32.mrf.mxu0
      %v1269 = vadd.f32 %v1240, %v1268
      %1270 = vdwg.mxu0
      %1271 = vst [vmem:[%s177] sm:$0xff] %v1020
      %1272 = vst [vmem:[%s177 + $0x8] sm:$0xff] %v1136
      %1273 = vst [vmem:[%s177 + $0x10] sm:$0xff] %v1252
      %1274 = vst [vmem:[%s177 + $0x18] sm:$0xff] %v1022
      %1275 = vst [vmem:[%s177 + $0x20] sm:$0xff] %v1138
      %1276 = vst [vmem:[%s177 + $0x28] sm:$0xff] %v1254
      %1277 = vst [vmem:[%s177 + $0x30] sm:$0xff] %v1025
      %1278 = vst [vmem:[%s177 + $0x38] sm:$0xff] %v1141
      %1279 = vst [vmem:[%s177 + $0x40] sm:$0xff] %v1257
      %1280 = vst [vmem:[%s177 + $0x48] sm:$0xff] %v1027
      %1281 = vst [vmem:[%s177 + $0x50] sm:$0xff] %v1143
      %1282 = vst [vmem:[%s177 + $0x58] sm:$0xff] %v1259
      %1283 = vst [vmem:[%s177 + $0x60] sm:$0xff] %v1030
      %1284 = vst [vmem:[%s177 + $0x68] sm:$0xff] %v1146
      %1285 = vst [vmem:[%s177 + $0x70] sm:$0xff] %v1262
      %1286 = vst [vmem:[%s177 + $0x78] sm:$0xff] %v1032
      %1287 = vst [vmem:[%s177 + $0x80] sm:$0xff] %v1148
      %1288 = vst [vmem:[%s177 + $0x88] sm:$0xff] %v1264
      %1289 = vst [vmem:[%s177 + $0x90] sm:$0xff] %v1035
      %1290 = vst [vmem:[%s177 + $0x98] sm:$0xff] %v1151
      %1291 = vst [vmem:[%s177 + $0xa0] sm:$0xff] %v1267
      %1292 = vst [vmem:[%s177 + $0xa8] sm:$0xff] %v1037
      %1293 = vst [vmem:[%s177 + $0xb0] sm:$0xff] %v1153
      %1294 = vst [vmem:[%s177 + $0xb8] sm:$0xff] %v1269
      %s1295 = smul.u32 8, %s14
      %p1296 = scmp.lt.s32.totalorder %s1295, 15
      %s1297 = scalar_select %p1296, %s1295, 15
      %s1298 = smul.addr %s1297, 3
      %s1299 = smul.addr %s1298, 8
      %s1300 = scalar_lea.vmem %s3, %s1299
      // Predicated region
      $region33: #{single_forward.3} parent=31 // pred_check
        %p1301 = pneg %p100
      $region34: #{single_forward.3} parent=31 // pred_check_branch
        %1303 = sbr.rel (%p1301) target = $region36
      $region35: #{single_forward.3} parent=31 // pred_region
        %s1304 = smul.u32 8, %s14
      $region36: #{single_forward.3} parent=31 // pred_fallthru
        _
    $region32: #{single_forward.3} parent=5 // pred_fallthru
      _
    %p1305 = scmp.le.s32.totalorder 2, %s9
    // Predicated region
    $region37: #{single_forward.3} parent=5 // pred_check
      %p1306 = pneg %p1305
    $region38: #{single_forward.3} parent=5 // pred_check_branch
      %1308 = sbr.rel (%p1306) target = $region40
    $region39: #{single_forward.3} parent=5 // pred_region
      %s1309 = ssub.s32 %s9, 2
      // Predicated region
      $region41: #{single_forward.3} parent=39 // pred_check
        %p1310 = pneg %p106
      $region42: #{single_forward.3} parent=39 // pred_check_branch
        %1312 = sbr.rel (%p1310) target = $region44
      $region43: #{single_forward.3} parent=39 // pred_region
        %s1313 = smul.u32 8, %s15
        %p1314 = scmp.lt.s32.totalorder %s1313, 15
        %s1315 = scalar_select %p1314, %s1313, 15
        %s1316 = smul.addr %s1315, 3
        %s1317 = smul.addr %s1316, 8
        %s1318 = scalar_lea.vmem %s3, %s1317
      $region44: #{single_forward.3} parent=39 // pred_fallthru
        _
    $region40: #{single_forward.3} parent=5 // pred_fallthru
      _
  $region6: #{single_forward.3} parent=0 // loop_footer
    %s13 = sadd.s32 1, %s9
  $region7: #{single_forward.3} parent=0 // loop_footer_branch
    %8 = sbr.rel target = $region3
  $region8: #{single_forward.3} parent=0 // loop_exit
    _

// kernel: single_forward.5
$region0: #{single_forward.5}
  #allocation0 [shape = 'u32[]', space=smem, size = 0x4, offset = 0x4, fixed_abs, tag = 'smem constant byte address 0x4 - core index']
  #allocation1 [shape = 'u32[72,128]{1,0:T(1,128)}', space=vmem, size = 0x9000, scoped, tag = 'internal scratch']
  %s0 = inlined_call_operand.vmem [shape: f32[2,10,10,128], index: 0, kind: input, shape index: {}]
  %s1 = inlined_call_operand.vmem [shape: bf16[1152,128], index: 1, kind: input, shape index: {}]
  %s2 = inlined_call_operand.vmem [shape: f32[1,128], index: 2, kind: input, shape index: {}]
  %s3 = inlined_call_operand.vmem [shape: f32[2,7,7,128], index: 3, kind: output, shape index: {}]
  %s4 = sld [smem:[#allocation0]]
  $region45: #{single_forward.5} parent=0
    _
  %s6 = ssub.s32 1, %s4
  %s7 = scalar_select 0, %s6, %s4
  loop: start=0, step=1, limit=4
  $region2: #{single_forward.5} parent=0 // loop_pre_header
    _
  $region3: #{single_forward.5} parent=0 // loop_header
    %s9 = sphi 0, %s13
    %p10 = scmp.ge.s32.totalorder %s9, 4
    %s19 = sphi 0, %s21
    %s22 = sphi 0, %s19
    %s23 = sphi 0, %s22
    %s39 = sphi 0, %s23
    %s43 = sphi 0, %s43
    %s45 = sphi 0, %s43
    %s46 = sphi 0, %s45
    %s60 = sphi 0, %s46
    %s64 = sphi 0, %s64
    %s66 = sphi 0, %s64
    %s67 = sphi 0, %s66
    %s81 = sphi 0, %s67
    %s87 = sphi 0, %s89
    %s90 = sphi 0, %s87
    %s91 = sphi 0, %s90
    %s107 = sphi 0, %s91
  $region4: #{single_forward.5} parent=0 // loop_header_branch
    %12 = sbr.rel (%p10) target = $region8
  $region5: #{single_forward.5} parent=0 // loop_body
    %s14 = ssub.s32 %s9, 1
    %s15 = ssub.s32 %s9, 2
    %s16 = sadd.s32 %s9, 1
    %s17 = ssub.s32 %s9, %s16
    %p18 = scmp.eq.s32.totalorder %s17, 0
    %s20 = sadd.s32 %s19, 1
    %s21 = scalar_select %p18, %s19, %s20
    %p24 = pneg %p18
    %p25 = scmp.eq.s32.totalorder %s9, 1
    %p26 = por %p24, %p25
    %p27 = scmp.ne.s32.totalorder %s19, %s22
    %p28 = scmp.eq.s32.totalorder %s9, 0
    %p29 = por %p27, %p28
    %p30 = scmp.ne.s32.totalorder %s19, %s22
    %p31 = scmp.eq.s32.totalorder %s14, 1
    %p32 = por %p30, %p31
    %p33 = scmp.ne.s32.totalorder %s22, %s23
    %p34 = scmp.eq.s32.totalorder %s14, 0
    %p35 = por %p33, %p34
    %p36 = scmp.ne.s32.totalorder %s22, %s23
    %p37 = scmp.eq.s32.totalorder %s15, 1
    %p38 = por %p36, %p37
    %p40 = scmp.ne.s32.totalorder %s23, %s39
    %p41 = scmp.eq.s32.totalorder %s15, 0
    %p42 = por %p40, %p41
    %s44 = sadd.s32 %s43, 1
    %p47 = scmp.eq.s32.totalorder %s9, 1
    %p48 = scmp.ne.s32.totalorder %s43, %s45
    %p49 = scmp.eq.s32.totalorder %s9, 0
    %p50 = por %p48, %p49
    %p51 = scmp.ne.s32.totalorder %s43, %s45
    %p52 = scmp.eq.s32.totalorder %s14, 1
    %p53 = por %p51, %p52
    %p54 = scmp.ne.s32.totalorder %s45, %s46
    %p55 = scmp.eq.s32.totalorder %s14, 0
    %p56 = por %p54, %p55
    %p57 = scmp.ne.s32.totalorder %s45, %s46
    %p58 = scmp.eq.s32.totalorder %s15, 1
    %p59 = por %p57, %p58
    %p61 = scmp.ne.s32.totalorder %s46, %s60
    %p62 = scmp.eq.s32.totalorder %s15, 0
    %p63 = por %p61, %p62
    %s65 = sadd.s32 %s64, 1
    %p68 = scmp.eq.s32.totalorder %s9, 1
    %p69 = scmp.ne.s32.totalorder %s64, %s66
    %p70 = scmp.eq.s32.totalorder %s9, 0
    %p71 = por %p69, %p70
    %p72 = scmp.ne.s32.totalorder %s64, %s66
    %p73 = scmp.eq.s32.totalorder %s14, 1
    %p74 = por %p72, %p73
    %p75 = scmp.ne.s32.totalorder %s66, %s67
    %p76 = scmp.eq.s32.totalorder %s14, 0
    %p77 = por %p75, %p76
    %p78 = scmp.ne.s32.totalorder %s66, %s67
    %p79 = scmp.eq.s32.totalorder %s15, 1
    %p80 = por %p78, %p79
    %p82 = scmp.ne.s32.totalorder %s67, %s81
    %p83 = scmp.eq.s32.totalorder %s15, 0
    %p84 = por %p82, %p83
    %s85 = ssub.s32 %s9, %s16
    %p86 = scmp.eq.s32.totalorder %s85, 0
    %s88 = sadd.s32 %s87, 1
    %s89 = scalar_select %p86, %s87, %s88
    %p92 = pneg %p86
    %p93 = scmp.eq.s32.totalorder %s9, 1
    %p94 = por %p92, %p93
    %p95 = scmp.ne.s32.totalorder %s87, %s90
    %p96 = scmp.eq.s32.totalorder %s9, 0
    %p97 = por %p95, %p96
    %p98 = scmp.ne.s32.totalorder %s87, %s90
    %p99 = scmp.eq.s32.totalorder %s14, 1
    %p100 = por %p98, %p99
    %p101 = scmp.ne.s32.totalorder %s90, %s91
    %p102 = scmp.eq.s32.totalorder %s14, 0
    %p103 = por %p101, %p102
    %p104 = scmp.ne.s32.totalorder %s90, %s91
    %p105 = scmp.eq.s32.totalorder %s15, 1
    %p106 = por %p104, %p105
    %p108 = scmp.ne.s32.totalorder %s91, %s107
    %p109 = scmp.eq.s32.totalorder %s15, 0
    %p110 = por %p108, %p109
    %p111 = scmp.le.s32.totalorder 1, %s9
    %p112 = scmp.lt.s32.totalorder %s9, 3
    %p113 = pnand %p111, %p112
    %p114 = pneg %p113
    // Predicated region
    $region9: #{single_forward.5} parent=5 // pred_check
      _
    $region10: #{single_forward.5} parent=5 // pred_check_branch
      %116 = sbr.rel (%p113) target = $region12
    $region11: #{single_forward.5} parent=5 // pred_region
      %s117 = ssub.s32 %s9, 1
      // Predicated region
      $region13: #{single_forward.5} parent=11 // pred_check
        %p118 = pneg %p56
      $region14: #{single_forward.5} parent=11 // pred_check_branch
        %120 = sbr.rel (%p118) target = $region16
      $region15: #{single_forward.5} parent=11 // pred_region
        _
      $region16: #{single_forward.5} parent=11 // pred_fallthru
        _
      // Predicated region
      $region17: #{single_forward.5} parent=11 // pred_check
        %p121 = pneg %p77
      $region18: #{single_forward.5} parent=11 // pred_check_branch
        %123 = sbr.rel (%p121) target = $region20
      $region19: #{single_forward.5} parent=11 // pred_region
        _
      $region20: #{single_forward.5} parent=11 // pred_fallthru
        _
    $region12: #{single_forward.5} parent=5 // pred_fallthru
      _
    %p124 = scmp.lt.s32.totalorder %s9, 2
    // Predicated region
    $region21: #{single_forward.5} parent=5 // pred_check
      %p125 = pneg %p124
    $region22: #{single_forward.5} parent=5 // pred_check_branch
      %127 = sbr.rel (%p125) target = $region24
    $region23: #{single_forward.5} parent=5 // pred_region
      // Predicated region
      $region25: #{single_forward.5} parent=23 // pred_check
        %p128 = pneg %p29
      $region26: #{single_forward.5} parent=23 // pred_check_branch
        %130 = sbr.rel (%p128) target = $region28
      $region27: #{single_forward.5} parent=23 // pred_region
        %p131 = scmp.lt.s32.totalorder %s9, 1
        %s132 = scalar_select %p131, %s9, 1
        %s133 = smul.addr %s132, 20
        %s134 = smul.addr %s133, 8
        %s135 = scalar_lea.vmem %s0, %s134
      $region28: #{single_forward.5} parent=23 // pred_fallthru
        _
    $region24: #{single_forward.5} parent=5 // pred_fallthru
      _
    %p136 = scmp.le.s32.totalorder 1, %s9
    %p137 = scmp.lt.s32.totalorder %s9, 3
    %p138 = pnand %p136, %p137
    %p139 = pneg %p138
    // Predicated region
    $region29: #{single_forward.5} parent=5 // pred_check
      _
    $region30: #{single_forward.5} parent=5 // pred_check_branch
      %141 = sbr.rel (%p138) target = $region32
    $region31: #{single_forward.5} parent=5 // pred_region
      %s142 = ssub.s32 %s9, 1
      %p143 = scmp.lt.s32.totalorder %s14, 1
      %s144 = scalar_select %p143, %s14, 1
      %s145 = smul.addr %s144, 20
      %s146 = smul.addr %s145, 8
      %s147 = scalar_lea.vmem %s0, %s146
      %p148 = pneg %p35
      %p149 = pneg %p32
      %p150 = pneg %p56
      %p151 = pneg %p53
      %p152 = pneg %p77
      %p153 = pneg %p74
      %p154 = pneg %p103
      %p155 = pneg %p100
      %p156 = scmp.lt.s32.totalorder %s14, 1
      %s157 = scalar_select %p156, %s14, 1
      %s158 = smul.addr %s157, 7
      %s159 = smul.addr %s158, 8
      %s160 = scalar_lea.vmem %s3, %s159
      %p161 = scmp.lt.s32.totalorder %s14, 1
      %s162 = scalar_select %p161, %s14, 1
      %s163 = smul.addr %s162, 20
      %s164 = smul.addr %s163, 8
      %s165 = scalar_lea.vmem %s0, %s164
      %p166 = scmp.lt.s32.totalorder %s14, 1
      %s167 = scalar_select %p166, %s14, 1
      %s168 = smul.addr %s167, 7
      %s169 = smul.addr %s168, 8
      %s170 = scalar_lea.vmem %s3, %s169
      %v171 = vld [vmem:[%s165] sm:$0xff]
      %v172 = vld [vmem:[%s165 + $0x8] sm:$0x3]
      %v173 = vld [vmem:[%s165 + $0x10] sm:$0xff]
      %v174 = vld [vmem:[%s165 + $0x18] sm:$0x3]
      %v175 = vld [vmem:[%s165 + $0x20] sm:$0xff]
      %v176 = vld [vmem:[%s165 + $0x28] sm:$0x3]
      %v177 = vld [vmem:[%s165 + $0x30] sm:$0xff]
      %v178 = vld [vmem:[%s165 + $0x38] sm:$0x3]
      %v179 = vld [vmem:[%s165 + $0x40] sm:$0xff]
      %v180 = vld [vmem:[%s165 + $0x48] sm:$0x3]
      %v181 = vld [vmem:[%s165 + $0x50] sm:$0xff]
      %v182 = vld [vmem:[%s165 + $0x58] sm:$0x3]
      %v183 = vld [vmem:[%s165 + $0x60] sm:$0xff]
      %v184 = vld [vmem:[%s165 + $0x68] sm:$0x3]
      %v185 = vld [vmem:[%s165 + $0x70] sm:$0xff]
      %v186 = vld [vmem:[%s165 + $0x78] sm:$0x3]
      %v187 = vld [vmem:[%s165 + $0x80] sm:$0xff]
      %v188 = vld [vmem:[%s165 + $0x88] sm:$0x3]
      %v189 = vld [vmem:[%s165 + $0x90] sm:$0xff]
      %v190 = vld [vmem:[%s165 + $0x98] sm:$0x3]
      %v191 = vpack.c.bf16 %v171, %v171
      %v192 = vpack.c.bf16 %v172, %v172
      %v193 = vpack.c.bf16 %v173, %v173
      %v194 = vpack.c.bf16 %v174, %v174
      %v195 = vpack.c.bf16 %v175, %v175
      %v196 = vpack.c.bf16 %v176, %v176
      %v197 = vpack.c.bf16 %v177, %v177
      %v198 = vpack.c.bf16 %v178, %v178
      %v199 = vpack.c.bf16 %v179, %v179
      %v200 = vpack.c.bf16 %v180, %v180
      %v201 = vpack.c.bf16 %v181, %v181
      %v202 = vpack.c.bf16 %v182, %v182
      %v203 = vpack.c.bf16 %v183, %v183
      %v204 = vpack.c.bf16 %v184, %v184
      %v205 = vpack.c.bf16 %v185, %v185
      %v206 = vpack.c.bf16 %v186, %v186
      %v207 = vpack.c.bf16 %v187, %v187
      %v208 = vpack.c.bf16 %v188, %v188
      %v209 = vpack.c.bf16 %v189, %v189
      %v210 = vpack.c.bf16 %v190, %v190
      %v227 = vunpack.c.l.b16 %v191
      %v228 = vunpack.c.l.b16 %v192
      %v229 = vunpack.c.l.b16 %v193
      %v230 = vunpack.c.l.b16 %v194
      %v231 = vunpack.c.l.b16 %v195
      %v232 = vunpack.c.l.b16 %v196
      %v233 = vunpack.c.l.b16 %v197
      %v234 = vunpack.c.l.b16 %v198
      %v235 = vunpack.c.l.b16 %v199
      %v236 = vunpack.c.l.b16 %v200
      %v237 = vunpack.c.l.b16 %v201
      %v238 = vunpack.c.l.b16 %v202
      %v239 = vunpack.c.l.b16 %v203
      %v240 = vunpack.c.l.b16 %v204
      %v241 = vunpack.c.l.b16 %v205
      %v242 = vunpack.c.l.b16 %v206
      %v243 = vpack.c.b16 %v228, %v227
      %v244 = vpack.c.b16 %v230, %v229
      %v245 = vpack.c.b16 %v232, %v231
      %v246 = vpack.c.b16 %v234, %v233
      %v247 = vpack.c.b16 %v236, %v235
      %v248 = vpack.c.b16 %v238, %v237
      %v249 = vpack.c.b16 %v240, %v239
      %v250 = vpack.c.b16 %v242, %v241
      %v252 = vshrl.u32 %v243, 16
      %v254 = vshll.u32 %v243, 16
      %v256 = vrot.slane %v254, 1
      %v257 = vor.u32 %v252, %v256
      %v259 = vshrl.u32 %v244, 16
      %v261 = vshll.u32 %v244, 16
      %v263 = vrot.slane %v261, 1
      %v264 = vor.u32 %v259, %v263
      %v266 = vshrl.u32 %v245, 16
      %v268 = vshll.u32 %v245, 16
      %v270 = vrot.slane %v268, 1
      %v271 = vor.u32 %v266, %v270
      %v273 = vshrl.u32 %v246, 16
      %v275 = vshll.u32 %v246, 16
      %v277 = vrot.slane %v275, 1
      %v278 = vor.u32 %v273, %v277
      %v280 = vshrl.u32 %v247, 16
      %v282 = vshll.u32 %v247, 16
      %v284 = vrot.slane %v282, 1
      %v285 = vor.u32 %v280, %v284
      %v287 = vshrl.u32 %v248, 16
      %v289 = vshll.u32 %v248, 16
      %v291 = vrot.slane %v289, 1
      %v292 = vor.u32 %v287, %v291
      %v294 = vshrl.u32 %v249, 16
      %v296 = vshll.u32 %v249, 16
      %v298 = vrot.slane %v296, 1
      %v299 = vor.u32 %v294, %v298
      %v301 = vshrl.u32 %v250, 16
      %v303 = vshll.u32 %v250, 16
      %v305 = vrot.slane %v303, 1
      %v306 = vor.u32 %v301, %v305
      %v307 = vrot.slane %v243, 1
      %v308 = vrot.slane %v244, 1
      %v309 = vrot.slane %v245, 1
      %v310 = vrot.slane %v246, 1
      %v311 = vrot.slane %v247, 1
      %v312 = vrot.slane %v248, 1
      %v313 = vrot.slane %v249, 1
      %v314 = vrot.slane %v250, 1
      %v317 = vunpack.c.l.b16 %v207
      %v318 = vunpack.c.l.b16 %v208
      %v319 = vpack.c.b16 %v318, %v317
      %v321 = vshrl.u32 %v319, 16
      %v323 = vshll.u32 %v319, 16
      %v325 = vrot.slane %v323, 1
      %v326 = vor.u32 %v321, %v325
      %v327 = vrot.slane %v319, 1
      %v330 = vunpack.c.l.b16 %v209
      %v331 = vunpack.c.l.b16 %v210
      %v332 = vpack.c.b16 %v331, %v330
      %v334 = vshrl.u32 %v332, 16
      %v336 = vshll.u32 %v332, 16
      %v338 = vrot.slane %v336, 1
      %v339 = vor.u32 %v334, %v338
      %v340 = vrot.slane %v332, 1
      %v341 = vunpack.c.l.b16 %v257
      %v342 = vunpack.c.l.b16 %v307
      %v343 = vunpack.c.l.b16 %v264
      %v344 = vunpack.c.l.b16 %v308
      %v345 = vunpack.c.l.b16 %v271
      %v346 = vunpack.c.l.b16 %v309
      %v347 = vunpack.c.l.b16 %v278
      %v348 = vunpack.c.l.b16 %v310
      %v349 = vunpack.c.l.b16 %v285
      %v350 = vunpack.c.l.b16 %v311
      %v351 = vunpack.c.l.b16 %v292
      %v352 = vunpack.c.l.b16 %v312
      %v353 = vunpack.c.l.b16 %v299
      %v354 = vunpack.c.l.b16 %v313
      %v355 = vunpack.c.l.b16 %v306
      %v356 = vunpack.c.l.b16 %v314
      %v357 = vunpack.c.l.b16 %v326
      %v358 = vunpack.c.l.b16 %v327
      %v359 = vunpack.c.l.b16 %v339
      %v360 = vunpack.c.l.b16 %v340
      %v361 = vld [vmem:[%s1] sm:$0xf]
      %v362 = vld [vmem:[%s1 + $0x4] sm:$0xf]
      %v363 = vld [vmem:[%s1 + $0x8] sm:$0xf]
      %v364 = vld [vmem:[%s1 + $0xc] sm:$0xf]
      %v365 = vld [vmem:[%s1 + $0x10] sm:$0xf]
      %v366 = vld [vmem:[%s1 + $0x14] sm:$0xf]
      %v367 = vld [vmem:[%s1 + $0x18] sm:$0xf]
      %v368 = vld [vmem:[%s1 + $0x1c] sm:$0xf]
      %v369 = vld [vmem:[%s1 + $0x20] sm:$0xf]
      %v370 = vld [vmem:[%s1 + $0x24] sm:$0xf]
      %v371 = vld [vmem:[%s1 + $0x28] sm:$0xf]
      %v372 = vld [vmem:[%s1 + $0x2c] sm:$0xf]
      %v373 = vld [vmem:[%s1 + $0x30] sm:$0xf]
      %v374 = vld [vmem:[%s1 + $0x34] sm:$0xf]
      %v375 = vld [vmem:[%s1 + $0x38] sm:$0xf]
      %v376 = vld [vmem:[%s1 + $0x3c] sm:$0xf]
      %v377 = vld [vmem:[%s1 + $0x40] sm:$0xf]
      %v378 = vld [vmem:[%s1 + $0x44] sm:$0xf]
      %v379 = vld [vmem:[%s1 + $0x48] sm:$0xf]
      %v380 = vld [vmem:[%s1 + $0x4c] sm:$0xf]
      %v381 = vld [vmem:[%s1 + $0x50] sm:$0xf]
      %v382 = vld [vmem:[%s1 + $0x54] sm:$0xf]
      %v383 = vld [vmem:[%s1 + $0x58] sm:$0xf]
      %v384 = vld [vmem:[%s1 + $0x5c] sm:$0xf]
      %v385 = vld [vmem:[%s1 + $0x60] sm:$0xf]
      %v386 = vld [vmem:[%s1 + $0x64] sm:$0xf]
      %v387 = vld [vmem:[%s1 + $0x68] sm:$0xf]
      %v388 = vld [vmem:[%s1 + $0x6c] sm:$0xf]
      %v389 = vld [vmem:[%s1 + $0x70] sm:$0xf]
      %v390 = vld [vmem:[%s1 + $0x74] sm:$0xf]
      %v391 = vld [vmem:[%s1 + $0x78] sm:$0xf]
      %v392 = vld [vmem:[%s1 + $0x7c] sm:$0xf]
      %v393 = vld [vmem:[%s1 + $0x80] sm:$0xf]
      %v394 = vld [vmem:[%s1 + $0x84] sm:$0xf]
      %v395 = vld [vmem:[%s1 + $0x88] sm:$0xf]
      %v396 = vld [vmem:[%s1 + $0x8c] sm:$0xf]
      %v397 = vld [vmem:[%s1 + $0x90] sm:$0xf]
      %v398 = vld [vmem:[%s1 + $0x94] sm:$0xf]
      %v399 = vld [vmem:[%s1 + $0x98] sm:$0xf]
      %v400 = vld [vmem:[%s1 + $0x9c] sm:$0xf]
      %v401 = vld [vmem:[%s1 + $0xa0] sm:$0xf]
      %v402 = vld [vmem:[%s1 + $0xa4] sm:$0xf]
      %v403 = vld [vmem:[%s1 + $0xa8] sm:$0xf]
      %v404 = vld [vmem:[%s1 + $0xac] sm:$0xf]
      %v405 = vld [vmem:[%s1 + $0xb0] sm:$0xf]
      %v406 = vld [vmem:[%s1 + $0xb4] sm:$0xf]
      %v407 = vld [vmem:[%s1 + $0xb8] sm:$0xf]
      %v408 = vld [vmem:[%s1 + $0xbc] sm:$0xf]
      %v409 = vld [vmem:[%s1 + $0xc0] sm:$0xf]
      %v410 = vld [vmem:[%s1 + $0xc4] sm:$0xf]
      %v411 = vld [vmem:[%s1 + $0xc8] sm:$0xf]
      %v412 = vld [vmem:[%s1 + $0xcc] sm:$0xf]
      %v413 = vld [vmem:[%s1 + $0xd0] sm:$0xf]
      %v414 = vld [vmem:[%s1 + $0xd4] sm:$0xf]
      %v415 = vld [vmem:[%s1 + $0xd8] sm:$0xf]
      %v416 = vld [vmem:[%s1 + $0xdc] sm:$0xf]
      %v417 = vld [vmem:[%s1 + $0xe0] sm:$0xf]
      %v418 = vld [vmem:[%s1 + $0xe4] sm:$0xf]
      %v419 = vld [vmem:[%s1 + $0xe8] sm:$0xf]
      %v420 = vld [vmem:[%s1 + $0xec] sm:$0xf]
      %v421 = vld [vmem:[%s1 + $0xf0] sm:$0xf]
      %v422 = vld [vmem:[%s1 + $0xf4] sm:$0xf]
      %v423 = vld [vmem:[%s1 + $0xf8] sm:$0xf]
      %v424 = vld [vmem:[%s1 + $0xfc] sm:$0xf]
      %v425 = vld [vmem:[%s1 + $0x100] sm:$0xf]
      %v426 = vld [vmem:[%s1 + $0x104] sm:$0xf]
      %v427 = vld [vmem:[%s1 + $0x108] sm:$0xf]
      %v428 = vld [vmem:[%s1 + $0x10c] sm:$0xf]
      %v429 = vld [vmem:[%s1 + $0x110] sm:$0xf]
      %v430 = vld [vmem:[%s1 + $0x114] sm:$0xf]
      %v431 = vld [vmem:[%s1 + $0x118] sm:$0xf]
      %v432 = vld [vmem:[%s1 + $0x11c] sm:$0xf]
      %v433 = vld [vmem:[%s1 + $0x120] sm:$0xf]
      %v434 = vld [vmem:[%s1 + $0x124] sm:$0xf]
      %v435 = vld [vmem:[%s1 + $0x128] sm:$0xf]
      %v436 = vld [vmem:[%s1 + $0x12c] sm:$0xf]
      %v437 = vld [vmem:[%s1 + $0x130] sm:$0xf]
      %v438 = vld [vmem:[%s1 + $0x134] sm:$0xf]
      %v439 = vld [vmem:[%s1 + $0x138] sm:$0xf]
      %v440 = vld [vmem:[%s1 + $0x13c] sm:$0xf]
      %v441 = vld [vmem:[%s1 + $0x140] sm:$0xf]
      %v442 = vld [vmem:[%s1 + $0x144] sm:$0xf]
      %v443 = vld [vmem:[%s1 + $0x148] sm:$0xf]
      %v444 = vld [vmem:[%s1 + $0x14c] sm:$0xf]
      %v445 = vld [vmem:[%s1 + $0x150] sm:$0xf]
      %v446 = vld [vmem:[%s1 + $0x154] sm:$0xf]
      %v447 = vld [vmem:[%s1 + $0x158] sm:$0xf]
      %v448 = vld [vmem:[%s1 + $0x15c] sm:$0xf]
      %v449 = vld [vmem:[%s1 + $0x160] sm:$0xf]
      %v450 = vld [vmem:[%s1 + $0x164] sm:$0xf]
      %v451 = vld [vmem:[%s1 + $0x168] sm:$0xf]
      %v452 = vld [vmem:[%s1 + $0x16c] sm:$0xf]
      %v453 = vld [vmem:[%s1 + $0x170] sm:$0xf]
      %v454 = vld [vmem:[%s1 + $0x174] sm:$0xf]
      %v455 = vld [vmem:[%s1 + $0x178] sm:$0xf]
      %v456 = vld [vmem:[%s1 + $0x17c] sm:$0xf]
      %v457 = vld [vmem:[%s1 + $0x180] sm:$0xf]
      %v458 = vld [vmem:[%s1 + $0x184] sm:$0xf]
      %v459 = vld [vmem:[%s1 + $0x188] sm:$0xf]
      %v460 = vld [vmem:[%s1 + $0x18c] sm:$0xf]
      %v461 = vld [vmem:[%s1 + $0x190] sm:$0xf]
      %v462 = vld [vmem:[%s1 + $0x194] sm:$0xf]
      %v463 = vld [vmem:[%s1 + $0x198] sm:$0xf]
      %v464 = vld [vmem:[%s1 + $0x19c] sm:$0xf]
      %v465 = vld [vmem:[%s1 + $0x1a0] sm:$0xf]
      %v466 = vld [vmem:[%s1 + $0x1a4] sm:$0xf]
      %v467 = vld [vmem:[%s1 + $0x1a8] sm:$0xf]
      %v468 = vld [vmem:[%s1 + $0x1ac] sm:$0xf]
      %v469 = vld [vmem:[%s1 + $0x1b0] sm:$0xf]
      %v470 = vld [vmem:[%s1 + $0x1b4] sm:$0xf]
      %v471 = vld [vmem:[%s1 + $0x1b8] sm:$0xf]
      %v472 = vld [vmem:[%s1 + $0x1bc] sm:$0xf]
      %v473 = vld [vmem:[%s1 + $0x1c0] sm:$0xf]
      %v474 = vld [vmem:[%s1 + $0x1c4] sm:$0xf]
      %v475 = vld [vmem:[%s1 + $0x1c8] sm:$0xf]
      %v476 = vld [vmem:[%s1 + $0x1cc] sm:$0xf]
      %v477 = vld [vmem:[%s1 + $0x1d0] sm:$0xf]
      %v478 = vld [vmem:[%s1 + $0x1d4] sm:$0xf]
      %v479 = vld [vmem:[%s1 + $0x1d8] sm:$0xf]
      %v480 = vld [vmem:[%s1 + $0x1dc] sm:$0xf]
      %v481 = vld [vmem:[%s1 + $0x1e0] sm:$0xf]
      %v482 = vld [vmem:[%s1 + $0x1e4] sm:$0xf]
      %v483 = vld [vmem:[%s1 + $0x1e8] sm:$0xf]
      %v484 = vld [vmem:[%s1 + $0x1ec] sm:$0xf]
      %v485 = vld [vmem:[%s1 + $0x1f0] sm:$0xf]
      %v486 = vld [vmem:[%s1 + $0x1f4] sm:$0xf]
      %v487 = vld [vmem:[%s1 + $0x1f8] sm:$0xf]
      %v488 = vld [vmem:[%s1 + $0x1fc] sm:$0xf]
      %v489 = vld [vmem:[%s1 + $0x200] sm:$0xf]
      %v490 = vld [vmem:[%s1 + $0x204] sm:$0xf]
      %v491 = vld [vmem:[%s1 + $0x208] sm:$0xf]
      %v492 = vld [vmem:[%s1 + $0x20c] sm:$0xf]
      %v493 = vld [vmem:[%s1 + $0x210] sm:$0xf]
      %v494 = vld [vmem:[%s1 + $0x214] sm:$0xf]
      %v495 = vld [vmem:[%s1 + $0x218] sm:$0xf]
      %v496 = vld [vmem:[%s1 + $0x21c] sm:$0xf]
      %v497 = vld [vmem:[%s1 + $0x220] sm:$0xf]
      %v498 = vld [vmem:[%s1 + $0x224] sm:$0xf]
      %v499 = vld [vmem:[%s1 + $0x228] sm:$0xf]
      %v500 = vld [vmem:[%s1 + $0x22c] sm:$0xf]
      %v501 = vld [vmem:[%s1 + $0x230] sm:$0xf]
      %v502 = vld [vmem:[%s1 + $0x234] sm:$0xf]
      %v503 = vld [vmem:[%s1 + $0x238] sm:$0xf]
      %v504 = vld [vmem:[%s1 + $0x23c] sm:$0xf]
      %v505 = vld [vmem:[%s2] sm:$0x1]
      %v507 = vperm.slane %v505, 0
      %v509 = vpack.c.b16 %v229, %v227
      %v510 = vpack.c.b16 %v343, %v341
      %v511 = vpack.c.b16 %v344, %v342
      %v512 = vpack.c.b16 %v231, %v229
      %v513 = vpack.c.b16 %v345, %v343
      %v514 = vpack.c.b16 %v346, %v344
      %v515 = vpack.c.b16 %v233, %v231
      %v516 = vpack.c.b16 %v347, %v345
      %v517 = vpack.c.b16 %v348, %v346
      %v518 = vpack.c.b16 %v235, %v233
      %v519 = vpack.c.b16 %v349, %v347
      %v520 = vpack.c.b16 %v350, %v348
      %v521 = vpack.c.b16 %v237, %v235
      %v522 = vpack.c.b16 %v351, %v349
      %v523 = vpack.c.b16 %v352, %v350
      %v524 = vpack.c.b16 %v239, %v237
      %v525 = vpack.c.b16 %v353, %v351
      %v526 = vpack.c.b16 %v354, %v352
      %v527 = vpack.c.b16 %v241, %v239
      %v528 = vpack.c.b16 %v355, %v353
      %v529 = vpack.c.b16 %v356, %v354
      %v530 = vpack.c.b16 %v317, %v241
      %v531 = vpack.c.b16 %v357, %v355
      %v532 = vpack.c.b16 %v358, %v356
      %v533 = vpack.c.b16 %v330, %v317
      %v534 = vpack.c.b16 %v359, %v357
      %v535 = vpack.c.b16 %v360, %v358
      %v707 = vunpack.c.l.b16 %v361
      %v708 = vunpack.c.l.b16 %v362
      %v709 = vunpack.c.l.b16 %v363
      %v710 = vunpack.c.l.b16 %v364
      %v711 = vunpack.c.l.b16 %v365
      %v712 = vunpack.c.l.b16 %v366
      %v713 = vunpack.c.l.b16 %v367
      %v714 = vunpack.c.l.b16 %v368
      %v715 = vunpack.c.l.b16 %v369
      %v716 = vunpack.c.l.b16 %v370
      %v717 = vunpack.c.l.b16 %v371
      %v718 = vunpack.c.l.b16 %v372
      %v719 = vunpack.c.l.b16 %v373
      %v720 = vunpack.c.l.b16 %v374
      %v721 = vunpack.c.l.b16 %v375
      %v722 = vunpack.c.l.b16 %v376
      %v723 = vunpack.c.l.b16 %v377
      %v724 = vunpack.c.l.b16 %v378
      %v725 = vunpack.c.l.b16 %v379
      %v726 = vunpack.c.l.b16 %v380
      %v727 = vunpack.c.l.b16 %v381
      %v728 = vunpack.c.l.b16 %v382
      %v729 = vunpack.c.l.b16 %v383
      %v730 = vunpack.c.l.b16 %v384
      %v731 = vunpack.c.l.b16 %v385
      %v732 = vunpack.c.l.b16 %v386
      %v733 = vunpack.c.l.b16 %v387
      %v734 = vunpack.c.l.b16 %v388
      %v735 = vunpack.c.l.b16 %v389
      %v736 = vunpack.c.l.b16 %v390
      %v737 = vunpack.c.l.b16 %v391
      %v738 = vunpack.c.l.b16 %v392
      %v739 = vunpack.c.l.b16 %v393
      %v740 = vunpack.c.l.b16 %v394
      %v741 = vunpack.c.l.b16 %v395
      %v742 = vunpack.c.l.b16 %v396
      %v743 = vunpack.c.l.b16 %v397
      %v744 = vunpack.c.l.b16 %v398
      %v745 = vunpack.c.l.b16 %v399
      %v746 = vunpack.c.l.b16 %v400
      %v747 = vunpack.c.l.b16 %v401
      %v748 = vunpack.c.l.b16 %v402
      %v749 = vunpack.c.l.b16 %v403
      %v750 = vunpack.c.l.b16 %v404
      %v751 = vunpack.c.l.b16 %v405
      %v752 = vunpack.c.l.b16 %v406
      %v753 = vunpack.c.l.b16 %v407
      %v754 = vunpack.c.l.b16 %v408
      %v755 = vunpack.c.l.b16 %v409
      %v756 = vunpack.c.l.b16 %v410
      %v757 = vunpack.c.l.b16 %v411
      %v758 = vunpack.c.l.b16 %v412
      %v759 = vunpack.c.l.b16 %v413
      %v760 = vunpack.c.l.b16 %v414
      %v761 = vunpack.c.l.b16 %v415
      %v762 = vunpack.c.l.b16 %v416
      %v763 = vunpack.c.l.b16 %v417
      %v764 = vunpack.c.l.b16 %v418
      %v765 = vunpack.c.l.b16 %v419
      %v766 = vunpack.c.l.b16 %v420
      %v767 = vunpack.c.l.b16 %v421
      %v768 = vunpack.c.l.b16 %v422
      %v769 = vunpack.c.l.b16 %v423
      %v770 = vunpack.c.l.b16 %v424
      %v771 = vunpack.c.l.b16 %v425
      %v772 = vunpack.c.l.b16 %v426
      %v773 = vunpack.c.l.b16 %v427
      %v774 = vunpack.c.l.b16 %v428
      %v775 = vunpack.c.l.b16 %v429
      %v776 = vunpack.c.l.b16 %v430
      %v777 = vunpack.c.l.b16 %v431
      %v778 = vunpack.c.l.b16 %v432
      %v779 = vunpack.c.l.b16 %v433
      %v780 = vunpack.c.l.b16 %v434
      %v781 = vunpack.c.l.b16 %v435
      %v782 = vunpack.c.l.b16 %v436
      %v783 = vunpack.c.l.b16 %v437
      %v784 = vunpack.c.l.b16 %v438
      %v785 = vunpack.c.l.b16 %v439
      %v786 = vunpack.c.l.b16 %v440
      %v787 = vunpack.c.l.b16 %v441
      %v788 = vunpack.c.l.b16 %v442
      %v789 = vunpack.c.l.b16 %v443
      %v790 = vunpack.c.l.b16 %v444
      %v791 = vunpack.c.l.b16 %v445
      %v792 = vunpack.c.l.b16 %v446
      %v793 = vunpack.c.l.b16 %v447
      %v794 = vunpack.c.l.b16 %v448
      %v795 = vunpack.c.l.b16 %v449
      %v796 = vunpack.c.l.b16 %v450
      %v797 = vunpack.c.l.b16 %v451
      %v798 = vunpack.c.l.b16 %v452
      %v799 = vunpack.c.l.b16 %v453
      %v800 = vunpack.c.l.b16 %v454
      %v801 = vunpack.c.l.b16 %v455
      %v802 = vunpack.c.l.b16 %v456
      %v803 = vunpack.c.l.b16 %v457
      %v804 = vunpack.c.l.b16 %v458
      %v805 = vunpack.c.l.b16 %v459
      %v806 = vunpack.c.l.b16 %v460
      %v807 = vunpack.c.l.b16 %v461
      %v808 = vunpack.c.l.b16 %v462
      %v809 = vunpack.c.l.b16 %v463
      %v810 = vunpack.c.l.b16 %v464
      %v811 = vunpack.c.l.b16 %v465
      %v812 = vunpack.c.l.b16 %v466
      %v813 = vunpack.c.l.b16 %v467
      %v814 = vunpack.c.l.b16 %v468
      %v815 = vunpack.c.l.b16 %v469
      %v816 = vunpack.c.l.b16 %v470
      %v817 = vunpack.c.l.b16 %v471
      %v818 = vunpack.c.l.b16 %v472
      %v819 = vunpack.c.l.b16 %v473
      %v820 = vunpack.c.l.b16 %v474
      %v821 = vunpack.c.l.b16 %v475
      %v822 = vunpack.c.l.b16 %v476
      %v823 = vunpack.c.l.b16 %v477
      %v824 = vunpack.c.l.b16 %v478
      %v825 = vunpack.c.l.b16 %v479
      %v826 = vunpack.c.l.b16 %v480
      %v827 = vunpack.c.l.b16 %v481
      %v828 = vunpack.c.l.b16 %v482
      %v829 = vunpack.c.l.b16 %v483
      %v830 = vunpack.c.l.b16 %v484
      %v831 = vunpack.c.l.b16 %v485
      %v832 = vunpack.c.l.b16 %v486
      %v833 = vunpack.c.l.b16 %v487
      %v834 = vunpack.c.l.b16 %v488
      %v835 = vunpack.c.l.b16 %v489
      %v836 = vunpack.c.l.b16 %v490
      %v837 = vunpack.c.l.b16 %v491
      %v838 = vunpack.c.l.b16 %v492
      %v839 = vunpack.c.l.b16 %v493
      %v840 = vunpack.c.l.b16 %v494
      %v841 = vunpack.c.l.b16 %v495
      %v842 = vunpack.c.l.b16 %v496
      %v843 = vunpack.c.l.b16 %v497
      %v844 = vunpack.c.l.b16 %v498
      %v845 = vunpack.c.l.b16 %v499
      %v846 = vunpack.c.l.b16 %v500
      %v847 = vunpack.c.l.b16 %v501
      %v848 = vunpack.c.l.b16 %v502
      %v849 = vunpack.c.l.b16 %v503
      %v850 = vunpack.c.l.b16 %v504
      %v851 = vpack.c.b16 %v708, %v707
      %v852 = vpack.c.b16 %v710, %v709
      %v853 = vpack.c.b16 %v712, %v711
      %v854 = vpack.c.b16 %v714, %v713
      %v855 = vpack.c.b16 %v716, %v715
      %v856 = vpack.c.b16 %v718, %v717
      %v857 = vpack.c.b16 %v720, %v719
      %v858 = vpack.c.b16 %v722, %v721
      %v859 = vpack.c.b16 %v724, %v723
      %v860 = vpack.c.b16 %v726, %v725
      %v861 = vpack.c.b16 %v728, %v727
      %v862 = vpack.c.b16 %v730, %v729
      %v863 = vpack.c.b16 %v732, %v731
      %v864 = vpack.c.b16 %v734, %v733
      %v865 = vpack.c.b16 %v736, %v735
      %v866 = vpack.c.b16 %v738, %v737
      %v867 = vpack.c.b16 %v740, %v739
      %v868 = vpack.c.b16 %v742, %v741
      %v869 = vpack.c.b16 %v744, %v743
      %v870 = vpack.c.b16 %v746, %v745
      %v871 = vpack.c.b16 %v748, %v747
      %v872 = vpack.c.b16 %v750, %v749
      %v873 = vpack.c.b16 %v752, %v751
      %v874 = vpack.c.b16 %v754, %v753
      %v875 = vpack.c.b16 %v756, %v755
      %v876 = vpack.c.b16 %v758, %v757
      %v877 = vpack.c.b16 %v760, %v759
      %v878 = vpack.c.b16 %v762, %v761
      %v879 = vpack.c.b16 %v764, %v763
      %v880 = vpack.c.b16 %v766, %v765
      %v881 = vpack.c.b16 %v768, %v767
      %v882 = vpack.c.b16 %v770, %v769
      %v883 = vpack.c.b16 %v772, %v771
      %v884 = vpack.c.b16 %v774, %v773
      %v885 = vpack.c.b16 %v776, %v775
      %v886 = vpack.c.b16 %v778, %v777
      %v887 = vpack.c.b16 %v780, %v779
      %v888 = vpack.c.b16 %v782, %v781
      %v889 = vpack.c.b16 %v784, %v783
      %v890 = vpack.c.b16 %v786, %v785
      %v891 = vpack.c.b16 %v788, %v787
      %v892 = vpack.c.b16 %v790, %v789
      %v893 = vpack.c.b16 %v792, %v791
      %v894 = vpack.c.b16 %v794, %v793
      %v895 = vpack.c.b16 %v796, %v795
      %v896 = vpack.c.b16 %v798, %v797
      %v897 = vpack.c.b16 %v800, %v799
      %v898 = vpack.c.b16 %v802, %v801
      %v899 = vpack.c.b16 %v804, %v803
      %v900 = vpack.c.b16 %v806, %v805
      %v901 = vpack.c.b16 %v808, %v807
      %v902 = vpack.c.b16 %v810, %v809
      %v903 = vpack.c.b16 %v812, %v811
      %v904 = vpack.c.b16 %v814, %v813
      %v905 = vpack.c.b16 %v816, %v815
      %v906 = vpack.c.b16 %v818, %v817
      %v907 = vpack.c.b16 %v820, %v819
      %v908 = vpack.c.b16 %v822, %v821
      %v909 = vpack.c.b16 %v824, %v823
      %v910 = vpack.c.b16 %v826, %v825
      %v911 = vpack.c.b16 %v828, %v827
      %v912 = vpack.c.b16 %v830, %v829
      %v913 = vpack.c.b16 %v832, %v831
      %v914 = vpack.c.b16 %v834, %v833
      %v915 = vpack.c.b16 %v836, %v835
      %v916 = vpack.c.b16 %v838, %v837
      %v917 = vpack.c.b16 %v840, %v839
      %v918 = vpack.c.b16 %v842, %v841
      %v919 = vpack.c.b16 %v844, %v843
      %v920 = vpack.c.b16 %v846, %v845
      %v921 = vpack.c.b16 %v848, %v847
      %v922 = vpack.c.b16 %v850, %v849
      %995 = vmatpush.bf16.msra.mxu0 %v858
      %996 = vmatpush.bf16.msra.mxu0 %v857
      %997 = vmatpush.bf16.msra.mxu0 %v856
      %998 = vmatpush.bf16.msra.mxu0 %v855
      %999 = vmatpush.bf16.msra.mxu0 %v854
      %1000 = vmatpush.bf16.msra.mxu0 %v853
      %1001 = vmatpush.bf16.msra.mxu0 %v852
      %1002 = vmatpush.bf16.msra.mxu0 %v851
      %1003 = vmatmul.bf16.gmra.mxu0 %v509
      %v1004 = vpop.f32.mrf.mxu0
      %v1005 = vadd.f32 %v507, %v1004
      %v1006 = vpop.f32.mrf.mxu0
      %v1007 = vadd.f32 %v507, %v1006
      %1008 = vmatmul.bf16.gmra.mxu0 %v515
      %v1009 = vpop.f32.mrf.mxu0
      %v1010 = vadd.f32 %v507, %v1009
      %v1011 = vpop.f32.mrf.mxu0
      %v1012 = vadd.f32 %v507, %v1011
      %1013 = vmatmul.bf16.gmra.mxu0 %v521
      %v1014 = vpop.f32.mrf.mxu0
      %v1015 = vadd.f32 %v507, %v1014
      %v1016 = vpop.f32.mrf.mxu0
      %v1017 = vadd.f32 %v507, %v1016
      %1018 = vmatmul.bf16.gmra.mxu0 %v527
      %v1019 = vpop.f32.mrf.mxu0
      %v1020 = vadd.f32 %v507, %v1019
      %v1021 = vpop.f32.mrf.mxu0
      %v1022 = vadd.f32 %v507, %v1021
      %1023 = vdwg.mxu0
      %1024 = vmatpush.bf16.msra.mxu0 %v866
      %1025 = vmatpush.bf16.msra.mxu0 %v865
      %1026 = vmatpush.bf16.msra.mxu0 %v864
      %1027 = vmatpush.bf16.msra.mxu0 %v863
      %1028 = vmatpush.bf16.msra.mxu0 %v862
      %1029 = vmatpush.bf16.msra.mxu0 %v861
      %1030 = vmatpush.bf16.msra.mxu0 %v860
      %1031 = vmatpush.bf16.msra.mxu0 %v859
      %1032 = vmatmul.bf16.gmra.mxu0 %v510
      %v1033 = vpop.f32.mrf.mxu0
      %v1034 = vadd.f32 %v1005, %v1033
      %v1035 = vpop.f32.mrf.mxu0
      %v1036 = vadd.f32 %v1007, %v1035
      %1037 = vmatmul.bf16.gmra.mxu0 %v516
      %v1038 = vpop.f32.mrf.mxu0
      %v1039 = vadd.f32 %v1010, %v1038
      %v1040 = vpop.f32.mrf.mxu0
      %v1041 = vadd.f32 %v1012, %v1040
      %1042 = vmatmul.bf16.gmra.mxu0 %v522
      %v1043 = vpop.f32.mrf.mxu0
      %v1044 = vadd.f32 %v1015, %v1043
      %v1045 = vpop.f32.mrf.mxu0
      %v1046 = vadd.f32 %v1017, %v1045
      %1047 = vmatmul.bf16.gmra.mxu0 %v528
      %v1048 = vpop.f32.mrf.mxu0
      %v1049 = vadd.f32 %v1020, %v1048
      %v1050 = vpop.f32.mrf.mxu0
      %v1051 = vadd.f32 %v1022, %v1050
      %1052 = vdwg.mxu0
      %1053 = vmatpush.bf16.msra.mxu0 %v874
      %1054 = vmatpush.bf16.msra.mxu0 %v873
      %1055 = vmatpush.bf16.msra.mxu0 %v872
      %1056 = vmatpush.bf16.msra.mxu0 %v871
      %1057 = vmatpush.bf16.msra.mxu0 %v870
      %1058 = vmatpush.bf16.msra.mxu0 %v869
      %1059 = vmatpush.bf16.msra.mxu0 %v868
      %1060 = vmatpush.bf16.msra.mxu0 %v867
      %1061 = vmatmul.bf16.gmra.mxu0 %v511
      %v1062 = vpop.f32.mrf.mxu0
      %v1063 = vadd.f32 %v1034, %v1062
      %v1064 = vpop.f32.mrf.mxu0
      %v1065 = vadd.f32 %v1036, %v1064
      %1066 = vmatmul.bf16.gmra.mxu0 %v517
      %v1067 = vpop.f32.mrf.mxu0
      %v1068 = vadd.f32 %v1039, %v1067
      %v1069 = vpop.f32.mrf.mxu0
      %v1070 = vadd.f32 %v1041, %v1069
      %1071 = vmatmul.bf16.gmra.mxu0 %v523
      %v1072 = vpop.f32.mrf.mxu0
      %v1073 = vadd.f32 %v1044, %v1072
      %v1074 = vpop.f32.mrf.mxu0
      %v1075 = vadd.f32 %v1046, %v1074
      %1076 = vmatmul.bf16.gmra.mxu0 %v529
      %v1077 = vpop.f32.mrf.mxu0
      %v1078 = vadd.f32 %v1049, %v1077
      %v1079 = vpop.f32.mrf.mxu0
      %v1080 = vadd.f32 %v1051, %v1079
      %1081 = vdwg.mxu0
      %1082 = vmatpush.bf16.msra.mxu0 %v882
      %1083 = vmatpush.bf16.msra.mxu0 %v881
      %1084 = vmatpush.bf16.msra.mxu0 %v880
      %1085 = vmatpush.bf16.msra.mxu0 %v879
      %1086 = vmatpush.bf16.msra.mxu0 %v878
      %1087 = vmatpush.bf16.msra.mxu0 %v877
      %1088 = vmatpush.bf16.msra.mxu0 %v876
      %1089 = vmatpush.bf16.msra.mxu0 %v875
      %1090 = vmatmul.bf16.gmra.mxu0 %v512
      %v1091 = vpop.f32.mrf.mxu0
      %v1092 = vadd.f32 %v1063, %v1091
      %v1093 = vpop.f32.mrf.mxu0
      %v1094 = vadd.f32 %v1065, %v1093
      %1095 = vmatmul.bf16.gmra.mxu0 %v518
      %v1096 = vpop.f32.mrf.mxu0
      %v1097 = vadd.f32 %v1068, %v1096
      %v1098 = vpop.f32.mrf.mxu0
      %v1099 = vadd.f32 %v1070, %v1098
      %1100 = vmatmul.bf16.gmra.mxu0 %v524
      %v1101 = vpop.f32.mrf.mxu0
      %v1102 = vadd.f32 %v1073, %v1101
      %v1103 = vpop.f32.mrf.mxu0
      %v1104 = vadd.f32 %v1075, %v1103
      %1105 = vmatmul.bf16.gmra.mxu0 %v530
      %v1106 = vpop.f32.mrf.mxu0
      %v1107 = vadd.f32 %v1078, %v1106
      %v1108 = vpop.f32.mrf.mxu0
      %v1109 = vadd.f32 %v1080, %v1108
      %1110 = vdwg.mxu0
      %1111 = vmatpush.bf16.msra.mxu0 %v890
      %1112 = vmatpush.bf16.msra.mxu0 %v889
      %1113 = vmatpush.bf16.msra.mxu0 %v888
      %1114 = vmatpush.bf16.msra.mxu0 %v887
      %1115 = vmatpush.bf16.msra.mxu0 %v886
      %1116 = vmatpush.bf16.msra.mxu0 %v885
      %1117 = vmatpush.bf16.msra.mxu0 %v884
      %1118 = vmatpush.bf16.msra.mxu0 %v883
      %1119 = vmatmul.bf16.gmra.mxu0 %v513
      %v1120 = vpop.f32.mrf.mxu0
      %v1121 = vadd.f32 %v1092, %v1120
      %v1122 = vpop.f32.mrf.mxu0
      %v1123 = vadd.f32 %v1094, %v1122
      %1124 = vmatmul.bf16.gmra.mxu0 %v519
      %v1125 = vpop.f32.mrf.mxu0
      %v1126 = vadd.f32 %v1097, %v1125
      %v1127 = vpop.f32.mrf.mxu0
      %v1128 = vadd.f32 %v1099, %v1127
      %1129 = vmatmul.bf16.gmra.mxu0 %v525
      %v1130 = vpop.f32.mrf.mxu0
      %v1131 = vadd.f32 %v1102, %v1130
      %v1132 = vpop.f32.mrf.mxu0
      %v1133 = vadd.f32 %v1104, %v1132
      %1134 = vmatmul.bf16.gmra.mxu0 %v531
      %v1135 = vpop.f32.mrf.mxu0
      %v1136 = vadd.f32 %v1107, %v1135
      %v1137 = vpop.f32.mrf.mxu0
      %v1138 = vadd.f32 %v1109, %v1137
      %1139 = vdwg.mxu0
      %1140 = vmatpush.bf16.msra.mxu0 %v898
      %1141 = vmatpush.bf16.msra.mxu0 %v897
      %1142 = vmatpush.bf16.msra.mxu0 %v896
      %1143 = vmatpush.bf16.msra.mxu0 %v895
      %1144 = vmatpush.bf16.msra.mxu0 %v894
      %1145 = vmatpush.bf16.msra.mxu0 %v893
      %1146 = vmatpush.bf16.msra.mxu0 %v892
      %1147 = vmatpush.bf16.msra.mxu0 %v891
      %1148 = vmatmul.bf16.gmra.mxu0 %v514
      %v1149 = vpop.f32.mrf.mxu0
      %v1150 = vadd.f32 %v1121, %v1149
      %v1151 = vpop.f32.mrf.mxu0
      %v1152 = vadd.f32 %v1123, %v1151
      %1153 = vmatmul.bf16.gmra.mxu0 %v520
      %v1154 = vpop.f32.mrf.mxu0
      %v1155 = vadd.f32 %v1126, %v1154
      %v1156 = vpop.f32.mrf.mxu0
      %v1157 = vadd.f32 %v1128, %v1156
      %1158 = vmatmul.bf16.gmra.mxu0 %v526
      %v1159 = vpop.f32.mrf.mxu0
      %v1160 = vadd.f32 %v1131, %v1159
      %v1161 = vpop.f32.mrf.mxu0
      %v1162 = vadd.f32 %v1133, %v1161
      %1163 = vmatmul.bf16.gmra.mxu0 %v532
      %v1164 = vpop.f32.mrf.mxu0
      %v1165 = vadd.f32 %v1136, %v1164
      %v1166 = vpop.f32.mrf.mxu0
      %v1167 = vadd.f32 %v1138, %v1166
      %1168 = vdwg.mxu0
      %1169 = vmatpush.bf16.msra.mxu0 %v906
      %1170 = vmatpush.bf16.msra.mxu0 %v905
      %1171 = vmatpush.bf16.msra.mxu0 %v904
      %1172 = vmatpush.bf16.msra.mxu0 %v903
      %1173 = vmatpush.bf16.msra.mxu0 %v902
      %1174 = vmatpush.bf16.msra.mxu0 %v901
      %1175 = vmatpush.bf16.msra.mxu0 %v900
      %1176 = vmatpush.bf16.msra.mxu0 %v899
      %1177 = vmatmul.bf16.gmra.mxu0 %v515
      %v1178 = vpop.f32.mrf.mxu0
      %v1179 = vadd.f32 %v1150, %v1178
      %v1180 = vpop.f32.mrf.mxu0
      %v1181 = vadd.f32 %v1152, %v1180
      %1182 = vmatmul.bf16.gmra.mxu0 %v521
      %v1183 = vpop.f32.mrf.mxu0
      %v1184 = vadd.f32 %v1155, %v1183
      %v1185 = vpop.f32.mrf.mxu0
      %v1186 = vadd.f32 %v1157, %v1185
      %1187 = vmatmul.bf16.gmra.mxu0 %v527
      %v1188 = vpop.f32.mrf.mxu0
      %v1189 = vadd.f32 %v1160, %v1188
      %v1190 = vpop.f32.mrf.mxu0
      %v1191 = vadd.f32 %v1162, %v1190
      %1192 = vmatmul.bf16.gmra.mxu0 %v533
      %v1193 = vpop.f32.mrf.mxu0
      %v1194 = vadd.f32 %v1165, %v1193
      %v1195 = vpop.f32.mrf.mxu0
      %v1196 = vadd.f32 %v1167, %v1195
      %1197 = vdwg.mxu0
      %1198 = vmatpush.bf16.msra.mxu0 %v914
      %1199 = vmatpush.bf16.msra.mxu0 %v913
      %1200 = vmatpush.bf16.msra.mxu0 %v912
      %1201 = vmatpush.bf16.msra.mxu0 %v911
      %1202 = vmatpush.bf16.msra.mxu0 %v910
      %1203 = vmatpush.bf16.msra.mxu0 %v909
      %1204 = vmatpush.bf16.msra.mxu0 %v908
      %1205 = vmatpush.bf16.msra.mxu0 %v907
      %1206 = vmatmul.bf16.gmra.mxu0 %v516
      %v1207 = vpop.f32.mrf.mxu0
      %v1208 = vadd.f32 %v1179, %v1207
      %v1209 = vpop.f32.mrf.mxu0
      %v1210 = vadd.f32 %v1181, %v1209
      %1211 = vmatmul.bf16.gmra.mxu0 %v522
      %v1212 = vpop.f32.mrf.mxu0
      %v1213 = vadd.f32 %v1184, %v1212
      %v1214 = vpop.f32.mrf.mxu0
      %v1215 = vadd.f32 %v1186, %v1214
      %1216 = vmatmul.bf16.gmra.mxu0 %v528
      %v1217 = vpop.f32.mrf.mxu0
      %v1218 = vadd.f32 %v1189, %v1217
      %v1219 = vpop.f32.mrf.mxu0
      %v1220 = vadd.f32 %v1191, %v1219
      %1221 = vmatmul.bf16.gmra.mxu0 %v534
      %v1222 = vpop.f32.mrf.mxu0
      %v1223 = vadd.f32 %v1194, %v1222
      %v1224 = vpop.f32.mrf.mxu0
      %v1225 = vadd.f32 %v1196, %v1224
      %1226 = vdwg.mxu0
      %1227 = vmatpush.bf16.msra.mxu0 %v922
      %1228 = vmatpush.bf16.msra.mxu0 %v921
      %1229 = vmatpush.bf16.msra.mxu0 %v920
      %1230 = vmatpush.bf16.msra.mxu0 %v919
      %1231 = vmatpush.bf16.msra.mxu0 %v918
      %1232 = vmatpush.bf16.msra.mxu0 %v917
      %1233 = vmatpush.bf16.msra.mxu0 %v916
      %1234 = vmatpush.bf16.msra.mxu0 %v915
      %1235 = vmatmul.bf16.gmra.mxu0 %v517
      %v1236 = vpop.f32.mrf.mxu0
      %v1237 = vadd.f32 %v1208, %v1236
      %v1238 = vpop.f32.mrf.mxu0
      %v1239 = vadd.f32 %v1210, %v1238
      %1240 = vmatmul.bf16.gmra.mxu0 %v523
      %v1241 = vpop.f32.mrf.mxu0
      %v1242 = vadd.f32 %v1213, %v1241
      %v1243 = vpop.f32.mrf.mxu0
      %v1244 = vadd.f32 %v1215, %v1243
      %1245 = vmatmul.bf16.gmra.mxu0 %v529
      %v1246 = vpop.f32.mrf.mxu0
      %v1247 = vadd.f32 %v1218, %v1246
      %v1248 = vpop.f32.mrf.mxu0
      %v1249 = vadd.f32 %v1220, %v1248
      %1250 = vmatmul.bf16.gmra.mxu0 %v535
      %v1251 = vpop.f32.mrf.mxu0
      %v1252 = vadd.f32 %v1223, %v1251
      %v1253 = vpop.f32.mrf.mxu0
      %v1254 = vadd.f32 %v1225, %v1253
      %1255 = vdwg.mxu0
      %v1256 = vmax.f32 %v1237, 0.0
      %v1257 = vmax.f32 %v1239, 0.0
      %v1258 = vmax.f32 %v1242, 0.0
      %v1259 = vmax.f32 %v1244, 0.0
      %v1260 = vmax.f32 %v1247, 0.0
      %v1261 = vmax.f32 %v1249, 0.0
      %v1262 = vmax.f32 %v1252, 0.0
      %v1263 = vmax.f32 %v1254, 0.0
      %v1271 = vrot.slane %v1256, 1
      %v1272 = vrot.slane %v1257, 1
      %v1273 = vrot.slane %v1258, 1
      %v1274 = vrot.slane %v1259, 1
      %v1275 = vrot.slane %v1260, 1
      %v1276 = vrot.slane %v1261, 1
      %v1277 = vrot.slane %v1262, 1
      %v1285 = vmax.f32 %v1256, %v1271
      %v1286 = vmax.f32 %v1257, %v1272
      %v1287 = vmax.f32 %v1258, %v1273
      %v1288 = vmax.f32 %v1259, %v1274
      %v1289 = vmax.f32 %v1260, %v1275
      %v1290 = vmax.f32 %v1261, %v1276
      %v1291 = vmax.f32 %v1262, %v1277
      %v1293 = vrot.slane %v1263, 1
      %v1295 = vmax.f32 %v1263, %v1293
      %v1296 = vmax.f32 %v1285, %v1286
      %v1297 = vmax.f32 %v1286, %v1287
      %v1298 = vmax.f32 %v1287, %v1288
      %v1299 = vmax.f32 %v1288, %v1289
      %v1300 = vmax.f32 %v1289, %v1290
      %v1301 = vmax.f32 %v1290, %v1291
      %v1302 = vmax.f32 %v1291, %v1295
      %1303 = vst [vmem:[%s170] sm:$0x7f] %v1296
      %1304 = vst [vmem:[%s170 + $0x8] sm:$0x7f] %v1297
      %1305 = vst [vmem:[%s170 + $0x10] sm:$0x7f] %v1298
      %1306 = vst [vmem:[%s170 + $0x18] sm:$0x7f] %v1299
      %1307 = vst [vmem:[%s170 + $0x20] sm:$0x7f] %v1300
      %1308 = vst [vmem:[%s170 + $0x28] sm:$0x7f] %v1301
      %1309 = vst [vmem:[%s170 + $0x30] sm:$0x7f] %v1302
      %p1310 = scmp.lt.s32.totalorder %s14, 1
      %s1311 = scalar_select %p1310, %s14, 1
      %s1312 = smul.addr %s1311, 7
      %s1313 = smul.addr %s1312, 8
      %s1314 = scalar_lea.vmem %s3, %s1313
      // Predicated region
      $region33: #{single_forward.5} parent=31 // pred_check
        %p1315 = pneg %p100
      $region34: #{single_forward.5} parent=31 // pred_check_branch
        %1317 = sbr.rel (%p1315) target = $region36
      $region35: #{single_forward.5} parent=31 // pred_region
        _
      $region36: #{single_forward.5} parent=31 // pred_fallthru
        _
    $region32: #{single_forward.5} parent=5 // pred_fallthru
      _
    %p1318 = scmp.le.s32.totalorder 2, %s9
    // Predicated region
    $region37: #{single_forward.5} parent=5 // pred_check
      %p1319 = pneg %p1318
    $region38: #{single_forward.5} parent=5 // pred_check_branch
      %1321 = sbr.rel (%p1319) target = $region40
    $region39: #{single_forward.5} parent=5 // pred_region
      %s1322 = ssub.s32 %s9, 2
      // Predicated region
      $region41: #{single_forward.5} parent=39 // pred_check
        %p1323 = pneg %p106
      $region42: #{single_forward.5} parent=39 // pred_check_branch
        %1325 = sbr.rel (%p1323) target = $region44
      $region43: #{single_forward.5} parent=39 // pred_region
        %p1326 = scmp.lt.s32.totalorder %s15, 1
        %s1327 = scalar_select %p1326, %s15, 1
        %s1328 = smul.addr %s1327, 7
        %s1329 = smul.addr %s1328, 8
        %s1330 = scalar_lea.vmem %s3, %s1329
      $region44: #{single_forward.5} parent=39 // pred_fallthru
        _
    $region40: #{single_forward.5} parent=5 // pred_fallthru
      _
  $region6: #{single_forward.5} parent=0 // loop_footer
    %s13 = sadd.s32 1, %s9
  $region7: #{single_forward.5} parent=0 // loop_footer_branch
    %8 = sbr.rel target = $region3
  $region8: #{single_forward.5} parent=0 // loop_exit
    _

// kernel: single_forward.4
$region0: #{single_forward.4}
  #allocation0 [shape = 'u32[]', space=smem, size = 0x4, offset = 0x4, fixed_abs, tag = 'smem constant byte address 0x4 - core index']
  #allocation1 [shape = 'u32[72,128]{1,0:T(1,128)}', space=vmem, size = 0x9000, scoped, tag = 'internal scratch']
  #allocation2 [shape = 'f32[10,10,256]{2,1,0:T(8,128)}', space=vmem, size = 0x28000, scoped, tag = 'scratch operand']
  #allocation3 [shape = 'f32[10,10,384]{2,1,0:T(8,128)}', space=vmem, size = 0x3c000, scoped, tag = 'scratch operand']
  %s0 = inlined_call_operand.vmem [shape: f32[2,8,8,384], index: 0, kind: input, shape index: {}]
  %s1 = inlined_call_operand.vmem [shape: f32[1,8,8,128], index: 1, kind: input, shape index: {}]
  %s2 = inlined_call_operand.vmem [shape: f32[9,128,18], index: 2, kind: input, shape index: {}]
  %s3 = inlined_call_operand.vmem [shape: f32[9,18,128], index: 3, kind: input, shape index: {}]
  %s4 = inlined_call_operand.vmem [shape: f32[18,2], index: 4, kind: input, shape index: {}]
  %s5 = inlined_call_operand.vmem [shape: f32[2,128], index: 5, kind: input, shape index: {}]
  %s6 = inlined_call_operand.vmem [shape: bf16[9,384,128], index: 6, kind: input, shape index: {}]
  %s7 = inlined_call_operand.vmem [shape: f32[1,128], index: 7, kind: input, shape index: {}]
  %s8 = inlined_call_operand.vmem [shape: f32[2,10,10,128], index: 8, kind: output, shape index: {}]
  %s9 = sld [smem:[#allocation0]]
  $region65: #{single_forward.4} parent=0
    _
  %s11 = ssub.s32 1, %s9
  %s12 = scalar_select 0, %s11, %s9
  loop: start=0, step=1, limit=4
  $region2: #{single_forward.4} parent=0 // loop_pre_header
    _
  $region3: #{single_forward.4} parent=0 // loop_header
    %s14 = sphi 0, %s18
    %p15 = scmp.ge.s32.totalorder %s14, 4
    %s24 = sphi 0, %s26
    %s27 = sphi 0, %s24
    %s28 = sphi 0, %s27
    %s44 = sphi 0, %s28
    %s48 = sphi 0, %s48
    %s50 = sphi 0, %s48
    %s51 = sphi 0, %s50
    %s65 = sphi 0, %s51
    %s69 = sphi 0, %s69
    %s71 = sphi 0, %s69
    %s72 = sphi 0, %s71
    %s86 = sphi 0, %s72
    %s90 = sphi 0, %s90
    %s92 = sphi 0, %s90
    %s93 = sphi 0, %s92
    %s107 = sphi 0, %s93
    %s111 = sphi 0, %s111
    %s113 = sphi 0, %s111
    %s114 = sphi 0, %s113
    %s128 = sphi 0, %s114
    %s132 = sphi 0, %s132
    %s134 = sphi 0, %s132
    %s135 = sphi 0, %s134
    %s149 = sphi 0, %s135
    %s153 = sphi 0, %s153
    %s155 = sphi 0, %s153
    %s156 = sphi 0, %s155
    %s170 = sphi 0, %s156
    %s174 = sphi 0, %s174
    %s176 = sphi 0, %s174
    %s177 = sphi 0, %s176
    %s191 = sphi 0, %s177
    %s197 = sphi 0, %s199
    %s200 = sphi 0, %s197
    %s201 = sphi 0, %s200
    %s217 = sphi 0, %s201
  $region4: #{single_forward.4} parent=0 // loop_header_branch
    %17 = sbr.rel (%p15) target = $region8
  $region5: #{single_forward.4} parent=0 // loop_body
    %s19 = ssub.s32 %s14, 1
    %s20 = ssub.s32 %s14, 2
    %s21 = sadd.s32 %s14, 1
    %s22 = ssub.s32 %s14, %s21
    %p23 = scmp.eq.s32.totalorder %s22, 0
    %s25 = sadd.s32 %s24, 1
    %s26 = scalar_select %p23, %s24, %s25
    %p29 = pneg %p23
    %p30 = scmp.eq.s32.totalorder %s14, 1
    %p31 = por %p29, %p30
    %p32 = scmp.ne.s32.totalorder %s24, %s27
    %p33 = scmp.eq.s32.totalorder %s14, 0
    %p34 = por %p32, %p33
    %p35 = scmp.ne.s32.totalorder %s24, %s27
    %p36 = scmp.eq.s32.totalorder %s19, 1
    %p37 = por %p35, %p36
    %p38 = scmp.ne.s32.totalorder %s27, %s28
    %p39 = scmp.eq.s32.totalorder %s19, 0
    %p40 = por %p38, %p39
    %p41 = scmp.ne.s32.totalorder %s27, %s28
    %p42 = scmp.eq.s32.totalorder %s20, 1
    %p43 = por %p41, %p42
    %p45 = scmp.ne.s32.totalorder %s28, %s44
    %p46 = scmp.eq.s32.totalorder %s20, 0
    %p47 = por %p45, %p46
    %s49 = sadd.s32 %s48, 1
    %p52 = scmp.eq.s32.totalorder %s14, 1
    %p53 = scmp.ne.s32.totalorder %s48, %s50
    %p54 = scmp.eq.s32.totalorder %s14, 0
    %p55 = por %p53, %p54
    %p56 = scmp.ne.s32.totalorder %s48, %s50
    %p57 = scmp.eq.s32.totalorder %s19, 1
    %p58 = por %p56, %p57
    %p59 = scmp.ne.s32.totalorder %s50, %s51
    %p60 = scmp.eq.s32.totalorder %s19, 0
    %p61 = por %p59, %p60
    %p62 = scmp.ne.s32.totalorder %s50, %s51
    %p63 = scmp.eq.s32.totalorder %s20, 1
    %p64 = por %p62, %p63
    %p66 = scmp.ne.s32.totalorder %s51, %s65
    %p67 = scmp.eq.s32.totalorder %s20, 0
    %p68 = por %p66, %p67
    %s70 = sadd.s32 %s69, 1
    %p73 = scmp.eq.s32.totalorder %s14, 1
    %p74 = scmp.ne.s32.totalorder %s69, %s71
    %p75 = scmp.eq.s32.totalorder %s14, 0
    %p76 = por %p74, %p75
    %p77 = scmp.ne.s32.totalorder %s69, %s71
    %p78 = scmp.eq.s32.totalorder %s19, 1
    %p79 = por %p77, %p78
    %p80 = scmp.ne.s32.totalorder %s71, %s72
    %p81 = scmp.eq.s32.totalorder %s19, 0
    %p82 = por %p80, %p81
    %p83 = scmp.ne.s32.totalorder %s71, %s72
    %p84 = scmp.eq.s32.totalorder %s20, 1
    %p85 = por %p83, %p84
    %p87 = scmp.ne.s32.totalorder %s72, %s86
    %p88 = scmp.eq.s32.totalorder %s20, 0
    %p89 = por %p87, %p88
    %s91 = sadd.s32 %s90, 1
    %p94 = scmp.eq.s32.totalorder %s14, 1
    %p95 = scmp.ne.s32.totalorder %s90, %s92
    %p96 = scmp.eq.s32.totalorder %s14, 0
    %p97 = por %p95, %p96
    %p98 = scmp.ne.s32.totalorder %s90, %s92
    %p99 = scmp.eq.s32.totalorder %s19, 1
    %p100 = por %p98, %p99
    %p101 = scmp.ne.s32.totalorder %s92, %s93
    %p102 = scmp.eq.s32.totalorder %s19, 0
    %p103 = por %p101, %p102
    %p104 = scmp.ne.s32.totalorder %s92, %s93
    %p105 = scmp.eq.s32.totalorder %s20, 1
    %p106 = por %p104, %p105
    %p108 = scmp.ne.s32.totalorder %s93, %s107
    %p109 = scmp.eq.s32.totalorder %s20, 0
    %p110 = por %p108, %p109
    %s112 = sadd.s32 %s111, 1
    %p115 = scmp.eq.s32.totalorder %s14, 1
    %p116 = scmp.ne.s32.totalorder %s111, %s113
    %p117 = scmp.eq.s32.totalorder %s14, 0
    %p118 = por %p116, %p117
    %p119 = scmp.ne.s32.totalorder %s111, %s113
    %p120 = scmp.eq.s32.totalorder %s19, 1
    %p121 = por %p119, %p120
    %p122 = scmp.ne.s32.totalorder %s113, %s114
    %p123 = scmp.eq.s32.totalorder %s19, 0
    %p124 = por %p122, %p123
    %p125 = scmp.ne.s32.totalorder %s113, %s114
    %p126 = scmp.eq.s32.totalorder %s20, 1
    %p127 = por %p125, %p126
    %p129 = scmp.ne.s32.totalorder %s114, %s128
    %p130 = scmp.eq.s32.totalorder %s20, 0
    %p131 = por %p129, %p130
    %s133 = sadd.s32 %s132, 1
    %p136 = scmp.eq.s32.totalorder %s14, 1
    %p137 = scmp.ne.s32.totalorder %s132, %s134
    %p138 = scmp.eq.s32.totalorder %s14, 0
    %p139 = por %p137, %p138
    %p140 = scmp.ne.s32.totalorder %s132, %s134
    %p141 = scmp.eq.s32.totalorder %s19, 1
    %p142 = por %p140, %p141
    %p143 = scmp.ne.s32.totalorder %s134, %s135
    %p144 = scmp.eq.s32.totalorder %s19, 0
    %p145 = por %p143, %p144
    %p146 = scmp.ne.s32.totalorder %s134, %s135
    %p147 = scmp.eq.s32.totalorder %s20, 1
    %p148 = por %p146, %p147
    %p150 = scmp.ne.s32.totalorder %s135, %s149
    %p151 = scmp.eq.s32.totalorder %s20, 0
    %p152 = por %p150, %p151
    %s154 = sadd.s32 %s153, 1
    %p157 = scmp.eq.s32.totalorder %s14, 1
    %p158 = scmp.ne.s32.totalorder %s153, %s155
    %p159 = scmp.eq.s32.totalorder %s14, 0
    %p160 = por %p158, %p159
    %p161 = scmp.ne.s32.totalorder %s153, %s155
    %p162 = scmp.eq.s32.totalorder %s19, 1
    %p163 = por %p161, %p162
    %p164 = scmp.ne.s32.totalorder %s155, %s156
    %p165 = scmp.eq.s32.totalorder %s19, 0
    %p166 = por %p164, %p165
    %p167 = scmp.ne.s32.totalorder %s155, %s156
    %p168 = scmp.eq.s32.totalorder %s20, 1
    %p169 = por %p167, %p168
    %p171 = scmp.ne.s32.totalorder %s156, %s170
    %p172 = scmp.eq.s32.totalorder %s20, 0
    %p173 = por %p171, %p172
    %s175 = sadd.s32 %s174, 1
    %p178 = scmp.eq.s32.totalorder %s14, 1
    %p179 = scmp.ne.s32.totalorder %s174, %s176
    %p180 = scmp.eq.s32.totalorder %s14, 0
    %p181 = por %p179, %p180
    %p182 = scmp.ne.s32.totalorder %s174, %s176
    %p183 = scmp.eq.s32.totalorder %s19, 1
    %p184 = por %p182, %p183
    %p185 = scmp.ne.s32.totalorder %s176, %s177
    %p186 = scmp.eq.s32.totalorder %s19, 0
    %p187 = por %p185, %p186
    %p188 = scmp.ne.s32.totalorder %s176, %s177
    %p189 = scmp.eq.s32.totalorder %s20, 1
    %p190 = por %p188, %p189
    %p192 = scmp.ne.s32.totalorder %s177, %s191
    %p193 = scmp.eq.s32.totalorder %s20, 0
    %p194 = por %p192, %p193
    %s195 = ssub.s32 %s14, %s21
    %p196 = scmp.eq.s32.totalorder %s195, 0
    %s198 = sadd.s32 %s197, 1
    %s199 = scalar_select %p196, %s197, %s198
    %p202 = pneg %p196
    %p203 = scmp.eq.s32.totalorder %s14, 1
    %p204 = por %p202, %p203
    %p205 = scmp.ne.s32.totalorder %s197, %s200
    %p206 = scmp.eq.s32.totalorder %s14, 0
    %p207 = por %p205, %p206
    %p208 = scmp.ne.s32.totalorder %s197, %s200
    %p209 = scmp.eq.s32.totalorder %s19, 1
    %p210 = por %p208, %p209
    %p211 = scmp.ne.s32.totalorder %s200, %s201
    %p212 = scmp.eq.s32.totalorder %s19, 0
    %p213 = por %p211, %p212
    %p214 = scmp.ne.s32.totalorder %s200, %s201
    %p215 = scmp.eq.s32.totalorder %s20, 1
    %p216 = por %p214, %p215
    %p218 = scmp.ne.s32.totalorder %s201, %s217
    %p219 = scmp.eq.s32.totalorder %s20, 0
    %p220 = por %p218, %p219
    %p221 = scmp.le.s32.totalorder 1, %s14
    %p222 = scmp.lt.s32.totalorder %s14, 3
    %p223 = pnand %p221, %p222
    %p224 = pneg %p223
    // Predicated region
    $region9: #{single_forward.4} parent=5 // pred_check
      _
    $region10: #{single_forward.4} parent=5 // pred_check_branch
      %226 = sbr.rel (%p223) target = $region12
    $region11: #{single_forward.4} parent=5 // pred_region
      %s227 = ssub.s32 %s14, 1
      // Predicated region
      $region13: #{single_forward.4} parent=11 // pred_check
        %p228 = pneg %p61
      $region14: #{single_forward.4} parent=11 // pred_check_branch
        %230 = sbr.rel (%p228) target = $region16
      $region15: #{single_forward.4} parent=11 // pred_region
        _
      $region16: #{single_forward.4} parent=11 // pred_fallthru
        _
      // Predicated region
      $region17: #{single_forward.4} parent=11 // pred_check
        %p231 = pneg %p82
      $region18: #{single_forward.4} parent=11 // pred_check_branch
        %233 = sbr.rel (%p231) target = $region20
      $region19: #{single_forward.4} parent=11 // pred_region
        _
      $region20: #{single_forward.4} parent=11 // pred_fallthru
        _
      // Predicated region
      $region21: #{single_forward.4} parent=11 // pred_check
        %p234 = pneg %p103
      $region22: #{single_forward.4} parent=11 // pred_check_branch
        %236 = sbr.rel (%p234) target = $region24
      $region23: #{single_forward.4} parent=11 // pred_region
        _
      $region24: #{single_forward.4} parent=11 // pred_fallthru
        _
      // Predicated region
      $region25: #{single_forward.4} parent=11 // pred_check
        %p237 = pneg %p124
      $region26: #{single_forward.4} parent=11 // pred_check_branch
        %239 = sbr.rel (%p237) target = $region28
      $region27: #{single_forward.4} parent=11 // pred_region
        _
      $region28: #{single_forward.4} parent=11 // pred_fallthru
        _
      // Predicated region
      $region29: #{single_forward.4} parent=11 // pred_check
        %p240 = pneg %p145
      $region30: #{single_forward.4} parent=11 // pred_check_branch
        %242 = sbr.rel (%p240) target = $region32
      $region31: #{single_forward.4} parent=11 // pred_region
        _
      $region32: #{single_forward.4} parent=11 // pred_fallthru
        _
      // Predicated region
      $region33: #{single_forward.4} parent=11 // pred_check
        %p243 = pneg %p166
      $region34: #{single_forward.4} parent=11 // pred_check_branch
        %245 = sbr.rel (%p243) target = $region36
      $region35: #{single_forward.4} parent=11 // pred_region
        _
      $region36: #{single_forward.4} parent=11 // pred_fallthru
        _
      // Predicated region
      $region37: #{single_forward.4} parent=11 // pred_check
        %p246 = pneg %p187
      $region38: #{single_forward.4} parent=11 // pred_check_branch
        %248 = sbr.rel (%p246) target = $region40
      $region39: #{single_forward.4} parent=11 // pred_region
        _
      $region40: #{single_forward.4} parent=11 // pred_fallthru
        _
    $region12: #{single_forward.4} parent=5 // pred_fallthru
      _
    %p249 = scmp.lt.s32.totalorder %s14, 2
    // Predicated region
    $region41: #{single_forward.4} parent=5 // pred_check
      %p250 = pneg %p249
    $region42: #{single_forward.4} parent=5 // pred_check_branch
      %252 = sbr.rel (%p250) target = $region44
    $region43: #{single_forward.4} parent=5 // pred_region
      // Predicated region
      $region45: #{single_forward.4} parent=43 // pred_check
        %p253 = pneg %p34
      $region46: #{single_forward.4} parent=43 // pred_check_branch
        %255 = sbr.rel (%p253) target = $region48
      $region47: #{single_forward.4} parent=43 // pred_region
        %p256 = scmp.lt.s32.totalorder %s14, 1
        %s257 = scalar_select %p256, %s14, 1
        %s258 = smul.addr %s257, 24
        %s259 = smul.addr %s258, 8
        %s260 = scalar_lea.vmem %s0, %s259
      $region48: #{single_forward.4} parent=43 // pred_fallthru
        _
    $region44: #{single_forward.4} parent=5 // pred_fallthru
      _
    %p261 = scmp.le.s32.totalorder 1, %s14
    %p262 = scmp.lt.s32.totalorder %s14, 3
    %p263 = pnand %p261, %p262
    %p264 = pneg %p263
    // Predicated region
    $region49: #{single_forward.4} parent=5 // pred_check
      _
    $region50: #{single_forward.4} parent=5 // pred_check_branch
      %266 = sbr.rel (%p263) target = $region52
    $region51: #{single_forward.4} parent=5 // pred_region
      %s267 = ssub.s32 %s14, 1
      %p268 = scmp.lt.s32.totalorder %s19, 1
      %s269 = scalar_select %p268, %s19, 1
      %s270 = smul.addr %s269, 24
      %s271 = smul.addr %s270, 8
      %s272 = scalar_lea.vmem %s0, %s271
      %p273 = pneg %p40
      %p274 = pneg %p37
      %p275 = pneg %p61
      %p276 = pneg %p58
      %p277 = pneg %p82
      %p278 = pneg %p79
      %p279 = pneg %p103
      %p280 = pneg %p100
      %p281 = pneg %p124
      %p282 = pneg %p121
      %p283 = pneg %p145
      %p284 = pneg %p142
      %p285 = pneg %p166
      %p286 = pneg %p163
      %p287 = pneg %p187
      %p288 = pneg %p184
      %p289 = pneg %p213
      %p290 = pneg %p210
      %p291 = scmp.lt.s32.totalorder %s19, 1
      %s292 = scalar_select %p291, %s19, 1
      %s293 = smul.addr %s292, 20
      %s294 = smul.addr %s293, 8
      %s295 = scalar_lea.vmem %s8, %s294
      %p296 = scmp.lt.s32.totalorder %s19, 1
      %s297 = scalar_select %p296, %s19, 1
      %s298 = smul.addr %s297, 24
      %s299 = smul.addr %s298, 8
      %s300 = scalar_lea.vmem %s0, %s299
      %p301 = scmp.lt.s32.totalorder %s19, 1
      %s302 = scalar_select %p301, %s19, 1
      %s303 = smul.addr %s302, 20
      %s304 = smul.addr %s303, 8
      %s305 = scalar_lea.vmem %s8, %s304
      %v306 = vld [vmem:[%s300] sm:$0xff]
      %v307 = vld [vmem:[%s300 + $0x8] sm:$0xff]
      %v308 = vld [vmem:[%s300 + $0x10] sm:$0xff]
      %v309 = vld [vmem:[%s300 + $0x18] sm:$0xff]
      %v310 = vld [vmem:[%s300 + $0x20] sm:$0xff]
      %v311 = vld [vmem:[%s300 + $0x28] sm:$0xff]
      %v312 = vld [vmem:[%s300 + $0x30] sm:$0xff]
      %v313 = vld [vmem:[%s300 + $0x38] sm:$0xff]
      %v314 = vld [vmem:[%s300 + $0x40] sm:$0xff]
      %v315 = vld [vmem:[%s300 + $0x48] sm:$0xff]
      %v316 = vld [vmem:[%s300 + $0x50] sm:$0xff]
      %v317 = vld [vmem:[%s300 + $0x58] sm:$0xff]
      %v318 = vld [vmem:[%s300 + $0x60] sm:$0xff]
      %v319 = vld [vmem:[%s300 + $0x68] sm:$0xff]
      %v320 = vld [vmem:[%s300 + $0x70] sm:$0xff]
      %v321 = vld [vmem:[%s300 + $0x78] sm:$0xff]
      %v322 = vld [vmem:[%s300 + $0x80] sm:$0xff]
      %v323 = vld [vmem:[%s300 + $0x88] sm:$0xff]
      %v324 = vld [vmem:[%s300 + $0x90] sm:$0xff]
      %v325 = vld [vmem:[%s300 + $0x98] sm:$0xff]
      %v326 = vld [vmem:[%s300 + $0xa0] sm:$0xff]
      %v327 = vld [vmem:[%s300 + $0xa8] sm:$0xff]
      %v328 = vld [vmem:[%s300 + $0xb0] sm:$0xff]
      %v329 = vld [vmem:[%s300 + $0xb8] sm:$0xff]
      %v330 = vld [vmem:[%s1] sm:$0xff]
      %v331 = vld [vmem:[%s1 + $0x8] sm:$0xff]
      %v332 = vld [vmem:[%s1 + $0x10] sm:$0xff]
      %v333 = vld [vmem:[%s1 + $0x18] sm:$0xff]
      %v334 = vld [vmem:[%s1 + $0x20] sm:$0xff]
      %v335 = vld [vmem:[%s1 + $0x28] sm:$0xff]
      %v336 = vld [vmem:[%s1 + $0x30] sm:$0xff]
      %v337 = vld [vmem:[%s1 + $0x38] sm:$0xff]
      %v338 = vsub.f32 %v307, %v330
      %v339 = vsub.f32 %v310, %v331
      %v340 = vsub.f32 %v313, %v332
      %v341 = vsub.f32 %v316, %v333
      %v342 = vsub.f32 %v319, %v334
      %v343 = vsub.f32 %v322, %v335
      %v344 = vsub.f32 %v325, %v336
      %v345 = vsub.f32 %v328, %v337
      %v354 = vrot.slane %v338, 7
      %v355 = vrot.slane %v339, 7
      %v356 = vrot.slane %v340, 7
      %v357 = vrot.slane %v341, 7
      %v358 = vrot.slane %v342, 7
      %v359 = vrot.slane %v343, 7
      %v360 = vrot.slane %v344, 7
      %v361 = vrot.slane %v345, 7
      %s370 = scalar_lea.vmem [#allocation2], 32
      %371 = vst [vmem:[%s370] sm:$0xfe] %v354
      %372 = vst [vmem:[%s370 + $0x10] sm:$0x1] %v354
      %373 = vst [vmem:[%s370 + $0x20] sm:$0xfe] %v355
      %374 = vst [vmem:[%s370 + $0x30] sm:$0x1] %v355
      %375 = vst [vmem:[%s370 + $0x40] sm:$0xfe] %v356
      %376 = vst [vmem:[%s370 + $0x50] sm:$0x1] %v356
      %377 = vst [vmem:[%s370 + $0x60] sm:$0xfe] %v357
      %378 = vst [vmem:[%s370 + $0x70] sm:$0x1] %v357
      %379 = vst [vmem:[%s370 + $0x80] sm:$0xfe] %v358
      %380 = vst [vmem:[%s370 + $0x90] sm:$0x1] %v358
      %381 = vst [vmem:[%s370 + $0xa0] sm:$0xfe] %v359
      %382 = vst [vmem:[%s370 + $0xb0] sm:$0x1] %v359
      %383 = vst [vmem:[%s370 + $0xc0] sm:$0xfe] %v360
      %384 = vst [vmem:[%s370 + $0xd0] sm:$0x1] %v360
      %385 = vst [vmem:[%s370 + $0xe0] sm:$0xfe] %v361
      %386 = vst [vmem:[%s370 + $0xf0] sm:$0x1] %v361
      %v395 = vrot.slane %v308, 7
      %v396 = vrot.slane %v311, 7
      %v397 = vrot.slane %v314, 7
      %v398 = vrot.slane %v317, 7
      %v399 = vrot.slane %v320, 7
      %v400 = vrot.slane %v323, 7
      %v401 = vrot.slane %v326, 7
      %v402 = vrot.slane %v329, 7
      %411 = vst [vmem:[%s370 + $0x8] sm:$0xfe] %v395
      %412 = vst [vmem:[%s370 + $0x18] sm:$0x1] %v395
      %413 = vst [vmem:[%s370 + $0x28] sm:$0xfe] %v396
      %414 = vst [vmem:[%s370 + $0x38] sm:$0x1] %v396
      %415 = vst [vmem:[%s370 + $0x48] sm:$0xfe] %v397
      %416 = vst [vmem:[%s370 + $0x58] sm:$0x1] %v397
      %417 = vst [vmem:[%s370 + $0x68] sm:$0xfe] %v398
      %418 = vst [vmem:[%s370 + $0x78] sm:$0x1] %v398
      %419 = vst [vmem:[%s370 + $0x88] sm:$0xfe] %v399
      %420 = vst [vmem:[%s370 + $0x98] sm:$0x1] %v399
      %421 = vst [vmem:[%s370 + $0xa8] sm:$0xfe] %v400
      %422 = vst [vmem:[%s370 + $0xb8] sm:$0x1] %v400
      %423 = vst [vmem:[%s370 + $0xc8] sm:$0xfe] %v401
      %424 = vst [vmem:[%s370 + $0xd8] sm:$0x1] %v401
      %425 = vst [vmem:[%s370 + $0xe8] sm:$0xfe] %v402
      %426 = vst [vmem:[%s370 + $0xf8] sm:$0x1] %v402
      %s427 = scalar_lea.vmem %s370, 2 [#allocation2]
      %v428 = vld [vmem:[%s427] ss:$8 sm:$0x3]
      %s429 = scalar_lea.vmem %s370, 34 [#allocation2]
      %v430 = vld [vmem:[%s429] ss:$8 sm:$0x3]
      %s431 = scalar_lea.vmem %s370, 66 [#allocation2]
      %v432 = vld [vmem:[%s431] ss:$8 sm:$0x3]
      %s433 = scalar_lea.vmem %s370, 98 [#allocation2]
      %v434 = vld [vmem:[%s433] ss:$8 sm:$0x3]
      %s435 = scalar_lea.vmem %s370, 130 [#allocation2]
      %v436 = vld [vmem:[%s435] ss:$8 sm:$0x3]
      %s437 = scalar_lea.vmem %s370, 162 [#allocation2]
      %v438 = vld [vmem:[%s437] ss:$8 sm:$0x3]
      %s439 = scalar_lea.vmem %s370, 194 [#allocation2]
      %v440 = vld [vmem:[%s439] ss:$8 sm:$0x3]
      %s441 = scalar_lea.vmem %s370, 226 [#allocation2]
      %v442 = vld [vmem:[%s441] ss:$8 sm:$0x3]
      %v443 = vlaneseq
      %vm444 = vcmp.ge.s32.totalorder %v443, 0
      %vm445 = vcmp.lt.s32.totalorder %v443, 256
      %vm446 = vmand %vm444, %vm445
      %447 = vst.msk [vmem:[%s370] ss:$8 sm:$0x3] %vm446, %v428
      %448 = vst.msk [vmem:[%s370] ss:$8 sm:$0x0] %vm446, %v428
      %s449 = scalar_lea.vmem %s370, 32 [#allocation2]
      %450 = vst.msk [vmem:[%s449] ss:$8 sm:$0x3] %vm446, %v430
      %451 = vst.msk [vmem:[%s449] ss:$8 sm:$0x0] %vm446, %v430
      %s452 = scalar_lea.vmem %s370, 64 [#allocation2]
      %453 = vst.msk [vmem:[%s452] ss:$8 sm:$0x3] %vm446, %v432
      %454 = vst.msk [vmem:[%s452] ss:$8 sm:$0x0] %vm446, %v432
      %s455 = scalar_lea.vmem %s370, 96 [#allocation2]
      %456 = vst.msk [vmem:[%s455] ss:$8 sm:$0x3] %vm446, %v434
      %457 = vst.msk [vmem:[%s455] ss:$8 sm:$0x0] %vm446, %v434
      %s458 = scalar_lea.vmem %s370, 128 [#allocation2]
      %459 = vst.msk [vmem:[%s458] ss:$8 sm:$0x3] %vm446, %v436
      %460 = vst.msk [vmem:[%s458] ss:$8 sm:$0x0] %vm446, %v436
      %s461 = scalar_lea.vmem %s370, 160 [#allocation2]
      %462 = vst.msk [vmem:[%s461] ss:$8 sm:$0x3] %vm446, %v438
      %463 = vst.msk [vmem:[%s461] ss:$8 sm:$0x0] %vm446, %v438
      %s464 = scalar_lea.vmem %s370, 192 [#allocation2]
      %465 = vst.msk [vmem:[%s464] ss:$8 sm:$0x3] %vm446, %v440
      %466 = vst.msk [vmem:[%s464] ss:$8 sm:$0x0] %vm446, %v440
      %s467 = scalar_lea.vmem %s370, 224 [#allocation2]
      %468 = vst.msk [vmem:[%s467] ss:$8 sm:$0x3] %vm446, %v442
      %469 = vst.msk [vmem:[%s467] ss:$8 sm:$0x0] %vm446, %v442
      %s470 = scalar_lea.vmem %s370, 7 [#allocation2]
      %v471 = vld [vmem:[%s470] ss:$8 sm:$0x3]
      %s472 = scalar_lea.vmem %s370, 39 [#allocation2]
      %v473 = vld [vmem:[%s472] ss:$8 sm:$0x3]
      %s474 = scalar_lea.vmem %s370, 71 [#allocation2]
      %v475 = vld [vmem:[%s474] ss:$8 sm:$0x3]
      %s476 = scalar_lea.vmem %s370, 103 [#allocation2]
      %v477 = vld [vmem:[%s476] ss:$8 sm:$0x3]
      %s478 = scalar_lea.vmem %s370, 135 [#allocation2]
      %v479 = vld [vmem:[%s478] ss:$8 sm:$0x3]
      %s480 = scalar_lea.vmem %s370, 167 [#allocation2]
      %v481 = vld [vmem:[%s480] ss:$8 sm:$0x3]
      %s482 = scalar_lea.vmem %s370, 199 [#allocation2]
      %v483 = vld [vmem:[%s482] ss:$8 sm:$0x3]
      %s484 = scalar_lea.vmem %s370, 231 [#allocation2]
      %v485 = vld [vmem:[%s484] ss:$8 sm:$0x3]
      %s486 = scalar_lea.vmem %s370, 17 [#allocation2]
      %487 = vst.msk [vmem:[%s486] ss:$8 sm:$0x3] %vm446, %v471
      %488 = vst.msk [vmem:[%s486] ss:$8 sm:$0x0] %vm446, %v471
      %s489 = scalar_lea.vmem %s370, 49 [#allocation2]
      %490 = vst.msk [vmem:[%s489] ss:$8 sm:$0x3] %vm446, %v473
      %491 = vst.msk [vmem:[%s489] ss:$8 sm:$0x0] %vm446, %v473
      %s492 = scalar_lea.vmem %s370, 81 [#allocation2]
      %493 = vst.msk [vmem:[%s492] ss:$8 sm:$0x3] %vm446, %v475
      %494 = vst.msk [vmem:[%s492] ss:$8 sm:$0x0] %vm446, %v475
      %s495 = scalar_lea.vmem %s370, 113 [#allocation2]
      %496 = vst.msk [vmem:[%s495] ss:$8 sm:$0x3] %vm446, %v477
      %497 = vst.msk [vmem:[%s495] ss:$8 sm:$0x0] %vm446, %v477
      %s498 = scalar_lea.vmem %s370, 145 [#allocation2]
      %499 = vst.msk [vmem:[%s498] ss:$8 sm:$0x3] %vm446, %v479
      %500 = vst.msk [vmem:[%s498] ss:$8 sm:$0x0] %vm446, %v479
      %s501 = scalar_lea.vmem %s370, 177 [#allocation2]
      %502 = vst.msk [vmem:[%s501] ss:$8 sm:$0x3] %vm446, %v481
      %503 = vst.msk [vmem:[%s501] ss:$8 sm:$0x0] %vm446, %v481
      %s504 = scalar_lea.vmem %s370, 209 [#allocation2]
      %505 = vst.msk [vmem:[%s504] ss:$8 sm:$0x3] %vm446, %v483
      %506 = vst.msk [vmem:[%s504] ss:$8 sm:$0x0] %vm446, %v483
      %s507 = scalar_lea.vmem %s370, 241 [#allocation2]
      %508 = vst.msk [vmem:[%s507] ss:$8 sm:$0x3] %vm446, %v485
      %509 = vst.msk [vmem:[%s507] ss:$8 sm:$0x0] %vm446, %v485
      %s510 = scalar_lea.vmem [#allocation2], 64
      %v511 = vld [vmem:[%s510] sm:$0xff]
      %v512 = vld [vmem:[%s510 + $0x8] sm:$0xff]
      %v513 = vld [vmem:[%s510 + $0x10] sm:$0x3]
      %v514 = vld [vmem:[%s510 + $0x18] sm:$0x3]
      %515 = vst [vmem:[#allocation2] sm:$0xff] %v511
      %516 = vst [vmem:[#allocation2 + $0x8] sm:$0xff] %v512
      %517 = vst [vmem:[#allocation2 + $0x10] sm:$0x3] %v513
      %518 = vst [vmem:[#allocation2 + $0x18] sm:$0x3] %v514
      %s519 = scalar_lea.vmem [#allocation2], 224
      %v520 = vld [vmem:[%s519] sm:$0xff]
      %v521 = vld [vmem:[%s519 + $0x8] sm:$0xff]
      %v522 = vld [vmem:[%s519 + $0x10] sm:$0x3]
      %v523 = vld [vmem:[%s519 + $0x18] sm:$0x3]
      %s524 = scalar_lea.vmem [#allocation2], 288
      %525 = vst [vmem:[%s524] sm:$0xff] %v520
      %526 = vst [vmem:[%s524 + $0x8] sm:$0xff] %v521
      %527 = vst [vmem:[%s524 + $0x10] sm:$0x3] %v522
      %528 = vst [vmem:[%s524 + $0x18] sm:$0x3] %v523
      %529 = vst [vmem:[#allocation3] sm:$0xff] 0.0
      %530 = vst [vmem:[#allocation3 + $0x8] sm:$0xff] 0.0
      %531 = vst [vmem:[#allocation3 + $0x10] sm:$0xff] 0.0
      %532 = vst [vmem:[#allocation3 + $0x18] sm:$0x3] 0.0
      %533 = vst [vmem:[#allocation3 + $0x20] sm:$0x3] 0.0
      %534 = vst [vmem:[#allocation3 + $0x28] sm:$0x3] 0.0
      %535 = vst [vmem:[#allocation3 + $0x30] sm:$0xff] 0.0
      %536 = vst [vmem:[#allocation3 + $0x38] sm:$0xff] 0.0
      %537 = vst [vmem:[#allocation3 + $0x40] sm:$0xff] 0.0
      %538 = vst [vmem:[#allocation3 + $0x48] sm:$0x3] 0.0
      %539 = vst [vmem:[#allocation3 + $0x50] sm:$0x3] 0.0
      %540 = vst [vmem:[#allocation3 + $0x58] sm:$0x3] 0.0
      %541 = vst [vmem:[#allocation3 + $0x60] sm:$0xff] 0.0
      %542 = vst [vmem:[#allocation3 + $0x68] sm:$0xff] 0.0
      %543 = vst [vmem:[#allocation3 + $0x70] sm:$0xff] 0.0
      %544 = vst [vmem:[#allocation3 + $0x78] sm:$0x3] 0.0
      %545 = vst [vmem:[#allocation3 + $0x80] sm:$0x3] 0.0
      %546 = vst [vmem:[#allocation3 + $0x88] sm:$0x3] 0.0
      %547 = vst [vmem:[#allocation3 + $0x90] sm:$0xff] 0.0
      %548 = vst [vmem:[#allocation3 + $0x98] sm:$0xff] 0.0
      %549 = vst [vmem:[#allocation3 + $0xa0] sm:$0xff] 0.0
      %550 = vst [vmem:[#allocation3 + $0xa8] sm:$0x3] 0.0
      %551 = vst [vmem:[#allocation3 + $0xb0] sm:$0x3] 0.0
      %552 = vst [vmem:[#allocation3 + $0xb8] sm:$0x3] 0.0
      %553 = vst [vmem:[#allocation3 + $0xc0] sm:$0xff] 0.0
      %554 = vst [vmem:[#allocation3 + $0xc8] sm:$0xff] 0.0
      %555 = vst [vmem:[#allocation3 + $0xd0] sm:$0xff] 0.0
      %556 = vst [vmem:[#allocation3 + $0xd8] sm:$0x3] 0.0
      %557 = vst [vmem:[#allocation3 + $0xe0] sm:$0x3] 0.0
      %558 = vst [vmem:[#allocation3 + $0xe8] sm:$0x3] 0.0
      %559 = vst [vmem:[#allocation3 + $0xf0] sm:$0xff] 0.0
      %560 = vst [vmem:[#allocation3 + $0xf8] sm:$0xff] 0.0
      %561 = vst [vmem:[#allocation3 + $0x100] sm:$0xff] 0.0
      %562 = vst [vmem:[#allocation3 + $0x108] sm:$0x3] 0.0
      %563 = vst [vmem:[#allocation3 + $0x110] sm:$0x3] 0.0
      %564 = vst [vmem:[#allocation3 + $0x118] sm:$0x3] 0.0
      %565 = vst [vmem:[#allocation3 + $0x120] sm:$0xff] 0.0
      %566 = vst [vmem:[#allocation3 + $0x128] sm:$0xff] 0.0
      %567 = vst [vmem:[#allocation3 + $0x130] sm:$0xff] 0.0
      %568 = vst [vmem:[#allocation3 + $0x138] sm:$0x3] 0.0
      %569 = vst [vmem:[#allocation3 + $0x140] sm:$0x3] 0.0
      %570 = vst [vmem:[#allocation3 + $0x148] sm:$0x3] 0.0
      %571 = vst [vmem:[#allocation3 + $0x150] sm:$0xff] 0.0
      %572 = vst [vmem:[#allocation3 + $0x158] sm:$0xff] 0.0
      %573 = vst [vmem:[#allocation3 + $0x160] sm:$0xff] 0.0
      %574 = vst [vmem:[#allocation3 + $0x168] sm:$0x3] 0.0
      %575 = vst [vmem:[#allocation3 + $0x170] sm:$0x3] 0.0
      %576 = vst [vmem:[#allocation3 + $0x178] sm:$0x3] 0.0
      %577 = vst [vmem:[#allocation3 + $0x180] sm:$0xff] 0.0
      %578 = vst [vmem:[#allocation3 + $0x188] sm:$0xff] 0.0
      %579 = vst [vmem:[#allocation3 + $0x190] sm:$0xff] 0.0
      %580 = vst [vmem:[#allocation3 + $0x198] sm:$0x3] 0.0
      %581 = vst [vmem:[#allocation3 + $0x1a0] sm:$0x3] 0.0
      %582 = vst [vmem:[#allocation3 + $0x1a8] sm:$0x3] 0.0
      %583 = vst [vmem:[#allocation3 + $0x1b0] sm:$0xff] 0.0
      %584 = vst [vmem:[#allocation3 + $0x1b8] sm:$0xff] 0.0
      %585 = vst [vmem:[#allocation3 + $0x1c0] sm:$0xff] 0.0
      %586 = vst [vmem:[#allocation3 + $0x1c8] sm:$0x3] 0.0
      %587 = vst [vmem:[#allocation3 + $0x1d0] sm:$0x3] 0.0
      %588 = vst [vmem:[#allocation3 + $0x1d8] sm:$0x3] 0.0
      %v605 = vrot.slane %v306, 7
      %v606 = vrot.slane %v307, 7
      %v607 = vrot.slane %v309, 7
      %v608 = vrot.slane %v310, 7
      %v609 = vrot.slane %v312, 7
      %v610 = vrot.slane %v313, 7
      %v611 = vrot.slane %v315, 7
      %v612 = vrot.slane %v316, 7
      %v613 = vrot.slane %v318, 7
      %v614 = vrot.slane %v319, 7
      %v615 = vrot.slane %v321, 7
      %v616 = vrot.slane %v322, 7
      %v617 = vrot.slane %v324, 7
      %v618 = vrot.slane %v325, 7
      %v619 = vrot.slane %v327, 7
      %v620 = vrot.slane %v328, 7
      %s637 = scalar_lea.vmem [#allocation3], 48
      %638 = vst [vmem:[%s637] sm:$0xfe] %v605
      %639 = vst [vmem:[%s637 + $0x8] sm:$0xfe] %v606
      %640 = vst [vmem:[%s637 + $0x10] sm:$0xfe] %v395
      %641 = vst [vmem:[%s637 + $0x18] sm:$0x1] %v605
      %642 = vst [vmem:[%s637 + $0x20] sm:$0x1] %v606
      %643 = vst [vmem:[%s637 + $0x28] sm:$0x1] %v395
      %644 = vst [vmem:[%s637 + $0x30] sm:$0xfe] %v607
      %645 = vst [vmem:[%s637 + $0x38] sm:$0xfe] %v608
      %646 = vst [vmem:[%s637 + $0x40] sm:$0xfe] %v396
      %647 = vst [vmem:[%s637 + $0x48] sm:$0x1] %v607
      %648 = vst [vmem:[%s637 + $0x50] sm:$0x1] %v608
      %649 = vst [vmem:[%s637 + $0x58] sm:$0x1] %v396
      %650 = vst [vmem:[%s637 + $0x60] sm:$0xfe] %v609
      %651 = vst [vmem:[%s637 + $0x68] sm:$0xfe] %v610
      %652 = vst [vmem:[%s637 + $0x70] sm:$0xfe] %v397
      %653 = vst [vmem:[%s637 + $0x78] sm:$0x1] %v609
      %654 = vst [vmem:[%s637 + $0x80] sm:$0x1] %v610
      %655 = vst [vmem:[%s637 + $0x88] sm:$0x1] %v397
      %656 = vst [vmem:[%s637 + $0x90] sm:$0xfe] %v611
      %657 = vst [vmem:[%s637 + $0x98] sm:$0xfe] %v612
      %658 = vst [vmem:[%s637 + $0xa0] sm:$0xfe] %v398
      %659 = vst [vmem:[%s637 + $0xa8] sm:$0x1] %v611
      %660 = vst [vmem:[%s637 + $0xb0] sm:$0x1] %v612
      %661 = vst [vmem:[%s637 + $0xb8] sm:$0x1] %v398
      %662 = vst [vmem:[%s637 + $0xc0] sm:$0xfe] %v613
      %663 = vst [vmem:[%s637 + $0xc8] sm:$0xfe] %v614
      %664 = vst [vmem:[%s637 + $0xd0] sm:$0xfe] %v399
      %665 = vst [vmem:[%s637 + $0xd8] sm:$0x1] %v613
      %666 = vst [vmem:[%s637 + $0xe0] sm:$0x1] %v614
      %667 = vst [vmem:[%s637 + $0xe8] sm:$0x1] %v399
      %668 = vst [vmem:[%s637 + $0xf0] sm:$0xfe] %v615
      %669 = vst [vmem:[%s637 + $0xf8] sm:$0xfe] %v616
      %670 = vst [vmem:[%s637 + $0x100] sm:$0xfe] %v400
      %671 = vst [vmem:[%s637 + $0x108] sm:$0x1] %v615
      %672 = vst [vmem:[%s637 + $0x110] sm:$0x1] %v616
      %673 = vst [vmem:[%s637 + $0x118] sm:$0x1] %v400
      %674 = vst [vmem:[%s637 + $0x120] sm:$0xfe] %v617
      %675 = vst [vmem:[%s637 + $0x128] sm:$0xfe] %v618
      %676 = vst [vmem:[%s637 + $0x130] sm:$0xfe] %v401
      %677 = vst [vmem:[%s637 + $0x138] sm:$0x1] %v617
      %678 = vst [vmem:[%s637 + $0x140] sm:$0x1] %v618
      %679 = vst [vmem:[%s637 + $0x148] sm:$0x1] %v401
      %680 = vst [vmem:[%s637 + $0x150] sm:$0xfe] %v619
      %681 = vst [vmem:[%s637 + $0x158] sm:$0xfe] %v620
      %682 = vst [vmem:[%s637 + $0x160] sm:$0xfe] %v402
      %683 = vst [vmem:[%s637 + $0x168] sm:$0x1] %v619
      %684 = vst [vmem:[%s637 + $0x170] sm:$0x1] %v620
      %685 = vst [vmem:[%s637 + $0x178] sm:$0x1] %v402
      %v686 = vmul.f32 %v306, 0.125
      %v687 = vmul.f32 %v309, 0.125
      %v688 = vmul.f32 %v312, 0.125
      %v689 = vmul.f32 %v315, 0.125
      %v690 = vmul.f32 %v318, 0.125
      %v691 = vmul.f32 %v321, 0.125
      %v692 = vmul.f32 %v324, 0.125
      %v693 = vmul.f32 %v327, 0.125
      %v694 = vld [vmem:[#allocation2] sm:$0xff]
      %v695 = vld [vmem:[#allocation2 + $0x20] sm:$0xff]
      %v696 = vld [vmem:[#allocation2 + $0x40] sm:$0xff]
      %v697 = vld [vmem:[#allocation2 + $0x60] sm:$0xff]
      %v698 = vld [vmem:[#allocation2 + $0x80] sm:$0xff]
      %v699 = vld [vmem:[#allocation2 + $0xa0] sm:$0xff]
      %v700 = vld [vmem:[#allocation2 + $0xc0] sm:$0xff]
      %v701 = vld [vmem:[#allocation2 + $0xe0] sm:$0xff]
      %v702 = vmul.f32 %v686, %v694
      %v703 = vmul.f32 %v687, %v695
      %v704 = vmul.f32 %v688, %v696
      %v705 = vmul.f32 %v689, %v697
      %v706 = vmul.f32 %v690, %v698
      %v707 = vmul.f32 %v691, %v699
      %v708 = vmul.f32 %v692, %v700
      %v709 = vmul.f32 %v693, %v701
      %v710 = vld [vmem:[%s2] sm:$0xff]
      %v711 = vld [vmem:[%s2 + $0x8] sm:$0xff]
      %v712 = vld [vmem:[%s2 + $0x10] sm:$0xff]
      %v713 = vld [vmem:[%s2 + $0x18] sm:$0xff]
      %v714 = vld [vmem:[%s2 + $0x20] sm:$0xff]
      %v715 = vld [vmem:[%s2 + $0x28] sm:$0xff]
      %v716 = vld [vmem:[%s2 + $0x30] sm:$0xff]
      %v717 = vld [vmem:[%s2 + $0x38] sm:$0xff]
      %v718 = vld [vmem:[%s2 + $0x40] sm:$0xff]
      %v719 = vld [vmem:[%s2 + $0x48] sm:$0xff]
      %v720 = vld [vmem:[%s2 + $0x50] sm:$0xff]
      %v721 = vld [vmem:[%s2 + $0x58] sm:$0xff]
      %v722 = vld [vmem:[%s2 + $0x60] sm:$0xff]
      %v723 = vld [vmem:[%s2 + $0x68] sm:$0xff]
      %v724 = vld [vmem:[%s2 + $0x70] sm:$0xff]
      %v725 = vld [vmem:[%s2 + $0x78] sm:$0xff]
      %v726 = vld [vmem:[#allocation2] sm:$0xfe]
      %v727 = vld [vmem:[#allocation2 + $0x10] sm:$0x1]
      %v728 = vld [vmem:[#allocation2 + $0x20] sm:$0xfe]
      %v729 = vld [vmem:[#allocation2 + $0x30] sm:$0x1]
      %v730 = vld [vmem:[#allocation2 + $0x40] sm:$0xfe]
      %v731 = vld [vmem:[#allocation2 + $0x50] sm:$0x1]
      %v732 = vld [vmem:[#allocation2 + $0x60] sm:$0xfe]
      %v733 = vld [vmem:[#allocation2 + $0x70] sm:$0x1]
      %v734 = vld [vmem:[#allocation2 + $0x80] sm:$0xfe]
      %v735 = vld [vmem:[#allocation2 + $0x90] sm:$0x1]
      %v736 = vld [vmem:[#allocation2 + $0xa0] sm:$0xfe]
      %v737 = vld [vmem:[#allocation2 + $0xb0] sm:$0x1]
      %v738 = vld [vmem:[#allocation2 + $0xc0] sm:$0xfe]
      %v739 = vld [vmem:[#allocation2 + $0xd0] sm:$0x1]
      %v740 = vld [vmem:[#allocation2 + $0xe0] sm:$0xfe]
      %v741 = vld [vmem:[#allocation2 + $0xf0] sm:$0x1]
      %vm758 = vcmask 1046528
      %v759 = vrot.slane %v726, 1
      %v760 = vrot.slane %v727, 1
      %v761 = vsel %vm758, %v759, %v760
      %v762 = vrot.slane %v728, 1
      %v763 = vrot.slane %v729, 1
      %v764 = vsel %vm758, %v762, %v763
      %v765 = vrot.slane %v730, 1
      %v766 = vrot.slane %v731, 1
      %v767 = vsel %vm758, %v765, %v766
      %v768 = vrot.slane %v732, 1
      %v769 = vrot.slane %v733, 1
      %v770 = vsel %vm758, %v768, %v769
      %v771 = vrot.slane %v734, 1
      %v772 = vrot.slane %v735, 1
      %v773 = vsel %vm758, %v771, %v772
      %v774 = vrot.slane %v736, 1
      %v775 = vrot.slane %v737, 1
      %v776 = vsel %vm758, %v774, %v775
      %v777 = vrot.slane %v738, 1
      %v778 = vrot.slane %v739, 1
      %v779 = vsel %vm758, %v777, %v778
      %v780 = vrot.slane %v740, 1
      %v781 = vrot.slane %v741, 1
      %v782 = vsel %vm758, %v780, %v781
      %v791 = vmul.f32 %v686, %v761
      %v792 = vmul.f32 %v687, %v764
      %v793 = vmul.f32 %v688, %v767
      %v794 = vmul.f32 %v689, %v770
      %v795 = vmul.f32 %v690, %v773
      %v796 = vmul.f32 %v691, %v776
      %v797 = vmul.f32 %v692, %v779
      %v798 = vmul.f32 %v693, %v782
      %s799 = scalar_lea.vmem %s2, 128
      %v800 = vld [vmem:[%s799] sm:$0xff]
      %v801 = vld [vmem:[%s799 + $0x8] sm:$0xff]
      %v802 = vld [vmem:[%s799 + $0x10] sm:$0xff]
      %v803 = vld [vmem:[%s799 + $0x18] sm:$0xff]
      %v804 = vld [vmem:[%s799 + $0x20] sm:$0xff]
      %v805 = vld [vmem:[%s799 + $0x28] sm:$0xff]
      %v806 = vld [vmem:[%s799 + $0x30] sm:$0xff]
      %v807 = vld [vmem:[%s799 + $0x38] sm:$0xff]
      %v808 = vld [vmem:[%s799 + $0x40] sm:$0xff]
      %v809 = vld [vmem:[%s799 + $0x48] sm:$0xff]
      %v810 = vld [vmem:[%s799 + $0x50] sm:$0xff]
      %v811 = vld [vmem:[%s799 + $0x58] sm:$0xff]
      %v812 = vld [vmem:[%s799 + $0x60] sm:$0xff]
      %v813 = vld [vmem:[%s799 + $0x68] sm:$0xff]
      %v814 = vld [vmem:[%s799 + $0x70] sm:$0xff]
      %v815 = vld [vmem:[%s799 + $0x78] sm:$0xff]
      %816 = vmatpush.msra.mxu0 %v815
      %817 = vmatpush.msra.mxu0 %v814
      %818 = vmatpush.msra.mxu0 %v813
      %819 = vmatpush.msra.mxu0 %v812
      %820 = vmatpush.msra.mxu0 %v811
      %821 = vmatpush.msra.mxu0 %v810
      %822 = vmatpush.msra.mxu0 %v809
      %823 = vmatpush.msra.mxu0 %v808
      %824 = vmatpush.msra.mxu0 %v807
      %825 = vmatpush.msra.mxu0 %v806
      %826 = vmatpush.msra.mxu0 %v805
      %827 = vmatpush.msra.mxu0 %v804
      %828 = vmatpush.msra.mxu0 %v803
      %829 = vmatpush.msra.mxu0 %v802
      %830 = vmatpush.msra.mxu0 %v801
      %831 = vmatpush.msra.mxu0 %v800
      %832 = vmatmul.f32.gmra.mxu0 %v791
      %v833 = vpop.f32.mrf.mxu0
      %v834 = vadd.f32 0.0, %v833
      %835 = vmatmul.f32.gmra.mxu0 %v792
      %v836 = vpop.f32.mrf.mxu0
      %v837 = vadd.f32 0.0, %v836
      %838 = vmatmul.f32.gmra.mxu0 %v793
      %v839 = vpop.f32.mrf.mxu0
      %v840 = vadd.f32 0.0, %v839
      %841 = vmatmul.f32.gmra.mxu0 %v794
      %v842 = vpop.f32.mrf.mxu0
      %v843 = vadd.f32 0.0, %v842
      %844 = vmatmul.f32.gmra.mxu0 %v795
      %v845 = vpop.f32.mrf.mxu0
      %v846 = vadd.f32 0.0, %v845
      %847 = vmatmul.f32.gmra.mxu0 %v796
      %v848 = vpop.f32.mrf.mxu0
      %v849 = vadd.f32 0.0, %v848
      %850 = vmatmul.f32.gmra.mxu0 %v797
      %v851 = vpop.f32.mrf.mxu0
      %v852 = vadd.f32 0.0, %v851
      %853 = vmatmul.f32.gmra.mxu0 %v798
      %v854 = vpop.f32.mrf.mxu0
      %v855 = vadd.f32 0.0, %v854
      %856 = vdwg.mxu0
      %857 = vmatpush.msra.mxu0 %v725
      %858 = vmatpush.msra.mxu0 %v724
      %859 = vmatpush.msra.mxu0 %v723
      %860 = vmatpush.msra.mxu0 %v722
      %861 = vmatpush.msra.mxu0 %v721
      %862 = vmatpush.msra.mxu0 %v720
      %863 = vmatpush.msra.mxu0 %v719
      %864 = vmatpush.msra.mxu0 %v718
      %865 = vmatpush.msra.mxu0 %v717
      %866 = vmatpush.msra.mxu0 %v716
      %867 = vmatpush.msra.mxu0 %v715
      %868 = vmatpush.msra.mxu0 %v714
      %869 = vmatpush.msra.mxu0 %v713
      %870 = vmatpush.msra.mxu0 %v712
      %871 = vmatpush.msra.mxu0 %v711
      %872 = vmatpush.msra.mxu0 %v710
      %873 = vmatmul.f32.gmra.mxu0 %v702
      %v874 = vpop.f32.mrf.mxu0
      %v875 = vadd.f32 %v834, %v874
      %876 = vmatmul.f32.gmra.mxu0 %v703
      %v877 = vpop.f32.mrf.mxu0
      %v878 = vadd.f32 %v837, %v877
      %879 = vmatmul.f32.gmra.mxu0 %v704
      %v880 = vpop.f32.mrf.mxu0
      %v881 = vadd.f32 %v840, %v880
      %882 = vmatmul.f32.gmra.mxu0 %v705
      %v883 = vpop.f32.mrf.mxu0
      %v884 = vadd.f32 %v843, %v883
      %885 = vmatmul.f32.gmra.mxu0 %v706
      %v886 = vpop.f32.mrf.mxu0
      %v887 = vadd.f32 %v846, %v886
      %888 = vmatmul.f32.gmra.mxu0 %v707
      %v889 = vpop.f32.mrf.mxu0
      %v890 = vadd.f32 %v849, %v889
      %891 = vmatmul.f32.gmra.mxu0 %v708
      %v892 = vpop.f32.mrf.mxu0
      %v893 = vadd.f32 %v852, %v892
      %894 = vmatmul.f32.gmra.mxu0 %v709
      %v895 = vpop.f32.mrf.mxu0
      %v896 = vadd.f32 %v855, %v895
      %897 = vdwg.mxu0
      %v898 = vld [vmem:[#allocation2] sm:$0xfc]
      %v899 = vld [vmem:[#allocation2 + $0x10] sm:$0x3]
      %v900 = vld [vmem:[#allocation2 + $0x20] sm:$0xfc]
      %v901 = vld [vmem:[#allocation2 + $0x30] sm:$0x3]
      %v902 = vld [vmem:[#allocation2 + $0x40] sm:$0xfc]
      %v903 = vld [vmem:[#allocation2 + $0x50] sm:$0x3]
      %v904 = vld [vmem:[#allocation2 + $0x60] sm:$0xfc]
      %v905 = vld [vmem:[#allocation2 + $0x70] sm:$0x3]
      %v906 = vld [vmem:[#allocation2 + $0x80] sm:$0xfc]
      %v907 = vld [vmem:[#allocation2 + $0x90] sm:$0x3]
      %v908 = vld [vmem:[#allocation2 + $0xa0] sm:$0xfc]
      %v909 = vld [vmem:[#allocation2 + $0xb0] sm:$0x3]
      %v910 = vld [vmem:[#allocation2 + $0xc0] sm:$0xfc]
      %v911 = vld [vmem:[#allocation2 + $0xd0] sm:$0x3]
      %v912 = vld [vmem:[#allocation2 + $0xe0] sm:$0xfc]
      %v913 = vld [vmem:[#allocation2 + $0xf0] sm:$0x3]
      %vm930 = vcmask 1045504
      %v931 = vrot.slane %v898, 2
      %v932 = vrot.slane %v899, 2
      %v933 = vsel %vm930, %v931, %v932
      %v934 = vrot.slane %v900, 2
      %v935 = vrot.slane %v901, 2
      %v936 = vsel %vm930, %v934, %v935
      %v937 = vrot.slane %v902, 2
      %v938 = vrot.slane %v903, 2
      %v939 = vsel %vm930, %v937, %v938
      %v940 = vrot.slane %v904, 2
      %v941 = vrot.slane %v905, 2
      %v942 = vsel %vm930, %v940, %v941
      %v943 = vrot.slane %v906, 2
      %v944 = vrot.slane %v907, 2
      %v945 = vsel %vm930, %v943, %v944
      %v946 = vrot.slane %v908, 2
      %v947 = vrot.slane %v909, 2
      %v948 = vsel %vm930, %v946, %v947
      %v949 = vrot.slane %v910, 2
      %v950 = vrot.slane %v911, 2
      %v951 = vsel %vm930, %v949, %v950
      %v952 = vrot.slane %v912, 2
      %v953 = vrot.slane %v913, 2
      %v954 = vsel %vm930, %v952, %v953
      %v963 = vmul.f32 %v686, %v933
      %v964 = vmul.f32 %v687, %v936
      %v965 = vmul.f32 %v688, %v939
      %v966 = vmul.f32 %v689, %v942
      %v967 = vmul.f32 %v690, %v945
      %v968 = vmul.f32 %v691, %v948
      %v969 = vmul.f32 %v692, %v951
      %v970 = vmul.f32 %v693, %v954
      %s971 = scalar_lea.vmem %s2, 256
      %v972 = vld [vmem:[%s971] sm:$0xff]
      %v973 = vld [vmem:[%s971 + $0x8] sm:$0xff]
      %v974 = vld [vmem:[%s971 + $0x10] sm:$0xff]
      %v975 = vld [vmem:[%s971 + $0x18] sm:$0xff]
      %v976 = vld [vmem:[%s971 + $0x20] sm:$0xff]
      %v977 = vld [vmem:[%s971 + $0x28] sm:$0xff]
      %v978 = vld [vmem:[%s971 + $0x30] sm:$0xff]
      %v979 = vld [vmem:[%s971 + $0x38] sm:$0xff]
      %v980 = vld [vmem:[%s971 + $0x40] sm:$0xff]
      %v981 = vld [vmem:[%s971 + $0x48] sm:$0xff]
      %v982 = vld [vmem:[%s971 + $0x50] sm:$0xff]
      %v983 = vld [vmem:[%s971 + $0x58] sm:$0xff]
      %v984 = vld [vmem:[%s971 + $0x60] sm:$0xff]
      %v985 = vld [vmem:[%s971 + $0x68] sm:$0xff]
      %v986 = vld [vmem:[%s971 + $0x70] sm:$0xff]
      %v987 = vld [vmem:[%s971 + $0x78] sm:$0xff]
      %988 = vmatpush.msra.mxu0 %v987
      %989 = vmatpush.msra.mxu0 %v986
      %990 = vmatpush.msra.mxu0 %v985
      %991 = vmatpush.msra.mxu0 %v984
      %992 = vmatpush.msra.mxu0 %v983
      %993 = vmatpush.msra.mxu0 %v982
      %994 = vmatpush.msra.mxu0 %v981
      %995 = vmatpush.msra.mxu0 %v980
      %996 = vmatpush.msra.mxu0 %v979
      %997 = vmatpush.msra.mxu0 %v978
      %998 = vmatpush.msra.mxu0 %v977
      %999 = vmatpush.msra.mxu0 %v976
      %1000 = vmatpush.msra.mxu0 %v975
      %1001 = vmatpush.msra.mxu0 %v974
      %1002 = vmatpush.msra.mxu0 %v973
      %1003 = vmatpush.msra.mxu0 %v972
      %1004 = vmatmul.f32.gmra.mxu0 %v963
      %v1005 = vpop.f32.mrf.mxu0
      %v1006 = vadd.f32 0.0, %v1005
      %1007 = vmatmul.f32.gmra.mxu0 %v964
      %v1008 = vpop.f32.mrf.mxu0
      %v1009 = vadd.f32 0.0, %v1008
      %1010 = vmatmul.f32.gmra.mxu0 %v965
      %v1011 = vpop.f32.mrf.mxu0
      %v1012 = vadd.f32 0.0, %v1011
      %1013 = vmatmul.f32.gmra.mxu0 %v966
      %v1014 = vpop.f32.mrf.mxu0
      %v1015 = vadd.f32 0.0, %v1014
      %1016 = vmatmul.f32.gmra.mxu0 %v967
      %v1017 = vpop.f32.mrf.mxu0
      %v1018 = vadd.f32 0.0, %v1017
      %1019 = vmatmul.f32.gmra.mxu0 %v968
      %v1020 = vpop.f32.mrf.mxu0
      %v1021 = vadd.f32 0.0, %v1020
      %1022 = vmatmul.f32.gmra.mxu0 %v969
      %v1023 = vpop.f32.mrf.mxu0
      %v1024 = vadd.f32 0.0, %v1023
      %1025 = vmatmul.f32.gmra.mxu0 %v970
      %v1026 = vpop.f32.mrf.mxu0
      %v1027 = vadd.f32 0.0, %v1026
      %1028 = vdwg.mxu0
      %v1029 = vadd.f32 %v875, %v1006
      %v1030 = vadd.f32 %v878, %v1009
      %v1031 = vadd.f32 %v881, %v1012
      %v1032 = vadd.f32 %v884, %v1015
      %v1033 = vadd.f32 %v887, %v1018
      %v1034 = vadd.f32 %v890, %v1021
      %v1035 = vadd.f32 %v893, %v1024
      %v1036 = vadd.f32 %v896, %v1027
      %v1037 = vld [vmem:[%s370] sm:$0xff]
      %v1038 = vld [vmem:[%s370 + $0x20] sm:$0xff]
      %v1039 = vld [vmem:[%s370 + $0x40] sm:$0xff]
      %v1040 = vld [vmem:[%s370 + $0x60] sm:$0xff]
      %v1041 = vld [vmem:[%s370 + $0x80] sm:$0xff]
      %v1042 = vld [vmem:[%s370 + $0xa0] sm:$0xff]
      %v1043 = vld [vmem:[%s370 + $0xc0] sm:$0xff]
      %v1044 = vld [vmem:[%s370 + $0xe0] sm:$0xff]
      %v1045 = vmul.f32 %v686, %v1037
      %v1046 = vmul.f32 %v687, %v1038
      %v1047 = vmul.f32 %v688, %v1039
      %v1048 = vmul.f32 %v689, %v1040
      %v1049 = vmul.f32 %v690, %v1041
      %v1050 = vmul.f32 %v691, %v1042
      %v1051 = vmul.f32 %v692, %v1043
      %v1052 = vmul.f32 %v693, %v1044
      %s1053 = scalar_lea.vmem %s2, 384
      %v1054 = vld [vmem:[%s1053] sm:$0xff]
      %v1055 = vld [vmem:[%s1053 + $0x8] sm:$0xff]
      %v1056 = vld [vmem:[%s1053 + $0x10] sm:$0xff]
      %v1057 = vld [vmem:[%s1053 + $0x18] sm:$0xff]
      %v1058 = vld [vmem:[%s1053 + $0x20] sm:$0xff]
      %v1059 = vld [vmem:[%s1053 + $0x28] sm:$0xff]
      %v1060 = vld [vmem:[%s1053 + $0x30] sm:$0xff]
      %v1061 = vld [vmem:[%s1053 + $0x38] sm:$0xff]
      %v1062 = vld [vmem:[%s1053 + $0x40] sm:$0xff]
      %v1063 = vld [vmem:[%s1053 + $0x48] sm:$0xff]
      %v1064 = vld [vmem:[%s1053 + $0x50] sm:$0xff]
      %v1065 = vld [vmem:[%s1053 + $0x58] sm:$0xff]
      %v1066 = vld [vmem:[%s1053 + $0x60] sm:$0xff]
      %v1067 = vld [vmem:[%s1053 + $0x68] sm:$0xff]
      %v1068 = vld [vmem:[%s1053 + $0x70] sm:$0xff]
      %v1069 = vld [vmem:[%s1053 + $0x78] sm:$0xff]
      %1070 = vmatpush.msra.mxu0 %v1069
      %1071 = vmatpush.msra.mxu0 %v1068
      %1072 = vmatpush.msra.mxu0 %v1067
      %1073 = vmatpush.msra.mxu0 %v1066
      %1074 = vmatpush.msra.mxu0 %v1065
      %1075 = vmatpush.msra.mxu0 %v1064
      %1076 = vmatpush.msra.mxu0 %v1063
      %1077 = vmatpush.msra.mxu0 %v1062
      %1078 = vmatpush.msra.mxu0 %v1061
      %1079 = vmatpush.msra.mxu0 %v1060
      %1080 = vmatpush.msra.mxu0 %v1059
      %1081 = vmatpush.msra.mxu0 %v1058
      %1082 = vmatpush.msra.mxu0 %v1057
      %1083 = vmatpush.msra.mxu0 %v1056
      %1084 = vmatpush.msra.mxu0 %v1055
      %1085 = vmatpush.msra.mxu0 %v1054
      %1086 = vmatmul.f32.gmra.mxu0 %v1045
      %v1087 = vpop.f32.mrf.mxu0
      %v1088 = vadd.f32 0.0, %v1087
      %1089 = vmatmul.f32.gmra.mxu0 %v1046
      %v1090 = vpop.f32.mrf.mxu0
      %v1091 = vadd.f32 0.0, %v1090
      %1092 = vmatmul.f32.gmra.mxu0 %v1047
      %v1093 = vpop.f32.mrf.mxu0
      %v1094 = vadd.f32 0.0, %v1093
      %1095 = vmatmul.f32.gmra.mxu0 %v1048
      %v1096 = vpop.f32.mrf.mxu0
      %v1097 = vadd.f32 0.0, %v1096
      %1098 = vmatmul.f32.gmra.mxu0 %v1049
      %v1099 = vpop.f32.mrf.mxu0
      %v1100 = vadd.f32 0.0, %v1099
      %1101 = vmatmul.f32.gmra.mxu0 %v1050
      %v1102 = vpop.f32.mrf.mxu0
      %v1103 = vadd.f32 0.0, %v1102
      %1104 = vmatmul.f32.gmra.mxu0 %v1051
      %v1105 = vpop.f32.mrf.mxu0
      %v1106 = vadd.f32 0.0, %v1105
      %1107 = vmatmul.f32.gmra.mxu0 %v1052
      %v1108 = vpop.f32.mrf.mxu0
      %v1109 = vadd.f32 0.0, %v1108
      %1110 = vdwg.mxu0
      %v1111 = vadd.f32 %v1029, %v1088
      %v1112 = vadd.f32 %v1030, %v1091
      %v1113 = vadd.f32 %v1031, %v1094
      %v1114 = vadd.f32 %v1032, %v1097
      %v1115 = vadd.f32 %v1033, %v1100
      %v1116 = vadd.f32 %v1034, %v1103
      %v1117 = vadd.f32 %v1035, %v1106
      %v1118 = vadd.f32 %v1036, %v1109
      %v1119 = vld [vmem:[%s370] sm:$0xfe]
      %v1120 = vld [vmem:[%s370 + $0x10] sm:$0x1]
      %v1121 = vld [vmem:[%s370 + $0x20] sm:$0xfe]
      %v1122 = vld [vmem:[%s370 + $0x30] sm:$0x1]
      %v1123 = vld [vmem:[%s370 + $0x40] sm:$0xfe]
      %v1124 = vld [vmem:[%s370 + $0x50] sm:$0x1]
      %v1125 = vld [vmem:[%s370 + $0x60] sm:$0xfe]
      %v1126 = vld [vmem:[%s370 + $0x70] sm:$0x1]
      %v1127 = vld [vmem:[%s370 + $0x80] sm:$0xfe]
      %v1128 = vld [vmem:[%s370 + $0x90] sm:$0x1]
      %v1129 = vld [vmem:[%s370 + $0xa0] sm:$0xfe]
      %v1130 = vld [vmem:[%s370 + $0xb0] sm:$0x1]
      %v1131 = vld [vmem:[%s370 + $0xc0] sm:$0xfe]
      %v1132 = vld [vmem:[%s370 + $0xd0] sm:$0x1]
      %v1133 = vld [vmem:[%s370 + $0xe0] sm:$0xfe]
      %v1134 = vld [vmem:[%s370 + $0xf0] sm:$0x1]
      %v1151 = vrot.slane %v1119, 1
      %v1152 = vrot.slane %v1120, 1
      %v1153 = vsel %vm758, %v1151, %v1152
      %v1154 = vrot.slane %v1121, 1
      %v1155 = vrot.slane %v1122, 1
      %v1156 = vsel %vm758, %v1154, %v1155
      %v1157 = vrot.slane %v1123, 1
      %v1158 = vrot.slane %v1124, 1
      %v1159 = vsel %vm758, %v1157, %v1158
      %v1160 = vrot.slane %v1125, 1
      %v1161 = vrot.slane %v1126, 1
      %v1162 = vsel %vm758, %v1160, %v1161
      %v1163 = vrot.slane %v1127, 1
      %v1164 = vrot.slane %v1128, 1
      %v1165 = vsel %vm758, %v1163, %v1164
      %v1166 = vrot.slane %v1129, 1
      %v1167 = vrot.slane %v1130, 1
      %v1168 = vsel %vm758, %v1166, %v1167
      %v1169 = vrot.slane %v1131, 1
      %v1170 = vrot.slane %v1132, 1
      %v1171 = vsel %vm758, %v1169, %v1170
      %v1172 = vrot.slane %v1133, 1
      %v1173 = vrot.slane %v1134, 1
      %v1174 = vsel %vm758, %v1172, %v1173
      %v1183 = vmul.f32 %v686, %v1153
      %v1184 = vmul.f32 %v687, %v1156
      %v1185 = vmul.f32 %v688, %v1159
      %v1186 = vmul.f32 %v689, %v1162
      %v1187 = vmul.f32 %v690, %v1165
      %v1188 = vmul.f32 %v691, %v1168
      %v1189 = vmul.f32 %v692, %v1171
      %v1190 = vmul.f32 %v693, %v1174
      %s1191 = scalar_lea.vmem %s2, 512
      %v1192 = vld [vmem:[%s1191] sm:$0xff]
      %v1193 = vld [vmem:[%s1191 + $0x8] sm:$0xff]
      %v1194 = vld [vmem:[%s1191 + $0x10] sm:$0xff]
      %v1195 = vld [vmem:[%s1191 + $0x18] sm:$0xff]
      %v1196 = vld [vmem:[%s1191 + $0x20] sm:$0xff]
      %v1197 = vld [vmem:[%s1191 + $0x28] sm:$0xff]
      %v1198 = vld [vmem:[%s1191 + $0x30] sm:$0xff]
      %v1199 = vld [vmem:[%s1191 + $0x38] sm:$0xff]
      %v1200 = vld [vmem:[%s1191 + $0x40] sm:$0xff]
      %v1201 = vld [vmem:[%s1191 + $0x48] sm:$0xff]
      %v1202 = vld [vmem:[%s1191 + $0x50] sm:$0xff]
      %v1203 = vld [vmem:[%s1191 + $0x58] sm:$0xff]
      %v1204 = vld [vmem:[%s1191 + $0x60] sm:$0xff]
      %v1205 = vld [vmem:[%s1191 + $0x68] sm:$0xff]
      %v1206 = vld [vmem:[%s1191 + $0x70] sm:$0xff]
      %v1207 = vld [vmem:[%s1191 + $0x78] sm:$0xff]
      %1208 = vmatpush.msra.mxu0 %v1207
      %1209 = vmatpush.msra.mxu0 %v1206
      %1210 = vmatpush.msra.mxu0 %v1205
      %1211 = vmatpush.msra.mxu0 %v1204
      %1212 = vmatpush.msra.mxu0 %v1203
      %1213 = vmatpush.msra.mxu0 %v1202
      %1214 = vmatpush.msra.mxu0 %v1201
      %1215 = vmatpush.msra.mxu0 %v1200
      %1216 = vmatpush.msra.mxu0 %v1199
      %1217 = vmatpush.msra.mxu0 %v1198
      %1218 = vmatpush.msra.mxu0 %v1197
      %1219 = vmatpush.msra.mxu0 %v1196
      %1220 = vmatpush.msra.mxu0 %v1195
      %1221 = vmatpush.msra.mxu0 %v1194
      %1222 = vmatpush.msra.mxu0 %v1193
      %1223 = vmatpush.msra.mxu0 %v1192
      %1224 = vmatmul.f32.gmra.mxu0 %v1183
      %v1225 = vpop.f32.mrf.mxu0
      %v1226 = vadd.f32 0.0, %v1225
      %1227 = vmatmul.f32.gmra.mxu0 %v1184
      %v1228 = vpop.f32.mrf.mxu0
      %v1229 = vadd.f32 0.0, %v1228
      %1230 = vmatmul.f32.gmra.mxu0 %v1185
      %v1231 = vpop.f32.mrf.mxu0
      %v1232 = vadd.f32 0.0, %v1231
      %1233 = vmatmul.f32.gmra.mxu0 %v1186
      %v1234 = vpop.f32.mrf.mxu0
      %v1235 = vadd.f32 0.0, %v1234
      %1236 = vmatmul.f32.gmra.mxu0 %v1187
      %v1237 = vpop.f32.mrf.mxu0
      %v1238 = vadd.f32 0.0, %v1237
      %1239 = vmatmul.f32.gmra.mxu0 %v1188
      %v1240 = vpop.f32.mrf.mxu0
      %v1241 = vadd.f32 0.0, %v1240
      %1242 = vmatmul.f32.gmra.mxu0 %v1189
      %v1243 = vpop.f32.mrf.mxu0
      %v1244 = vadd.f32 0.0, %v1243
      %1245 = vmatmul.f32.gmra.mxu0 %v1190
      %v1246 = vpop.f32.mrf.mxu0
      %v1247 = vadd.f32 0.0, %v1246
      %1248 = vdwg.mxu0
      %v1249 = vadd.f32 %v1111, %v1226
      %v1250 = vadd.f32 %v1112, %v1229
      %v1251 = vadd.f32 %v1113, %v1232
      %v1252 = vadd.f32 %v1114, %v1235
      %v1253 = vadd.f32 %v1115, %v1238
      %v1254 = vadd.f32 %v1116, %v1241
      %v1255 = vadd.f32 %v1117, %v1244
      %v1256 = vadd.f32 %v1118, %v1247
      %v1257 = vld [vmem:[%s370] sm:$0xfc]
      %v1258 = vld [vmem:[%s370 + $0x10] sm:$0x3]
      %v1259 = vld [vmem:[%s370 + $0x20] sm:$0xfc]
      %v1260 = vld [vmem:[%s370 + $0x30] sm:$0x3]
      %v1261 = vld [vmem:[%s370 + $0x40] sm:$0xfc]
      %v1262 = vld [vmem:[%s370 + $0x50] sm:$0x3]
      %v1263 = vld [vmem:[%s370 + $0x60] sm:$0xfc]
      %v1264 = vld [vmem:[%s370 + $0x70] sm:$0x3]
      %v1265 = vld [vmem:[%s370 + $0x80] sm:$0xfc]
      %v1266 = vld [vmem:[%s370 + $0x90] sm:$0x3]
      %v1267 = vld [vmem:[%s370 + $0xa0] sm:$0xfc]
      %v1268 = vld [vmem:[%s370 + $0xb0] sm:$0x3]
      %v1269 = vld [vmem:[%s370 + $0xc0] sm:$0xfc]
      %v1270 = vld [vmem:[%s370 + $0xd0] sm:$0x3]
      %v1271 = vld [vmem:[%s370 + $0xe0] sm:$0xfc]
      %v1272 = vld [vmem:[%s370 + $0xf0] sm:$0x3]
      %v1289 = vrot.slane %v1257, 2
      %v1290 = vrot.slane %v1258, 2
      %v1291 = vsel %vm930, %v1289, %v1290
      %v1292 = vrot.slane %v1259, 2
      %v1293 = vrot.slane %v1260, 2
      %v1294 = vsel %vm930, %v1292, %v1293
      %v1295 = vrot.slane %v1261, 2
      %v1296 = vrot.slane %v1262, 2
      %v1297 = vsel %vm930, %v1295, %v1296
      %v1298 = vrot.slane %v1263, 2
      %v1299 = vrot.slane %v1264, 2
      %v1300 = vsel %vm930, %v1298, %v1299
      %v1301 = vrot.slane %v1265, 2
      %v1302 = vrot.slane %v1266, 2
      %v1303 = vsel %vm930, %v1301, %v1302
      %v1304 = vrot.slane %v1267, 2
      %v1305 = vrot.slane %v1268, 2
      %v1306 = vsel %vm930, %v1304, %v1305
      %v1307 = vrot.slane %v1269, 2
      %v1308 = vrot.slane %v1270, 2
      %v1309 = vsel %vm930, %v1307, %v1308
      %v1310 = vrot.slane %v1271, 2
      %v1311 = vrot.slane %v1272, 2
      %v1312 = vsel %vm930, %v1310, %v1311
      %v1321 = vmul.f32 %v686, %v1291
      %v1322 = vmul.f32 %v687, %v1294
      %v1323 = vmul.f32 %v688, %v1297
      %v1324 = vmul.f32 %v689, %v1300
      %v1325 = vmul.f32 %v690, %v1303
      %v1326 = vmul.f32 %v691, %v1306
      %v1327 = vmul.f32 %v692, %v1309
      %v1328 = vmul.f32 %v693, %v1312
      %s1329 = scalar_lea.vmem %s2, 640
      %v1330 = vld [vmem:[%s1329] sm:$0xff]
      %v1331 = vld [vmem:[%s1329 + $0x8] sm:$0xff]
      %v1332 = vld [vmem:[%s1329 + $0x10] sm:$0xff]
      %v1333 = vld [vmem:[%s1329 + $0x18] sm:$0xff]
      %v1334 = vld [vmem:[%s1329 + $0x20] sm:$0xff]
      %v1335 = vld [vmem:[%s1329 + $0x28] sm:$0xff]
      %v1336 = vld [vmem:[%s1329 + $0x30] sm:$0xff]
      %v1337 = vld [vmem:[%s1329 + $0x38] sm:$0xff]
      %v1338 = vld [vmem:[%s1329 + $0x40] sm:$0xff]
      %v1339 = vld [vmem:[%s1329 + $0x48] sm:$0xff]
      %v1340 = vld [vmem:[%s1329 + $0x50] sm:$0xff]
      %v1341 = vld [vmem:[%s1329 + $0x58] sm:$0xff]
      %v1342 = vld [vmem:[%s1329 + $0x60] sm:$0xff]
      %v1343 = vld [vmem:[%s1329 + $0x68] sm:$0xff]
      %v1344 = vld [vmem:[%s1329 + $0x70] sm:$0xff]
      %v1345 = vld [vmem:[%s1329 + $0x78] sm:$0xff]
      %1346 = vmatpush.msra.mxu0 %v1345
      %1347 = vmatpush.msra.mxu0 %v1344
      %1348 = vmatpush.msra.mxu0 %v1343
      %1349 = vmatpush.msra.mxu0 %v1342
      %1350 = vmatpush.msra.mxu0 %v1341
      %1351 = vmatpush.msra.mxu0 %v1340
      %1352 = vmatpush.msra.mxu0 %v1339
      %1353 = vmatpush.msra.mxu0 %v1338
      %1354 = vmatpush.msra.mxu0 %v1337
      %1355 = vmatpush.msra.mxu0 %v1336
      %1356 = vmatpush.msra.mxu0 %v1335
      %1357 = vmatpush.msra.mxu0 %v1334
      %1358 = vmatpush.msra.mxu0 %v1333
      %1359 = vmatpush.msra.mxu0 %v1332
      %1360 = vmatpush.msra.mxu0 %v1331
      %1361 = vmatpush.msra.mxu0 %v1330
      %1362 = vmatmul.f32.gmra.mxu0 %v1321
      %v1363 = vpop.f32.mrf.mxu0
      %v1364 = vadd.f32 0.0, %v1363
      %1365 = vmatmul.f32.gmra.mxu0 %v1322
      %v1366 = vpop.f32.mrf.mxu0
      %v1367 = vadd.f32 0.0, %v1366
      %1368 = vmatmul.f32.gmra.mxu0 %v1323
      %v1369 = vpop.f32.mrf.mxu0
      %v1370 = vadd.f32 0.0, %v1369
      %1371 = vmatmul.f32.gmra.mxu0 %v1324
      %v1372 = vpop.f32.mrf.mxu0
      %v1373 = vadd.f32 0.0, %v1372
      %1374 = vmatmul.f32.gmra.mxu0 %v1325
      %v1375 = vpop.f32.mrf.mxu0
      %v1376 = vadd.f32 0.0, %v1375
      %1377 = vmatmul.f32.gmra.mxu0 %v1326
      %v1378 = vpop.f32.mrf.mxu0
      %v1379 = vadd.f32 0.0, %v1378
      %1380 = vmatmul.f32.gmra.mxu0 %v1327
      %v1381 = vpop.f32.mrf.mxu0
      %v1382 = vadd.f32 0.0, %v1381
      %1383 = vmatmul.f32.gmra.mxu0 %v1328
      %v1384 = vpop.f32.mrf.mxu0
      %v1385 = vadd.f32 0.0, %v1384
      %1386 = vdwg.mxu0
      %v1387 = vadd.f32 %v1249, %v1364
      %v1388 = vadd.f32 %v1250, %v1367
      %v1389 = vadd.f32 %v1251, %v1370
      %v1390 = vadd.f32 %v1252, %v1373
      %v1391 = vadd.f32 %v1253, %v1376
      %v1392 = vadd.f32 %v1254, %v1379
      %v1393 = vadd.f32 %v1255, %v1382
      %v1394 = vadd.f32 %v1256, %v1385
      %v1395 = vld [vmem:[%s510] sm:$0xff]
      %v1396 = vld [vmem:[%s510 + $0x20] sm:$0xff]
      %v1397 = vld [vmem:[%s510 + $0x40] sm:$0xff]
      %v1398 = vld [vmem:[%s510 + $0x60] sm:$0xff]
      %v1399 = vld [vmem:[%s510 + $0x80] sm:$0xff]
      %v1400 = vld [vmem:[%s510 + $0xa0] sm:$0xff]
      %v1401 = vld [vmem:[%s510 + $0xc0] sm:$0xff]
      %v1402 = vld [vmem:[%s510 + $0xe0] sm:$0xff]
      %v1403 = vmul.f32 %v686, %v1395
      %v1404 = vmul.f32 %v687, %v1396
      %v1405 = vmul.f32 %v688, %v1397
      %v1406 = vmul.f32 %v689, %v1398
      %v1407 = vmul.f32 %v690, %v1399
      %v1408 = vmul.f32 %v691, %v1400
      %v1409 = vmul.f32 %v692, %v1401
      %v1410 = vmul.f32 %v693, %v1402
      %s1411 = scalar_lea.vmem %s2, 768
      %v1412 = vld [vmem:[%s1411] sm:$0xff]
      %v1413 = vld [vmem:[%s1411 + $0x8] sm:$0xff]
      %v1414 = vld [vmem:[%s1411 + $0x10] sm:$0xff]
      %v1415 = vld [vmem:[%s1411 + $0x18] sm:$0xff]
      %v1416 = vld [vmem:[%s1411 + $0x20] sm:$0xff]
      %v1417 = vld [vmem:[%s1411 + $0x28] sm:$0xff]
      %v1418 = vld [vmem:[%s1411 + $0x30] sm:$0xff]
      %v1419 = vld [vmem:[%s1411 + $0x38] sm:$0xff]
      %v1420 = vld [vmem:[%s1411 + $0x40] sm:$0xff]
      %v1421 = vld [vmem:[%s1411 + $0x48] sm:$0xff]
      %v1422 = vld [vmem:[%s1411 + $0x50] sm:$0xff]
      %v1423 = vld [vmem:[%s1411 + $0x58] sm:$0xff]
      %v1424 = vld [vmem:[%s1411 + $0x60] sm:$0xff]
      %v1425 = vld [vmem:[%s1411 + $0x68] sm:$0xff]
      %v1426 = vld [vmem:[%s1411 + $0x70] sm:$0xff]
      %v1427 = vld [vmem:[%s1411 + $0x78] sm:$0xff]
      %1428 = vmatpush.msra.mxu0 %v1427
      %1429 = vmatpush.msra.mxu0 %v1426
      %1430 = vmatpush.msra.mxu0 %v1425
      %1431 = vmatpush.msra.mxu0 %v1424
      %1432 = vmatpush.msra.mxu0 %v1423
      %1433 = vmatpush.msra.mxu0 %v1422
      %1434 = vmatpush.msra.mxu0 %v1421
      %1435 = vmatpush.msra.mxu0 %v1420
      %1436 = vmatpush.msra.mxu0 %v1419
      %1437 = vmatpush.msra.mxu0 %v1418
      %1438 = vmatpush.msra.mxu0 %v1417
      %1439 = vmatpush.msra.mxu0 %v1416
      %1440 = vmatpush.msra.mxu0 %v1415
      %1441 = vmatpush.msra.mxu0 %v1414
      %1442 = vmatpush.msra.mxu0 %v1413
      %1443 = vmatpush.msra.mxu0 %v1412
      %1444 = vmatmul.f32.gmra.mxu0 %v1403
      %v1445 = vpop.f32.mrf.mxu0
      %v1446 = vadd.f32 0.0, %v1445
      %1447 = vmatmul.f32.gmra.mxu0 %v1404
      %v1448 = vpop.f32.mrf.mxu0
      %v1449 = vadd.f32 0.0, %v1448
      %1450 = vmatmul.f32.gmra.mxu0 %v1405
      %v1451 = vpop.f32.mrf.mxu0
      %v1452 = vadd.f32 0.0, %v1451
      %1453 = vmatmul.f32.gmra.mxu0 %v1406
      %v1454 = vpop.f32.mrf.mxu0
      %v1455 = vadd.f32 0.0, %v1454
      %1456 = vmatmul.f32.gmra.mxu0 %v1407
      %v1457 = vpop.f32.mrf.mxu0
      %v1458 = vadd.f32 0.0, %v1457
      %1459 = vmatmul.f32.gmra.mxu0 %v1408
      %v1460 = vpop.f32.mrf.mxu0
      %v1461 = vadd.f32 0.0, %v1460
      %1462 = vmatmul.f32.gmra.mxu0 %v1409
      %v1463 = vpop.f32.mrf.mxu0
      %v1464 = vadd.f32 0.0, %v1463
      %1465 = vmatmul.f32.gmra.mxu0 %v1410
      %v1466 = vpop.f32.mrf.mxu0
      %v1467 = vadd.f32 0.0, %v1466
      %1468 = vdwg.mxu0
      %v1469 = vadd.f32 %v1387, %v1446
      %v1470 = vadd.f32 %v1388, %v1449
      %v1471 = vadd.f32 %v1389, %v1452
      %v1472 = vadd.f32 %v1390, %v1455
      %v1473 = vadd.f32 %v1391, %v1458
      %v1474 = vadd.f32 %v1392, %v1461
      %v1475 = vadd.f32 %v1393, %v1464
      %v1476 = vadd.f32 %v1394, %v1467
      %v1477 = vld [vmem:[%s510] sm:$0xfe]
      %v1478 = vld [vmem:[%s510 + $0x10] sm:$0x1]
      %v1479 = vld [vmem:[%s510 + $0x20] sm:$0xfe]
      %v1480 = vld [vmem:[%s510 + $0x30] sm:$0x1]
      %v1481 = vld [vmem:[%s510 + $0x40] sm:$0xfe]
      %v1482 = vld [vmem:[%s510 + $0x50] sm:$0x1]
      %v1483 = vld [vmem:[%s510 + $0x60] sm:$0xfe]
      %v1484 = vld [vmem:[%s510 + $0x70] sm:$0x1]
      %v1485 = vld [vmem:[%s510 + $0x80] sm:$0xfe]
      %v1486 = vld [vmem:[%s510 + $0x90] sm:$0x1]
      %v1487 = vld [vmem:[%s510 + $0xa0] sm:$0xfe]
      %v1488 = vld [vmem:[%s510 + $0xb0] sm:$0x1]
      %v1489 = vld [vmem:[%s510 + $0xc0] sm:$0xfe]
      %v1490 = vld [vmem:[%s510 + $0xd0] sm:$0x1]
      %v1491 = vld [vmem:[%s510 + $0xe0] sm:$0xfe]
      %v1492 = vld [vmem:[%s510 + $0xf0] sm:$0x1]
      %v1509 = vrot.slane %v1477, 1
      %v1510 = vrot.slane %v1478, 1
      %v1511 = vsel %vm758, %v1509, %v1510
      %v1512 = vrot.slane %v1479, 1
      %v1513 = vrot.slane %v1480, 1
      %v1514 = vsel %vm758, %v1512, %v1513
      %v1515 = vrot.slane %v1481, 1
      %v1516 = vrot.slane %v1482, 1
      %v1517 = vsel %vm758, %v1515, %v1516
      %v1518 = vrot.slane %v1483, 1
      %v1519 = vrot.slane %v1484, 1
      %v1520 = vsel %vm758, %v1518, %v1519
      %v1521 = vrot.slane %v1485, 1
      %v1522 = vrot.slane %v1486, 1
      %v1523 = vsel %vm758, %v1521, %v1522
      %v1524 = vrot.slane %v1487, 1
      %v1525 = vrot.slane %v1488, 1
      %v1526 = vsel %vm758, %v1524, %v1525
      %v1527 = vrot.slane %v1489, 1
      %v1528 = vrot.slane %v1490, 1
      %v1529 = vsel %vm758, %v1527, %v1528
      %v1530 = vrot.slane %v1491, 1
      %v1531 = vrot.slane %v1492, 1
      %v1532 = vsel %vm758, %v1530, %v1531
      %v1541 = vmul.f32 %v686, %v1511
      %v1542 = vmul.f32 %v687, %v1514
      %v1543 = vmul.f32 %v688, %v1517
      %v1544 = vmul.f32 %v689, %v1520
      %v1545 = vmul.f32 %v690, %v1523
      %v1546 = vmul.f32 %v691, %v1526
      %v1547 = vmul.f32 %v692, %v1529
      %v1548 = vmul.f32 %v693, %v1532
      %s1549 = scalar_lea.vmem %s2, 896
      %v1550 = vld [vmem:[%s1549] sm:$0xff]
      %v1551 = vld [vmem:[%s1549 + $0x8] sm:$0xff]
      %v1552 = vld [vmem:[%s1549 + $0x10] sm:$0xff]
      %v1553 = vld [vmem:[%s1549 + $0x18] sm:$0xff]
      %v1554 = vld [vmem:[%s1549 + $0x20] sm:$0xff]
      %v1555 = vld [vmem:[%s1549 + $0x28] sm:$0xff]
      %v1556 = vld [vmem:[%s1549 + $0x30] sm:$0xff]
      %v1557 = vld [vmem:[%s1549 + $0x38] sm:$0xff]
      %v1558 = vld [vmem:[%s1549 + $0x40] sm:$0xff]
      %v1559 = vld [vmem:[%s1549 + $0x48] sm:$0xff]
      %v1560 = vld [vmem:[%s1549 + $0x50] sm:$0xff]
      %v1561 = vld [vmem:[%s1549 + $0x58] sm:$0xff]
      %v1562 = vld [vmem:[%s1549 + $0x60] sm:$0xff]
      %v1563 = vld [vmem:[%s1549 + $0x68] sm:$0xff]
      %v1564 = vld [vmem:[%s1549 + $0x70] sm:$0xff]
      %v1565 = vld [vmem:[%s1549 + $0x78] sm:$0xff]
      %1566 = vmatpush.msra.mxu0 %v1565
      %1567 = vmatpush.msra.mxu0 %v1564
      %1568 = vmatpush.msra.mxu0 %v1563
      %1569 = vmatpush.msra.mxu0 %v1562
      %1570 = vmatpush.msra.mxu0 %v1561
      %1571 = vmatpush.msra.mxu0 %v1560
      %1572 = vmatpush.msra.mxu0 %v1559
      %1573 = vmatpush.msra.mxu0 %v1558
      %1574 = vmatpush.msra.mxu0 %v1557
      %1575 = vmatpush.msra.mxu0 %v1556
      %1576 = vmatpush.msra.mxu0 %v1555
      %1577 = vmatpush.msra.mxu0 %v1554
      %1578 = vmatpush.msra.mxu0 %v1553
      %1579 = vmatpush.msra.mxu0 %v1552
      %1580 = vmatpush.msra.mxu0 %v1551
      %1581 = vmatpush.msra.mxu0 %v1550
      %1582 = vmatmul.f32.gmra.mxu0 %v1541
      %v1583 = vpop.f32.mrf.mxu0
      %v1584 = vadd.f32 0.0, %v1583
      %1585 = vmatmul.f32.gmra.mxu0 %v1542
      %v1586 = vpop.f32.mrf.mxu0
      %v1587 = vadd.f32 0.0, %v1586
      %1588 = vmatmul.f32.gmra.mxu0 %v1543
      %v1589 = vpop.f32.mrf.mxu0
      %v1590 = vadd.f32 0.0, %v1589
      %1591 = vmatmul.f32.gmra.mxu0 %v1544
      %v1592 = vpop.f32.mrf.mxu0
      %v1593 = vadd.f32 0.0, %v1592
      %1594 = vmatmul.f32.gmra.mxu0 %v1545
      %v1595 = vpop.f32.mrf.mxu0
      %v1596 = vadd.f32 0.0, %v1595
      %1597 = vmatmul.f32.gmra.mxu0 %v1546
      %v1598 = vpop.f32.mrf.mxu0
      %v1599 = vadd.f32 0.0, %v1598
      %1600 = vmatmul.f32.gmra.mxu0 %v1547
      %v1601 = vpop.f32.mrf.mxu0
      %v1602 = vadd.f32 0.0, %v1601
      %1603 = vmatmul.f32.gmra.mxu0 %v1548
      %v1604 = vpop.f32.mrf.mxu0
      %v1605 = vadd.f32 0.0, %v1604
      %1606 = vdwg.mxu0
      %v1607 = vadd.f32 %v1469, %v1584
      %v1608 = vadd.f32 %v1470, %v1587
      %v1609 = vadd.f32 %v1471, %v1590
      %v1610 = vadd.f32 %v1472, %v1593
      %v1611 = vadd.f32 %v1473, %v1596
      %v1612 = vadd.f32 %v1474, %v1599
      %v1613 = vadd.f32 %v1475, %v1602
      %v1614 = vadd.f32 %v1476, %v1605
      %v1615 = vld [vmem:[%s510] sm:$0xfc]
      %v1616 = vld [vmem:[%s510 + $0x10] sm:$0x3]
      %v1617 = vld [vmem:[%s510 + $0x20] sm:$0xfc]
      %v1618 = vld [vmem:[%s510 + $0x30] sm:$0x3]
      %v1619 = vld [vmem:[%s510 + $0x40] sm:$0xfc]
      %v1620 = vld [vmem:[%s510 + $0x50] sm:$0x3]
      %v1621 = vld [vmem:[%s510 + $0x60] sm:$0xfc]
      %v1622 = vld [vmem:[%s510 + $0x70] sm:$0x3]
      %v1623 = vld [vmem:[%s510 + $0x80] sm:$0xfc]
      %v1624 = vld [vmem:[%s510 + $0x90] sm:$0x3]
      %v1625 = vld [vmem:[%s510 + $0xa0] sm:$0xfc]
      %v1626 = vld [vmem:[%s510 + $0xb0] sm:$0x3]
      %v1627 = vld [vmem:[%s510 + $0xc0] sm:$0xfc]
      %v1628 = vld [vmem:[%s510 + $0xd0] sm:$0x3]
      %v1629 = vld [vmem:[%s510 + $0xe0] sm:$0xfc]
      %v1630 = vld [vmem:[%s510 + $0xf0] sm:$0x3]
      %v1647 = vrot.slane %v1615, 2
      %v1648 = vrot.slane %v1616, 2
      %v1649 = vsel %vm930, %v1647, %v1648
      %v1650 = vrot.slane %v1617, 2
      %v1651 = vrot.slane %v1618, 2
      %v1652 = vsel %vm930, %v1650, %v1651
      %v1653 = vrot.slane %v1619, 2
      %v1654 = vrot.slane %v1620, 2
      %v1655 = vsel %vm930, %v1653, %v1654
      %v1656 = vrot.slane %v1621, 2
      %v1657 = vrot.slane %v1622, 2
      %v1658 = vsel %vm930, %v1656, %v1657
      %v1659 = vrot.slane %v1623, 2
      %v1660 = vrot.slane %v1624, 2
      %v1661 = vsel %vm930, %v1659, %v1660
      %v1662 = vrot.slane %v1625, 2
      %v1663 = vrot.slane %v1626, 2
      %v1664 = vsel %vm930, %v1662, %v1663
      %v1665 = vrot.slane %v1627, 2
      %v1666 = vrot.slane %v1628, 2
      %v1667 = vsel %vm930, %v1665, %v1666
      %v1668 = vrot.slane %v1629, 2
      %v1669 = vrot.slane %v1630, 2
      %v1670 = vsel %vm930, %v1668, %v1669
      %v1679 = vmul.f32 %v686, %v1649
      %v1680 = vmul.f32 %v687, %v1652
      %v1681 = vmul.f32 %v688, %v1655
      %v1682 = vmul.f32 %v689, %v1658
      %v1683 = vmul.f32 %v690, %v1661
      %v1684 = vmul.f32 %v691, %v1664
      %v1685 = vmul.f32 %v692, %v1667
      %v1686 = vmul.f32 %v693, %v1670
      %s1687 = scalar_lea.vmem %s2, 1024
      %v1688 = vld [vmem:[%s1687] sm:$0xff]
      %v1689 = vld [vmem:[%s1687 + $0x8] sm:$0xff]
      %v1690 = vld [vmem:[%s1687 + $0x10] sm:$0xff]
      %v1691 = vld [vmem:[%s1687 + $0x18] sm:$0xff]
      %v1692 = vld [vmem:[%s1687 + $0x20] sm:$0xff]
      %v1693 = vld [vmem:[%s1687 + $0x28] sm:$0xff]
      %v1694 = vld [vmem:[%s1687 + $0x30] sm:$0xff]
      %v1695 = vld [vmem:[%s1687 + $0x38] sm:$0xff]
      %v1696 = vld [vmem:[%s1687 + $0x40] sm:$0xff]
      %v1697 = vld [vmem:[%s1687 + $0x48] sm:$0xff]
      %v1698 = vld [vmem:[%s1687 + $0x50] sm:$0xff]
      %v1699 = vld [vmem:[%s1687 + $0x58] sm:$0xff]
      %v1700 = vld [vmem:[%s1687 + $0x60] sm:$0xff]
      %v1701 = vld [vmem:[%s1687 + $0x68] sm:$0xff]
      %v1702 = vld [vmem:[%s1687 + $0x70] sm:$0xff]
      %v1703 = vld [vmem:[%s1687 + $0x78] sm:$0xff]
      %1704 = vmatpush.msra.mxu0 %v1703
      %1705 = vmatpush.msra.mxu0 %v1702
      %1706 = vmatpush.msra.mxu0 %v1701
      %1707 = vmatpush.msra.mxu0 %v1700
      %1708 = vmatpush.msra.mxu0 %v1699
      %1709 = vmatpush.msra.mxu0 %v1698
      %1710 = vmatpush.msra.mxu0 %v1697
      %1711 = vmatpush.msra.mxu0 %v1696
      %1712 = vmatpush.msra.mxu0 %v1695
      %1713 = vmatpush.msra.mxu0 %v1694
      %1714 = vmatpush.msra.mxu0 %v1693
      %1715 = vmatpush.msra.mxu0 %v1692
      %1716 = vmatpush.msra.mxu0 %v1691
      %1717 = vmatpush.msra.mxu0 %v1690
      %1718 = vmatpush.msra.mxu0 %v1689
      %1719 = vmatpush.msra.mxu0 %v1688
      %1720 = vmatmul.f32.gmra.mxu0 %v1679
      %v1721 = vpop.f32.mrf.mxu0
      %v1722 = vadd.f32 0.0, %v1721
      %1723 = vmatmul.f32.gmra.mxu0 %v1680
      %v1724 = vpop.f32.mrf.mxu0
      %v1725 = vadd.f32 0.0, %v1724
      %1726 = vmatmul.f32.gmra.mxu0 %v1681
      %v1727 = vpop.f32.mrf.mxu0
      %v1728 = vadd.f32 0.0, %v1727
      %1729 = vmatmul.f32.gmra.mxu0 %v1682
      %v1730 = vpop.f32.mrf.mxu0
      %v1731 = vadd.f32 0.0, %v1730
      %1732 = vmatmul.f32.gmra.mxu0 %v1683
      %v1733 = vpop.f32.mrf.mxu0
      %v1734 = vadd.f32 0.0, %v1733
      %1735 = vmatmul.f32.gmra.mxu0 %v1684
      %v1736 = vpop.f32.mrf.mxu0
      %v1737 = vadd.f32 0.0, %v1736
      %1738 = vmatmul.f32.gmra.mxu0 %v1685
      %v1739 = vpop.f32.mrf.mxu0
      %v1740 = vadd.f32 0.0, %v1739
      %1741 = vmatmul.f32.gmra.mxu0 %v1686
      %v1742 = vpop.f32.mrf.mxu0
      %v1743 = vadd.f32 0.0, %v1742
      %1744 = vdwg.mxu0
      %v1745 = vadd.f32 %v1607, %v1722
      %v1746 = vadd.f32 %v1608, %v1725
      %v1747 = vadd.f32 %v1609, %v1728
      %v1748 = vadd.f32 %v1610, %v1731
      %v1749 = vadd.f32 %v1611, %v1734
      %v1750 = vadd.f32 %v1612, %v1737
      %v1751 = vadd.f32 %v1613, %v1740
      %v1752 = vadd.f32 %v1614, %v1743
      %vm1753 = vcmask 146432
      %v1754 = vsel %vm1753, %v1745, -inf
      %1755 = vmax.xlane.f32.xlu0 %v1754
      %v1756 = vpop.xlane.xlu0 %1755
      %v1757 = vsel %vm1753, %v1746, -inf
      %1758 = vmax.xlane.f32.xlu0 %v1757
      %v1759 = vpop.xlane.xlu0 %1758
      %v1760 = vsel %vm1753, %v1747, -inf
      %1761 = vmax.xlane.f32.xlu0 %v1760
      %v1762 = vpop.xlane.xlu0 %1761
      %v1763 = vsel %vm1753, %v1748, -inf
      %1764 = vmax.xlane.f32.xlu0 %v1763
      %v1765 = vpop.xlane.xlu0 %1764
      %v1766 = vsel %vm1753, %v1749, -inf
      %1767 = vmax.xlane.f32.xlu0 %v1766
      %v1768 = vpop.xlane.xlu0 %1767
      %v1769 = vsel %vm1753, %v1750, -inf
      %1770 = vmax.xlane.f32.xlu0 %v1769
      %v1771 = vpop.xlane.xlu0 %1770
      %v1772 = vsel %vm1753, %v1751, -inf
      %1773 = vmax.xlane.f32.xlu0 %v1772
      %v1774 = vpop.xlane.xlu0 %1773
      %v1775 = vsel %vm1753, %v1752, -inf
      %1776 = vmax.xlane.f32.xlu0 %v1775
      %v1777 = vpop.xlane.xlu0 %1776
      %v1778 = vsub.f32 %v1745, %v1756
      %v1779 = vsub.f32 %v1746, %v1759
      %v1780 = vsub.f32 %v1747, %v1762
      %v1781 = vsub.f32 %v1748, %v1765
      %v1782 = vsub.f32 %v1749, %v1768
      %v1783 = vsub.f32 %v1750, %v1771
      %v1784 = vsub.f32 %v1751, %v1774
      %v1785 = vsub.f32 %v1752, %v1777
      %v1786 = vmul.f32 %v1778, 1.442695
      %v1787 = vpow.pop %v1786
      %v1788 = vmul.f32 %v1779, 1.442695
      %v1789 = vpow.pop %v1788
      %v1790 = vmul.f32 %v1780, 1.442695
      %v1791 = vpow.pop %v1790
      %v1792 = vmul.f32 %v1781, 1.442695
      %v1793 = vpow.pop %v1792
      %v1794 = vmul.f32 %v1782, 1.442695
      %v1795 = vpow.pop %v1794
      %v1796 = vmul.f32 %v1783, 1.442695
      %v1797 = vpow.pop %v1796
      %v1798 = vmul.f32 %v1784, 1.442695
      %v1799 = vpow.pop %v1798
      %v1800 = vmul.f32 %v1785, 1.442695
      %v1801 = vpow.pop %v1800
      %v1802 = vld [vmem:[%s4] sm:$0xff]
      %v1803 = vld [vmem:[%s4 + $0x8] sm:$0xff]
      %v1804 = vld [vmem:[%s4 + $0x10] sm:$0x3]
      %v1806 = vsel %vm1753, %v1787, 0
      %v1809 = vsel %vm1753, %v1789, 0
      %v1812 = vsel %vm1753, %v1791, 0
      %v1815 = vsel %vm1753, %v1793, 0
      %v1818 = vsel %vm1753, %v1795, 0
      %v1821 = vsel %vm1753, %v1797, 0
      %v1824 = vsel %vm1753, %v1799, 0
      %v1827 = vsel %vm1753, %v1801, 0
      %vm1829 = vcmask 1041408
      %v1831 = vsel %vm1829, %v1804, 0
      %1833 = vmatpush.msra.mxu0 0.0
      %1834 = vmatpush.msra.mxu0 0.0
      %1835 = vmatpush.msra.mxu0 0.0
      %1836 = vmatpush.msra.mxu0 0.0
      %1837 = vmatpush.msra.mxu0 0.0
      %1838 = vmatpush.msra.mxu0 0.0
      %1839 = vmatpush.msra.mxu0 0.0
      %1840 = vmatpush.msra.mxu0 0.0
      %1841 = vmatpush.msra.mxu0 0.0
      %1842 = vmatpush.msra.mxu0 0.0
      %1843 = vmatpush.msra.mxu0 0.0
      %1844 = vmatpush.msra.mxu0 0.0
      %1845 = vmatpush.msra.mxu0 0.0
      %1846 = vmatpush.msra.mxu0 %v1831
      %1847 = vmatpush.msra.mxu0 %v1803
      %1848 = vmatpush.msra.mxu0 %v1802
      %1849 = vmatmul.f32.gmra.mxu0 %v1806
      %v1850 = vpop.f32.mrf.mxu0
      %v1851 = vadd.f32 0.0, %v1850
      %1852 = vmatmul.f32.gmra.mxu0 %v1809
      %v1853 = vpop.f32.mrf.mxu0
      %v1854 = vadd.f32 0.0, %v1853
      %1855 = vmatmul.f32.gmra.mxu0 %v1812
      %v1856 = vpop.f32.mrf.mxu0
      %v1857 = vadd.f32 0.0, %v1856
      %1858 = vmatmul.f32.gmra.mxu0 %v1815
      %v1859 = vpop.f32.mrf.mxu0
      %v1860 = vadd.f32 0.0, %v1859
      %1861 = vmatmul.f32.gmra.mxu0 %v1818
      %v1862 = vpop.f32.mrf.mxu0
      %v1863 = vadd.f32 0.0, %v1862
      %1864 = vmatmul.f32.gmra.mxu0 %v1821
      %v1865 = vpop.f32.mrf.mxu0
      %v1866 = vadd.f32 0.0, %v1865
      %1867 = vmatmul.f32.gmra.mxu0 %v1824
      %v1868 = vpop.f32.mrf.mxu0
      %v1869 = vadd.f32 0.0, %v1868
      %1870 = vmatmul.f32.gmra.mxu0 %v1827
      %v1871 = vpop.f32.mrf.mxu0
      %v1872 = vadd.f32 0.0, %v1871
      %1873 = vdwg.mxu0
      %v1874 = vrcp.pop %v1851
      %v1875 = vrcp.pop %v1854
      %v1876 = vrcp.pop %v1857
      %v1877 = vrcp.pop %v1860
      %v1878 = vrcp.pop %v1863
      %v1879 = vrcp.pop %v1866
      %v1880 = vrcp.pop %v1869
      %v1881 = vrcp.pop %v1872
      %v1882 = vld [vmem:[%s5] sm:$0x3]
      %vm1883 = vcmask 15360
      %v1885 = vsel %vm1883, %v1874, 0
      %v1888 = vsel %vm1883, %v1875, 0
      %v1891 = vsel %vm1883, %v1876, 0
      %v1894 = vsel %vm1883, %v1877, 0
      %v1897 = vsel %vm1883, %v1878, 0
      %v1900 = vsel %vm1883, %v1879, 0
      %v1903 = vsel %vm1883, %v1880, 0
      %v1906 = vsel %vm1883, %v1881, 0
      %v1909 = vsel %vm1829, %v1882, 0
      %1911 = vmatpush.msra.mxu0 0.0
      %1912 = vmatpush.msra.mxu0 0.0
      %1913 = vmatpush.msra.mxu0 0.0
      %1914 = vmatpush.msra.mxu0 0.0
      %1915 = vmatpush.msra.mxu0 0.0
      %1916 = vmatpush.msra.mxu0 0.0
      %1917 = vmatpush.msra.mxu0 0.0
      %1918 = vmatpush.msra.mxu0 0.0
      %1919 = vmatpush.msra.mxu0 0.0
      %1920 = vmatpush.msra.mxu0 0.0
      %1921 = vmatpush.msra.mxu0 0.0
      %1922 = vmatpush.msra.mxu0 0.0
      %1923 = vmatpush.msra.mxu0 0.0
      %1924 = vmatpush.msra.mxu0 0.0
      %1925 = vmatpush.msra.mxu0 0.0
      %1926 = vmatpush.msra.mxu0 %v1909
      %1927 = vmatmul.f32.gmra.mxu0 %v1885
      %v1928 = vpop.f32.mrf.mxu0
      %v1929 = vadd.f32 0.0, %v1928
      %1930 = vmatmul.f32.gmra.mxu0 %v1888
      %v1931 = vpop.f32.mrf.mxu0
      %v1932 = vadd.f32 0.0, %v1931
      %1933 = vmatmul.f32.gmra.mxu0 %v1891
      %v1934 = vpop.f32.mrf.mxu0
      %v1935 = vadd.f32 0.0, %v1934
      %1936 = vmatmul.f32.gmra.mxu0 %v1894
      %v1937 = vpop.f32.mrf.mxu0
      %v1938 = vadd.f32 0.0, %v1937
      %1939 = vmatmul.f32.gmra.mxu0 %v1897
      %v1940 = vpop.f32.mrf.mxu0
      %v1941 = vadd.f32 0.0, %v1940
      %1942 = vmatmul.f32.gmra.mxu0 %v1900
      %v1943 = vpop.f32.mrf.mxu0
      %v1944 = vadd.f32 0.0, %v1943
      %1945 = vmatmul.f32.gmra.mxu0 %v1903
      %v1946 = vpop.f32.mrf.mxu0
      %v1947 = vadd.f32 0.0, %v1946
      %1948 = vmatmul.f32.gmra.mxu0 %v1906
      %v1949 = vpop.f32.mrf.mxu0
      %v1950 = vadd.f32 0.0, %v1949
      %1951 = vdwg.mxu0
      %v1952 = vld [vmem:[%s7] sm:$0x1]
      %v1954 = vperm.slane %v1952, 0
      %v1956 = vadd.f32 %v1954, 0.0
      %v1957 = vld [vmem:[%s3] sm:$0xff]
      %v1958 = vld [vmem:[%s3 + $0x8] sm:$0xff]
      %v1959 = vld [vmem:[%s3 + $0x10] sm:$0x3]
      %v1961 = vsel %vm1829, %v1959, 0
      %1963 = vmatpush.msra.mxu0 0.0
      %1964 = vmatpush.msra.mxu0 0.0
      %1965 = vmatpush.msra.mxu0 0.0
      %1966 = vmatpush.msra.mxu0 0.0
      %1967 = vmatpush.msra.mxu0 0.0
      %1968 = vmatpush.msra.mxu0 0.0
      %1969 = vmatpush.msra.mxu0 0.0
      %1970 = vmatpush.msra.mxu0 0.0
      %1971 = vmatpush.msra.mxu0 0.0
      %1972 = vmatpush.msra.mxu0 0.0
      %1973 = vmatpush.msra.mxu0 0.0
      %1974 = vmatpush.msra.mxu0 0.0
      %1975 = vmatpush.msra.mxu0 0.0
      %1976 = vmatpush.msra.mxu0 %v1961
      %1977 = vmatpush.msra.mxu0 %v1958
      %1978 = vmatpush.msra.mxu0 %v1957
      %1979 = vmatmul.f32.gmra.mxu0 %v1806
      %v1980 = vpop.f32.mrf.mxu0
      %v1981 = vadd.f32 0.0, %v1980
      %1982 = vmatmul.f32.gmra.mxu0 %v1809
      %v1983 = vpop.f32.mrf.mxu0
      %v1984 = vadd.f32 0.0, %v1983
      %1985 = vmatmul.f32.gmra.mxu0 %v1812
      %v1986 = vpop.f32.mrf.mxu0
      %v1987 = vadd.f32 0.0, %v1986
      %1988 = vmatmul.f32.gmra.mxu0 %v1815
      %v1989 = vpop.f32.mrf.mxu0
      %v1990 = vadd.f32 0.0, %v1989
      %1991 = vmatmul.f32.gmra.mxu0 %v1818
      %v1992 = vpop.f32.mrf.mxu0
      %v1993 = vadd.f32 0.0, %v1992
      %1994 = vmatmul.f32.gmra.mxu0 %v1821
      %v1995 = vpop.f32.mrf.mxu0
      %v1996 = vadd.f32 0.0, %v1995
      %1997 = vmatmul.f32.gmra.mxu0 %v1824
      %v1998 = vpop.f32.mrf.mxu0
      %v1999 = vadd.f32 0.0, %v1998
      %2000 = vmatmul.f32.gmra.mxu0 %v1827
      %v2001 = vpop.f32.mrf.mxu0
      %v2002 = vadd.f32 0.0, %v2001
      %2003 = vdwg.mxu0
      %v2004 = vld [vmem:[#allocation2 + $0x8] sm:$0xff]
      %v2005 = vld [vmem:[#allocation2 + $0x28] sm:$0xff]
      %v2006 = vld [vmem:[#allocation2 + $0x48] sm:$0xff]
      %v2007 = vld [vmem:[#allocation2 + $0x68] sm:$0xff]
      %v2008 = vld [vmem:[#allocation2 + $0x88] sm:$0xff]
      %v2009 = vld [vmem:[#allocation2 + $0xa8] sm:$0xff]
      %v2010 = vld [vmem:[#allocation2 + $0xc8] sm:$0xff]
      %v2011 = vld [vmem:[#allocation2 + $0xe8] sm:$0xff]
      %v2012 = vmul.f32 %v1981, %v2004
      %v2013 = vmul.f32 %v1984, %v2005
      %v2014 = vmul.f32 %v1987, %v2006
      %v2015 = vmul.f32 %v1990, %v2007
      %v2016 = vmul.f32 %v1993, %v2008
      %v2017 = vmul.f32 %v1996, %v2009
      %v2018 = vmul.f32 %v1999, %v2010
      %v2019 = vmul.f32 %v2002, %v2011
      %v2020 = vadd.f32 %v2012, 0.0
      %v2021 = vadd.f32 %v2013, 0.0
      %v2022 = vadd.f32 %v2014, 0.0
      %v2023 = vadd.f32 %v2015, 0.0
      %v2024 = vadd.f32 %v2016, 0.0
      %v2025 = vadd.f32 %v2017, 0.0
      %v2026 = vadd.f32 %v2018, 0.0
      %v2027 = vadd.f32 %v2019, 0.0
      %v2028 = vld [vmem:[#allocation3] sm:$0xff]
      %v2029 = vld [vmem:[#allocation3 + $0x8] sm:$0xff]
      %v2030 = vld [vmem:[#allocation3 + $0x10] sm:$0xff]
      %v2031 = vld [vmem:[#allocation3 + $0x30] sm:$0xff]
      %v2032 = vld [vmem:[#allocation3 + $0x38] sm:$0xff]
      %v2033 = vld [vmem:[#allocation3 + $0x40] sm:$0xff]
      %v2034 = vld [vmem:[#allocation3 + $0x60] sm:$0xff]
      %v2035 = vld [vmem:[#allocation3 + $0x68] sm:$0xff]
      %v2036 = vld [vmem:[#allocation3 + $0x70] sm:$0xff]
      %v2037 = vld [vmem:[#allocation3 + $0x90] sm:$0xff]
      %v2038 = vld [vmem:[#allocation3 + $0x98] sm:$0xff]
      %v2039 = vld [vmem:[#allocation3 + $0xa0] sm:$0xff]
      %v2040 = vld [vmem:[#allocation3 + $0xc0] sm:$0xff]
      %v2041 = vld [vmem:[#allocation3 + $0xc8] sm:$0xff]
      %v2042 = vld [vmem:[#allocation3 + $0xd0] sm:$0xff]
      %v2043 = vld [vmem:[#allocation3 + $0xf0] sm:$0xff]
      %v2044 = vld [vmem:[#allocation3 + $0xf8] sm:$0xff]
      %v2045 = vld [vmem:[#allocation3 + $0x100] sm:$0xff]
      %v2046 = vld [vmem:[#allocation3 + $0x120] sm:$0xff]
      %v2047 = vld [vmem:[#allocation3 + $0x128] sm:$0xff]
      %v2048 = vld [vmem:[#allocation3 + $0x130] sm:$0xff]
      %v2049 = vld [vmem:[#allocation3 + $0x150] sm:$0xff]
      %v2050 = vld [vmem:[#allocation3 + $0x158] sm:$0xff]
      %v2051 = vld [vmem:[#allocation3 + $0x160] sm:$0xff]
      %v2052 = vpack.c.bf16 %v2031, %v2028
      %v2053 = vpack.c.bf16 %v2032, %v2029
      %v2054 = vpack.c.bf16 %v2033, %v2030
      %v2055 = vpack.c.bf16 %v2037, %v2034
      %v2056 = vpack.c.bf16 %v2038, %v2035
      %v2057 = vpack.c.bf16 %v2039, %v2036
      %v2058 = vpack.c.bf16 %v2043, %v2040
      %v2059 = vpack.c.bf16 %v2044, %v2041
      %v2060 = vpack.c.bf16 %v2045, %v2042
      %v2061 = vpack.c.bf16 %v2049, %v2046
      %v2062 = vpack.c.bf16 %v2050, %v2047
      %v2063 = vpack.c.bf16 %v2051, %v2048
      %v2064 = vld [vmem:[%s6] sm:$0xf]
      %v2065 = vld [vmem:[%s6 + $0x4] sm:$0xf]
      %v2066 = vld [vmem:[%s6 + $0x8] sm:$0xf]
      %v2067 = vld [vmem:[%s6 + $0xc] sm:$0xf]
      %v2068 = vld [vmem:[%s6 + $0x10] sm:$0xf]
      %v2069 = vld [vmem:[%s6 + $0x14] sm:$0xf]
      %v2070 = vld [vmem:[%s6 + $0x18] sm:$0xf]
      %v2071 = vld [vmem:[%s6 + $0x1c] sm:$0xf]
      %v2072 = vld [vmem:[%s6 + $0x20] sm:$0xf]
      %v2073 = vld [vmem:[%s6 + $0x24] sm:$0xf]
      %v2074 = vld [vmem:[%s6 + $0x28] sm:$0xf]
      %v2075 = vld [vmem:[%s6 + $0x2c] sm:$0xf]
      %v2076 = vld [vmem:[%s6 + $0x30] sm:$0xf]
      %v2077 = vld [vmem:[%s6 + $0x34] sm:$0xf]
      %v2078 = vld [vmem:[%s6 + $0x38] sm:$0xf]
      %v2079 = vld [vmem:[%s6 + $0x3c] sm:$0xf]
      %v2080 = vld [vmem:[%s6 + $0x40] sm:$0xf]
      %v2081 = vld [vmem:[%s6 + $0x44] sm:$0xf]
      %v2082 = vld [vmem:[%s6 + $0x48] sm:$0xf]
      %v2083 = vld [vmem:[%s6 + $0x4c] sm:$0xf]
      %v2084 = vld [vmem:[%s6 + $0x50] sm:$0xf]
      %v2085 = vld [vmem:[%s6 + $0x54] sm:$0xf]
      %v2086 = vld [vmem:[%s6 + $0x58] sm:$0xf]
      %v2087 = vld [vmem:[%s6 + $0x5c] sm:$0xf]
      %v2088 = vld [vmem:[%s6 + $0x60] sm:$0xf]
      %v2089 = vld [vmem:[%s6 + $0x64] sm:$0xf]
      %v2090 = vld [vmem:[%s6 + $0x68] sm:$0xf]
      %v2091 = vld [vmem:[%s6 + $0x6c] sm:$0xf]
      %v2092 = vld [vmem:[%s6 + $0x70] sm:$0xf]
      %v2093 = vld [vmem:[%s6 + $0x74] sm:$0xf]
      %v2094 = vld [vmem:[%s6 + $0x78] sm:$0xf]
      %v2095 = vld [vmem:[%s6 + $0x7c] sm:$0xf]
      %v2096 = vld [vmem:[%s6 + $0x80] sm:$0xf]
      %v2097 = vld [vmem:[%s6 + $0x84] sm:$0xf]
      %v2098 = vld [vmem:[%s6 + $0x88] sm:$0xf]
      %v2099 = vld [vmem:[%s6 + $0x8c] sm:$0xf]
      %v2100 = vld [vmem:[%s6 + $0x90] sm:$0xf]
      %v2101 = vld [vmem:[%s6 + $0x94] sm:$0xf]
      %v2102 = vld [vmem:[%s6 + $0x98] sm:$0xf]
      %v2103 = vld [vmem:[%s6 + $0x9c] sm:$0xf]
      %v2104 = vld [vmem:[%s6 + $0xa0] sm:$0xf]
      %v2105 = vld [vmem:[%s6 + $0xa4] sm:$0xf]
      %v2106 = vld [vmem:[%s6 + $0xa8] sm:$0xf]
      %v2107 = vld [vmem:[%s6 + $0xac] sm:$0xf]
      %v2108 = vld [vmem:[%s6 + $0xb0] sm:$0xf]
      %v2109 = vld [vmem:[%s6 + $0xb4] sm:$0xf]
      %v2110 = vld [vmem:[%s6 + $0xb8] sm:$0xf]
      %v2111 = vld [vmem:[%s6 + $0xbc] sm:$0xf]
      %v2160 = vunpack.c.l.b16 %v2064
      %v2161 = vunpack.c.l.b16 %v2065
      %v2162 = vunpack.c.l.b16 %v2066
      %v2163 = vunpack.c.l.b16 %v2067
      %v2164 = vunpack.c.l.b16 %v2068
      %v2165 = vunpack.c.l.b16 %v2069
      %v2166 = vunpack.c.l.b16 %v2070
      %v2167 = vunpack.c.l.b16 %v2071
      %v2168 = vunpack.c.l.b16 %v2072
      %v2169 = vunpack.c.l.b16 %v2073
      %v2170 = vunpack.c.l.b16 %v2074
      %v2171 = vunpack.c.l.b16 %v2075
      %v2172 = vunpack.c.l.b16 %v2076
      %v2173 = vunpack.c.l.b16 %v2077
      %v2174 = vunpack.c.l.b16 %v2078
      %v2175 = vunpack.c.l.b16 %v2079
      %v2176 = vunpack.c.l.b16 %v2080
      %v2177 = vunpack.c.l.b16 %v2081
      %v2178 = vunpack.c.l.b16 %v2082
      %v2179 = vunpack.c.l.b16 %v2083
      %v2180 = vunpack.c.l.b16 %v2084
      %v2181 = vunpack.c.l.b16 %v2085
      %v2182 = vunpack.c.l.b16 %v2086
      %v2183 = vunpack.c.l.b16 %v2087
      %v2184 = vunpack.c.l.b16 %v2088
      %v2185 = vunpack.c.l.b16 %v2089
      %v2186 = vunpack.c.l.b16 %v2090
      %v2187 = vunpack.c.l.b16 %v2091
      %v2188 = vunpack.c.l.b16 %v2092
      %v2189 = vunpack.c.l.b16 %v2093
      %v2190 = vunpack.c.l.b16 %v2094
      %v2191 = vunpack.c.l.b16 %v2095
      %v2192 = vunpack.c.l.b16 %v2096
      %v2193 = vunpack.c.l.b16 %v2097
      %v2194 = vunpack.c.l.b16 %v2098
      %v2195 = vunpack.c.l.b16 %v2099
      %v2196 = vunpack.c.l.b16 %v2100
      %v2197 = vunpack.c.l.b16 %v2101
      %v2198 = vunpack.c.l.b16 %v2102
      %v2199 = vunpack.c.l.b16 %v2103
      %v2200 = vunpack.c.l.b16 %v2104
      %v2201 = vunpack.c.l.b16 %v2105
      %v2202 = vunpack.c.l.b16 %v2106
      %v2203 = vunpack.c.l.b16 %v2107
      %v2204 = vunpack.c.l.b16 %v2108
      %v2205 = vunpack.c.l.b16 %v2109
      %v2206 = vunpack.c.l.b16 %v2110
      %v2207 = vunpack.c.l.b16 %v2111
      %v2208 = vpack.c.b16 %v2161, %v2160
      %v2209 = vpack.c.b16 %v2163, %v2162
      %v2210 = vpack.c.b16 %v2165, %v2164
      %v2211 = vpack.c.b16 %v2167, %v2166
      %v2212 = vpack.c.b16 %v2169, %v2168
      %v2213 = vpack.c.b16 %v2171, %v2170
      %v2214 = vpack.c.b16 %v2173, %v2172
      %v2215 = vpack.c.b16 %v2175, %v2174
      %v2216 = vpack.c.b16 %v2177, %v2176
      %v2217 = vpack.c.b16 %v2179, %v2178
      %v2218 = vpack.c.b16 %v2181, %v2180
      %v2219 = vpack.c.b16 %v2183, %v2182
      %v2220 = vpack.c.b16 %v2185, %v2184
      %v2221 = vpack.c.b16 %v2187, %v2186
      %v2222 = vpack.c.b16 %v2189, %v2188
      %v2223 = vpack.c.b16 %v2191, %v2190
      %v2224 = vpack.c.b16 %v2193, %v2192
      %v2225 = vpack.c.b16 %v2195, %v2194
      %v2226 = vpack.c.b16 %v2197, %v2196
      %v2227 = vpack.c.b16 %v2199, %v2198
      %v2228 = vpack.c.b16 %v2201, %v2200
      %v2229 = vpack.c.b16 %v2203, %v2202
      %v2230 = vpack.c.b16 %v2205, %v2204
      %v2231 = vpack.c.b16 %v2207, %v2206
      %2256 = vmatpush.bf16.msra.mxu0 %v2215
      %2257 = vmatpush.bf16.msra.mxu0 %v2214
      %2258 = vmatpush.bf16.msra.mxu0 %v2213
      %2259 = vmatpush.bf16.msra.mxu0 %v2212
      %2260 = vmatpush.bf16.msra.mxu0 %v2211
      %2261 = vmatpush.bf16.msra.mxu0 %v2210
      %2262 = vmatpush.bf16.msra.mxu0 %v2209
      %2263 = vmatpush.bf16.msra.mxu0 %v2208
      %2264 = vmatmul.bf16.gmra.mxu0 %v2052
      %v2265 = vpop.f32.mrf.mxu0
      %v2266 = vadd.f32 0.0, %v2265
      %v2267 = vpop.f32.mrf.mxu0
      %v2268 = vadd.f32 0.0, %v2267
      %2269 = vmatmul.bf16.gmra.mxu0 %v2055
      %v2270 = vpop.f32.mrf.mxu0
      %v2271 = vadd.f32 0.0, %v2270
      %v2272 = vpop.f32.mrf.mxu0
      %v2273 = vadd.f32 0.0, %v2272
      %2274 = vmatmul.bf16.gmra.mxu0 %v2058
      %v2275 = vpop.f32.mrf.mxu0
      %v2276 = vadd.f32 0.0, %v2275
      %v2277 = vpop.f32.mrf.mxu0
      %v2278 = vadd.f32 0.0, %v2277
      %2279 = vmatmul.bf16.gmra.mxu0 %v2061
      %v2280 = vpop.f32.mrf.mxu0
      %v2281 = vadd.f32 0.0, %v2280
      %v2282 = vpop.f32.mrf.mxu0
      %v2283 = vadd.f32 0.0, %v2282
      %2284 = vdwg.mxu0
      %2285 = vmatpush.bf16.msra.mxu0 %v2223
      %2286 = vmatpush.bf16.msra.mxu0 %v2222
      %2287 = vmatpush.bf16.msra.mxu0 %v2221
      %2288 = vmatpush.bf16.msra.mxu0 %v2220
      %2289 = vmatpush.bf16.msra.mxu0 %v2219
      %2290 = vmatpush.bf16.msra.mxu0 %v2218
      %2291 = vmatpush.bf16.msra.mxu0 %v2217
      %2292 = vmatpush.bf16.msra.mxu0 %v2216
      %2293 = vmatmul.bf16.gmra.mxu0 %v2053
      %v2294 = vpop.f32.mrf.mxu0
      %v2295 = vadd.f32 %v2266, %v2294
      %v2296 = vpop.f32.mrf.mxu0
      %v2297 = vadd.f32 %v2268, %v2296
      %2298 = vmatmul.bf16.gmra.mxu0 %v2056
      %v2299 = vpop.f32.mrf.mxu0
      %v2300 = vadd.f32 %v2271, %v2299
      %v2301 = vpop.f32.mrf.mxu0
      %v2302 = vadd.f32 %v2273, %v2301
      %2303 = vmatmul.bf16.gmra.mxu0 %v2059
      %v2304 = vpop.f32.mrf.mxu0
      %v2305 = vadd.f32 %v2276, %v2304
      %v2306 = vpop.f32.mrf.mxu0
      %v2307 = vadd.f32 %v2278, %v2306
      %2308 = vmatmul.bf16.gmra.mxu0 %v2062
      %v2309 = vpop.f32.mrf.mxu0
      %v2310 = vadd.f32 %v2281, %v2309
      %v2311 = vpop.f32.mrf.mxu0
      %v2312 = vadd.f32 %v2283, %v2311
      %2313 = vdwg.mxu0
      %2314 = vmatpush.bf16.msra.mxu0 %v2231
      %2315 = vmatpush.bf16.msra.mxu0 %v2230
      %2316 = vmatpush.bf16.msra.mxu0 %v2229
      %2317 = vmatpush.bf16.msra.mxu0 %v2228
      %2318 = vmatpush.bf16.msra.mxu0 %v2227
      %2319 = vmatpush.bf16.msra.mxu0 %v2226
      %2320 = vmatpush.bf16.msra.mxu0 %v2225
      %2321 = vmatpush.bf16.msra.mxu0 %v2224
      %2322 = vmatmul.bf16.gmra.mxu0 %v2054
      %v2323 = vpop.f32.mrf.mxu0
      %v2324 = vadd.f32 %v2295, %v2323
      %v2325 = vpop.f32.mrf.mxu0
      %v2326 = vadd.f32 %v2297, %v2325
      %2327 = vmatmul.bf16.gmra.mxu0 %v2057
      %v2328 = vpop.f32.mrf.mxu0
      %v2329 = vadd.f32 %v2300, %v2328
      %v2330 = vpop.f32.mrf.mxu0
      %v2331 = vadd.f32 %v2302, %v2330
      %2332 = vmatmul.bf16.gmra.mxu0 %v2060
      %v2333 = vpop.f32.mrf.mxu0
      %v2334 = vadd.f32 %v2305, %v2333
      %v2335 = vpop.f32.mrf.mxu0
      %v2336 = vadd.f32 %v2307, %v2335
      %2337 = vmatmul.bf16.gmra.mxu0 %v2063
      %v2338 = vpop.f32.mrf.mxu0
      %v2339 = vadd.f32 %v2310, %v2338
      %v2340 = vpop.f32.mrf.mxu0
      %v2341 = vadd.f32 %v2312, %v2340
      %2342 = vdwg.mxu0
      %v2343 = vadd.f32 %v1956, %v2324
      %v2344 = vadd.f32 %v1956, %v2326
      %v2345 = vadd.f32 %v1956, %v2329
      %v2346 = vadd.f32 %v1956, %v2331
      %v2347 = vadd.f32 %v1956, %v2334
      %v2348 = vadd.f32 %v1956, %v2336
      %v2349 = vadd.f32 %v1956, %v2339
      %v2350 = vadd.f32 %v1956, %v2341
      %s2351 = scalar_lea.vmem %s3, 24
      %v2352 = vld [vmem:[%s2351] sm:$0xff]
      %v2353 = vld [vmem:[%s2351 + $0x8] sm:$0xff]
      %v2354 = vld [vmem:[%s2351 + $0x10] sm:$0x3]
      %v2356 = vsel %vm1829, %v2354, 0
      %2358 = vmatpush.msra.mxu0 0.0
      %2359 = vmatpush.msra.mxu0 0.0
      %2360 = vmatpush.msra.mxu0 0.0
      %2361 = vmatpush.msra.mxu0 0.0
      %2362 = vmatpush.msra.mxu0 0.0
      %2363 = vmatpush.msra.mxu0 0.0
      %2364 = vmatpush.msra.mxu0 0.0
      %2365 = vmatpush.msra.mxu0 0.0
      %2366 = vmatpush.msra.mxu0 0.0
      %2367 = vmatpush.msra.mxu0 0.0
      %2368 = vmatpush.msra.mxu0 0.0
      %2369 = vmatpush.msra.mxu0 0.0
      %2370 = vmatpush.msra.mxu0 0.0
      %2371 = vmatpush.msra.mxu0 %v2356
      %2372 = vmatpush.msra.mxu0 %v2353
      %2373 = vmatpush.msra.mxu0 %v2352
      %2374 = vmatmul.f32.gmra.mxu0 %v1806
      %v2375 = vpop.f32.mrf.mxu0
      %v2376 = vadd.f32 0.0, %v2375
      %2377 = vmatmul.f32.gmra.mxu0 %v1809
      %v2378 = vpop.f32.mrf.mxu0
      %v2379 = vadd.f32 0.0, %v2378
      %2380 = vmatmul.f32.gmra.mxu0 %v1812
      %v2381 = vpop.f32.mrf.mxu0
      %v2382 = vadd.f32 0.0, %v2381
      %2383 = vmatmul.f32.gmra.mxu0 %v1815
      %v2384 = vpop.f32.mrf.mxu0
      %v2385 = vadd.f32 0.0, %v2384
      %2386 = vmatmul.f32.gmra.mxu0 %v1818
      %v2387 = vpop.f32.mrf.mxu0
      %v2388 = vadd.f32 0.0, %v2387
      %2389 = vmatmul.f32.gmra.mxu0 %v1821
      %v2390 = vpop.f32.mrf.mxu0
      %v2391 = vadd.f32 0.0, %v2390
      %2392 = vmatmul.f32.gmra.mxu0 %v1824
      %v2393 = vpop.f32.mrf.mxu0
      %v2394 = vadd.f32 0.0, %v2393
      %2395 = vmatmul.f32.gmra.mxu0 %v1827
      %v2396 = vpop.f32.mrf.mxu0
      %v2397 = vadd.f32 0.0, %v2396
      %2398 = vdwg.mxu0
      %v2399 = vld [vmem:[#allocation2 + $0x8] sm:$0xfe]
      %v2400 = vld [vmem:[#allocation2 + $0x18] sm:$0x1]
      %v2401 = vld [vmem:[#allocation2 + $0x28] sm:$0xfe]
      %v2402 = vld [vmem:[#allocation2 + $0x38] sm:$0x1]
      %v2403 = vld [vmem:[#allocation2 + $0x48] sm:$0xfe]
      %v2404 = vld [vmem:[#allocation2 + $0x58] sm:$0x1]
      %v2405 = vld [vmem:[#allocation2 + $0x68] sm:$0xfe]
      %v2406 = vld [vmem:[#allocation2 + $0x78] sm:$0x1]
      %v2407 = vld [vmem:[#allocation2 + $0x88] sm:$0xfe]
      %v2408 = vld [vmem:[#allocation2 + $0x98] sm:$0x1]
      %v2409 = vld [vmem:[#allocation2 + $0xa8] sm:$0xfe]
      %v2410 = vld [vmem:[#allocation2 + $0xb8] sm:$0x1]
      %v2411 = vld [vmem:[#allocation2 + $0xc8] sm:$0xfe]
      %v2412 = vld [vmem:[#allocation2 + $0xd8] sm:$0x1]
      %v2413 = vld [vmem:[#allocation2 + $0xe8] sm:$0xfe]
      %v2414 = vld [vmem:[#allocation2 + $0xf8] sm:$0x1]
      %v2431 = vrot.slane %v2399, 1
      %v2432 = vrot.slane %v2400, 1
      %v2433 = vsel %vm758, %v2431, %v2432
      %v2434 = vrot.slane %v2401, 1
      %v2435 = vrot.slane %v2402, 1
      %v2436 = vsel %vm758, %v2434, %v2435
      %v2437 = vrot.slane %v2403, 1
      %v2438 = vrot.slane %v2404, 1
      %v2439 = vsel %vm758, %v2437, %v2438
      %v2440 = vrot.slane %v2405, 1
      %v2441 = vrot.slane %v2406, 1
      %v2442 = vsel %vm758, %v2440, %v2441
      %v2443 = vrot.slane %v2407, 1
      %v2444 = vrot.slane %v2408, 1
      %v2445 = vsel %vm758, %v2443, %v2444
      %v2446 = vrot.slane %v2409, 1
      %v2447 = vrot.slane %v2410, 1
      %v2448 = vsel %vm758, %v2446, %v2447
      %v2449 = vrot.slane %v2411, 1
      %v2450 = vrot.slane %v2412, 1
      %v2451 = vsel %vm758, %v2449, %v2450
      %v2452 = vrot.slane %v2413, 1
      %v2453 = vrot.slane %v2414, 1
      %v2454 = vsel %vm758, %v2452, %v2453
      %v2463 = vmul.f32 %v2376, %v2433
      %v2464 = vmul.f32 %v2379, %v2436
      %v2465 = vmul.f32 %v2382, %v2439
      %v2466 = vmul.f32 %v2385, %v2442
      %v2467 = vmul.f32 %v2388, %v2445
      %v2468 = vmul.f32 %v2391, %v2448
      %v2469 = vmul.f32 %v2394, %v2451
      %v2470 = vmul.f32 %v2397, %v2454
      %v2471 = vadd.f32 %v2020, %v2463
      %v2472 = vadd.f32 %v2021, %v2464
      %v2473 = vadd.f32 %v2022, %v2465
      %v2474 = vadd.f32 %v2023, %v2466
      %v2475 = vadd.f32 %v2024, %v2467
      %v2476 = vadd.f32 %v2025, %v2468
      %v2477 = vadd.f32 %v2026, %v2469
      %v2478 = vadd.f32 %v2027, %v2470
      %v2479 = vld [vmem:[#allocation3] sm:$0xfe]
      %v2480 = vld [vmem:[#allocation3 + $0x8] sm:$0xfe]
      %v2481 = vld [vmem:[#allocation3 + $0x10] sm:$0xfe]
      %v2482 = vld [vmem:[#allocation3 + $0x18] sm:$0x1]
      %v2483 = vld [vmem:[#allocation3 + $0x20] sm:$0x1]
      %v2484 = vld [vmem:[#allocation3 + $0x28] sm:$0x1]
      %v2485 = vld [vmem:[#allocation3 + $0x30] sm:$0xfe]
      %v2486 = vld [vmem:[#allocation3 + $0x38] sm:$0xfe]
      %v2487 = vld [vmem:[#allocation3 + $0x40] sm:$0xfe]
      %v2488 = vld [vmem:[#allocation3 + $0x48] sm:$0x1]
      %v2489 = vld [vmem:[#allocation3 + $0x50] sm:$0x1]
      %v2490 = vld [vmem:[#allocation3 + $0x58] sm:$0x1]
      %v2491 = vld [vmem:[#allocation3 + $0x60] sm:$0xfe]
      %v2492 = vld [vmem:[#allocation3 + $0x68] sm:$0xfe]
      %v2493 = vld [vmem:[#allocation3 + $0x70] sm:$0xfe]
      %v2494 = vld [vmem:[#allocation3 + $0x78] sm:$0x1]
      %v2495 = vld [vmem:[#allocation3 + $0x80] sm:$0x1]
      %v2496 = vld [vmem:[#allocation3 + $0x88] sm:$0x1]
      %v2497 = vld [vmem:[#allocation3 + $0x90] sm:$0xfe]
      %v2498 = vld [vmem:[#allocation3 + $0x98] sm:$0xfe]
      %v2499 = vld [vmem:[#allocation3 + $0xa0] sm:$0xfe]
      %v2500 = vld [vmem:[#allocation3 + $0xa8] sm:$0x1]
      %v2501 = vld [vmem:[#allocation3 + $0xb0] sm:$0x1]
      %v2502 = vld [vmem:[#allocation3 + $0xb8] sm:$0x1]
      %v2503 = vld [vmem:[#allocation3 + $0xc0] sm:$0xfe]
      %v2504 = vld [vmem:[#allocation3 + $0xc8] sm:$0xfe]
      %v2505 = vld [vmem:[#allocation3 + $0xd0] sm:$0xfe]
      %v2506 = vld [vmem:[#allocation3 + $0xd8] sm:$0x1]
      %v2507 = vld [vmem:[#allocation3 + $0xe0] sm:$0x1]
      %v2508 = vld [vmem:[#allocation3 + $0xe8] sm:$0x1]
      %v2509 = vld [vmem:[#allocation3 + $0xf0] sm:$0xfe]
      %v2510 = vld [vmem:[#allocation3 + $0xf8] sm:$0xfe]
      %v2511 = vld [vmem:[#allocation3 + $0x100] sm:$0xfe]
      %v2512 = vld [vmem:[#allocation3 + $0x108] sm:$0x1]
      %v2513 = vld [vmem:[#allocation3 + $0x110] sm:$0x1]
      %v2514 = vld [vmem:[#allocation3 + $0x118] sm:$0x1]
      %v2515 = vld [vmem:[#allocation3 + $0x120] sm:$0xfe]
      %v2516 = vld [vmem:[#allocation3 + $0x128] sm:$0xfe]
      %v2517 = vld [vmem:[#allocation3 + $0x130] sm:$0xfe]
      %v2518 = vld [vmem:[#allocation3 + $0x138] sm:$0x1]
      %v2519 = vld [vmem:[#allocation3 + $0x140] sm:$0x1]
      %v2520 = vld [vmem:[#allocation3 + $0x148] sm:$0x1]
      %v2521 = vld [vmem:[#allocation3 + $0x150] sm:$0xfe]
      %v2522 = vld [vmem:[#allocation3 + $0x158] sm:$0xfe]
      %v2523 = vld [vmem:[#allocation3 + $0x160] sm:$0xfe]
      %v2524 = vld [vmem:[#allocation3 + $0x168] sm:$0x1]
      %v2525 = vld [vmem:[#allocation3 + $0x170] sm:$0x1]
      %v2526 = vld [vmem:[#allocation3 + $0x178] sm:$0x1]
      %v2575 = vrot.slane %v2479, 1
      %v2576 = vrot.slane %v2482, 1
      %v2577 = vsel %vm758, %v2575, %v2576
      %v2578 = vrot.slane %v2480, 1
      %v2579 = vrot.slane %v2483, 1
      %v2580 = vsel %vm758, %v2578, %v2579
      %v2581 = vrot.slane %v2481, 1
      %v2582 = vrot.slane %v2484, 1
      %v2583 = vsel %vm758, %v2581, %v2582
      %v2584 = vrot.slane %v2485, 1
      %v2585 = vrot.slane %v2488, 1
      %v2586 = vsel %vm758, %v2584, %v2585
      %v2587 = vrot.slane %v2486, 1
      %v2588 = vrot.slane %v2489, 1
      %v2589 = vsel %vm758, %v2587, %v2588
      %v2590 = vrot.slane %v2487, 1
      %v2591 = vrot.slane %v2490, 1
      %v2592 = vsel %vm758, %v2590, %v2591
      %v2593 = vrot.slane %v2491, 1
      %v2594 = vrot.slane %v2494, 1
      %v2595 = vsel %vm758, %v2593, %v2594
      %v2596 = vrot.slane %v2492, 1
      %v2597 = vrot.slane %v2495, 1
      %v2598 = vsel %vm758, %v2596, %v2597
      %v2599 = vrot.slane %v2493, 1
      %v2600 = vrot.slane %v2496, 1
      %v2601 = vsel %vm758, %v2599, %v2600
      %v2602 = vrot.slane %v2497, 1
      %v2603 = vrot.slane %v2500, 1
      %v2604 = vsel %vm758, %v2602, %v2603
      %v2605 = vrot.slane %v2498, 1
      %v2606 = vrot.slane %v2501, 1
      %v2607 = vsel %vm758, %v2605, %v2606
      %v2608 = vrot.slane %v2499, 1
      %v2609 = vrot.slane %v2502, 1
      %v2610 = vsel %vm758, %v2608, %v2609
      %v2611 = vrot.slane %v2503, 1
      %v2612 = vrot.slane %v2506, 1
      %v2613 = vsel %vm758, %v2611, %v2612
      %v2614 = vrot.slane %v2504, 1
      %v2615 = vrot.slane %v2507, 1
      %v2616 = vsel %vm758, %v2614, %v2615
      %v2617 = vrot.slane %v2505, 1
      %v2618 = vrot.slane %v2508, 1
      %v2619 = vsel %vm758, %v2617, %v2618
      %v2620 = vrot.slane %v2509, 1
      %v2621 = vrot.slane %v2512, 1
      %v2622 = vsel %vm758, %v2620, %v2621
      %v2623 = vrot.slane %v2510, 1
      %v2624 = vrot.slane %v2513, 1
      %v2625 = vsel %vm758, %v2623, %v2624
      %v2626 = vrot.slane %v2511, 1
      %v2627 = vrot.slane %v2514, 1
      %v2628 = vsel %vm758, %v2626, %v2627
      %v2629 = vrot.slane %v2515, 1
      %v2630 = vrot.slane %v2518, 1
      %v2631 = vsel %vm758, %v2629, %v2630
      %v2632 = vrot.slane %v2516, 1
      %v2633 = vrot.slane %v2519, 1
      %v2634 = vsel %vm758, %v2632, %v2633
      %v2635 = vrot.slane %v2517, 1
      %v2636 = vrot.slane %v2520, 1
      %v2637 = vsel %vm758, %v2635, %v2636
      %v2638 = vrot.slane %v2521, 1
      %v2639 = vrot.slane %v2524, 1
      %v2640 = vsel %vm758, %v2638, %v2639
      %v2641 = vrot.slane %v2522, 1
      %v2642 = vrot.slane %v2525, 1
      %v2643 = vsel %vm758, %v2641, %v2642
      %v2644 = vrot.slane %v2523, 1
      %v2645 = vrot.slane %v2526, 1
      %v2646 = vsel %vm758, %v2644, %v2645
      %v2671 = vpack.c.bf16 %v2586, %v2577
      %v2672 = vpack.c.bf16 %v2589, %v2580
      %v2673 = vpack.c.bf16 %v2592, %v2583
      %v2674 = vpack.c.bf16 %v2604, %v2595
      %v2675 = vpack.c.bf16 %v2607, %v2598
      %v2676 = vpack.c.bf16 %v2610, %v2601
      %v2677 = vpack.c.bf16 %v2622, %v2613
      %v2678 = vpack.c.bf16 %v2625, %v2616
      %v2679 = vpack.c.bf16 %v2628, %v2619
      %v2680 = vpack.c.bf16 %v2640, %v2631
      %v2681 = vpack.c.bf16 %v2643, %v2634
      %v2682 = vpack.c.bf16 %v2646, %v2637
      %s2683 = scalar_lea.vmem %s6, 192
      %v2684 = vld [vmem:[%s2683] sm:$0xf]
      %v2685 = vld [vmem:[%s2683 + $0x4] sm:$0xf]
      %v2686 = vld [vmem:[%s2683 + $0x8] sm:$0xf]
      %v2687 = vld [vmem:[%s2683 + $0xc] sm:$0xf]
      %v2688 = vld [vmem:[%s2683 + $0x10] sm:$0xf]
      %v2689 = vld [vmem:[%s2683 + $0x14] sm:$0xf]
      %v2690 = vld [vmem:[%s2683 + $0x18] sm:$0xf]
      %v2691 = vld [vmem:[%s2683 + $0x1c] sm:$0xf]
      %v2692 = vld [vmem:[%s2683 + $0x20] sm:$0xf]
      %v2693 = vld [vmem:[%s2683 + $0x24] sm:$0xf]
      %v2694 = vld [vmem:[%s2683 + $0x28] sm:$0xf]
      %v2695 = vld [vmem:[%s2683 + $0x2c] sm:$0xf]
      %v2696 = vld [vmem:[%s2683 + $0x30] sm:$0xf]
      %v2697 = vld [vmem:[%s2683 + $0x34] sm:$0xf]
      %v2698 = vld [vmem:[%s2683 + $0x38] sm:$0xf]
      %v2699 = vld [vmem:[%s2683 + $0x3c] sm:$0xf]
      %v2700 = vld [vmem:[%s2683 + $0x40] sm:$0xf]
      %v2701 = vld [vmem:[%s2683 + $0x44] sm:$0xf]
      %v2702 = vld [vmem:[%s2683 + $0x48] sm:$0xf]
      %v2703 = vld [vmem:[%s2683 + $0x4c] sm:$0xf]
      %v2704 = vld [vmem:[%s2683 + $0x50] sm:$0xf]
      %v2705 = vld [vmem:[%s2683 + $0x54] sm:$0xf]
      %v2706 = vld [vmem:[%s2683 + $0x58] sm:$0xf]
      %v2707 = vld [vmem:[%s2683 + $0x5c] sm:$0xf]
      %v2708 = vld [vmem:[%s2683 + $0x60] sm:$0xf]
      %v2709 = vld [vmem:[%s2683 + $0x64] sm:$0xf]
      %v2710 = vld [vmem:[%s2683 + $0x68] sm:$0xf]
      %v2711 = vld [vmem:[%s2683 + $0x6c] sm:$0xf]
      %v2712 = vld [vmem:[%s2683 + $0x70] sm:$0xf]
      %v2713 = vld [vmem:[%s2683 + $0x74] sm:$0xf]
      %v2714 = vld [vmem:[%s2683 + $0x78] sm:$0xf]
      %v2715 = vld [vmem:[%s2683 + $0x7c] sm:$0xf]
      %v2716 = vld [vmem:[%s2683 + $0x80] sm:$0xf]
      %v2717 = vld [vmem:[%s2683 + $0x84] sm:$0xf]
      %v2718 = vld [vmem:[%s2683 + $0x88] sm:$0xf]
      %v2719 = vld [vmem:[%s2683 + $0x8c] sm:$0xf]
      %v2720 = vld [vmem:[%s2683 + $0x90] sm:$0xf]
      %v2721 = vld [vmem:[%s2683 + $0x94] sm:$0xf]
      %v2722 = vld [vmem:[%s2683 + $0x98] sm:$0xf]
      %v2723 = vld [vmem:[%s2683 + $0x9c] sm:$0xf]
      %v2724 = vld [vmem:[%s2683 + $0xa0] sm:$0xf]
      %v2725 = vld [vmem:[%s2683 + $0xa4] sm:$0xf]
      %v2726 = vld [vmem:[%s2683 + $0xa8] sm:$0xf]
      %v2727 = vld [vmem:[%s2683 + $0xac] sm:$0xf]
      %v2728 = vld [vmem:[%s2683 + $0xb0] sm:$0xf]
      %v2729 = vld [vmem:[%s2683 + $0xb4] sm:$0xf]
      %v2730 = vld [vmem:[%s2683 + $0xb8] sm:$0xf]
      %v2731 = vld [vmem:[%s2683 + $0xbc] sm:$0xf]
      %v2780 = vunpack.c.l.b16 %v2684
      %v2781 = vunpack.c.l.b16 %v2685
      %v2782 = vunpack.c.l.b16 %v2686
      %v2783 = vunpack.c.l.b16 %v2687
      %v2784 = vunpack.c.l.b16 %v2688
      %v2785 = vunpack.c.l.b16 %v2689
      %v2786 = vunpack.c.l.b16 %v2690
      %v2787 = vunpack.c.l.b16 %v2691
      %v2788 = vunpack.c.l.b16 %v2692
      %v2789 = vunpack.c.l.b16 %v2693
      %v2790 = vunpack.c.l.b16 %v2694
      %v2791 = vunpack.c.l.b16 %v2695
      %v2792 = vunpack.c.l.b16 %v2696
      %v2793 = vunpack.c.l.b16 %v2697
      %v2794 = vunpack.c.l.b16 %v2698
      %v2795 = vunpack.c.l.b16 %v2699
      %v2796 = vunpack.c.l.b16 %v2700
      %v2797 = vunpack.c.l.b16 %v2701
      %v2798 = vunpack.c.l.b16 %v2702
      %v2799 = vunpack.c.l.b16 %v2703
      %v2800 = vunpack.c.l.b16 %v2704
      %v2801 = vunpack.c.l.b16 %v2705
      %v2802 = vunpack.c.l.b16 %v2706
      %v2803 = vunpack.c.l.b16 %v2707
      %v2804 = vunpack.c.l.b16 %v2708
      %v2805 = vunpack.c.l.b16 %v2709
      %v2806 = vunpack.c.l.b16 %v2710
      %v2807 = vunpack.c.l.b16 %v2711
      %v2808 = vunpack.c.l.b16 %v2712
      %v2809 = vunpack.c.l.b16 %v2713
      %v2810 = vunpack.c.l.b16 %v2714
      %v2811 = vunpack.c.l.b16 %v2715
      %v2812 = vunpack.c.l.b16 %v2716
      %v2813 = vunpack.c.l.b16 %v2717
      %v2814 = vunpack.c.l.b16 %v2718
      %v2815 = vunpack.c.l.b16 %v2719
      %v2816 = vunpack.c.l.b16 %v2720
      %v2817 = vunpack.c.l.b16 %v2721
      %v2818 = vunpack.c.l.b16 %v2722
      %v2819 = vunpack.c.l.b16 %v2723
      %v2820 = vunpack.c.l.b16 %v2724
      %v2821 = vunpack.c.l.b16 %v2725
      %v2822 = vunpack.c.l.b16 %v2726
      %v2823 = vunpack.c.l.b16 %v2727
      %v2824 = vunpack.c.l.b16 %v2728
      %v2825 = vunpack.c.l.b16 %v2729
      %v2826 = vunpack.c.l.b16 %v2730
      %v2827 = vunpack.c.l.b16 %v2731
      %v2828 = vpack.c.b16 %v2781, %v2780
      %v2829 = vpack.c.b16 %v2783, %v2782
      %v2830 = vpack.c.b16 %v2785, %v2784
      %v2831 = vpack.c.b16 %v2787, %v2786
      %v2832 = vpack.c.b16 %v2789, %v2788
      %v2833 = vpack.c.b16 %v2791, %v2790
      %v2834 = vpack.c.b16 %v2793, %v2792
      %v2835 = vpack.c.b16 %v2795, %v2794
      %v2836 = vpack.c.b16 %v2797, %v2796
      %v2837 = vpack.c.b16 %v2799, %v2798
      %v2838 = vpack.c.b16 %v2801, %v2800
      %v2839 = vpack.c.b16 %v2803, %v2802
      %v2840 = vpack.c.b16 %v2805, %v2804
      %v2841 = vpack.c.b16 %v2807, %v2806
      %v2842 = vpack.c.b16 %v2809, %v2808
      %v2843 = vpack.c.b16 %v2811, %v2810
      %v2844 = vpack.c.b16 %v2813, %v2812
      %v2845 = vpack.c.b16 %v2815, %v2814
      %v2846 = vpack.c.b16 %v2817, %v2816
      %v2847 = vpack.c.b16 %v2819, %v2818
      %v2848 = vpack.c.b16 %v2821, %v2820
      %v2849 = vpack.c.b16 %v2823, %v2822
      %v2850 = vpack.c.b16 %v2825, %v2824
      %v2851 = vpack.c.b16 %v2827, %v2826
      %2876 = vmatpush.bf16.msra.mxu0 %v2835
      %2877 = vmatpush.bf16.msra.mxu0 %v2834
      %2878 = vmatpush.bf16.msra.mxu0 %v2833
      %2879 = vmatpush.bf16.msra.mxu0 %v2832
      %2880 = vmatpush.bf16.msra.mxu0 %v2831
      %2881 = vmatpush.bf16.msra.mxu0 %v2830
      %2882 = vmatpush.bf16.msra.mxu0 %v2829
      %2883 = vmatpush.bf16.msra.mxu0 %v2828
      %2884 = vmatmul.bf16.gmra.mxu0 %v2671
      %v2885 = vpop.f32.mrf.mxu0
      %v2886 = vadd.f32 0.0, %v2885
      %v2887 = vpop.f32.mrf.mxu0
      %v2888 = vadd.f32 0.0, %v2887
      %2889 = vmatmul.bf16.gmra.mxu0 %v2674
      %v2890 = vpop.f32.mrf.mxu0
      %v2891 = vadd.f32 0.0, %v2890
      %v2892 = vpop.f32.mrf.mxu0
      %v2893 = vadd.f32 0.0, %v2892
      %2894 = vmatmul.bf16.gmra.mxu0 %v2677
      %v2895 = vpop.f32.mrf.mxu0
      %v2896 = vadd.f32 0.0, %v2895
      %v2897 = vpop.f32.mrf.mxu0
      %v2898 = vadd.f32 0.0, %v2897
      %2899 = vmatmul.bf16.gmra.mxu0 %v2680
      %v2900 = vpop.f32.mrf.mxu0
      %v2901 = vadd.f32 0.0, %v2900
      %v2902 = vpop.f32.mrf.mxu0
      %v2903 = vadd.f32 0.0, %v2902
      %2904 = vdwg.mxu0
      %2905 = vmatpush.bf16.msra.mxu0 %v2843
      %2906 = vmatpush.bf16.msra.mxu0 %v2842
      %2907 = vmatpush.bf16.msra.mxu0 %v2841
      %2908 = vmatpush.bf16.msra.mxu0 %v2840
      %2909 = vmatpush.bf16.msra.mxu0 %v2839
      %2910 = vmatpush.bf16.msra.mxu0 %v2838
      %2911 = vmatpush.bf16.msra.mxu0 %v2837
      %2912 = vmatpush.bf16.msra.mxu0 %v2836
      %2913 = vmatmul.bf16.gmra.mxu0 %v2672
      %v2914 = vpop.f32.mrf.mxu0
      %v2915 = vadd.f32 %v2886, %v2914
      %v2916 = vpop.f32.mrf.mxu0
      %v2917 = vadd.f32 %v2888, %v2916
      %2918 = vmatmul.bf16.gmra.mxu0 %v2675
      %v2919 = vpop.f32.mrf.mxu0
      %v2920 = vadd.f32 %v2891, %v2919
      %v2921 = vpop.f32.mrf.mxu0
      %v2922 = vadd.f32 %v2893, %v2921
      %2923 = vmatmul.bf16.gmra.mxu0 %v2678
      %v2924 = vpop.f32.mrf.mxu0
      %v2925 = vadd.f32 %v2896, %v2924
      %v2926 = vpop.f32.mrf.mxu0
      %v2927 = vadd.f32 %v2898, %v2926
      %2928 = vmatmul.bf16.gmra.mxu0 %v2681
      %v2929 = vpop.f32.mrf.mxu0
      %v2930 = vadd.f32 %v2901, %v2929
      %v2931 = vpop.f32.mrf.mxu0
      %v2932 = vadd.f32 %v2903, %v2931
      %2933 = vdwg.mxu0
      %2934 = vmatpush.bf16.msra.mxu0 %v2851
      %2935 = vmatpush.bf16.msra.mxu0 %v2850
      %2936 = vmatpush.bf16.msra.mxu0 %v2849
      %2937 = vmatpush.bf16.msra.mxu0 %v2848
      %2938 = vmatpush.bf16.msra.mxu0 %v2847
      %2939 = vmatpush.bf16.msra.mxu0 %v2846
      %2940 = vmatpush.bf16.msra.mxu0 %v2845
      %2941 = vmatpush.bf16.msra.mxu0 %v2844
      %2942 = vmatmul.bf16.gmra.mxu0 %v2673
      %v2943 = vpop.f32.mrf.mxu0
      %v2944 = vadd.f32 %v2915, %v2943
      %v2945 = vpop.f32.mrf.mxu0
      %v2946 = vadd.f32 %v2917, %v2945
      %2947 = vmatmul.bf16.gmra.mxu0 %v2676
      %v2948 = vpop.f32.mrf.mxu0
      %v2949 = vadd.f32 %v2920, %v2948
      %v2950 = vpop.f32.mrf.mxu0
      %v2951 = vadd.f32 %v2922, %v2950
      %2952 = vmatmul.bf16.gmra.mxu0 %v2679
      %v2953 = vpop.f32.mrf.mxu0
      %v2954 = vadd.f32 %v2925, %v2953
      %v2955 = vpop.f32.mrf.mxu0
      %v2956 = vadd.f32 %v2927, %v2955
      %2957 = vmatmul.bf16.gmra.mxu0 %v2682
      %v2958 = vpop.f32.mrf.mxu0
      %v2959 = vadd.f32 %v2930, %v2958
      %v2960 = vpop.f32.mrf.mxu0
      %v2961 = vadd.f32 %v2932, %v2960
      %2962 = vdwg.mxu0
      %v2963 = vadd.f32 %v2343, %v2944
      %v2964 = vadd.f32 %v2344, %v2946
      %v2965 = vadd.f32 %v2345, %v2949
      %v2966 = vadd.f32 %v2346, %v2951
      %v2967 = vadd.f32 %v2347, %v2954
      %v2968 = vadd.f32 %v2348, %v2956
      %v2969 = vadd.f32 %v2349, %v2959
      %v2970 = vadd.f32 %v2350, %v2961
      %s2971 = scalar_lea.vmem %s3, 48
      %v2972 = vld [vmem:[%s2971] sm:$0xff]
      %v2973 = vld [vmem:[%s2971 + $0x8] sm:$0xff]
      %v2974 = vld [vmem:[%s2971 + $0x10] sm:$0x3]
      %v2976 = vsel %vm1829, %v2974, 0
      %2978 = vmatpush.msra.mxu0 0.0
      %2979 = vmatpush.msra.mxu0 0.0
      %2980 = vmatpush.msra.mxu0 0.0
      %2981 = vmatpush.msra.mxu0 0.0
      %2982 = vmatpush.msra.mxu0 0.0
      %2983 = vmatpush.msra.mxu0 0.0
      %2984 = vmatpush.msra.mxu0 0.0
      %2985 = vmatpush.msra.mxu0 0.0
      %2986 = vmatpush.msra.mxu0 0.0
      %2987 = vmatpush.msra.mxu0 0.0
      %2988 = vmatpush.msra.mxu0 0.0
      %2989 = vmatpush.msra.mxu0 0.0
      %2990 = vmatpush.msra.mxu0 0.0
      %2991 = vmatpush.msra.mxu0 %v2976
      %2992 = vmatpush.msra.mxu0 %v2973
      %2993 = vmatpush.msra.mxu0 %v2972
      %2994 = vmatmul.f32.gmra.mxu0 %v1806
      %v2995 = vpop.f32.mrf.mxu0
      %v2996 = vadd.f32 0.0, %v2995
      %2997 = vmatmul.f32.gmra.mxu0 %v1809
      %v2998 = vpop.f32.mrf.mxu0
      %v2999 = vadd.f32 0.0, %v2998
      %3000 = vmatmul.f32.gmra.mxu0 %v1812
      %v3001 = vpop.f32.mrf.mxu0
      %v3002 = vadd.f32 0.0, %v3001
      %3003 = vmatmul.f32.gmra.mxu0 %v1815
      %v3004 = vpop.f32.mrf.mxu0
      %v3005 = vadd.f32 0.0, %v3004
      %3006 = vmatmul.f32.gmra.mxu0 %v1818
      %v3007 = vpop.f32.mrf.mxu0
      %v3008 = vadd.f32 0.0, %v3007
      %3009 = vmatmul.f32.gmra.mxu0 %v1821
      %v3010 = vpop.f32.mrf.mxu0
      %v3011 = vadd.f32 0.0, %v3010
      %3012 = vmatmul.f32.gmra.mxu0 %v1824
      %v3013 = vpop.f32.mrf.mxu0
      %v3014 = vadd.f32 0.0, %v3013
      %3015 = vmatmul.f32.gmra.mxu0 %v1827
      %v3016 = vpop.f32.mrf.mxu0
      %v3017 = vadd.f32 0.0, %v3016
      %3018 = vdwg.mxu0
      %v3019 = vld [vmem:[#allocation2 + $0x8] sm:$0xfc]
      %v3020 = vld [vmem:[#allocation2 + $0x18] sm:$0x3]
      %v3021 = vld [vmem:[#allocation2 + $0x28] sm:$0xfc]
      %v3022 = vld [vmem:[#allocation2 + $0x38] sm:$0x3]
      %v3023 = vld [vmem:[#allocation2 + $0x48] sm:$0xfc]
      %v3024 = vld [vmem:[#allocation2 + $0x58] sm:$0x3]
      %v3025 = vld [vmem:[#allocation2 + $0x68] sm:$0xfc]
      %v3026 = vld [vmem:[#allocation2 + $0x78] sm:$0x3]
      %v3027 = vld [vmem:[#allocation2 + $0x88] sm:$0xfc]
      %v3028 = vld [vmem:[#allocation2 + $0x98] sm:$0x3]
      %v3029 = vld [vmem:[#allocation2 + $0xa8] sm:$0xfc]
      %v3030 = vld [vmem:[#allocation2 + $0xb8] sm:$0x3]
      %v3031 = vld [vmem:[#allocation2 + $0xc8] sm:$0xfc]
      %v3032 = vld [vmem:[#allocation2 + $0xd8] sm:$0x3]
      %v3033 = vld [vmem:[#allocation2 + $0xe8] sm:$0xfc]
      %v3034 = vld [vmem:[#allocation2 + $0xf8] sm:$0x3]
      %v3051 = vrot.slane %v3019, 2
      %v3052 = vrot.slane %v3020, 2
      %v3053 = vsel %vm930, %v3051, %v3052
      %v3054 = vrot.slane %v3021, 2
      %v3055 = vrot.slane %v3022, 2
      %v3056 = vsel %vm930, %v3054, %v3055
      %v3057 = vrot.slane %v3023, 2
      %v3058 = vrot.slane %v3024, 2
      %v3059 = vsel %vm930, %v3057, %v3058
      %v3060 = vrot.slane %v3025, 2
      %v3061 = vrot.slane %v3026, 2
      %v3062 = vsel %vm930, %v3060, %v3061
      %v3063 = vrot.slane %v3027, 2
      %v3064 = vrot.slane %v3028, 2
      %v3065 = vsel %vm930, %v3063, %v3064
      %v3066 = vrot.slane %v3029, 2
      %v3067 = vrot.slane %v3030, 2
      %v3068 = vsel %vm930, %v3066, %v3067
      %v3069 = vrot.slane %v3031, 2
      %v3070 = vrot.slane %v3032, 2
      %v3071 = vsel %vm930, %v3069, %v3070
      %v3072 = vrot.slane %v3033, 2
      %v3073 = vrot.slane %v3034, 2
      %v3074 = vsel %vm930, %v3072, %v3073
      %v3083 = vmul.f32 %v2996, %v3053
      %v3084 = vmul.f32 %v2999, %v3056
      %v3085 = vmul.f32 %v3002, %v3059
      %v3086 = vmul.f32 %v3005, %v3062
      %v3087 = vmul.f32 %v3008, %v3065
      %v3088 = vmul.f32 %v3011, %v3068
      %v3089 = vmul.f32 %v3014, %v3071
      %v3090 = vmul.f32 %v3017, %v3074
      %v3091 = vadd.f32 %v2471, %v3083
      %v3092 = vadd.f32 %v2472, %v3084
      %v3093 = vadd.f32 %v2473, %v3085
      %v3094 = vadd.f32 %v2474, %v3086
      %v3095 = vadd.f32 %v2475, %v3087
      %v3096 = vadd.f32 %v2476, %v3088
      %v3097 = vadd.f32 %v2477, %v3089
      %v3098 = vadd.f32 %v2478, %v3090
      %v3099 = vld [vmem:[#allocation3] sm:$0xfc]
      %v3100 = vld [vmem:[#allocation3 + $0x8] sm:$0xfc]
      %v3101 = vld [vmem:[#allocation3 + $0x10] sm:$0xfc]
      %v3102 = vld [vmem:[#allocation3 + $0x18] sm:$0x3]
      %v3103 = vld [vmem:[#allocation3 + $0x20] sm:$0x3]
      %v3104 = vld [vmem:[#allocation3 + $0x28] sm:$0x3]
      %v3105 = vld [vmem:[#allocation3 + $0x30] sm:$0xfc]
      %v3106 = vld [vmem:[#allocation3 + $0x38] sm:$0xfc]
      %v3107 = vld [vmem:[#allocation3 + $0x40] sm:$0xfc]
      %v3108 = vld [vmem:[#allocation3 + $0x48] sm:$0x3]
      %v3109 = vld [vmem:[#allocation3 + $0x50] sm:$0x3]
      %v3110 = vld [vmem:[#allocation3 + $0x58] sm:$0x3]
      %v3111 = vld [vmem:[#allocation3 + $0x60] sm:$0xfc]
      %v3112 = vld [vmem:[#allocation3 + $0x68] sm:$0xfc]
      %v3113 = vld [vmem:[#allocation3 + $0x70] sm:$0xfc]
      %v3114 = vld [vmem:[#allocation3 + $0x78] sm:$0x3]
      %v3115 = vld [vmem:[#allocation3 + $0x80] sm:$0x3]
      %v3116 = vld [vmem:[#allocation3 + $0x88] sm:$0x3]
      %v3117 = vld [vmem:[#allocation3 + $0x90] sm:$0xfc]
      %v3118 = vld [vmem:[#allocation3 + $0x98] sm:$0xfc]
      %v3119 = vld [vmem:[#allocation3 + $0xa0] sm:$0xfc]
      %v3120 = vld [vmem:[#allocation3 + $0xa8] sm:$0x3]
      %v3121 = vld [vmem:[#allocation3 + $0xb0] sm:$0x3]
      %v3122 = vld [vmem:[#allocation3 + $0xb8] sm:$0x3]
      %v3123 = vld [vmem:[#allocation3 + $0xc0] sm:$0xfc]
      %v3124 = vld [vmem:[#allocation3 + $0xc8] sm:$0xfc]
      %v3125 = vld [vmem:[#allocation3 + $0xd0] sm:$0xfc]
      %v3126 = vld [vmem:[#allocation3 + $0xd8] sm:$0x3]
      %v3127 = vld [vmem:[#allocation3 + $0xe0] sm:$0x3]
      %v3128 = vld [vmem:[#allocation3 + $0xe8] sm:$0x3]
      %v3129 = vld [vmem:[#allocation3 + $0xf0] sm:$0xfc]
      %v3130 = vld [vmem:[#allocation3 + $0xf8] sm:$0xfc]
      %v3131 = vld [vmem:[#allocation3 + $0x100] sm:$0xfc]
      %v3132 = vld [vmem:[#allocation3 + $0x108] sm:$0x3]
      %v3133 = vld [vmem:[#allocation3 + $0x110] sm:$0x3]
      %v3134 = vld [vmem:[#allocation3 + $0x118] sm:$0x3]
      %v3135 = vld [vmem:[#allocation3 + $0x120] sm:$0xfc]
      %v3136 = vld [vmem:[#allocation3 + $0x128] sm:$0xfc]
      %v3137 = vld [vmem:[#allocation3 + $0x130] sm:$0xfc]
      %v3138 = vld [vmem:[#allocation3 + $0x138] sm:$0x3]
      %v3139 = vld [vmem:[#allocation3 + $0x140] sm:$0x3]
      %v3140 = vld [vmem:[#allocation3 + $0x148] sm:$0x3]
      %v3141 = vld [vmem:[#allocation3 + $0x150] sm:$0xfc]
      %v3142 = vld [vmem:[#allocation3 + $0x158] sm:$0xfc]
      %v3143 = vld [vmem:[#allocation3 + $0x160] sm:$0xfc]
      %v3144 = vld [vmem:[#allocation3 + $0x168] sm:$0x3]
      %v3145 = vld [vmem:[#allocation3 + $0x170] sm:$0x3]
      %v3146 = vld [vmem:[#allocation3 + $0x178] sm:$0x3]
      %v3195 = vrot.slane %v3099, 2
      %v3196 = vrot.slane %v3102, 2
      %v3197 = vsel %vm930, %v3195, %v3196
      %v3198 = vrot.slane %v3100, 2
      %v3199 = vrot.slane %v3103, 2
      %v3200 = vsel %vm930, %v3198, %v3199
      %v3201 = vrot.slane %v3101, 2
      %v3202 = vrot.slane %v3104, 2
      %v3203 = vsel %vm930, %v3201, %v3202
      %v3204 = vrot.slane %v3105, 2
      %v3205 = vrot.slane %v3108, 2
      %v3206 = vsel %vm930, %v3204, %v3205
      %v3207 = vrot.slane %v3106, 2
      %v3208 = vrot.slane %v3109, 2
      %v3209 = vsel %vm930, %v3207, %v3208
      %v3210 = vrot.slane %v3107, 2
      %v3211 = vrot.slane %v3110, 2
      %v3212 = vsel %vm930, %v3210, %v3211
      %v3213 = vrot.slane %v3111, 2
      %v3214 = vrot.slane %v3114, 2
      %v3215 = vsel %vm930, %v3213, %v3214
      %v3216 = vrot.slane %v3112, 2
      %v3217 = vrot.slane %v3115, 2
      %v3218 = vsel %vm930, %v3216, %v3217
      %v3219 = vrot.slane %v3113, 2
      %v3220 = vrot.slane %v3116, 2
      %v3221 = vsel %vm930, %v3219, %v3220
      %v3222 = vrot.slane %v3117, 2
      %v3223 = vrot.slane %v3120, 2
      %v3224 = vsel %vm930, %v3222, %v3223
      %v3225 = vrot.slane %v3118, 2
      %v3226 = vrot.slane %v3121, 2
      %v3227 = vsel %vm930, %v3225, %v3226
      %v3228 = vrot.slane %v3119, 2
      %v3229 = vrot.slane %v3122, 2
      %v3230 = vsel %vm930, %v3228, %v3229
      %v3231 = vrot.slane %v3123, 2
      %v3232 = vrot.slane %v3126, 2
      %v3233 = vsel %vm930, %v3231, %v3232
      %v3234 = vrot.slane %v3124, 2
      %v3235 = vrot.slane %v3127, 2
      %v3236 = vsel %vm930, %v3234, %v3235
      %v3237 = vrot.slane %v3125, 2
      %v3238 = vrot.slane %v3128, 2
      %v3239 = vsel %vm930, %v3237, %v3238
      %v3240 = vrot.slane %v3129, 2
      %v3241 = vrot.slane %v3132, 2
      %v3242 = vsel %vm930, %v3240, %v3241
      %v3243 = vrot.slane %v3130, 2
      %v3244 = vrot.slane %v3133, 2
      %v3245 = vsel %vm930, %v3243, %v3244
      %v3246 = vrot.slane %v3131, 2
      %v3247 = vrot.slane %v3134, 2
      %v3248 = vsel %vm930, %v3246, %v3247
      %v3249 = vrot.slane %v3135, 2
      %v3250 = vrot.slane %v3138, 2
      %v3251 = vsel %vm930, %v3249, %v3250
      %v3252 = vrot.slane %v3136, 2
      %v3253 = vrot.slane %v3139, 2
      %v3254 = vsel %vm930, %v3252, %v3253
      %v3255 = vrot.slane %v3137, 2
      %v3256 = vrot.slane %v3140, 2
      %v3257 = vsel %vm930, %v3255, %v3256
      %v3258 = vrot.slane %v3141, 2
      %v3259 = vrot.slane %v3144, 2
      %v3260 = vsel %vm930, %v3258, %v3259
      %v3261 = vrot.slane %v3142, 2
      %v3262 = vrot.slane %v3145, 2
      %v3263 = vsel %vm930, %v3261, %v3262
      %v3264 = vrot.slane %v3143, 2
      %v3265 = vrot.slane %v3146, 2
      %v3266 = vsel %vm930, %v3264, %v3265
      %v3291 = vpack.c.bf16 %v3206, %v3197
      %v3292 = vpack.c.bf16 %v3209, %v3200
      %v3293 = vpack.c.bf16 %v3212, %v3203
      %v3294 = vpack.c.bf16 %v3224, %v3215
      %v3295 = vpack.c.bf16 %v3227, %v3218
      %v3296 = vpack.c.bf16 %v3230, %v3221
      %v3297 = vpack.c.bf16 %v3242, %v3233
      %v3298 = vpack.c.bf16 %v3245, %v3236
      %v3299 = vpack.c.bf16 %v3248, %v3239
      %v3300 = vpack.c.bf16 %v3260, %v3251
      %v3301 = vpack.c.bf16 %v3263, %v3254
      %v3302 = vpack.c.bf16 %v3266, %v3257
      %s3303 = scalar_lea.vmem %s6, 384
      %v3304 = vld [vmem:[%s3303] sm:$0xf]
      %v3305 = vld [vmem:[%s3303 + $0x4] sm:$0xf]
      %v3306 = vld [vmem:[%s3303 + $0x8] sm:$0xf]
      %v3307 = vld [vmem:[%s3303 + $0xc] sm:$0xf]
      %v3308 = vld [vmem:[%s3303 + $0x10] sm:$0xf]
      %v3309 = vld [vmem:[%s3303 + $0x14] sm:$0xf]
      %v3310 = vld [vmem:[%s3303 + $0x18] sm:$0xf]
      %v3311 = vld [vmem:[%s3303 + $0x1c] sm:$0xf]
      %v3312 = vld [vmem:[%s3303 + $0x20] sm:$0xf]
      %v3313 = vld [vmem:[%s3303 + $0x24] sm:$0xf]
      %v3314 = vld [vmem:[%s3303 + $0x28] sm:$0xf]
      %v3315 = vld [vmem:[%s3303 + $0x2c] sm:$0xf]
      %v3316 = vld [vmem:[%s3303 + $0x30] sm:$0xf]
      %v3317 = vld [vmem:[%s3303 + $0x34] sm:$0xf]
      %v3318 = vld [vmem:[%s3303 + $0x38] sm:$0xf]
      %v3319 = vld [vmem:[%s3303 + $0x3c] sm:$0xf]
      %v3320 = vld [vmem:[%s3303 + $0x40] sm:$0xf]
      %v3321 = vld [vmem:[%s3303 + $0x44] sm:$0xf]
      %v3322 = vld [vmem:[%s3303 + $0x48] sm:$0xf]
      %v3323 = vld [vmem:[%s3303 + $0x4c] sm:$0xf]
      %v3324 = vld [vmem:[%s3303 + $0x50] sm:$0xf]
      %v3325 = vld [vmem:[%s3303 + $0x54] sm:$0xf]
      %v3326 = vld [vmem:[%s3303 + $0x58] sm:$0xf]
      %v3327 = vld [vmem:[%s3303 + $0x5c] sm:$0xf]
      %v3328 = vld [vmem:[%s3303 + $0x60] sm:$0xf]
      %v3329 = vld [vmem:[%s3303 + $0x64] sm:$0xf]
      %v3330 = vld [vmem:[%s3303 + $0x68] sm:$0xf]
      %v3331 = vld [vmem:[%s3303 + $0x6c] sm:$0xf]
      %v3332 = vld [vmem:[%s3303 + $0x70] sm:$0xf]
      %v3333 = vld [vmem:[%s3303 + $0x74] sm:$0xf]
      %v3334 = vld [vmem:[%s3303 + $0x78] sm:$0xf]
      %v3335 = vld [vmem:[%s3303 + $0x7c] sm:$0xf]
      %v3336 = vld [vmem:[%s3303 + $0x80] sm:$0xf]
      %v3337 = vld [vmem:[%s3303 + $0x84] sm:$0xf]
      %v3338 = vld [vmem:[%s3303 + $0x88] sm:$0xf]
      %v3339 = vld [vmem:[%s3303 + $0x8c] sm:$0xf]
      %v3340 = vld [vmem:[%s3303 + $0x90] sm:$0xf]
      %v3341 = vld [vmem:[%s3303 + $0x94] sm:$0xf]
      %v3342 = vld [vmem:[%s3303 + $0x98] sm:$0xf]
      %v3343 = vld [vmem:[%s3303 + $0x9c] sm:$0xf]
      %v3344 = vld [vmem:[%s3303 + $0xa0] sm:$0xf]
      %v3345 = vld [vmem:[%s3303 + $0xa4] sm:$0xf]
      %v3346 = vld [vmem:[%s3303 + $0xa8] sm:$0xf]
      %v3347 = vld [vmem:[%s3303 + $0xac] sm:$0xf]
      %v3348 = vld [vmem:[%s3303 + $0xb0] sm:$0xf]
      %v3349 = vld [vmem:[%s3303 + $0xb4] sm:$0xf]
      %v3350 = vld [vmem:[%s3303 + $0xb8] sm:$0xf]
      %v3351 = vld [vmem:[%s3303 + $0xbc] sm:$0xf]
      %v3400 = vunpack.c.l.b16 %v3304
      %v3401 = vunpack.c.l.b16 %v3305
      %v3402 = vunpack.c.l.b16 %v3306
      %v3403 = vunpack.c.l.b16 %v3307
      %v3404 = vunpack.c.l.b16 %v3308
      %v3405 = vunpack.c.l.b16 %v3309
      %v3406 = vunpack.c.l.b16 %v3310
      %v3407 = vunpack.c.l.b16 %v3311
      %v3408 = vunpack.c.l.b16 %v3312
      %v3409 = vunpack.c.l.b16 %v3313
      %v3410 = vunpack.c.l.b16 %v3314
      %v3411 = vunpack.c.l.b16 %v3315
      %v3412 = vunpack.c.l.b16 %v3316
      %v3413 = vunpack.c.l.b16 %v3317
      %v3414 = vunpack.c.l.b16 %v3318
      %v3415 = vunpack.c.l.b16 %v3319
      %v3416 = vunpack.c.l.b16 %v3320
      %v3417 = vunpack.c.l.b16 %v3321
      %v3418 = vunpack.c.l.b16 %v3322
      %v3419 = vunpack.c.l.b16 %v3323
      %v3420 = vunpack.c.l.b16 %v3324
      %v3421 = vunpack.c.l.b16 %v3325
      %v3422 = vunpack.c.l.b16 %v3326
      %v3423 = vunpack.c.l.b16 %v3327
      %v3424 = vunpack.c.l.b16 %v3328
      %v3425 = vunpack.c.l.b16 %v3329
      %v3426 = vunpack.c.l.b16 %v3330
      %v3427 = vunpack.c.l.b16 %v3331
      %v3428 = vunpack.c.l.b16 %v3332
      %v3429 = vunpack.c.l.b16 %v3333
      %v3430 = vunpack.c.l.b16 %v3334
      %v3431 = vunpack.c.l.b16 %v3335
      %v3432 = vunpack.c.l.b16 %v3336
      %v3433 = vunpack.c.l.b16 %v3337
      %v3434 = vunpack.c.l.b16 %v3338
      %v3435 = vunpack.c.l.b16 %v3339
      %v3436 = vunpack.c.l.b16 %v3340
      %v3437 = vunpack.c.l.b16 %v3341
      %v3438 = vunpack.c.l.b16 %v3342
      %v3439 = vunpack.c.l.b16 %v3343
      %v3440 = vunpack.c.l.b16 %v3344
      %v3441 = vunpack.c.l.b16 %v3345
      %v3442 = vunpack.c.l.b16 %v3346
      %v3443 = vunpack.c.l.b16 %v3347
      %v3444 = vunpack.c.l.b16 %v3348
      %v3445 = vunpack.c.l.b16 %v3349
      %v3446 = vunpack.c.l.b16 %v3350
      %v3447 = vunpack.c.l.b16 %v3351
      %v3448 = vpack.c.b16 %v3401, %v3400
      %v3449 = vpack.c.b16 %v3403, %v3402
      %v3450 = vpack.c.b16 %v3405, %v3404
      %v3451 = vpack.c.b16 %v3407, %v3406
      %v3452 = vpack.c.b16 %v3409, %v3408
      %v3453 = vpack.c.b16 %v3411, %v3410
      %v3454 = vpack.c.b16 %v3413, %v3412
      %v3455 = vpack.c.b16 %v3415, %v3414
      %v3456 = vpack.c.b16 %v3417, %v3416
      %v3457 = vpack.c.b16 %v3419, %v3418
      %v3458 = vpack.c.b16 %v3421, %v3420
      %v3459 = vpack.c.b16 %v3423, %v3422
      %v3460 = vpack.c.b16 %v3425, %v3424
      %v3461 = vpack.c.b16 %v3427, %v3426
      %v3462 = vpack.c.b16 %v3429, %v3428
      %v3463 = vpack.c.b16 %v3431, %v3430
      %v3464 = vpack.c.b16 %v3433, %v3432
      %v3465 = vpack.c.b16 %v3435, %v3434
      %v3466 = vpack.c.b16 %v3437, %v3436
      %v3467 = vpack.c.b16 %v3439, %v3438
      %v3468 = vpack.c.b16 %v3441, %v3440
      %v3469 = vpack.c.b16 %v3443, %v3442
      %v3470 = vpack.c.b16 %v3445, %v3444
      %v3471 = vpack.c.b16 %v3447, %v3446
      %3496 = vmatpush.bf16.msra.mxu0 %v3455
      %3497 = vmatpush.bf16.msra.mxu0 %v3454
      %3498 = vmatpush.bf16.msra.mxu0 %v3453
      %3499 = vmatpush.bf16.msra.mxu0 %v3452
      %3500 = vmatpush.bf16.msra.mxu0 %v3451
      %3501 = vmatpush.bf16.msra.mxu0 %v3450
      %3502 = vmatpush.bf16.msra.mxu0 %v3449
      %3503 = vmatpush.bf16.msra.mxu0 %v3448
      %3504 = vmatmul.bf16.gmra.mxu0 %v3291
      %v3505 = vpop.f32.mrf.mxu0
      %v3506 = vadd.f32 0.0, %v3505
      %v3507 = vpop.f32.mrf.mxu0
      %v3508 = vadd.f32 0.0, %v3507
      %3509 = vmatmul.bf16.gmra.mxu0 %v3294
      %v3510 = vpop.f32.mrf.mxu0
      %v3511 = vadd.f32 0.0, %v3510
      %v3512 = vpop.f32.mrf.mxu0
      %v3513 = vadd.f32 0.0, %v3512
      %3514 = vmatmul.bf16.gmra.mxu0 %v3297
      %v3515 = vpop.f32.mrf.mxu0
      %v3516 = vadd.f32 0.0, %v3515
      %v3517 = vpop.f32.mrf.mxu0
      %v3518 = vadd.f32 0.0, %v3517
      %3519 = vmatmul.bf16.gmra.mxu0 %v3300
      %v3520 = vpop.f32.mrf.mxu0
      %v3521 = vadd.f32 0.0, %v3520
      %v3522 = vpop.f32.mrf.mxu0
      %v3523 = vadd.f32 0.0, %v3522
      %3524 = vdwg.mxu0
      %3525 = vmatpush.bf16.msra.mxu0 %v3463
      %3526 = vmatpush.bf16.msra.mxu0 %v3462
      %3527 = vmatpush.bf16.msra.mxu0 %v3461
      %3528 = vmatpush.bf16.msra.mxu0 %v3460
      %3529 = vmatpush.bf16.msra.mxu0 %v3459
      %3530 = vmatpush.bf16.msra.mxu0 %v3458
      %3531 = vmatpush.bf16.msra.mxu0 %v3457
      %3532 = vmatpush.bf16.msra.mxu0 %v3456
      %3533 = vmatmul.bf16.gmra.mxu0 %v3292
      %v3534 = vpop.f32.mrf.mxu0
      %v3535 = vadd.f32 %v3506, %v3534
      %v3536 = vpop.f32.mrf.mxu0
      %v3537 = vadd.f32 %v3508, %v3536
      %3538 = vmatmul.bf16.gmra.mxu0 %v3295
      %v3539 = vpop.f32.mrf.mxu0
      %v3540 = vadd.f32 %v3511, %v3539
      %v3541 = vpop.f32.mrf.mxu0
      %v3542 = vadd.f32 %v3513, %v3541
      %3543 = vmatmul.bf16.gmra.mxu0 %v3298
      %v3544 = vpop.f32.mrf.mxu0
      %v3545 = vadd.f32 %v3516, %v3544
      %v3546 = vpop.f32.mrf.mxu0
      %v3547 = vadd.f32 %v3518, %v3546
      %3548 = vmatmul.bf16.gmra.mxu0 %v3301
      %v3549 = vpop.f32.mrf.mxu0
      %v3550 = vadd.f32 %v3521, %v3549
      %v3551 = vpop.f32.mrf.mxu0
      %v3552 = vadd.f32 %v3523, %v3551
      %3553 = vdwg.mxu0
      %3554 = vmatpush.bf16.msra.mxu0 %v3471
      %3555 = vmatpush.bf16.msra.mxu0 %v3470
      %3556 = vmatpush.bf16.msra.mxu0 %v3469
      %3557 = vmatpush.bf16.msra.mxu0 %v3468
      %3558 = vmatpush.bf16.msra.mxu0 %v3467
      %3559 = vmatpush.bf16.msra.mxu0 %v3466
      %3560 = vmatpush.bf16.msra.mxu0 %v3465
      %3561 = vmatpush.bf16.msra.mxu0 %v3464
      %3562 = vmatmul.bf16.gmra.mxu0 %v3293
      %v3563 = vpop.f32.mrf.mxu0
      %v3564 = vadd.f32 %v3535, %v3563
      %v3565 = vpop.f32.mrf.mxu0
      %v3566 = vadd.f32 %v3537, %v3565
      %3567 = vmatmul.bf16.gmra.mxu0 %v3296
      %v3568 = vpop.f32.mrf.mxu0
      %v3569 = vadd.f32 %v3540, %v3568
      %v3570 = vpop.f32.mrf.mxu0
      %v3571 = vadd.f32 %v3542, %v3570
      %3572 = vmatmul.bf16.gmra.mxu0 %v3299
      %v3573 = vpop.f32.mrf.mxu0
      %v3574 = vadd.f32 %v3545, %v3573
      %v3575 = vpop.f32.mrf.mxu0
      %v3576 = vadd.f32 %v3547, %v3575
      %3577 = vmatmul.bf16.gmra.mxu0 %v3302
      %v3578 = vpop.f32.mrf.mxu0
      %v3579 = vadd.f32 %v3550, %v3578
      %v3580 = vpop.f32.mrf.mxu0
      %v3581 = vadd.f32 %v3552, %v3580
      %3582 = vdwg.mxu0
      %v3583 = vadd.f32 %v2963, %v3564
      %v3584 = vadd.f32 %v2964, %v3566
      %v3585 = vadd.f32 %v2965, %v3569
      %v3586 = vadd.f32 %v2966, %v3571
      %v3587 = vadd.f32 %v2967, %v3574
      %v3588 = vadd.f32 %v2968, %v3576
      %v3589 = vadd.f32 %v2969, %v3579
      %v3590 = vadd.f32 %v2970, %v3581
      %s3591 = scalar_lea.vmem %s3, 72
      %v3592 = vld [vmem:[%s3591] sm:$0xff]
      %v3593 = vld [vmem:[%s3591 + $0x8] sm:$0xff]
      %v3594 = vld [vmem:[%s3591 + $0x10] sm:$0x3]
      %v3596 = vsel %vm1829, %v3594, 0
      %3598 = vmatpush.msra.mxu0 0.0
      %3599 = vmatpush.msra.mxu0 0.0
      %3600 = vmatpush.msra.mxu0 0.0
      %3601 = vmatpush.msra.mxu0 0.0
      %3602 = vmatpush.msra.mxu0 0.0
      %3603 = vmatpush.msra.mxu0 0.0
      %3604 = vmatpush.msra.mxu0 0.0
      %3605 = vmatpush.msra.mxu0 0.0
      %3606 = vmatpush.msra.mxu0 0.0
      %3607 = vmatpush.msra.mxu0 0.0
      %3608 = vmatpush.msra.mxu0 0.0
      %3609 = vmatpush.msra.mxu0 0.0
      %3610 = vmatpush.msra.mxu0 0.0
      %3611 = vmatpush.msra.mxu0 %v3596
      %3612 = vmatpush.msra.mxu0 %v3593
      %3613 = vmatpush.msra.mxu0 %v3592
      %3614 = vmatmul.f32.gmra.mxu0 %v1806
      %v3615 = vpop.f32.mrf.mxu0
      %v3616 = vadd.f32 0.0, %v3615
      %3617 = vmatmul.f32.gmra.mxu0 %v1809
      %v3618 = vpop.f32.mrf.mxu0
      %v3619 = vadd.f32 0.0, %v3618
      %3620 = vmatmul.f32.gmra.mxu0 %v1812
      %v3621 = vpop.f32.mrf.mxu0
      %v3622 = vadd.f32 0.0, %v3621
      %3623 = vmatmul.f32.gmra.mxu0 %v1815
      %v3624 = vpop.f32.mrf.mxu0
      %v3625 = vadd.f32 0.0, %v3624
      %3626 = vmatmul.f32.gmra.mxu0 %v1818
      %v3627 = vpop.f32.mrf.mxu0
      %v3628 = vadd.f32 0.0, %v3627
      %3629 = vmatmul.f32.gmra.mxu0 %v1821
      %v3630 = vpop.f32.mrf.mxu0
      %v3631 = vadd.f32 0.0, %v3630
      %3632 = vmatmul.f32.gmra.mxu0 %v1824
      %v3633 = vpop.f32.mrf.mxu0
      %v3634 = vadd.f32 0.0, %v3633
      %3635 = vmatmul.f32.gmra.mxu0 %v1827
      %v3636 = vpop.f32.mrf.mxu0
      %v3637 = vadd.f32 0.0, %v3636
      %3638 = vdwg.mxu0
      %v3639 = vld [vmem:[%s370 + $0x8] sm:$0xff]
      %v3640 = vld [vmem:[%s370 + $0x28] sm:$0xff]
      %v3641 = vld [vmem:[%s370 + $0x48] sm:$0xff]
      %v3642 = vld [vmem:[%s370 + $0x68] sm:$0xff]
      %v3643 = vld [vmem:[%s370 + $0x88] sm:$0xff]
      %v3644 = vld [vmem:[%s370 + $0xa8] sm:$0xff]
      %v3645 = vld [vmem:[%s370 + $0xc8] sm:$0xff]
      %v3646 = vld [vmem:[%s370 + $0xe8] sm:$0xff]
      %v3647 = vmul.f32 %v3616, %v3639
      %v3648 = vmul.f32 %v3619, %v3640
      %v3649 = vmul.f32 %v3622, %v3641
      %v3650 = vmul.f32 %v3625, %v3642
      %v3651 = vmul.f32 %v3628, %v3643
      %v3652 = vmul.f32 %v3631, %v3644
      %v3653 = vmul.f32 %v3634, %v3645
      %v3654 = vmul.f32 %v3637, %v3646
      %v3655 = vadd.f32 %v3091, %v3647
      %v3656 = vadd.f32 %v3092, %v3648
      %v3657 = vadd.f32 %v3093, %v3649
      %v3658 = vadd.f32 %v3094, %v3650
      %v3659 = vadd.f32 %v3095, %v3651
      %v3660 = vadd.f32 %v3096, %v3652
      %v3661 = vadd.f32 %v3097, %v3653
      %v3662 = vadd.f32 %v3098, %v3654
      %v3663 = vld [vmem:[%s637] sm:$0xff]
      %v3664 = vld [vmem:[%s637 + $0x8] sm:$0xff]
      %v3665 = vld [vmem:[%s637 + $0x10] sm:$0xff]
      %v3666 = vld [vmem:[%s637 + $0x30] sm:$0xff]
      %v3667 = vld [vmem:[%s637 + $0x38] sm:$0xff]
      %v3668 = vld [vmem:[%s637 + $0x40] sm:$0xff]
      %v3669 = vld [vmem:[%s637 + $0x60] sm:$0xff]
      %v3670 = vld [vmem:[%s637 + $0x68] sm:$0xff]
      %v3671 = vld [vmem:[%s637 + $0x70] sm:$0xff]
      %v3672 = vld [vmem:[%s637 + $0x90] sm:$0xff]
      %v3673 = vld [vmem:[%s637 + $0x98] sm:$0xff]
      %v3674 = vld [vmem:[%s637 + $0xa0] sm:$0xff]
      %v3675 = vld [vmem:[%s637 + $0xc0] sm:$0xff]
      %v3676 = vld [vmem:[%s637 + $0xc8] sm:$0xff]
      %v3677 = vld [vmem:[%s637 + $0xd0] sm:$0xff]
      %v3678 = vld [vmem:[%s637 + $0xf0] sm:$0xff]
      %v3679 = vld [vmem:[%s637 + $0xf8] sm:$0xff]
      %v3680 = vld [vmem:[%s637 + $0x100] sm:$0xff]
      %v3681 = vld [vmem:[%s637 + $0x120] sm:$0xff]
      %v3682 = vld [vmem:[%s637 + $0x128] sm:$0xff]
      %v3683 = vld [vmem:[%s637 + $0x130] sm:$0xff]
      %v3684 = vld [vmem:[%s637 + $0x150] sm:$0xff]
      %v3685 = vld [vmem:[%s637 + $0x158] sm:$0xff]
      %v3686 = vld [vmem:[%s637 + $0x160] sm:$0xff]
      %v3687 = vpack.c.bf16 %v3666, %v3663
      %v3688 = vpack.c.bf16 %v3667, %v3664
      %v3689 = vpack.c.bf16 %v3668, %v3665
      %v3690 = vpack.c.bf16 %v3672, %v3669
      %v3691 = vpack.c.bf16 %v3673, %v3670
      %v3692 = vpack.c.bf16 %v3674, %v3671
      %v3693 = vpack.c.bf16 %v3678, %v3675
      %v3694 = vpack.c.bf16 %v3679, %v3676
      %v3695 = vpack.c.bf16 %v3680, %v3677
      %v3696 = vpack.c.bf16 %v3684, %v3681
      %v3697 = vpack.c.bf16 %v3685, %v3682
      %v3698 = vpack.c.bf16 %v3686, %v3683
      %s3699 = scalar_lea.vmem %s6, 576
      %v3700 = vld [vmem:[%s3699] sm:$0xf]
      %v3701 = vld [vmem:[%s3699 + $0x4] sm:$0xf]
      %v3702 = vld [vmem:[%s3699 + $0x8] sm:$0xf]
      %v3703 = vld [vmem:[%s3699 + $0xc] sm:$0xf]
      %v3704 = vld [vmem:[%s3699 + $0x10] sm:$0xf]
      %v3705 = vld [vmem:[%s3699 + $0x14] sm:$0xf]
      %v3706 = vld [vmem:[%s3699 + $0x18] sm:$0xf]
      %v3707 = vld [vmem:[%s3699 + $0x1c] sm:$0xf]
      %v3708 = vld [vmem:[%s3699 + $0x20] sm:$0xf]
      %v3709 = vld [vmem:[%s3699 + $0x24] sm:$0xf]
      %v3710 = vld [vmem:[%s3699 + $0x28] sm:$0xf]
      %v3711 = vld [vmem:[%s3699 + $0x2c] sm:$0xf]
      %v3712 = vld [vmem:[%s3699 + $0x30] sm:$0xf]
      %v3713 = vld [vmem:[%s3699 + $0x34] sm:$0xf]
      %v3714 = vld [vmem:[%s3699 + $0x38] sm:$0xf]
      %v3715 = vld [vmem:[%s3699 + $0x3c] sm:$0xf]
      %v3716 = vld [vmem:[%s3699 + $0x40] sm:$0xf]
      %v3717 = vld [vmem:[%s3699 + $0x44] sm:$0xf]
      %v3718 = vld [vmem:[%s3699 + $0x48] sm:$0xf]
      %v3719 = vld [vmem:[%s3699 + $0x4c] sm:$0xf]
      %v3720 = vld [vmem:[%s3699 + $0x50] sm:$0xf]
      %v3721 = vld [vmem:[%s3699 + $0x54] sm:$0xf]
      %v3722 = vld [vmem:[%s3699 + $0x58] sm:$0xf]
      %v3723 = vld [vmem:[%s3699 + $0x5c] sm:$0xf]
      %v3724 = vld [vmem:[%s3699 + $0x60] sm:$0xf]
      %v3725 = vld [vmem:[%s3699 + $0x64] sm:$0xf]
      %v3726 = vld [vmem:[%s3699 + $0x68] sm:$0xf]
      %v3727 = vld [vmem:[%s3699 + $0x6c] sm:$0xf]
      %v3728 = vld [vmem:[%s3699 + $0x70] sm:$0xf]
      %v3729 = vld [vmem:[%s3699 + $0x74] sm:$0xf]
      %v3730 = vld [vmem:[%s3699 + $0x78] sm:$0xf]
      %v3731 = vld [vmem:[%s3699 + $0x7c] sm:$0xf]
      %v3732 = vld [vmem:[%s3699 + $0x80] sm:$0xf]
      %v3733 = vld [vmem:[%s3699 + $0x84] sm:$0xf]
      %v3734 = vld [vmem:[%s3699 + $0x88] sm:$0xf]
      %v3735 = vld [vmem:[%s3699 + $0x8c] sm:$0xf]
      %v3736 = vld [vmem:[%s3699 + $0x90] sm:$0xf]
      %v3737 = vld [vmem:[%s3699 + $0x94] sm:$0xf]
      %v3738 = vld [vmem:[%s3699 + $0x98] sm:$0xf]
      %v3739 = vld [vmem:[%s3699 + $0x9c] sm:$0xf]
      %v3740 = vld [vmem:[%s3699 + $0xa0] sm:$0xf]
      %v3741 = vld [vmem:[%s3699 + $0xa4] sm:$0xf]
      %v3742 = vld [vmem:[%s3699 + $0xa8] sm:$0xf]
      %v3743 = vld [vmem:[%s3699 + $0xac] sm:$0xf]
      %v3744 = vld [vmem:[%s3699 + $0xb0] sm:$0xf]
      %v3745 = vld [vmem:[%s3699 + $0xb4] sm:$0xf]
      %v3746 = vld [vmem:[%s3699 + $0xb8] sm:$0xf]
      %v3747 = vld [vmem:[%s3699 + $0xbc] sm:$0xf]
      %v3796 = vunpack.c.l.b16 %v3700
      %v3797 = vunpack.c.l.b16 %v3701
      %v3798 = vunpack.c.l.b16 %v3702
      %v3799 = vunpack.c.l.b16 %v3703
      %v3800 = vunpack.c.l.b16 %v3704
      %v3801 = vunpack.c.l.b16 %v3705
      %v3802 = vunpack.c.l.b16 %v3706
      %v3803 = vunpack.c.l.b16 %v3707
      %v3804 = vunpack.c.l.b16 %v3708
      %v3805 = vunpack.c.l.b16 %v3709
      %v3806 = vunpack.c.l.b16 %v3710
      %v3807 = vunpack.c.l.b16 %v3711
      %v3808 = vunpack.c.l.b16 %v3712
      %v3809 = vunpack.c.l.b16 %v3713
      %v3810 = vunpack.c.l.b16 %v3714
      %v3811 = vunpack.c.l.b16 %v3715
      %v3812 = vunpack.c.l.b16 %v3716
      %v3813 = vunpack.c.l.b16 %v3717
      %v3814 = vunpack.c.l.b16 %v3718
      %v3815 = vunpack.c.l.b16 %v3719
      %v3816 = vunpack.c.l.b16 %v3720
      %v3817 = vunpack.c.l.b16 %v3721
      %v3818 = vunpack.c.l.b16 %v3722
      %v3819 = vunpack.c.l.b16 %v3723
      %v3820 = vunpack.c.l.b16 %v3724
      %v3821 = vunpack.c.l.b16 %v3725
      %v3822 = vunpack.c.l.b16 %v3726
      %v3823 = vunpack.c.l.b16 %v3727
      %v3824 = vunpack.c.l.b16 %v3728
      %v3825 = vunpack.c.l.b16 %v3729
      %v3826 = vunpack.c.l.b16 %v3730
      %v3827 = vunpack.c.l.b16 %v3731
      %v3828 = vunpack.c.l.b16 %v3732
      %v3829 = vunpack.c.l.b16 %v3733
      %v3830 = vunpack.c.l.b16 %v3734
      %v3831 = vunpack.c.l.b16 %v3735
      %v3832 = vunpack.c.l.b16 %v3736
      %v3833 = vunpack.c.l.b16 %v3737
      %v3834 = vunpack.c.l.b16 %v3738
      %v3835 = vunpack.c.l.b16 %v3739
      %v3836 = vunpack.c.l.b16 %v3740
      %v3837 = vunpack.c.l.b16 %v3741
      %v3838 = vunpack.c.l.b16 %v3742
      %v3839 = vunpack.c.l.b16 %v3743
      %v3840 = vunpack.c.l.b16 %v3744
      %v3841 = vunpack.c.l.b16 %v3745
      %v3842 = vunpack.c.l.b16 %v3746
      %v3843 = vunpack.c.l.b16 %v3747
      %v3844 = vpack.c.b16 %v3797, %v3796
      %v3845 = vpack.c.b16 %v3799, %v3798
      %v3846 = vpack.c.b16 %v3801, %v3800
      %v3847 = vpack.c.b16 %v3803, %v3802
      %v3848 = vpack.c.b16 %v3805, %v3804
      %v3849 = vpack.c.b16 %v3807, %v3806
      %v3850 = vpack.c.b16 %v3809, %v3808
      %v3851 = vpack.c.b16 %v3811, %v3810
      %v3852 = vpack.c.b16 %v3813, %v3812
      %v3853 = vpack.c.b16 %v3815, %v3814
      %v3854 = vpack.c.b16 %v3817, %v3816
      %v3855 = vpack.c.b16 %v3819, %v3818
      %v3856 = vpack.c.b16 %v3821, %v3820
      %v3857 = vpack.c.b16 %v3823, %v3822
      %v3858 = vpack.c.b16 %v3825, %v3824
      %v3859 = vpack.c.b16 %v3827, %v3826
      %v3860 = vpack.c.b16 %v3829, %v3828
      %v3861 = vpack.c.b16 %v3831, %v3830
      %v3862 = vpack.c.b16 %v3833, %v3832
      %v3863 = vpack.c.b16 %v3835, %v3834
      %v3864 = vpack.c.b16 %v3837, %v3836
      %v3865 = vpack.c.b16 %v3839, %v3838
      %v3866 = vpack.c.b16 %v3841, %v3840
      %v3867 = vpack.c.b16 %v3843, %v3842
      %3892 = vmatpush.bf16.msra.mxu0 %v3851
      %3893 = vmatpush.bf16.msra.mxu0 %v3850
      %3894 = vmatpush.bf16.msra.mxu0 %v3849
      %3895 = vmatpush.bf16.msra.mxu0 %v3848
      %3896 = vmatpush.bf16.msra.mxu0 %v3847
      %3897 = vmatpush.bf16.msra.mxu0 %v3846
      %3898 = vmatpush.bf16.msra.mxu0 %v3845
      %3899 = vmatpush.bf16.msra.mxu0 %v3844
      %3900 = vmatmul.bf16.gmra.mxu0 %v3687
      %v3901 = vpop.f32.mrf.mxu0
      %v3902 = vadd.f32 0.0, %v3901
      %v3903 = vpop.f32.mrf.mxu0
      %v3904 = vadd.f32 0.0, %v3903
      %3905 = vmatmul.bf16.gmra.mxu0 %v3690
      %v3906 = vpop.f32.mrf.mxu0
      %v3907 = vadd.f32 0.0, %v3906
      %v3908 = vpop.f32.mrf.mxu0
      %v3909 = vadd.f32 0.0, %v3908
      %3910 = vmatmul.bf16.gmra.mxu0 %v3693
      %v3911 = vpop.f32.mrf.mxu0
      %v3912 = vadd.f32 0.0, %v3911
      %v3913 = vpop.f32.mrf.mxu0
      %v3914 = vadd.f32 0.0, %v3913
      %3915 = vmatmul.bf16.gmra.mxu0 %v3696
      %v3916 = vpop.f32.mrf.mxu0
      %v3917 = vadd.f32 0.0, %v3916
      %v3918 = vpop.f32.mrf.mxu0
      %v3919 = vadd.f32 0.0, %v3918
      %3920 = vdwg.mxu0
      %3921 = vmatpush.bf16.msra.mxu0 %v3859
      %3922 = vmatpush.bf16.msra.mxu0 %v3858
      %3923 = vmatpush.bf16.msra.mxu0 %v3857
      %3924 = vmatpush.bf16.msra.mxu0 %v3856
      %3925 = vmatpush.bf16.msra.mxu0 %v3855
      %3926 = vmatpush.bf16.msra.mxu0 %v3854
      %3927 = vmatpush.bf16.msra.mxu0 %v3853
      %3928 = vmatpush.bf16.msra.mxu0 %v3852
      %3929 = vmatmul.bf16.gmra.mxu0 %v3688
      %v3930 = vpop.f32.mrf.mxu0
      %v3931 = vadd.f32 %v3902, %v3930
      %v3932 = vpop.f32.mrf.mxu0
      %v3933 = vadd.f32 %v3904, %v3932
      %3934 = vmatmul.bf16.gmra.mxu0 %v3691
      %v3935 = vpop.f32.mrf.mxu0
      %v3936 = vadd.f32 %v3907, %v3935
      %v3937 = vpop.f32.mrf.mxu0
      %v3938 = vadd.f32 %v3909, %v3937
      %3939 = vmatmul.bf16.gmra.mxu0 %v3694
      %v3940 = vpop.f32.mrf.mxu0
      %v3941 = vadd.f32 %v3912, %v3940
      %v3942 = vpop.f32.mrf.mxu0
      %v3943 = vadd.f32 %v3914, %v3942
      %3944 = vmatmul.bf16.gmra.mxu0 %v3697
      %v3945 = vpop.f32.mrf.mxu0
      %v3946 = vadd.f32 %v3917, %v3945
      %v3947 = vpop.f32.mrf.mxu0
      %v3948 = vadd.f32 %v3919, %v3947
      %3949 = vdwg.mxu0
      %3950 = vmatpush.bf16.msra.mxu0 %v3867
      %3951 = vmatpush.bf16.msra.mxu0 %v3866
      %3952 = vmatpush.bf16.msra.mxu0 %v3865
      %3953 = vmatpush.bf16.msra.mxu0 %v3864
      %3954 = vmatpush.bf16.msra.mxu0 %v3863
      %3955 = vmatpush.bf16.msra.mxu0 %v3862
      %3956 = vmatpush.bf16.msra.mxu0 %v3861
      %3957 = vmatpush.bf16.msra.mxu0 %v3860
      %3958 = vmatmul.bf16.gmra.mxu0 %v3689
      %v3959 = vpop.f32.mrf.mxu0
      %v3960 = vadd.f32 %v3931, %v3959
      %v3961 = vpop.f32.mrf.mxu0
      %v3962 = vadd.f32 %v3933, %v3961
      %3963 = vmatmul.bf16.gmra.mxu0 %v3692
      %v3964 = vpop.f32.mrf.mxu0
      %v3965 = vadd.f32 %v3936, %v3964
      %v3966 = vpop.f32.mrf.mxu0
      %v3967 = vadd.f32 %v3938, %v3966
      %3968 = vmatmul.bf16.gmra.mxu0 %v3695
      %v3969 = vpop.f32.mrf.mxu0
      %v3970 = vadd.f32 %v3941, %v3969
      %v3971 = vpop.f32.mrf.mxu0
      %v3972 = vadd.f32 %v3943, %v3971
      %3973 = vmatmul.bf16.gmra.mxu0 %v3698
      %v3974 = vpop.f32.mrf.mxu0
      %v3975 = vadd.f32 %v3946, %v3974
      %v3976 = vpop.f32.mrf.mxu0
      %v3977 = vadd.f32 %v3948, %v3976
      %3978 = vdwg.mxu0
      %v3979 = vadd.f32 %v3583, %v3960
      %v3980 = vadd.f32 %v3584, %v3962
      %v3981 = vadd.f32 %v3585, %v3965
      %v3982 = vadd.f32 %v3586, %v3967
      %v3983 = vadd.f32 %v3587, %v3970
      %v3984 = vadd.f32 %v3588, %v3972
      %v3985 = vadd.f32 %v3589, %v3975
      %v3986 = vadd.f32 %v3590, %v3977
      %s3987 = scalar_lea.vmem %s3, 96
      %v3988 = vld [vmem:[%s3987] sm:$0xff]
      %v3989 = vld [vmem:[%s3987 + $0x8] sm:$0xff]
      %v3990 = vld [vmem:[%s3987 + $0x10] sm:$0x3]
      %v3992 = vsel %vm1829, %v3990, 0
      %3994 = vmatpush.msra.mxu0 0.0
      %3995 = vmatpush.msra.mxu0 0.0
      %3996 = vmatpush.msra.mxu0 0.0
      %3997 = vmatpush.msra.mxu0 0.0
      %3998 = vmatpush.msra.mxu0 0.0
      %3999 = vmatpush.msra.mxu0 0.0
      %4000 = vmatpush.msra.mxu0 0.0
      %4001 = vmatpush.msra.mxu0 0.0
      %4002 = vmatpush.msra.mxu0 0.0
      %4003 = vmatpush.msra.mxu0 0.0
      %4004 = vmatpush.msra.mxu0 0.0
      %4005 = vmatpush.msra.mxu0 0.0
      %4006 = vmatpush.msra.mxu0 0.0
      %4007 = vmatpush.msra.mxu0 %v3992
      %4008 = vmatpush.msra.mxu0 %v3989
      %4009 = vmatpush.msra.mxu0 %v3988
      %4010 = vmatmul.f32.gmra.mxu0 %v1806
      %v4011 = vpop.f32.mrf.mxu0
      %v4012 = vadd.f32 0.0, %v4011
      %4013 = vmatmul.f32.gmra.mxu0 %v1809
      %v4014 = vpop.f32.mrf.mxu0
      %v4015 = vadd.f32 0.0, %v4014
      %4016 = vmatmul.f32.gmra.mxu0 %v1812
      %v4017 = vpop.f32.mrf.mxu0
      %v4018 = vadd.f32 0.0, %v4017
      %4019 = vmatmul.f32.gmra.mxu0 %v1815
      %v4020 = vpop.f32.mrf.mxu0
      %v4021 = vadd.f32 0.0, %v4020
      %4022 = vmatmul.f32.gmra.mxu0 %v1818
      %v4023 = vpop.f32.mrf.mxu0
      %v4024 = vadd.f32 0.0, %v4023
      %4025 = vmatmul.f32.gmra.mxu0 %v1821
      %v4026 = vpop.f32.mrf.mxu0
      %v4027 = vadd.f32 0.0, %v4026
      %4028 = vmatmul.f32.gmra.mxu0 %v1824
      %v4029 = vpop.f32.mrf.mxu0
      %v4030 = vadd.f32 0.0, %v4029
      %4031 = vmatmul.f32.gmra.mxu0 %v1827
      %v4032 = vpop.f32.mrf.mxu0
      %v4033 = vadd.f32 0.0, %v4032
      %4034 = vdwg.mxu0
      %v4035 = vld [vmem:[%s370 + $0x8] sm:$0xfe]
      %v4036 = vld [vmem:[%s370 + $0x18] sm:$0x1]
      %v4037 = vld [vmem:[%s370 + $0x28] sm:$0xfe]
      %v4038 = vld [vmem:[%s370 + $0x38] sm:$0x1]
      %v4039 = vld [vmem:[%s370 + $0x48] sm:$0xfe]
      %v4040 = vld [vmem:[%s370 + $0x58] sm:$0x1]
      %v4041 = vld [vmem:[%s370 + $0x68] sm:$0xfe]
      %v4042 = vld [vmem:[%s370 + $0x78] sm:$0x1]
      %v4043 = vld [vmem:[%s370 + $0x88] sm:$0xfe]
      %v4044 = vld [vmem:[%s370 + $0x98] sm:$0x1]
      %v4045 = vld [vmem:[%s370 + $0xa8] sm:$0xfe]
      %v4046 = vld [vmem:[%s370 + $0xb8] sm:$0x1]
      %v4047 = vld [vmem:[%s370 + $0xc8] sm:$0xfe]
      %v4048 = vld [vmem:[%s370 + $0xd8] sm:$0x1]
      %v4049 = vld [vmem:[%s370 + $0xe8] sm:$0xfe]
      %v4050 = vld [vmem:[%s370 + $0xf8] sm:$0x1]
      %v4067 = vrot.slane %v4035, 1
      %v4068 = vrot.slane %v4036, 1
      %v4069 = vsel %vm758, %v4067, %v4068
      %v4070 = vrot.slane %v4037, 1
      %v4071 = vrot.slane %v4038, 1
      %v4072 = vsel %vm758, %v4070, %v4071
      %v4073 = vrot.slane %v4039, 1
      %v4074 = vrot.slane %v4040, 1
      %v4075 = vsel %vm758, %v4073, %v4074
      %v4076 = vrot.slane %v4041, 1
      %v4077 = vrot.slane %v4042, 1
      %v4078 = vsel %vm758, %v4076, %v4077
      %v4079 = vrot.slane %v4043, 1
      %v4080 = vrot.slane %v4044, 1
      %v4081 = vsel %vm758, %v4079, %v4080
      %v4082 = vrot.slane %v4045, 1
      %v4083 = vrot.slane %v4046, 1
      %v4084 = vsel %vm758, %v4082, %v4083
      %v4085 = vrot.slane %v4047, 1
      %v4086 = vrot.slane %v4048, 1
      %v4087 = vsel %vm758, %v4085, %v4086
      %v4088 = vrot.slane %v4049, 1
      %v4089 = vrot.slane %v4050, 1
      %v4090 = vsel %vm758, %v4088, %v4089
      %v4099 = vmul.f32 %v4012, %v4069
      %v4100 = vmul.f32 %v4015, %v4072
      %v4101 = vmul.f32 %v4018, %v4075
      %v4102 = vmul.f32 %v4021, %v4078
      %v4103 = vmul.f32 %v4024, %v4081
      %v4104 = vmul.f32 %v4027, %v4084
      %v4105 = vmul.f32 %v4030, %v4087
      %v4106 = vmul.f32 %v4033, %v4090
      %v4107 = vadd.f32 %v3655, %v4099
      %v4108 = vadd.f32 %v3656, %v4100
      %v4109 = vadd.f32 %v3657, %v4101
      %v4110 = vadd.f32 %v3658, %v4102
      %v4111 = vadd.f32 %v3659, %v4103
      %v4112 = vadd.f32 %v3660, %v4104
      %v4113 = vadd.f32 %v3661, %v4105
      %v4114 = vadd.f32 %v3662, %v4106
      %v4115 = vld [vmem:[%s637] sm:$0xfe]
      %v4116 = vld [vmem:[%s637 + $0x8] sm:$0xfe]
      %v4117 = vld [vmem:[%s637 + $0x10] sm:$0xfe]
      %v4118 = vld [vmem:[%s637 + $0x18] sm:$0x1]
      %v4119 = vld [vmem:[%s637 + $0x20] sm:$0x1]
      %v4120 = vld [vmem:[%s637 + $0x28] sm:$0x1]
      %v4121 = vld [vmem:[%s637 + $0x30] sm:$0xfe]
      %v4122 = vld [vmem:[%s637 + $0x38] sm:$0xfe]
      %v4123 = vld [vmem:[%s637 + $0x40] sm:$0xfe]
      %v4124 = vld [vmem:[%s637 + $0x48] sm:$0x1]
      %v4125 = vld [vmem:[%s637 + $0x50] sm:$0x1]
      %v4126 = vld [vmem:[%s637 + $0x58] sm:$0x1]
      %v4127 = vld [vmem:[%s637 + $0x60] sm:$0xfe]
      %v4128 = vld [vmem:[%s637 + $0x68] sm:$0xfe]
      %v4129 = vld [vmem:[%s637 + $0x70] sm:$0xfe]
      %v4130 = vld [vmem:[%s637 + $0x78] sm:$0x1]
      %v4131 = vld [vmem:[%s637 + $0x80] sm:$0x1]
      %v4132 = vld [vmem:[%s637 + $0x88] sm:$0x1]
      %v4133 = vld [vmem:[%s637 + $0x90] sm:$0xfe]
      %v4134 = vld [vmem:[%s637 + $0x98] sm:$0xfe]
      %v4135 = vld [vmem:[%s637 + $0xa0] sm:$0xfe]
      %v4136 = vld [vmem:[%s637 + $0xa8] sm:$0x1]
      %v4137 = vld [vmem:[%s637 + $0xb0] sm:$0x1]
      %v4138 = vld [vmem:[%s637 + $0xb8] sm:$0x1]
      %v4139 = vld [vmem:[%s637 + $0xc0] sm:$0xfe]
      %v4140 = vld [vmem:[%s637 + $0xc8] sm:$0xfe]
      %v4141 = vld [vmem:[%s637 + $0xd0] sm:$0xfe]
      %v4142 = vld [vmem:[%s637 + $0xd8] sm:$0x1]
      %v4143 = vld [vmem:[%s637 + $0xe0] sm:$0x1]
      %v4144 = vld [vmem:[%s637 + $0xe8] sm:$0x1]
      %v4145 = vld [vmem:[%s637 + $0xf0] sm:$0xfe]
      %v4146 = vld [vmem:[%s637 + $0xf8] sm:$0xfe]
      %v4147 = vld [vmem:[%s637 + $0x100] sm:$0xfe]
      %v4148 = vld [vmem:[%s637 + $0x108] sm:$0x1]
      %v4149 = vld [vmem:[%s637 + $0x110] sm:$0x1]
      %v4150 = vld [vmem:[%s637 + $0x118] sm:$0x1]
      %v4151 = vld [vmem:[%s637 + $0x120] sm:$0xfe]
      %v4152 = vld [vmem:[%s637 + $0x128] sm:$0xfe]
      %v4153 = vld [vmem:[%s637 + $0x130] sm:$0xfe]
      %v4154 = vld [vmem:[%s637 + $0x138] sm:$0x1]
      %v4155 = vld [vmem:[%s637 + $0x140] sm:$0x1]
      %v4156 = vld [vmem:[%s637 + $0x148] sm:$0x1]
      %v4157 = vld [vmem:[%s637 + $0x150] sm:$0xfe]
      %v4158 = vld [vmem:[%s637 + $0x158] sm:$0xfe]
      %v4159 = vld [vmem:[%s637 + $0x160] sm:$0xfe]
      %v4160 = vld [vmem:[%s637 + $0x168] sm:$0x1]
      %v4161 = vld [vmem:[%s637 + $0x170] sm:$0x1]
      %v4162 = vld [vmem:[%s637 + $0x178] sm:$0x1]
      %v4211 = vrot.slane %v4115, 1
      %v4212 = vrot.slane %v4118, 1
      %v4213 = vsel %vm758, %v4211, %v4212
      %v4214 = vrot.slane %v4116, 1
      %v4215 = vrot.slane %v4119, 1
      %v4216 = vsel %vm758, %v4214, %v4215
      %v4217 = vrot.slane %v4117, 1
      %v4218 = vrot.slane %v4120, 1
      %v4219 = vsel %vm758, %v4217, %v4218
      %v4220 = vrot.slane %v4121, 1
      %v4221 = vrot.slane %v4124, 1
      %v4222 = vsel %vm758, %v4220, %v4221
      %v4223 = vrot.slane %v4122, 1
      %v4224 = vrot.slane %v4125, 1
      %v4225 = vsel %vm758, %v4223, %v4224
      %v4226 = vrot.slane %v4123, 1
      %v4227 = vrot.slane %v4126, 1
      %v4228 = vsel %vm758, %v4226, %v4227
      %v4229 = vrot.slane %v4127, 1
      %v4230 = vrot.slane %v4130, 1
      %v4231 = vsel %vm758, %v4229, %v4230
      %v4232 = vrot.slane %v4128, 1
      %v4233 = vrot.slane %v4131, 1
      %v4234 = vsel %vm758, %v4232, %v4233
      %v4235 = vrot.slane %v4129, 1
      %v4236 = vrot.slane %v4132, 1
      %v4237 = vsel %vm758, %v4235, %v4236
      %v4238 = vrot.slane %v4133, 1
      %v4239 = vrot.slane %v4136, 1
      %v4240 = vsel %vm758, %v4238, %v4239
      %v4241 = vrot.slane %v4134, 1
      %v4242 = vrot.slane %v4137, 1
      %v4243 = vsel %vm758, %v4241, %v4242
      %v4244 = vrot.slane %v4135, 1
      %v4245 = vrot.slane %v4138, 1
      %v4246 = vsel %vm758, %v4244, %v4245
      %v4247 = vrot.slane %v4139, 1
      %v4248 = vrot.slane %v4142, 1
      %v4249 = vsel %vm758, %v4247, %v4248
      %v4250 = vrot.slane %v4140, 1
      %v4251 = vrot.slane %v4143, 1
      %v4252 = vsel %vm758, %v4250, %v4251
      %v4253 = vrot.slane %v4141, 1
      %v4254 = vrot.slane %v4144, 1
      %v4255 = vsel %vm758, %v4253, %v4254
      %v4256 = vrot.slane %v4145, 1
      %v4257 = vrot.slane %v4148, 1
      %v4258 = vsel %vm758, %v4256, %v4257
      %v4259 = vrot.slane %v4146, 1
      %v4260 = vrot.slane %v4149, 1
      %v4261 = vsel %vm758, %v4259, %v4260
      %v4262 = vrot.slane %v4147, 1
      %v4263 = vrot.slane %v4150, 1
      %v4264 = vsel %vm758, %v4262, %v4263
      %v4265 = vrot.slane %v4151, 1
      %v4266 = vrot.slane %v4154, 1
      %v4267 = vsel %vm758, %v4265, %v4266
      %v4268 = vrot.slane %v4152, 1
      %v4269 = vrot.slane %v4155, 1
      %v4270 = vsel %vm758, %v4268, %v4269
      %v4271 = vrot.slane %v4153, 1
      %v4272 = vrot.slane %v4156, 1
      %v4273 = vsel %vm758, %v4271, %v4272
      %v4274 = vrot.slane %v4157, 1
      %v4275 = vrot.slane %v4160, 1
      %v4276 = vsel %vm758, %v4274, %v4275
      %v4277 = vrot.slane %v4158, 1
      %v4278 = vrot.slane %v4161, 1
      %v4279 = vsel %vm758, %v4277, %v4278
      %v4280 = vrot.slane %v4159, 1
      %v4281 = vrot.slane %v4162, 1
      %v4282 = vsel %vm758, %v4280, %v4281
      %v4307 = vpack.c.bf16 %v4222, %v4213
      %v4308 = vpack.c.bf16 %v4225, %v4216
      %v4309 = vpack.c.bf16 %v4228, %v4219
      %v4310 = vpack.c.bf16 %v4240, %v4231
      %v4311 = vpack.c.bf16 %v4243, %v4234
      %v4312 = vpack.c.bf16 %v4246, %v4237
      %v4313 = vpack.c.bf16 %v4258, %v4249
      %v4314 = vpack.c.bf16 %v4261, %v4252
      %v4315 = vpack.c.bf16 %v4264, %v4255
      %v4316 = vpack.c.bf16 %v4276, %v4267
      %v4317 = vpack.c.bf16 %v4279, %v4270
      %v4318 = vpack.c.bf16 %v4282, %v4273
      %s4319 = scalar_lea.vmem %s6, 768
      %v4320 = vld [vmem:[%s4319] sm:$0xf]
      %v4321 = vld [vmem:[%s4319 + $0x4] sm:$0xf]
      %v4322 = vld [vmem:[%s4319 + $0x8] sm:$0xf]
      %v4323 = vld [vmem:[%s4319 + $0xc] sm:$0xf]
      %v4324 = vld [vmem:[%s4319 + $0x10] sm:$0xf]
      %v4325 = vld [vmem:[%s4319 + $0x14] sm:$0xf]
      %v4326 = vld [vmem:[%s4319 + $0x18] sm:$0xf]
      %v4327 = vld [vmem:[%s4319 + $0x1c] sm:$0xf]
      %v4328 = vld [vmem:[%s4319 + $0x20] sm:$0xf]
      %v4329 = vld [vmem:[%s4319 + $0x24] sm:$0xf]
      %v4330 = vld [vmem:[%s4319 + $0x28] sm:$0xf]
      %v4331 = vld [vmem:[%s4319 + $0x2c] sm:$0xf]
      %v4332 = vld [vmem:[%s4319 + $0x30] sm:$0xf]
      %v4333 = vld [vmem:[%s4319 + $0x34] sm:$0xf]
      %v4334 = vld [vmem:[%s4319 + $0x38] sm:$0xf]
      %v4335 = vld [vmem:[%s4319 + $0x3c] sm:$0xf]
      %v4336 = vld [vmem:[%s4319 + $0x40] sm:$0xf]
      %v4337 = vld [vmem:[%s4319 + $0x44] sm:$0xf]
      %v4338 = vld [vmem:[%s4319 + $0x48] sm:$0xf]
      %v4339 = vld [vmem:[%s4319 + $0x4c] sm:$0xf]
      %v4340 = vld [vmem:[%s4319 + $0x50] sm:$0xf]
      %v4341 = vld [vmem:[%s4319 + $0x54] sm:$0xf]
      %v4342 = vld [vmem:[%s4319 + $0x58] sm:$0xf]
      %v4343 = vld [vmem:[%s4319 + $0x5c] sm:$0xf]
      %v4344 = vld [vmem:[%s4319 + $0x60] sm:$0xf]
      %v4345 = vld [vmem:[%s4319 + $0x64] sm:$0xf]
      %v4346 = vld [vmem:[%s4319 + $0x68] sm:$0xf]
      %v4347 = vld [vmem:[%s4319 + $0x6c] sm:$0xf]
      %v4348 = vld [vmem:[%s4319 + $0x70] sm:$0xf]
      %v4349 = vld [vmem:[%s4319 + $0x74] sm:$0xf]
      %v4350 = vld [vmem:[%s4319 + $0x78] sm:$0xf]
      %v4351 = vld [vmem:[%s4319 + $0x7c] sm:$0xf]
      %v4352 = vld [vmem:[%s4319 + $0x80] sm:$0xf]
      %v4353 = vld [vmem:[%s4319 + $0x84] sm:$0xf]
      %v4354 = vld [vmem:[%s4319 + $0x88] sm:$0xf]
      %v4355 = vld [vmem:[%s4319 + $0x8c] sm:$0xf]
      %v4356 = vld [vmem:[%s4319 + $0x90] sm:$0xf]
      %v4357 = vld [vmem:[%s4319 + $0x94] sm:$0xf]
      %v4358 = vld [vmem:[%s4319 + $0x98] sm:$0xf]
      %v4359 = vld [vmem:[%s4319 + $0x9c] sm:$0xf]
      %v4360 = vld [vmem:[%s4319 + $0xa0] sm:$0xf]
      %v4361 = vld [vmem:[%s4319 + $0xa4] sm:$0xf]
      %v4362 = vld [vmem:[%s4319 + $0xa8] sm:$0xf]
      %v4363 = vld [vmem:[%s4319 + $0xac] sm:$0xf]
      %v4364 = vld [vmem:[%s4319 + $0xb0] sm:$0xf]
      %v4365 = vld [vmem:[%s4319 + $0xb4] sm:$0xf]
      %v4366 = vld [vmem:[%s4319 + $0xb8] sm:$0xf]
      %v4367 = vld [vmem:[%s4319 + $0xbc] sm:$0xf]
      %v4416 = vunpack.c.l.b16 %v4320
      %v4417 = vunpack.c.l.b16 %v4321
      %v4418 = vunpack.c.l.b16 %v4322
      %v4419 = vunpack.c.l.b16 %v4323
      %v4420 = vunpack.c.l.b16 %v4324
      %v4421 = vunpack.c.l.b16 %v4325
      %v4422 = vunpack.c.l.b16 %v4326
      %v4423 = vunpack.c.l.b16 %v4327
      %v4424 = vunpack.c.l.b16 %v4328
      %v4425 = vunpack.c.l.b16 %v4329
      %v4426 = vunpack.c.l.b16 %v4330
      %v4427 = vunpack.c.l.b16 %v4331
      %v4428 = vunpack.c.l.b16 %v4332
      %v4429 = vunpack.c.l.b16 %v4333
      %v4430 = vunpack.c.l.b16 %v4334
      %v4431 = vunpack.c.l.b16 %v4335
      %v4432 = vunpack.c.l.b16 %v4336
      %v4433 = vunpack.c.l.b16 %v4337
      %v4434 = vunpack.c.l.b16 %v4338
      %v4435 = vunpack.c.l.b16 %v4339
      %v4436 = vunpack.c.l.b16 %v4340
      %v4437 = vunpack.c.l.b16 %v4341
      %v4438 = vunpack.c.l.b16 %v4342
      %v4439 = vunpack.c.l.b16 %v4343
      %v4440 = vunpack.c.l.b16 %v4344
      %v4441 = vunpack.c.l.b16 %v4345
      %v4442 = vunpack.c.l.b16 %v4346
      %v4443 = vunpack.c.l.b16 %v4347
      %v4444 = vunpack.c.l.b16 %v4348
      %v4445 = vunpack.c.l.b16 %v4349
      %v4446 = vunpack.c.l.b16 %v4350
      %v4447 = vunpack.c.l.b16 %v4351
      %v4448 = vunpack.c.l.b16 %v4352
      %v4449 = vunpack.c.l.b16 %v4353
      %v4450 = vunpack.c.l.b16 %v4354
      %v4451 = vunpack.c.l.b16 %v4355
      %v4452 = vunpack.c.l.b16 %v4356
      %v4453 = vunpack.c.l.b16 %v4357
      %v4454 = vunpack.c.l.b16 %v4358
      %v4455 = vunpack.c.l.b16 %v4359
      %v4456 = vunpack.c.l.b16 %v4360
      %v4457 = vunpack.c.l.b16 %v4361
      %v4458 = vunpack.c.l.b16 %v4362
      %v4459 = vunpack.c.l.b16 %v4363
      %v4460 = vunpack.c.l.b16 %v4364
      %v4461 = vunpack.c.l.b16 %v4365
      %v4462 = vunpack.c.l.b16 %v4366
      %v4463 = vunpack.c.l.b16 %v4367
      %v4464 = vpack.c.b16 %v4417, %v4416
      %v4465 = vpack.c.b16 %v4419, %v4418
      %v4466 = vpack.c.b16 %v4421, %v4420
      %v4467 = vpack.c.b16 %v4423, %v4422
      %v4468 = vpack.c.b16 %v4425, %v4424
      %v4469 = vpack.c.b16 %v4427, %v4426
      %v4470 = vpack.c.b16 %v4429, %v4428
      %v4471 = vpack.c.b16 %v4431, %v4430
      %v4472 = vpack.c.b16 %v4433, %v4432
      %v4473 = vpack.c.b16 %v4435, %v4434
      %v4474 = vpack.c.b16 %v4437, %v4436
      %v4475 = vpack.c.b16 %v4439, %v4438
      %v4476 = vpack.c.b16 %v4441, %v4440
      %v4477 = vpack.c.b16 %v4443, %v4442
      %v4478 = vpack.c.b16 %v4445, %v4444
      %v4479 = vpack.c.b16 %v4447, %v4446
      %v4480 = vpack.c.b16 %v4449, %v4448
      %v4481 = vpack.c.b16 %v4451, %v4450
      %v4482 = vpack.c.b16 %v4453, %v4452
      %v4483 = vpack.c.b16 %v4455, %v4454
      %v4484 = vpack.c.b16 %v4457, %v4456
      %v4485 = vpack.c.b16 %v4459, %v4458
      %v4486 = vpack.c.b16 %v4461, %v4460
      %v4487 = vpack.c.b16 %v4463, %v4462
      %4512 = vmatpush.bf16.msra.mxu0 %v4471
      %4513 = vmatpush.bf16.msra.mxu0 %v4470
      %4514 = vmatpush.bf16.msra.mxu0 %v4469
      %4515 = vmatpush.bf16.msra.mxu0 %v4468
      %4516 = vmatpush.bf16.msra.mxu0 %v4467
      %4517 = vmatpush.bf16.msra.mxu0 %v4466
      %4518 = vmatpush.bf16.msra.mxu0 %v4465
      %4519 = vmatpush.bf16.msra.mxu0 %v4464
      %4520 = vmatmul.bf16.gmra.mxu0 %v4307
      %v4521 = vpop.f32.mrf.mxu0
      %v4522 = vadd.f32 0.0, %v4521
      %v4523 = vpop.f32.mrf.mxu0
      %v4524 = vadd.f32 0.0, %v4523
      %4525 = vmatmul.bf16.gmra.mxu0 %v4310
      %v4526 = vpop.f32.mrf.mxu0
      %v4527 = vadd.f32 0.0, %v4526
      %v4528 = vpop.f32.mrf.mxu0
      %v4529 = vadd.f32 0.0, %v4528
      %4530 = vmatmul.bf16.gmra.mxu0 %v4313
      %v4531 = vpop.f32.mrf.mxu0
      %v4532 = vadd.f32 0.0, %v4531
      %v4533 = vpop.f32.mrf.mxu0
      %v4534 = vadd.f32 0.0, %v4533
      %4535 = vmatmul.bf16.gmra.mxu0 %v4316
      %v4536 = vpop.f32.mrf.mxu0
      %v4537 = vadd.f32 0.0, %v4536
      %v4538 = vpop.f32.mrf.mxu0
      %v4539 = vadd.f32 0.0, %v4538
      %4540 = vdwg.mxu0
      %4541 = vmatpush.bf16.msra.mxu0 %v4479
      %4542 = vmatpush.bf16.msra.mxu0 %v4478
      %4543 = vmatpush.bf16.msra.mxu0 %v4477
      %4544 = vmatpush.bf16.msra.mxu0 %v4476
      %4545 = vmatpush.bf16.msra.mxu0 %v4475
      %4546 = vmatpush.bf16.msra.mxu0 %v4474
      %4547 = vmatpush.bf16.msra.mxu0 %v4473
      %4548 = vmatpush.bf16.msra.mxu0 %v4472
      %4549 = vmatmul.bf16.gmra.mxu0 %v4308
      %v4550 = vpop.f32.mrf.mxu0
      %v4551 = vadd.f32 %v4522, %v4550
      %v4552 = vpop.f32.mrf.mxu0
      %v4553 = vadd.f32 %v4524, %v4552
      %4554 = vmatmul.bf16.gmra.mxu0 %v4311
      %v4555 = vpop.f32.mrf.mxu0
      %v4556 = vadd.f32 %v4527, %v4555
      %v4557 = vpop.f32.mrf.mxu0
      %v4558 = vadd.f32 %v4529, %v4557
      %4559 = vmatmul.bf16.gmra.mxu0 %v4314
      %v4560 = vpop.f32.mrf.mxu0
      %v4561 = vadd.f32 %v4532, %v4560
      %v4562 = vpop.f32.mrf.mxu0
      %v4563 = vadd.f32 %v4534, %v4562
      %4564 = vmatmul.bf16.gmra.mxu0 %v4317
      %v4565 = vpop.f32.mrf.mxu0
      %v4566 = vadd.f32 %v4537, %v4565
      %v4567 = vpop.f32.mrf.mxu0
      %v4568 = vadd.f32 %v4539, %v4567
      %4569 = vdwg.mxu0
      %4570 = vmatpush.bf16.msra.mxu0 %v4487
      %4571 = vmatpush.bf16.msra.mxu0 %v4486
      %4572 = vmatpush.bf16.msra.mxu0 %v4485
      %4573 = vmatpush.bf16.msra.mxu0 %v4484
      %4574 = vmatpush.bf16.msra.mxu0 %v4483
      %4575 = vmatpush.bf16.msra.mxu0 %v4482
      %4576 = vmatpush.bf16.msra.mxu0 %v4481
      %4577 = vmatpush.bf16.msra.mxu0 %v4480
      %4578 = vmatmul.bf16.gmra.mxu0 %v4309
      %v4579 = vpop.f32.mrf.mxu0
      %v4580 = vadd.f32 %v4551, %v4579
      %v4581 = vpop.f32.mrf.mxu0
      %v4582 = vadd.f32 %v4553, %v4581
      %4583 = vmatmul.bf16.gmra.mxu0 %v4312
      %v4584 = vpop.f32.mrf.mxu0
      %v4585 = vadd.f32 %v4556, %v4584
      %v4586 = vpop.f32.mrf.mxu0
      %v4587 = vadd.f32 %v4558, %v4586
      %4588 = vmatmul.bf16.gmra.mxu0 %v4315
      %v4589 = vpop.f32.mrf.mxu0
      %v4590 = vadd.f32 %v4561, %v4589
      %v4591 = vpop.f32.mrf.mxu0
      %v4592 = vadd.f32 %v4563, %v4591
      %4593 = vmatmul.bf16.gmra.mxu0 %v4318
      %v4594 = vpop.f32.mrf.mxu0
      %v4595 = vadd.f32 %v4566, %v4594
      %v4596 = vpop.f32.mrf.mxu0
      %v4597 = vadd.f32 %v4568, %v4596
      %4598 = vdwg.mxu0
      %v4599 = vadd.f32 %v3979, %v4580
      %v4600 = vadd.f32 %v3980, %v4582
      %v4601 = vadd.f32 %v3981, %v4585
      %v4602 = vadd.f32 %v3982, %v4587
      %v4603 = vadd.f32 %v3983, %v4590
      %v4604 = vadd.f32 %v3984, %v4592
      %v4605 = vadd.f32 %v3985, %v4595
      %v4606 = vadd.f32 %v3986, %v4597
      %s4607 = scalar_lea.vmem %s3, 120
      %v4608 = vld [vmem:[%s4607] sm:$0xff]
      %v4609 = vld [vmem:[%s4607 + $0x8] sm:$0xff]
      %v4610 = vld [vmem:[%s4607 + $0x10] sm:$0x3]
      %v4612 = vsel %vm1829, %v4610, 0
      %4614 = vmatpush.msra.mxu0 0.0
      %4615 = vmatpush.msra.mxu0 0.0
      %4616 = vmatpush.msra.mxu0 0.0
      %4617 = vmatpush.msra.mxu0 0.0
      %4618 = vmatpush.msra.mxu0 0.0
      %4619 = vmatpush.msra.mxu0 0.0
      %4620 = vmatpush.msra.mxu0 0.0
      %4621 = vmatpush.msra.mxu0 0.0
      %4622 = vmatpush.msra.mxu0 0.0
      %4623 = vmatpush.msra.mxu0 0.0
      %4624 = vmatpush.msra.mxu0 0.0
      %4625 = vmatpush.msra.mxu0 0.0
      %4626 = vmatpush.msra.mxu0 0.0
      %4627 = vmatpush.msra.mxu0 %v4612
      %4628 = vmatpush.msra.mxu0 %v4609
      %4629 = vmatpush.msra.mxu0 %v4608
      %4630 = vmatmul.f32.gmra.mxu0 %v1806
      %v4631 = vpop.f32.mrf.mxu0
      %v4632 = vadd.f32 0.0, %v4631
      %4633 = vmatmul.f32.gmra.mxu0 %v1809
      %v4634 = vpop.f32.mrf.mxu0
      %v4635 = vadd.f32 0.0, %v4634
      %4636 = vmatmul.f32.gmra.mxu0 %v1812
      %v4637 = vpop.f32.mrf.mxu0
      %v4638 = vadd.f32 0.0, %v4637
      %4639 = vmatmul.f32.gmra.mxu0 %v1815
      %v4640 = vpop.f32.mrf.mxu0
      %v4641 = vadd.f32 0.0, %v4640
      %4642 = vmatmul.f32.gmra.mxu0 %v1818
      %v4643 = vpop.f32.mrf.mxu0
      %v4644 = vadd.f32 0.0, %v4643
      %4645 = vmatmul.f32.gmra.mxu0 %v1821
      %v4646 = vpop.f32.mrf.mxu0
      %v4647 = vadd.f32 0.0, %v4646
      %4648 = vmatmul.f32.gmra.mxu0 %v1824
      %v4649 = vpop.f32.mrf.mxu0
      %v4650 = vadd.f32 0.0, %v4649
      %4651 = vmatmul.f32.gmra.mxu0 %v1827
      %v4652 = vpop.f32.mrf.mxu0
      %v4653 = vadd.f32 0.0, %v4652
      %4654 = vdwg.mxu0
      %v4655 = vld [vmem:[%s370 + $0x8] sm:$0xfc]
      %v4656 = vld [vmem:[%s370 + $0x18] sm:$0x3]
      %v4657 = vld [vmem:[%s370 + $0x28] sm:$0xfc]
      %v4658 = vld [vmem:[%s370 + $0x38] sm:$0x3]
      %v4659 = vld [vmem:[%s370 + $0x48] sm:$0xfc]
      %v4660 = vld [vmem:[%s370 + $0x58] sm:$0x3]
      %v4661 = vld [vmem:[%s370 + $0x68] sm:$0xfc]
      %v4662 = vld [vmem:[%s370 + $0x78] sm:$0x3]
      %v4663 = vld [vmem:[%s370 + $0x88] sm:$0xfc]
      %v4664 = vld [vmem:[%s370 + $0x98] sm:$0x3]
      %v4665 = vld [vmem:[%s370 + $0xa8] sm:$0xfc]
      %v4666 = vld [vmem:[%s370 + $0xb8] sm:$0x3]
      %v4667 = vld [vmem:[%s370 + $0xc8] sm:$0xfc]
      %v4668 = vld [vmem:[%s370 + $0xd8] sm:$0x3]
      %v4669 = vld [vmem:[%s370 + $0xe8] sm:$0xfc]
      %v4670 = vld [vmem:[%s370 + $0xf8] sm:$0x3]
      %v4687 = vrot.slane %v4655, 2
      %v4688 = vrot.slane %v4656, 2
      %v4689 = vsel %vm930, %v4687, %v4688
      %v4690 = vrot.slane %v4657, 2
      %v4691 = vrot.slane %v4658, 2
      %v4692 = vsel %vm930, %v4690, %v4691
      %v4693 = vrot.slane %v4659, 2
      %v4694 = vrot.slane %v4660, 2
      %v4695 = vsel %vm930, %v4693, %v4694
      %v4696 = vrot.slane %v4661, 2
      %v4697 = vrot.slane %v4662, 2
      %v4698 = vsel %vm930, %v4696, %v4697
      %v4699 = vrot.slane %v4663, 2
      %v4700 = vrot.slane %v4664, 2
      %v4701 = vsel %vm930, %v4699, %v4700
      %v4702 = vrot.slane %v4665, 2
      %v4703 = vrot.slane %v4666, 2
      %v4704 = vsel %vm930, %v4702, %v4703
      %v4705 = vrot.slane %v4667, 2
      %v4706 = vrot.slane %v4668, 2
      %v4707 = vsel %vm930, %v4705, %v4706
      %v4708 = vrot.slane %v4669, 2
      %v4709 = vrot.slane %v4670, 2
      %v4710 = vsel %vm930, %v4708, %v4709
      %v4719 = vmul.f32 %v4632, %v4689
      %v4720 = vmul.f32 %v4635, %v4692
      %v4721 = vmul.f32 %v4638, %v4695
      %v4722 = vmul.f32 %v4641, %v4698
      %v4723 = vmul.f32 %v4644, %v4701
      %v4724 = vmul.f32 %v4647, %v4704
      %v4725 = vmul.f32 %v4650, %v4707
      %v4726 = vmul.f32 %v4653, %v4710
      %v4727 = vadd.f32 %v4107, %v4719
      %v4728 = vadd.f32 %v4108, %v4720
      %v4729 = vadd.f32 %v4109, %v4721
      %v4730 = vadd.f32 %v4110, %v4722
      %v4731 = vadd.f32 %v4111, %v4723
      %v4732 = vadd.f32 %v4112, %v4724
      %v4733 = vadd.f32 %v4113, %v4725
      %v4734 = vadd.f32 %v4114, %v4726
      %v4735 = vld [vmem:[%s637] sm:$0xfc]
      %v4736 = vld [vmem:[%s637 + $0x8] sm:$0xfc]
      %v4737 = vld [vmem:[%s637 + $0x10] sm:$0xfc]
      %v4738 = vld [vmem:[%s637 + $0x18] sm:$0x3]
      %v4739 = vld [vmem:[%s637 + $0x20] sm:$0x3]
      %v4740 = vld [vmem:[%s637 + $0x28] sm:$0x3]
      %v4741 = vld [vmem:[%s637 + $0x30] sm:$0xfc]
      %v4742 = vld [vmem:[%s637 + $0x38] sm:$0xfc]
      %v4743 = vld [vmem:[%s637 + $0x40] sm:$0xfc]
      %v4744 = vld [vmem:[%s637 + $0x48] sm:$0x3]
      %v4745 = vld [vmem:[%s637 + $0x50] sm:$0x3]
      %v4746 = vld [vmem:[%s637 + $0x58] sm:$0x3]
      %v4747 = vld [vmem:[%s637 + $0x60] sm:$0xfc]
      %v4748 = vld [vmem:[%s637 + $0x68] sm:$0xfc]
      %v4749 = vld [vmem:[%s637 + $0x70] sm:$0xfc]
      %v4750 = vld [vmem:[%s637 + $0x78] sm:$0x3]
      %v4751 = vld [vmem:[%s637 + $0x80] sm:$0x3]
      %v4752 = vld [vmem:[%s637 + $0x88] sm:$0x3]
      %v4753 = vld [vmem:[%s637 + $0x90] sm:$0xfc]
      %v4754 = vld [vmem:[%s637 + $0x98] sm:$0xfc]
      %v4755 = vld [vmem:[%s637 + $0xa0] sm:$0xfc]
      %v4756 = vld [vmem:[%s637 + $0xa8] sm:$0x3]
      %v4757 = vld [vmem:[%s637 + $0xb0] sm:$0x3]
      %v4758 = vld [vmem:[%s637 + $0xb8] sm:$0x3]
      %v4759 = vld [vmem:[%s637 + $0xc0] sm:$0xfc]
      %v4760 = vld [vmem:[%s637 + $0xc8] sm:$0xfc]
      %v4761 = vld [vmem:[%s637 + $0xd0] sm:$0xfc]
      %v4762 = vld [vmem:[%s637 + $0xd8] sm:$0x3]
      %v4763 = vld [vmem:[%s637 + $0xe0] sm:$0x3]
      %v4764 = vld [vmem:[%s637 + $0xe8] sm:$0x3]
      %v4765 = vld [vmem:[%s637 + $0xf0] sm:$0xfc]
      %v4766 = vld [vmem:[%s637 + $0xf8] sm:$0xfc]
      %v4767 = vld [vmem:[%s637 + $0x100] sm:$0xfc]
      %v4768 = vld [vmem:[%s637 + $0x108] sm:$0x3]
      %v4769 = vld [vmem:[%s637 + $0x110] sm:$0x3]
      %v4770 = vld [vmem:[%s637 + $0x118] sm:$0x3]
      %v4771 = vld [vmem:[%s637 + $0x120] sm:$0xfc]
      %v4772 = vld [vmem:[%s637 + $0x128] sm:$0xfc]
      %v4773 = vld [vmem:[%s637 + $0x130] sm:$0xfc]
      %v4774 = vld [vmem:[%s637 + $0x138] sm:$0x3]
      %v4775 = vld [vmem:[%s637 + $0x140] sm:$0x3]
      %v4776 = vld [vmem:[%s637 + $0x148] sm:$0x3]
      %v4777 = vld [vmem:[%s637 + $0x150] sm:$0xfc]
      %v4778 = vld [vmem:[%s637 + $0x158] sm:$0xfc]
      %v4779 = vld [vmem:[%s637 + $0x160] sm:$0xfc]
      %v4780 = vld [vmem:[%s637 + $0x168] sm:$0x3]
      %v4781 = vld [vmem:[%s637 + $0x170] sm:$0x3]
      %v4782 = vld [vmem:[%s637 + $0x178] sm:$0x3]
      %v4831 = vrot.slane %v4735, 2
      %v4832 = vrot.slane %v4738, 2
      %v4833 = vsel %vm930, %v4831, %v4832
      %v4834 = vrot.slane %v4736, 2
      %v4835 = vrot.slane %v4739, 2
      %v4836 = vsel %vm930, %v4834, %v4835
      %v4837 = vrot.slane %v4737, 2
      %v4838 = vrot.slane %v4740, 2
      %v4839 = vsel %vm930, %v4837, %v4838
      %v4840 = vrot.slane %v4741, 2
      %v4841 = vrot.slane %v4744, 2
      %v4842 = vsel %vm930, %v4840, %v4841
      %v4843 = vrot.slane %v4742, 2
      %v4844 = vrot.slane %v4745, 2
      %v4845 = vsel %vm930, %v4843, %v4844
      %v4846 = vrot.slane %v4743, 2
      %v4847 = vrot.slane %v4746, 2
      %v4848 = vsel %vm930, %v4846, %v4847
      %v4849 = vrot.slane %v4747, 2
      %v4850 = vrot.slane %v4750, 2
      %v4851 = vsel %vm930, %v4849, %v4850
      %v4852 = vrot.slane %v4748, 2
      %v4853 = vrot.slane %v4751, 2
      %v4854 = vsel %vm930, %v4852, %v4853
      %v4855 = vrot.slane %v4749, 2
      %v4856 = vrot.slane %v4752, 2
      %v4857 = vsel %vm930, %v4855, %v4856
      %v4858 = vrot.slane %v4753, 2
      %v4859 = vrot.slane %v4756, 2
      %v4860 = vsel %vm930, %v4858, %v4859
      %v4861 = vrot.slane %v4754, 2
      %v4862 = vrot.slane %v4757, 2
      %v4863 = vsel %vm930, %v4861, %v4862
      %v4864 = vrot.slane %v4755, 2
      %v4865 = vrot.slane %v4758, 2
      %v4866 = vsel %vm930, %v4864, %v4865
      %v4867 = vrot.slane %v4759, 2
      %v4868 = vrot.slane %v4762, 2
      %v4869 = vsel %vm930, %v4867, %v4868
      %v4870 = vrot.slane %v4760, 2
      %v4871 = vrot.slane %v4763, 2
      %v4872 = vsel %vm930, %v4870, %v4871
      %v4873 = vrot.slane %v4761, 2
      %v4874 = vrot.slane %v4764, 2
      %v4875 = vsel %vm930, %v4873, %v4874
      %v4876 = vrot.slane %v4765, 2
      %v4877 = vrot.slane %v4768, 2
      %v4878 = vsel %vm930, %v4876, %v4877
      %v4879 = vrot.slane %v4766, 2
      %v4880 = vrot.slane %v4769, 2
      %v4881 = vsel %vm930, %v4879, %v4880
      %v4882 = vrot.slane %v4767, 2
      %v4883 = vrot.slane %v4770, 2
      %v4884 = vsel %vm930, %v4882, %v4883
      %v4885 = vrot.slane %v4771, 2
      %v4886 = vrot.slane %v4774, 2
      %v4887 = vsel %vm930, %v4885, %v4886
      %v4888 = vrot.slane %v4772, 2
      %v4889 = vrot.slane %v4775, 2
      %v4890 = vsel %vm930, %v4888, %v4889
      %v4891 = vrot.slane %v4773, 2
      %v4892 = vrot.slane %v4776, 2
      %v4893 = vsel %vm930, %v4891, %v4892
      %v4894 = vrot.slane %v4777, 2
      %v4895 = vrot.slane %v4780, 2
      %v4896 = vsel %vm930, %v4894, %v4895
      %v4897 = vrot.slane %v4778, 2
      %v4898 = vrot.slane %v4781, 2
      %v4899 = vsel %vm930, %v4897, %v4898
      %v4900 = vrot.slane %v4779, 2
      %v4901 = vrot.slane %v4782, 2
      %v4902 = vsel %vm930, %v4900, %v4901
      %v4927 = vpack.c.bf16 %v4842, %v4833
      %v4928 = vpack.c.bf16 %v4845, %v4836
      %v4929 = vpack.c.bf16 %v4848, %v4839
      %v4930 = vpack.c.bf16 %v4860, %v4851
      %v4931 = vpack.c.bf16 %v4863, %v4854
      %v4932 = vpack.c.bf16 %v4866, %v4857
      %v4933 = vpack.c.bf16 %v4878, %v4869
      %v4934 = vpack.c.bf16 %v4881, %v4872
      %v4935 = vpack.c.bf16 %v4884, %v4875
      %v4936 = vpack.c.bf16 %v4896, %v4887
      %v4937 = vpack.c.bf16 %v4899, %v4890
      %v4938 = vpack.c.bf16 %v4902, %v4893
      %s4939 = scalar_lea.vmem %s6, 960
      %v4940 = vld [vmem:[%s4939] sm:$0xf]
      %v4941 = vld [vmem:[%s4939 + $0x4] sm:$0xf]
      %v4942 = vld [vmem:[%s4939 + $0x8] sm:$0xf]
      %v4943 = vld [vmem:[%s4939 + $0xc] sm:$0xf]
      %v4944 = vld [vmem:[%s4939 + $0x10] sm:$0xf]
      %v4945 = vld [vmem:[%s4939 + $0x14] sm:$0xf]
      %v4946 = vld [vmem:[%s4939 + $0x18] sm:$0xf]
      %v4947 = vld [vmem:[%s4939 + $0x1c] sm:$0xf]
      %v4948 = vld [vmem:[%s4939 + $0x20] sm:$0xf]
      %v4949 = vld [vmem:[%s4939 + $0x24] sm:$0xf]
      %v4950 = vld [vmem:[%s4939 + $0x28] sm:$0xf]
      %v4951 = vld [vmem:[%s4939 + $0x2c] sm:$0xf]
      %v4952 = vld [vmem:[%s4939 + $0x30] sm:$0xf]
      %v4953 = vld [vmem:[%s4939 + $0x34] sm:$0xf]
      %v4954 = vld [vmem:[%s4939 + $0x38] sm:$0xf]
      %v4955 = vld [vmem:[%s4939 + $0x3c] sm:$0xf]
      %v4956 = vld [vmem:[%s4939 + $0x40] sm:$0xf]
      %v4957 = vld [vmem:[%s4939 + $0x44] sm:$0xf]
      %v4958 = vld [vmem:[%s4939 + $0x48] sm:$0xf]
      %v4959 = vld [vmem:[%s4939 + $0x4c] sm:$0xf]
      %v4960 = vld [vmem:[%s4939 + $0x50] sm:$0xf]
      %v4961 = vld [vmem:[%s4939 + $0x54] sm:$0xf]
      %v4962 = vld [vmem:[%s4939 + $0x58] sm:$0xf]
      %v4963 = vld [vmem:[%s4939 + $0x5c] sm:$0xf]
      %v4964 = vld [vmem:[%s4939 + $0x60] sm:$0xf]
      %v4965 = vld [vmem:[%s4939 + $0x64] sm:$0xf]
      %v4966 = vld [vmem:[%s4939 + $0x68] sm:$0xf]
      %v4967 = vld [vmem:[%s4939 + $0x6c] sm:$0xf]
      %v4968 = vld [vmem:[%s4939 + $0x70] sm:$0xf]
      %v4969 = vld [vmem:[%s4939 + $0x74] sm:$0xf]
      %v4970 = vld [vmem:[%s4939 + $0x78] sm:$0xf]
      %v4971 = vld [vmem:[%s4939 + $0x7c] sm:$0xf]
      %v4972 = vld [vmem:[%s4939 + $0x80] sm:$0xf]
      %v4973 = vld [vmem:[%s4939 + $0x84] sm:$0xf]
      %v4974 = vld [vmem:[%s4939 + $0x88] sm:$0xf]
      %v4975 = vld [vmem:[%s4939 + $0x8c] sm:$0xf]
      %v4976 = vld [vmem:[%s4939 + $0x90] sm:$0xf]
      %v4977 = vld [vmem:[%s4939 + $0x94] sm:$0xf]
      %v4978 = vld [vmem:[%s4939 + $0x98] sm:$0xf]
      %v4979 = vld [vmem:[%s4939 + $0x9c] sm:$0xf]
      %v4980 = vld [vmem:[%s4939 + $0xa0] sm:$0xf]
      %v4981 = vld [vmem:[%s4939 + $0xa4] sm:$0xf]
      %v4982 = vld [vmem:[%s4939 + $0xa8] sm:$0xf]
      %v4983 = vld [vmem:[%s4939 + $0xac] sm:$0xf]
      %v4984 = vld [vmem:[%s4939 + $0xb0] sm:$0xf]
      %v4985 = vld [vmem:[%s4939 + $0xb4] sm:$0xf]
      %v4986 = vld [vmem:[%s4939 + $0xb8] sm:$0xf]
      %v4987 = vld [vmem:[%s4939 + $0xbc] sm:$0xf]
      %v5036 = vunpack.c.l.b16 %v4940
      %v5037 = vunpack.c.l.b16 %v4941
      %v5038 = vunpack.c.l.b16 %v4942
      %v5039 = vunpack.c.l.b16 %v4943
      %v5040 = vunpack.c.l.b16 %v4944
      %v5041 = vunpack.c.l.b16 %v4945
      %v5042 = vunpack.c.l.b16 %v4946
      %v5043 = vunpack.c.l.b16 %v4947
      %v5044 = vunpack.c.l.b16 %v4948
      %v5045 = vunpack.c.l.b16 %v4949
      %v5046 = vunpack.c.l.b16 %v4950
      %v5047 = vunpack.c.l.b16 %v4951
      %v5048 = vunpack.c.l.b16 %v4952
      %v5049 = vunpack.c.l.b16 %v4953
      %v5050 = vunpack.c.l.b16 %v4954
      %v5051 = vunpack.c.l.b16 %v4955
      %v5052 = vunpack.c.l.b16 %v4956
      %v5053 = vunpack.c.l.b16 %v4957
      %v5054 = vunpack.c.l.b16 %v4958
      %v5055 = vunpack.c.l.b16 %v4959
      %v5056 = vunpack.c.l.b16 %v4960
      %v5057 = vunpack.c.l.b16 %v4961
      %v5058 = vunpack.c.l.b16 %v4962
      %v5059 = vunpack.c.l.b16 %v4963
      %v5060 = vunpack.c.l.b16 %v4964
      %v5061 = vunpack.c.l.b16 %v4965
      %v5062 = vunpack.c.l.b16 %v4966
      %v5063 = vunpack.c.l.b16 %v4967
      %v5064 = vunpack.c.l.b16 %v4968
      %v5065 = vunpack.c.l.b16 %v4969
      %v5066 = vunpack.c.l.b16 %v4970
      %v5067 = vunpack.c.l.b16 %v4971
      %v5068 = vunpack.c.l.b16 %v4972
      %v5069 = vunpack.c.l.b16 %v4973
      %v5070 = vunpack.c.l.b16 %v4974
      %v5071 = vunpack.c.l.b16 %v4975
      %v5072 = vunpack.c.l.b16 %v4976
      %v5073 = vunpack.c.l.b16 %v4977
      %v5074 = vunpack.c.l.b16 %v4978
      %v5075 = vunpack.c.l.b16 %v4979
      %v5076 = vunpack.c.l.b16 %v4980
      %v5077 = vunpack.c.l.b16 %v4981
      %v5078 = vunpack.c.l.b16 %v4982
      %v5079 = vunpack.c.l.b16 %v4983
      %v5080 = vunpack.c.l.b16 %v4984
      %v5081 = vunpack.c.l.b16 %v4985
      %v5082 = vunpack.c.l.b16 %v4986
      %v5083 = vunpack.c.l.b16 %v4987
      %v5084 = vpack.c.b16 %v5037, %v5036
      %v5085 = vpack.c.b16 %v5039, %v5038
      %v5086 = vpack.c.b16 %v5041, %v5040
      %v5087 = vpack.c.b16 %v5043, %v5042
      %v5088 = vpack.c.b16 %v5045, %v5044
      %v5089 = vpack.c.b16 %v5047, %v5046
      %v5090 = vpack.c.b16 %v5049, %v5048
      %v5091 = vpack.c.b16 %v5051, %v5050
      %v5092 = vpack.c.b16 %v5053, %v5052
      %v5093 = vpack.c.b16 %v5055, %v5054
      %v5094 = vpack.c.b16 %v5057, %v5056
      %v5095 = vpack.c.b16 %v5059, %v5058
      %v5096 = vpack.c.b16 %v5061, %v5060
      %v5097 = vpack.c.b16 %v5063, %v5062
      %v5098 = vpack.c.b16 %v5065, %v5064
      %v5099 = vpack.c.b16 %v5067, %v5066
      %v5100 = vpack.c.b16 %v5069, %v5068
      %v5101 = vpack.c.b16 %v5071, %v5070
      %v5102 = vpack.c.b16 %v5073, %v5072
      %v5103 = vpack.c.b16 %v5075, %v5074
      %v5104 = vpack.c.b16 %v5077, %v5076
      %v5105 = vpack.c.b16 %v5079, %v5078
      %v5106 = vpack.c.b16 %v5081, %v5080
      %v5107 = vpack.c.b16 %v5083, %v5082
      %5132 = vmatpush.bf16.msra.mxu0 %v5091
      %5133 = vmatpush.bf16.msra.mxu0 %v5090
      %5134 = vmatpush.bf16.msra.mxu0 %v5089
      %5135 = vmatpush.bf16.msra.mxu0 %v5088
      %5136 = vmatpush.bf16.msra.mxu0 %v5087
      %5137 = vmatpush.bf16.msra.mxu0 %v5086
      %5138 = vmatpush.bf16.msra.mxu0 %v5085
      %5139 = vmatpush.bf16.msra.mxu0 %v5084
      %5140 = vmatmul.bf16.gmra.mxu0 %v4927
      %v5141 = vpop.f32.mrf.mxu0
      %v5142 = vadd.f32 0.0, %v5141
      %v5143 = vpop.f32.mrf.mxu0
      %v5144 = vadd.f32 0.0, %v5143
      %5145 = vmatmul.bf16.gmra.mxu0 %v4930
      %v5146 = vpop.f32.mrf.mxu0
      %v5147 = vadd.f32 0.0, %v5146
      %v5148 = vpop.f32.mrf.mxu0
      %v5149 = vadd.f32 0.0, %v5148
      %5150 = vmatmul.bf16.gmra.mxu0 %v4933
      %v5151 = vpop.f32.mrf.mxu0
      %v5152 = vadd.f32 0.0, %v5151
      %v5153 = vpop.f32.mrf.mxu0
      %v5154 = vadd.f32 0.0, %v5153
      %5155 = vmatmul.bf16.gmra.mxu0 %v4936
      %v5156 = vpop.f32.mrf.mxu0
      %v5157 = vadd.f32 0.0, %v5156
      %v5158 = vpop.f32.mrf.mxu0
      %v5159 = vadd.f32 0.0, %v5158
      %5160 = vdwg.mxu0
      %5161 = vmatpush.bf16.msra.mxu0 %v5099
      %5162 = vmatpush.bf16.msra.mxu0 %v5098
      %5163 = vmatpush.bf16.msra.mxu0 %v5097
      %5164 = vmatpush.bf16.msra.mxu0 %v5096
      %5165 = vmatpush.bf16.msra.mxu0 %v5095
      %5166 = vmatpush.bf16.msra.mxu0 %v5094
      %5167 = vmatpush.bf16.msra.mxu0 %v5093
      %5168 = vmatpush.bf16.msra.mxu0 %v5092
      %5169 = vmatmul.bf16.gmra.mxu0 %v4928
      %v5170 = vpop.f32.mrf.mxu0
      %v5171 = vadd.f32 %v5142, %v5170
      %v5172 = vpop.f32.mrf.mxu0
      %v5173 = vadd.f32 %v5144, %v5172
      %5174 = vmatmul.bf16.gmra.mxu0 %v4931
      %v5175 = vpop.f32.mrf.mxu0
      %v5176 = vadd.f32 %v5147, %v5175
      %v5177 = vpop.f32.mrf.mxu0
      %v5178 = vadd.f32 %v5149, %v5177
      %5179 = vmatmul.bf16.gmra.mxu0 %v4934
      %v5180 = vpop.f32.mrf.mxu0
      %v5181 = vadd.f32 %v5152, %v5180
      %v5182 = vpop.f32.mrf.mxu0
      %v5183 = vadd.f32 %v5154, %v5182
      %5184 = vmatmul.bf16.gmra.mxu0 %v4937
      %v5185 = vpop.f32.mrf.mxu0
      %v5186 = vadd.f32 %v5157, %v5185
      %v5187 = vpop.f32.mrf.mxu0
      %v5188 = vadd.f32 %v5159, %v5187
      %5189 = vdwg.mxu0
      %5190 = vmatpush.bf16.msra.mxu0 %v5107
      %5191 = vmatpush.bf16.msra.mxu0 %v5106
      %5192 = vmatpush.bf16.msra.mxu0 %v5105
      %5193 = vmatpush.bf16.msra.mxu0 %v5104
      %5194 = vmatpush.bf16.msra.mxu0 %v5103
      %5195 = vmatpush.bf16.msra.mxu0 %v5102
      %5196 = vmatpush.bf16.msra.mxu0 %v5101
      %5197 = vmatpush.bf16.msra.mxu0 %v5100
      %5198 = vmatmul.bf16.gmra.mxu0 %v4929
      %v5199 = vpop.f32.mrf.mxu0
      %v5200 = vadd.f32 %v5171, %v5199
      %v5201 = vpop.f32.mrf.mxu0
      %v5202 = vadd.f32 %v5173, %v5201
      %5203 = vmatmul.bf16.gmra.mxu0 %v4932
      %v5204 = vpop.f32.mrf.mxu0
      %v5205 = vadd.f32 %v5176, %v5204
      %v5206 = vpop.f32.mrf.mxu0
      %v5207 = vadd.f32 %v5178, %v5206
      %5208 = vmatmul.bf16.gmra.mxu0 %v4935
      %v5209 = vpop.f32.mrf.mxu0
      %v5210 = vadd.f32 %v5181, %v5209
      %v5211 = vpop.f32.mrf.mxu0
      %v5212 = vadd.f32 %v5183, %v5211
      %5213 = vmatmul.bf16.gmra.mxu0 %v4938
      %v5214 = vpop.f32.mrf.mxu0
      %v5215 = vadd.f32 %v5186, %v5214
      %v5216 = vpop.f32.mrf.mxu0
      %v5217 = vadd.f32 %v5188, %v5216
      %5218 = vdwg.mxu0
      %v5219 = vadd.f32 %v4599, %v5200
      %v5220 = vadd.f32 %v4600, %v5202
      %v5221 = vadd.f32 %v4601, %v5205
      %v5222 = vadd.f32 %v4602, %v5207
      %v5223 = vadd.f32 %v4603, %v5210
      %v5224 = vadd.f32 %v4604, %v5212
      %v5225 = vadd.f32 %v4605, %v5215
      %v5226 = vadd.f32 %v4606, %v5217
      %s5227 = scalar_lea.vmem %s3, 144
      %v5228 = vld [vmem:[%s5227] sm:$0xff]
      %v5229 = vld [vmem:[%s5227 + $0x8] sm:$0xff]
      %v5230 = vld [vmem:[%s5227 + $0x10] sm:$0x3]
      %v5232 = vsel %vm1829, %v5230, 0
      %5234 = vmatpush.msra.mxu0 0.0
      %5235 = vmatpush.msra.mxu0 0.0
      %5236 = vmatpush.msra.mxu0 0.0
      %5237 = vmatpush.msra.mxu0 0.0
      %5238 = vmatpush.msra.mxu0 0.0
      %5239 = vmatpush.msra.mxu0 0.0
      %5240 = vmatpush.msra.mxu0 0.0
      %5241 = vmatpush.msra.mxu0 0.0
      %5242 = vmatpush.msra.mxu0 0.0
      %5243 = vmatpush.msra.mxu0 0.0
      %5244 = vmatpush.msra.mxu0 0.0
      %5245 = vmatpush.msra.mxu0 0.0
      %5246 = vmatpush.msra.mxu0 0.0
      %5247 = vmatpush.msra.mxu0 %v5232
      %5248 = vmatpush.msra.mxu0 %v5229
      %5249 = vmatpush.msra.mxu0 %v5228
      %5250 = vmatmul.f32.gmra.mxu0 %v1806
      %v5251 = vpop.f32.mrf.mxu0
      %v5252 = vadd.f32 0.0, %v5251
      %5253 = vmatmul.f32.gmra.mxu0 %v1809
      %v5254 = vpop.f32.mrf.mxu0
      %v5255 = vadd.f32 0.0, %v5254
      %5256 = vmatmul.f32.gmra.mxu0 %v1812
      %v5257 = vpop.f32.mrf.mxu0
      %v5258 = vadd.f32 0.0, %v5257
      %5259 = vmatmul.f32.gmra.mxu0 %v1815
      %v5260 = vpop.f32.mrf.mxu0
      %v5261 = vadd.f32 0.0, %v5260
      %5262 = vmatmul.f32.gmra.mxu0 %v1818
      %v5263 = vpop.f32.mrf.mxu0
      %v5264 = vadd.f32 0.0, %v5263
      %5265 = vmatmul.f32.gmra.mxu0 %v1821
      %v5266 = vpop.f32.mrf.mxu0
      %v5267 = vadd.f32 0.0, %v5266
      %5268 = vmatmul.f32.gmra.mxu0 %v1824
      %v5269 = vpop.f32.mrf.mxu0
      %v5270 = vadd.f32 0.0, %v5269
      %5271 = vmatmul.f32.gmra.mxu0 %v1827
      %v5272 = vpop.f32.mrf.mxu0
      %v5273 = vadd.f32 0.0, %v5272
      %5274 = vdwg.mxu0
      %v5275 = vld [vmem:[%s510 + $0x8] sm:$0xff]
      %v5276 = vld [vmem:[%s510 + $0x28] sm:$0xff]
      %v5277 = vld [vmem:[%s510 + $0x48] sm:$0xff]
      %v5278 = vld [vmem:[%s510 + $0x68] sm:$0xff]
      %v5279 = vld [vmem:[%s510 + $0x88] sm:$0xff]
      %v5280 = vld [vmem:[%s510 + $0xa8] sm:$0xff]
      %v5281 = vld [vmem:[%s510 + $0xc8] sm:$0xff]
      %v5282 = vld [vmem:[%s510 + $0xe8] sm:$0xff]
      %v5283 = vmul.f32 %v5252, %v5275
      %v5284 = vmul.f32 %v5255, %v5276
      %v5285 = vmul.f32 %v5258, %v5277
      %v5286 = vmul.f32 %v5261, %v5278
      %v5287 = vmul.f32 %v5264, %v5279
      %v5288 = vmul.f32 %v5267, %v5280
      %v5289 = vmul.f32 %v5270, %v5281
      %v5290 = vmul.f32 %v5273, %v5282
      %v5291 = vadd.f32 %v4727, %v5283
      %v5292 = vadd.f32 %v4728, %v5284
      %v5293 = vadd.f32 %v4729, %v5285
      %v5294 = vadd.f32 %v4730, %v5286
      %v5295 = vadd.f32 %v4731, %v5287
      %v5296 = vadd.f32 %v4732, %v5288
      %v5297 = vadd.f32 %v4733, %v5289
      %v5298 = vadd.f32 %v4734, %v5290
      %s5299 = scalar_lea.vmem [#allocation3], 96
      %v5300 = vld [vmem:[%s5299] sm:$0xff]
      %v5301 = vld [vmem:[%s5299 + $0x8] sm:$0xff]
      %v5302 = vld [vmem:[%s5299 + $0x10] sm:$0xff]
      %v5303 = vld [vmem:[%s5299 + $0x30] sm:$0xff]
      %v5304 = vld [vmem:[%s5299 + $0x38] sm:$0xff]
      %v5305 = vld [vmem:[%s5299 + $0x40] sm:$0xff]
      %v5306 = vld [vmem:[%s5299 + $0x60] sm:$0xff]
      %v5307 = vld [vmem:[%s5299 + $0x68] sm:$0xff]
      %v5308 = vld [vmem:[%s5299 + $0x70] sm:$0xff]
      %v5309 = vld [vmem:[%s5299 + $0x90] sm:$0xff]
      %v5310 = vld [vmem:[%s5299 + $0x98] sm:$0xff]
      %v5311 = vld [vmem:[%s5299 + $0xa0] sm:$0xff]
      %v5312 = vld [vmem:[%s5299 + $0xc0] sm:$0xff]
      %v5313 = vld [vmem:[%s5299 + $0xc8] sm:$0xff]
      %v5314 = vld [vmem:[%s5299 + $0xd0] sm:$0xff]
      %v5315 = vld [vmem:[%s5299 + $0xf0] sm:$0xff]
      %v5316 = vld [vmem:[%s5299 + $0xf8] sm:$0xff]
      %v5317 = vld [vmem:[%s5299 + $0x100] sm:$0xff]
      %v5318 = vld [vmem:[%s5299 + $0x120] sm:$0xff]
      %v5319 = vld [vmem:[%s5299 + $0x128] sm:$0xff]
      %v5320 = vld [vmem:[%s5299 + $0x130] sm:$0xff]
      %v5321 = vld [vmem:[%s5299 + $0x150] sm:$0xff]
      %v5322 = vld [vmem:[%s5299 + $0x158] sm:$0xff]
      %v5323 = vld [vmem:[%s5299 + $0x160] sm:$0xff]
      %v5324 = vpack.c.bf16 %v5303, %v5300
      %v5325 = vpack.c.bf16 %v5304, %v5301
      %v5326 = vpack.c.bf16 %v5305, %v5302
      %v5327 = vpack.c.bf16 %v5309, %v5306
      %v5328 = vpack.c.bf16 %v5310, %v5307
      %v5329 = vpack.c.bf16 %v5311, %v5308
      %v5330 = vpack.c.bf16 %v5315, %v5312
      %v5331 = vpack.c.bf16 %v5316, %v5313
      %v5332 = vpack.c.bf16 %v5317, %v5314
      %v5333 = vpack.c.bf16 %v5321, %v5318
      %v5334 = vpack.c.bf16 %v5322, %v5319
      %v5335 = vpack.c.bf16 %v5323, %v5320
      %s5336 = scalar_lea.vmem %s6, 1152
      %v5337 = vld [vmem:[%s5336] sm:$0xf]
      %v5338 = vld [vmem:[%s5336 + $0x4] sm:$0xf]
      %v5339 = vld [vmem:[%s5336 + $0x8] sm:$0xf]
      %v5340 = vld [vmem:[%s5336 + $0xc] sm:$0xf]
      %v5341 = vld [vmem:[%s5336 + $0x10] sm:$0xf]
      %v5342 = vld [vmem:[%s5336 + $0x14] sm:$0xf]
      %v5343 = vld [vmem:[%s5336 + $0x18] sm:$0xf]
      %v5344 = vld [vmem:[%s5336 + $0x1c] sm:$0xf]
      %v5345 = vld [vmem:[%s5336 + $0x20] sm:$0xf]
      %v5346 = vld [vmem:[%s5336 + $0x24] sm:$0xf]
      %v5347 = vld [vmem:[%s5336 + $0x28] sm:$0xf]
      %v5348 = vld [vmem:[%s5336 + $0x2c] sm:$0xf]
      %v5349 = vld [vmem:[%s5336 + $0x30] sm:$0xf]
      %v5350 = vld [vmem:[%s5336 + $0x34] sm:$0xf]
      %v5351 = vld [vmem:[%s5336 + $0x38] sm:$0xf]
      %v5352 = vld [vmem:[%s5336 + $0x3c] sm:$0xf]
      %v5353 = vld [vmem:[%s5336 + $0x40] sm:$0xf]
      %v5354 = vld [vmem:[%s5336 + $0x44] sm:$0xf]
      %v5355 = vld [vmem:[%s5336 + $0x48] sm:$0xf]
      %v5356 = vld [vmem:[%s5336 + $0x4c] sm:$0xf]
      %v5357 = vld [vmem:[%s5336 + $0x50] sm:$0xf]
      %v5358 = vld [vmem:[%s5336 + $0x54] sm:$0xf]
      %v5359 = vld [vmem:[%s5336 + $0x58] sm:$0xf]
      %v5360 = vld [vmem:[%s5336 + $0x5c] sm:$0xf]
      %v5361 = vld [vmem:[%s5336 + $0x60] sm:$0xf]
      %v5362 = vld [vmem:[%s5336 + $0x64] sm:$0xf]
      %v5363 = vld [vmem:[%s5336 + $0x68] sm:$0xf]
      %v5364 = vld [vmem:[%s5336 + $0x6c] sm:$0xf]
      %v5365 = vld [vmem:[%s5336 + $0x70] sm:$0xf]
      %v5366 = vld [vmem:[%s5336 + $0x74] sm:$0xf]
      %v5367 = vld [vmem:[%s5336 + $0x78] sm:$0xf]
      %v5368 = vld [vmem:[%s5336 + $0x7c] sm:$0xf]
      %v5369 = vld [vmem:[%s5336 + $0x80] sm:$0xf]
      %v5370 = vld [vmem:[%s5336 + $0x84] sm:$0xf]
      %v5371 = vld [vmem:[%s5336 + $0x88] sm:$0xf]
      %v5372 = vld [vmem:[%s5336 + $0x8c] sm:$0xf]
      %v5373 = vld [vmem:[%s5336 + $0x90] sm:$0xf]
      %v5374 = vld [vmem:[%s5336 + $0x94] sm:$0xf]
      %v5375 = vld [vmem:[%s5336 + $0x98] sm:$0xf]
      %v5376 = vld [vmem:[%s5336 + $0x9c] sm:$0xf]
      %v5377 = vld [vmem:[%s5336 + $0xa0] sm:$0xf]
      %v5378 = vld [vmem:[%s5336 + $0xa4] sm:$0xf]
      %v5379 = vld [vmem:[%s5336 + $0xa8] sm:$0xf]
      %v5380 = vld [vmem:[%s5336 + $0xac] sm:$0xf]
      %v5381 = vld [vmem:[%s5336 + $0xb0] sm:$0xf]
      %v5382 = vld [vmem:[%s5336 + $0xb4] sm:$0xf]
      %v5383 = vld [vmem:[%s5336 + $0xb8] sm:$0xf]
      %v5384 = vld [vmem:[%s5336 + $0xbc] sm:$0xf]
      %v5433 = vunpack.c.l.b16 %v5337
      %v5434 = vunpack.c.l.b16 %v5338
      %v5435 = vunpack.c.l.b16 %v5339
      %v5436 = vunpack.c.l.b16 %v5340
      %v5437 = vunpack.c.l.b16 %v5341
      %v5438 = vunpack.c.l.b16 %v5342
      %v5439 = vunpack.c.l.b16 %v5343
      %v5440 = vunpack.c.l.b16 %v5344
      %v5441 = vunpack.c.l.b16 %v5345
      %v5442 = vunpack.c.l.b16 %v5346
      %v5443 = vunpack.c.l.b16 %v5347
      %v5444 = vunpack.c.l.b16 %v5348
      %v5445 = vunpack.c.l.b16 %v5349
      %v5446 = vunpack.c.l.b16 %v5350
      %v5447 = vunpack.c.l.b16 %v5351
      %v5448 = vunpack.c.l.b16 %v5352
      %v5449 = vunpack.c.l.b16 %v5353
      %v5450 = vunpack.c.l.b16 %v5354
      %v5451 = vunpack.c.l.b16 %v5355
      %v5452 = vunpack.c.l.b16 %v5356
      %v5453 = vunpack.c.l.b16 %v5357
      %v5454 = vunpack.c.l.b16 %v5358
      %v5455 = vunpack.c.l.b16 %v5359
      %v5456 = vunpack.c.l.b16 %v5360
      %v5457 = vunpack.c.l.b16 %v5361
      %v5458 = vunpack.c.l.b16 %v5362
      %v5459 = vunpack.c.l.b16 %v5363
      %v5460 = vunpack.c.l.b16 %v5364
      %v5461 = vunpack.c.l.b16 %v5365
      %v5462 = vunpack.c.l.b16 %v5366
      %v5463 = vunpack.c.l.b16 %v5367
      %v5464 = vunpack.c.l.b16 %v5368
      %v5465 = vunpack.c.l.b16 %v5369
      %v5466 = vunpack.c.l.b16 %v5370
      %v5467 = vunpack.c.l.b16 %v5371
      %v5468 = vunpack.c.l.b16 %v5372
      %v5469 = vunpack.c.l.b16 %v5373
      %v5470 = vunpack.c.l.b16 %v5374
      %v5471 = vunpack.c.l.b16 %v5375
      %v5472 = vunpack.c.l.b16 %v5376
      %v5473 = vunpack.c.l.b16 %v5377
      %v5474 = vunpack.c.l.b16 %v5378
      %v5475 = vunpack.c.l.b16 %v5379
      %v5476 = vunpack.c.l.b16 %v5380
      %v5477 = vunpack.c.l.b16 %v5381
      %v5478 = vunpack.c.l.b16 %v5382
      %v5479 = vunpack.c.l.b16 %v5383
      %v5480 = vunpack.c.l.b16 %v5384
      %v5481 = vpack.c.b16 %v5434, %v5433
      %v5482 = vpack.c.b16 %v5436, %v5435
      %v5483 = vpack.c.b16 %v5438, %v5437
      %v5484 = vpack.c.b16 %v5440, %v5439
      %v5485 = vpack.c.b16 %v5442, %v5441
      %v5486 = vpack.c.b16 %v5444, %v5443
      %v5487 = vpack.c.b16 %v5446, %v5445
      %v5488 = vpack.c.b16 %v5448, %v5447
      %v5489 = vpack.c.b16 %v5450, %v5449
      %v5490 = vpack.c.b16 %v5452, %v5451
      %v5491 = vpack.c.b16 %v5454, %v5453
      %v5492 = vpack.c.b16 %v5456, %v5455
      %v5493 = vpack.c.b16 %v5458, %v5457
      %v5494 = vpack.c.b16 %v5460, %v5459
      %v5495 = vpack.c.b16 %v5462, %v5461
      %v5496 = vpack.c.b16 %v5464, %v5463
      %v5497 = vpack.c.b16 %v5466, %v5465
      %v5498 = vpack.c.b16 %v5468, %v5467
      %v5499 = vpack.c.b16 %v5470, %v5469
      %v5500 = vpack.c.b16 %v5472, %v5471
      %v5501 = vpack.c.b16 %v5474, %v5473
      %v5502 = vpack.c.b16 %v5476, %v5475
      %v5503 = vpack.c.b16 %v5478, %v5477
      %v5504 = vpack.c.b16 %v5480, %v5479
      %5529 = vmatpush.bf16.msra.mxu0 %v5488
      %5530 = vmatpush.bf16.msra.mxu0 %v5487
      %5531 = vmatpush.bf16.msra.mxu0 %v5486
      %5532 = vmatpush.bf16.msra.mxu0 %v5485
      %5533 = vmatpush.bf16.msra.mxu0 %v5484
      %5534 = vmatpush.bf16.msra.mxu0 %v5483
      %5535 = vmatpush.bf16.msra.mxu0 %v5482
      %5536 = vmatpush.bf16.msra.mxu0 %v5481
      %5537 = vmatmul.bf16.gmra.mxu0 %v5324
      %v5538 = vpop.f32.mrf.mxu0
      %v5539 = vadd.f32 0.0, %v5538
      %v5540 = vpop.f32.mrf.mxu0
      %v5541 = vadd.f32 0.0, %v5540
      %5542 = vmatmul.bf16.gmra.mxu0 %v5327
      %v5543 = vpop.f32.mrf.mxu0
      %v5544 = vadd.f32 0.0, %v5543
      %v5545 = vpop.f32.mrf.mxu0
      %v5546 = vadd.f32 0.0, %v5545
      %5547 = vmatmul.bf16.gmra.mxu0 %v5330
      %v5548 = vpop.f32.mrf.mxu0
      %v5549 = vadd.f32 0.0, %v5548
      %v5550 = vpop.f32.mrf.mxu0
      %v5551 = vadd.f32 0.0, %v5550
      %5552 = vmatmul.bf16.gmra.mxu0 %v5333
      %v5553 = vpop.f32.mrf.mxu0
      %v5554 = vadd.f32 0.0, %v5553
      %v5555 = vpop.f32.mrf.mxu0
      %v5556 = vadd.f32 0.0, %v5555
      %5557 = vdwg.mxu0
      %5558 = vmatpush.bf16.msra.mxu0 %v5496
      %5559 = vmatpush.bf16.msra.mxu0 %v5495
      %5560 = vmatpush.bf16.msra.mxu0 %v5494
      %5561 = vmatpush.bf16.msra.mxu0 %v5493
      %5562 = vmatpush.bf16.msra.mxu0 %v5492
      %5563 = vmatpush.bf16.msra.mxu0 %v5491
      %5564 = vmatpush.bf16.msra.mxu0 %v5490
      %5565 = vmatpush.bf16.msra.mxu0 %v5489
      %5566 = vmatmul.bf16.gmra.mxu0 %v5325
      %v5567 = vpop.f32.mrf.mxu0
      %v5568 = vadd.f32 %v5539, %v5567
      %v5569 = vpop.f32.mrf.mxu0
      %v5570 = vadd.f32 %v5541, %v5569
      %5571 = vmatmul.bf16.gmra.mxu0 %v5328
      %v5572 = vpop.f32.mrf.mxu0
      %v5573 = vadd.f32 %v5544, %v5572
      %v5574 = vpop.f32.mrf.mxu0
      %v5575 = vadd.f32 %v5546, %v5574
      %5576 = vmatmul.bf16.gmra.mxu0 %v5331
      %v5577 = vpop.f32.mrf.mxu0
      %v5578 = vadd.f32 %v5549, %v5577
      %v5579 = vpop.f32.mrf.mxu0
      %v5580 = vadd.f32 %v5551, %v5579
      %5581 = vmatmul.bf16.gmra.mxu0 %v5334
      %v5582 = vpop.f32.mrf.mxu0
      %v5583 = vadd.f32 %v5554, %v5582
      %v5584 = vpop.f32.mrf.mxu0
      %v5585 = vadd.f32 %v5556, %v5584
      %5586 = vdwg.mxu0
      %5587 = vmatpush.bf16.msra.mxu0 %v5504
      %5588 = vmatpush.bf16.msra.mxu0 %v5503
      %5589 = vmatpush.bf16.msra.mxu0 %v5502
      %5590 = vmatpush.bf16.msra.mxu0 %v5501
      %5591 = vmatpush.bf16.msra.mxu0 %v5500
      %5592 = vmatpush.bf16.msra.mxu0 %v5499
      %5593 = vmatpush.bf16.msra.mxu0 %v5498
      %5594 = vmatpush.bf16.msra.mxu0 %v5497
      %5595 = vmatmul.bf16.gmra.mxu0 %v5326
      %v5596 = vpop.f32.mrf.mxu0
      %v5597 = vadd.f32 %v5568, %v5596
      %v5598 = vpop.f32.mrf.mxu0
      %v5599 = vadd.f32 %v5570, %v5598
      %5600 = vmatmul.bf16.gmra.mxu0 %v5329
      %v5601 = vpop.f32.mrf.mxu0
      %v5602 = vadd.f32 %v5573, %v5601
      %v5603 = vpop.f32.mrf.mxu0
      %v5604 = vadd.f32 %v5575, %v5603
      %5605 = vmatmul.bf16.gmra.mxu0 %v5332
      %v5606 = vpop.f32.mrf.mxu0
      %v5607 = vadd.f32 %v5578, %v5606
      %v5608 = vpop.f32.mrf.mxu0
      %v5609 = vadd.f32 %v5580, %v5608
      %5610 = vmatmul.bf16.gmra.mxu0 %v5335
      %v5611 = vpop.f32.mrf.mxu0
      %v5612 = vadd.f32 %v5583, %v5611
      %v5613 = vpop.f32.mrf.mxu0
      %v5614 = vadd.f32 %v5585, %v5613
      %5615 = vdwg.mxu0
      %v5616 = vadd.f32 %v5219, %v5597
      %v5617 = vadd.f32 %v5220, %v5599
      %v5618 = vadd.f32 %v5221, %v5602
      %v5619 = vadd.f32 %v5222, %v5604
      %v5620 = vadd.f32 %v5223, %v5607
      %v5621 = vadd.f32 %v5224, %v5609
      %v5622 = vadd.f32 %v5225, %v5612
      %v5623 = vadd.f32 %v5226, %v5614
      %s5624 = scalar_lea.vmem %s3, 168
      %v5625 = vld [vmem:[%s5624] sm:$0xff]
      %v5626 = vld [vmem:[%s5624 + $0x8] sm:$0xff]
      %v5627 = vld [vmem:[%s5624 + $0x10] sm:$0x3]
      %v5629 = vsel %vm1829, %v5627, 0
      %5631 = vmatpush.msra.mxu0 0.0
      %5632 = vmatpush.msra.mxu0 0.0
      %5633 = vmatpush.msra.mxu0 0.0
      %5634 = vmatpush.msra.mxu0 0.0
      %5635 = vmatpush.msra.mxu0 0.0
      %5636 = vmatpush.msra.mxu0 0.0
      %5637 = vmatpush.msra.mxu0 0.0
      %5638 = vmatpush.msra.mxu0 0.0
      %5639 = vmatpush.msra.mxu0 0.0
      %5640 = vmatpush.msra.mxu0 0.0
      %5641 = vmatpush.msra.mxu0 0.0
      %5642 = vmatpush.msra.mxu0 0.0
      %5643 = vmatpush.msra.mxu0 0.0
      %5644 = vmatpush.msra.mxu0 %v5629
      %5645 = vmatpush.msra.mxu0 %v5626
      %5646 = vmatpush.msra.mxu0 %v5625
      %5647 = vmatmul.f32.gmra.mxu0 %v1806
      %v5648 = vpop.f32.mrf.mxu0
      %v5649 = vadd.f32 0.0, %v5648
      %5650 = vmatmul.f32.gmra.mxu0 %v1809
      %v5651 = vpop.f32.mrf.mxu0
      %v5652 = vadd.f32 0.0, %v5651
      %5653 = vmatmul.f32.gmra.mxu0 %v1812
      %v5654 = vpop.f32.mrf.mxu0
      %v5655 = vadd.f32 0.0, %v5654
      %5656 = vmatmul.f32.gmra.mxu0 %v1815
      %v5657 = vpop.f32.mrf.mxu0
      %v5658 = vadd.f32 0.0, %v5657
      %5659 = vmatmul.f32.gmra.mxu0 %v1818
      %v5660 = vpop.f32.mrf.mxu0
      %v5661 = vadd.f32 0.0, %v5660
      %5662 = vmatmul.f32.gmra.mxu0 %v1821
      %v5663 = vpop.f32.mrf.mxu0
      %v5664 = vadd.f32 0.0, %v5663
      %5665 = vmatmul.f32.gmra.mxu0 %v1824
      %v5666 = vpop.f32.mrf.mxu0
      %v5667 = vadd.f32 0.0, %v5666
      %5668 = vmatmul.f32.gmra.mxu0 %v1827
      %v5669 = vpop.f32.mrf.mxu0
      %v5670 = vadd.f32 0.0, %v5669
      %5671 = vdwg.mxu0
      %v5672 = vld [vmem:[%s510 + $0x8] sm:$0xfe]
      %v5673 = vld [vmem:[%s510 + $0x18] sm:$0x1]
      %v5674 = vld [vmem:[%s510 + $0x28] sm:$0xfe]
      %v5675 = vld [vmem:[%s510 + $0x38] sm:$0x1]
      %v5676 = vld [vmem:[%s510 + $0x48] sm:$0xfe]
      %v5677 = vld [vmem:[%s510 + $0x58] sm:$0x1]
      %v5678 = vld [vmem:[%s510 + $0x68] sm:$0xfe]
      %v5679 = vld [vmem:[%s510 + $0x78] sm:$0x1]
      %v5680 = vld [vmem:[%s510 + $0x88] sm:$0xfe]
      %v5681 = vld [vmem:[%s510 + $0x98] sm:$0x1]
      %v5682 = vld [vmem:[%s510 + $0xa8] sm:$0xfe]
      %v5683 = vld [vmem:[%s510 + $0xb8] sm:$0x1]
      %v5684 = vld [vmem:[%s510 + $0xc8] sm:$0xfe]
      %v5685 = vld [vmem:[%s510 + $0xd8] sm:$0x1]
      %v5686 = vld [vmem:[%s510 + $0xe8] sm:$0xfe]
      %v5687 = vld [vmem:[%s510 + $0xf8] sm:$0x1]
      %v5704 = vrot.slane %v5672, 1
      %v5705 = vrot.slane %v5673, 1
      %v5706 = vsel %vm758, %v5704, %v5705
      %v5707 = vrot.slane %v5674, 1
      %v5708 = vrot.slane %v5675, 1
      %v5709 = vsel %vm758, %v5707, %v5708
      %v5710 = vrot.slane %v5676, 1
      %v5711 = vrot.slane %v5677, 1
      %v5712 = vsel %vm758, %v5710, %v5711
      %v5713 = vrot.slane %v5678, 1
      %v5714 = vrot.slane %v5679, 1
      %v5715 = vsel %vm758, %v5713, %v5714
      %v5716 = vrot.slane %v5680, 1
      %v5717 = vrot.slane %v5681, 1
      %v5718 = vsel %vm758, %v5716, %v5717
      %v5719 = vrot.slane %v5682, 1
      %v5720 = vrot.slane %v5683, 1
      %v5721 = vsel %vm758, %v5719, %v5720
      %v5722 = vrot.slane %v5684, 1
      %v5723 = vrot.slane %v5685, 1
      %v5724 = vsel %vm758, %v5722, %v5723
      %v5725 = vrot.slane %v5686, 1
      %v5726 = vrot.slane %v5687, 1
      %v5727 = vsel %vm758, %v5725, %v5726
      %v5736 = vmul.f32 %v5649, %v5706
      %v5737 = vmul.f32 %v5652, %v5709
      %v5738 = vmul.f32 %v5655, %v5712
      %v5739 = vmul.f32 %v5658, %v5715
      %v5740 = vmul.f32 %v5661, %v5718
      %v5741 = vmul.f32 %v5664, %v5721
      %v5742 = vmul.f32 %v5667, %v5724
      %v5743 = vmul.f32 %v5670, %v5727
      %v5744 = vadd.f32 %v5291, %v5736
      %v5745 = vadd.f32 %v5292, %v5737
      %v5746 = vadd.f32 %v5293, %v5738
      %v5747 = vadd.f32 %v5294, %v5739
      %v5748 = vadd.f32 %v5295, %v5740
      %v5749 = vadd.f32 %v5296, %v5741
      %v5750 = vadd.f32 %v5297, %v5742
      %v5751 = vadd.f32 %v5298, %v5743
      %v5752 = vld [vmem:[%s5299] sm:$0xfe]
      %v5753 = vld [vmem:[%s5299 + $0x8] sm:$0xfe]
      %v5754 = vld [vmem:[%s5299 + $0x10] sm:$0xfe]
      %v5755 = vld [vmem:[%s5299 + $0x18] sm:$0x1]
      %v5756 = vld [vmem:[%s5299 + $0x20] sm:$0x1]
      %v5757 = vld [vmem:[%s5299 + $0x28] sm:$0x1]
      %v5758 = vld [vmem:[%s5299 + $0x30] sm:$0xfe]
      %v5759 = vld [vmem:[%s5299 + $0x38] sm:$0xfe]
      %v5760 = vld [vmem:[%s5299 + $0x40] sm:$0xfe]
      %v5761 = vld [vmem:[%s5299 + $0x48] sm:$0x1]
      %v5762 = vld [vmem:[%s5299 + $0x50] sm:$0x1]
      %v5763 = vld [vmem:[%s5299 + $0x58] sm:$0x1]
      %v5764 = vld [vmem:[%s5299 + $0x60] sm:$0xfe]
      %v5765 = vld [vmem:[%s5299 + $0x68] sm:$0xfe]
      %v5766 = vld [vmem:[%s5299 + $0x70] sm:$0xfe]
      %v5767 = vld [vmem:[%s5299 + $0x78] sm:$0x1]
      %v5768 = vld [vmem:[%s5299 + $0x80] sm:$0x1]
      %v5769 = vld [vmem:[%s5299 + $0x88] sm:$0x1]
      %v5770 = vld [vmem:[%s5299 + $0x90] sm:$0xfe]
      %v5771 = vld [vmem:[%s5299 + $0x98] sm:$0xfe]
      %v5772 = vld [vmem:[%s5299 + $0xa0] sm:$0xfe]
      %v5773 = vld [vmem:[%s5299 + $0xa8] sm:$0x1]
      %v5774 = vld [vmem:[%s5299 + $0xb0] sm:$0x1]
      %v5775 = vld [vmem:[%s5299 + $0xb8] sm:$0x1]
      %v5776 = vld [vmem:[%s5299 + $0xc0] sm:$0xfe]
      %v5777 = vld [vmem:[%s5299 + $0xc8] sm:$0xfe]
      %v5778 = vld [vmem:[%s5299 + $0xd0] sm:$0xfe]
      %v5779 = vld [vmem:[%s5299 + $0xd8] sm:$0x1]
      %v5780 = vld [vmem:[%s5299 + $0xe0] sm:$0x1]
      %v5781 = vld [vmem:[%s5299 + $0xe8] sm:$0x1]
      %v5782 = vld [vmem:[%s5299 + $0xf0] sm:$0xfe]
      %v5783 = vld [vmem:[%s5299 + $0xf8] sm:$0xfe]
      %v5784 = vld [vmem:[%s5299 + $0x100] sm:$0xfe]
      %v5785 = vld [vmem:[%s5299 + $0x108] sm:$0x1]
      %v5786 = vld [vmem:[%s5299 + $0x110] sm:$0x1]
      %v5787 = vld [vmem:[%s5299 + $0x118] sm:$0x1]
      %v5788 = vld [vmem:[%s5299 + $0x120] sm:$0xfe]
      %v5789 = vld [vmem:[%s5299 + $0x128] sm:$0xfe]
      %v5790 = vld [vmem:[%s5299 + $0x130] sm:$0xfe]
      %v5791 = vld [vmem:[%s5299 + $0x138] sm:$0x1]
      %v5792 = vld [vmem:[%s5299 + $0x140] sm:$0x1]
      %v5793 = vld [vmem:[%s5299 + $0x148] sm:$0x1]
      %v5794 = vld [vmem:[%s5299 + $0x150] sm:$0xfe]
      %v5795 = vld [vmem:[%s5299 + $0x158] sm:$0xfe]
      %v5796 = vld [vmem:[%s5299 + $0x160] sm:$0xfe]
      %v5797 = vld [vmem:[%s5299 + $0x168] sm:$0x1]
      %v5798 = vld [vmem:[%s5299 + $0x170] sm:$0x1]
      %v5799 = vld [vmem:[%s5299 + $0x178] sm:$0x1]
      %v5848 = vrot.slane %v5752, 1
      %v5849 = vrot.slane %v5755, 1
      %v5850 = vsel %vm758, %v5848, %v5849
      %v5851 = vrot.slane %v5753, 1
      %v5852 = vrot.slane %v5756, 1
      %v5853 = vsel %vm758, %v5851, %v5852
      %v5854 = vrot.slane %v5754, 1
      %v5855 = vrot.slane %v5757, 1
      %v5856 = vsel %vm758, %v5854, %v5855
      %v5857 = vrot.slane %v5758, 1
      %v5858 = vrot.slane %v5761, 1
      %v5859 = vsel %vm758, %v5857, %v5858
      %v5860 = vrot.slane %v5759, 1
      %v5861 = vrot.slane %v5762, 1
      %v5862 = vsel %vm758, %v5860, %v5861
      %v5863 = vrot.slane %v5760, 1
      %v5864 = vrot.slane %v5763, 1
      %v5865 = vsel %vm758, %v5863, %v5864
      %v5866 = vrot.slane %v5764, 1
      %v5867 = vrot.slane %v5767, 1
      %v5868 = vsel %vm758, %v5866, %v5867
      %v5869 = vrot.slane %v5765, 1
      %v5870 = vrot.slane %v5768, 1
      %v5871 = vsel %vm758, %v5869, %v5870
      %v5872 = vrot.slane %v5766, 1
      %v5873 = vrot.slane %v5769, 1
      %v5874 = vsel %vm758, %v5872, %v5873
      %v5875 = vrot.slane %v5770, 1
      %v5876 = vrot.slane %v5773, 1
      %v5877 = vsel %vm758, %v5875, %v5876
      %v5878 = vrot.slane %v5771, 1
      %v5879 = vrot.slane %v5774, 1
      %v5880 = vsel %vm758, %v5878, %v5879
      %v5881 = vrot.slane %v5772, 1
      %v5882 = vrot.slane %v5775, 1
      %v5883 = vsel %vm758, %v5881, %v5882
      %v5884 = vrot.slane %v5776, 1
      %v5885 = vrot.slane %v5779, 1
      %v5886 = vsel %vm758, %v5884, %v5885
      %v5887 = vrot.slane %v5777, 1
      %v5888 = vrot.slane %v5780, 1
      %v5889 = vsel %vm758, %v5887, %v5888
      %v5890 = vrot.slane %v5778, 1
      %v5891 = vrot.slane %v5781, 1
      %v5892 = vsel %vm758, %v5890, %v5891
      %v5893 = vrot.slane %v5782, 1
      %v5894 = vrot.slane %v5785, 1
      %v5895 = vsel %vm758, %v5893, %v5894
      %v5896 = vrot.slane %v5783, 1
      %v5897 = vrot.slane %v5786, 1
      %v5898 = vsel %vm758, %v5896, %v5897
      %v5899 = vrot.slane %v5784, 1
      %v5900 = vrot.slane %v5787, 1
      %v5901 = vsel %vm758, %v5899, %v5900
      %v5902 = vrot.slane %v5788, 1
      %v5903 = vrot.slane %v5791, 1
      %v5904 = vsel %vm758, %v5902, %v5903
      %v5905 = vrot.slane %v5789, 1
      %v5906 = vrot.slane %v5792, 1
      %v5907 = vsel %vm758, %v5905, %v5906
      %v5908 = vrot.slane %v5790, 1
      %v5909 = vrot.slane %v5793, 1
      %v5910 = vsel %vm758, %v5908, %v5909
      %v5911 = vrot.slane %v5794, 1
      %v5912 = vrot.slane %v5797, 1
      %v5913 = vsel %vm758, %v5911, %v5912
      %v5914 = vrot.slane %v5795, 1
      %v5915 = vrot.slane %v5798, 1
      %v5916 = vsel %vm758, %v5914, %v5915
      %v5917 = vrot.slane %v5796, 1
      %v5918 = vrot.slane %v5799, 1
      %v5919 = vsel %vm758, %v5917, %v5918
      %v5944 = vpack.c.bf16 %v5859, %v5850
      %v5945 = vpack.c.bf16 %v5862, %v5853
      %v5946 = vpack.c.bf16 %v5865, %v5856
      %v5947 = vpack.c.bf16 %v5877, %v5868
      %v5948 = vpack.c.bf16 %v5880, %v5871
      %v5949 = vpack.c.bf16 %v5883, %v5874
      %v5950 = vpack.c.bf16 %v5895, %v5886
      %v5951 = vpack.c.bf16 %v5898, %v5889
      %v5952 = vpack.c.bf16 %v5901, %v5892
      %v5953 = vpack.c.bf16 %v5913, %v5904
      %v5954 = vpack.c.bf16 %v5916, %v5907
      %v5955 = vpack.c.bf16 %v5919, %v5910
      %s5956 = scalar_lea.vmem %s6, 1344
      %v5957 = vld [vmem:[%s5956] sm:$0xf]
      %v5958 = vld [vmem:[%s5956 + $0x4] sm:$0xf]
      %v5959 = vld [vmem:[%s5956 + $0x8] sm:$0xf]
      %v5960 = vld [vmem:[%s5956 + $0xc] sm:$0xf]
      %v5961 = vld [vmem:[%s5956 + $0x10] sm:$0xf]
      %v5962 = vld [vmem:[%s5956 + $0x14] sm:$0xf]
      %v5963 = vld [vmem:[%s5956 + $0x18] sm:$0xf]
      %v5964 = vld [vmem:[%s5956 + $0x1c] sm:$0xf]
      %v5965 = vld [vmem:[%s5956 + $0x20] sm:$0xf]
      %v5966 = vld [vmem:[%s5956 + $0x24] sm:$0xf]
      %v5967 = vld [vmem:[%s5956 + $0x28] sm:$0xf]
      %v5968 = vld [vmem:[%s5956 + $0x2c] sm:$0xf]
      %v5969 = vld [vmem:[%s5956 + $0x30] sm:$0xf]
      %v5970 = vld [vmem:[%s5956 + $0x34] sm:$0xf]
      %v5971 = vld [vmem:[%s5956 + $0x38] sm:$0xf]
      %v5972 = vld [vmem:[%s5956 + $0x3c] sm:$0xf]
      %v5973 = vld [vmem:[%s5956 + $0x40] sm:$0xf]
      %v5974 = vld [vmem:[%s5956 + $0x44] sm:$0xf]
      %v5975 = vld [vmem:[%s5956 + $0x48] sm:$0xf]
      %v5976 = vld [vmem:[%s5956 + $0x4c] sm:$0xf]
      %v5977 = vld [vmem:[%s5956 + $0x50] sm:$0xf]
      %v5978 = vld [vmem:[%s5956 + $0x54] sm:$0xf]
      %v5979 = vld [vmem:[%s5956 + $0x58] sm:$0xf]
      %v5980 = vld [vmem:[%s5956 + $0x5c] sm:$0xf]
      %v5981 = vld [vmem:[%s5956 + $0x60] sm:$0xf]
      %v5982 = vld [vmem:[%s5956 + $0x64] sm:$0xf]
      %v5983 = vld [vmem:[%s5956 + $0x68] sm:$0xf]
      %v5984 = vld [vmem:[%s5956 + $0x6c] sm:$0xf]
      %v5985 = vld [vmem:[%s5956 + $0x70] sm:$0xf]
      %v5986 = vld [vmem:[%s5956 + $0x74] sm:$0xf]
      %v5987 = vld [vmem:[%s5956 + $0x78] sm:$0xf]
      %v5988 = vld [vmem:[%s5956 + $0x7c] sm:$0xf]
      %v5989 = vld [vmem:[%s5956 + $0x80] sm:$0xf]
      %v5990 = vld [vmem:[%s5956 + $0x84] sm:$0xf]
      %v5991 = vld [vmem:[%s5956 + $0x88] sm:$0xf]
      %v5992 = vld [vmem:[%s5956 + $0x8c] sm:$0xf]
      %v5993 = vld [vmem:[%s5956 + $0x90] sm:$0xf]
      %v5994 = vld [vmem:[%s5956 + $0x94] sm:$0xf]
      %v5995 = vld [vmem:[%s5956 + $0x98] sm:$0xf]
      %v5996 = vld [vmem:[%s5956 + $0x9c] sm:$0xf]
      %v5997 = vld [vmem:[%s5956 + $0xa0] sm:$0xf]
      %v5998 = vld [vmem:[%s5956 + $0xa4] sm:$0xf]
      %v5999 = vld [vmem:[%s5956 + $0xa8] sm:$0xf]
      %v6000 = vld [vmem:[%s5956 + $0xac] sm:$0xf]
      %v6001 = vld [vmem:[%s5956 + $0xb0] sm:$0xf]
      %v6002 = vld [vmem:[%s5956 + $0xb4] sm:$0xf]
      %v6003 = vld [vmem:[%s5956 + $0xb8] sm:$0xf]
      %v6004 = vld [vmem:[%s5956 + $0xbc] sm:$0xf]
      %v6053 = vunpack.c.l.b16 %v5957
      %v6054 = vunpack.c.l.b16 %v5958
      %v6055 = vunpack.c.l.b16 %v5959
      %v6056 = vunpack.c.l.b16 %v5960
      %v6057 = vunpack.c.l.b16 %v5961
      %v6058 = vunpack.c.l.b16 %v5962
      %v6059 = vunpack.c.l.b16 %v5963
      %v6060 = vunpack.c.l.b16 %v5964
      %v6061 = vunpack.c.l.b16 %v5965
      %v6062 = vunpack.c.l.b16 %v5966
      %v6063 = vunpack.c.l.b16 %v5967
      %v6064 = vunpack.c.l.b16 %v5968
      %v6065 = vunpack.c.l.b16 %v5969
      %v6066 = vunpack.c.l.b16 %v5970
      %v6067 = vunpack.c.l.b16 %v5971
      %v6068 = vunpack.c.l.b16 %v5972
      %v6069 = vunpack.c.l.b16 %v5973
      %v6070 = vunpack.c.l.b16 %v5974
      %v6071 = vunpack.c.l.b16 %v5975
      %v6072 = vunpack.c.l.b16 %v5976
      %v6073 = vunpack.c.l.b16 %v5977
      %v6074 = vunpack.c.l.b16 %v5978
      %v6075 = vunpack.c.l.b16 %v5979
      %v6076 = vunpack.c.l.b16 %v5980
      %v6077 = vunpack.c.l.b16 %v5981
      %v6078 = vunpack.c.l.b16 %v5982
      %v6079 = vunpack.c.l.b16 %v5983
      %v6080 = vunpack.c.l.b16 %v5984
      %v6081 = vunpack.c.l.b16 %v5985
      %v6082 = vunpack.c.l.b16 %v5986
      %v6083 = vunpack.c.l.b16 %v5987
      %v6084 = vunpack.c.l.b16 %v5988
      %v6085 = vunpack.c.l.b16 %v5989
      %v6086 = vunpack.c.l.b16 %v5990
      %v6087 = vunpack.c.l.b16 %v5991
      %v6088 = vunpack.c.l.b16 %v5992
      %v6089 = vunpack.c.l.b16 %v5993
      %v6090 = vunpack.c.l.b16 %v5994
      %v6091 = vunpack.c.l.b16 %v5995
      %v6092 = vunpack.c.l.b16 %v5996
      %v6093 = vunpack.c.l.b16 %v5997
      %v6094 = vunpack.c.l.b16 %v5998
      %v6095 = vunpack.c.l.b16 %v5999
      %v6096 = vunpack.c.l.b16 %v6000
      %v6097 = vunpack.c.l.b16 %v6001
      %v6098 = vunpack.c.l.b16 %v6002
      %v6099 = vunpack.c.l.b16 %v6003
      %v6100 = vunpack.c.l.b16 %v6004
      %v6101 = vpack.c.b16 %v6054, %v6053
      %v6102 = vpack.c.b16 %v6056, %v6055
      %v6103 = vpack.c.b16 %v6058, %v6057
      %v6104 = vpack.c.b16 %v6060, %v6059
      %v6105 = vpack.c.b16 %v6062, %v6061
      %v6106 = vpack.c.b16 %v6064, %v6063
      %v6107 = vpack.c.b16 %v6066, %v6065
      %v6108 = vpack.c.b16 %v6068, %v6067
      %v6109 = vpack.c.b16 %v6070, %v6069
      %v6110 = vpack.c.b16 %v6072, %v6071
      %v6111 = vpack.c.b16 %v6074, %v6073
      %v6112 = vpack.c.b16 %v6076, %v6075
      %v6113 = vpack.c.b16 %v6078, %v6077
      %v6114 = vpack.c.b16 %v6080, %v6079
      %v6115 = vpack.c.b16 %v6082, %v6081
      %v6116 = vpack.c.b16 %v6084, %v6083
      %v6117 = vpack.c.b16 %v6086, %v6085
      %v6118 = vpack.c.b16 %v6088, %v6087
      %v6119 = vpack.c.b16 %v6090, %v6089
      %v6120 = vpack.c.b16 %v6092, %v6091
      %v6121 = vpack.c.b16 %v6094, %v6093
      %v6122 = vpack.c.b16 %v6096, %v6095
      %v6123 = vpack.c.b16 %v6098, %v6097
      %v6124 = vpack.c.b16 %v6100, %v6099
      %6149 = vmatpush.bf16.msra.mxu0 %v6108
      %6150 = vmatpush.bf16.msra.mxu0 %v6107
      %6151 = vmatpush.bf16.msra.mxu0 %v6106
      %6152 = vmatpush.bf16.msra.mxu0 %v6105
      %6153 = vmatpush.bf16.msra.mxu0 %v6104
      %6154 = vmatpush.bf16.msra.mxu0 %v6103
      %6155 = vmatpush.bf16.msra.mxu0 %v6102
      %6156 = vmatpush.bf16.msra.mxu0 %v6101
      %6157 = vmatmul.bf16.gmra.mxu0 %v5944
      %v6158 = vpop.f32.mrf.mxu0
      %v6159 = vadd.f32 0.0, %v6158
      %v6160 = vpop.f32.mrf.mxu0
      %v6161 = vadd.f32 0.0, %v6160
      %6162 = vmatmul.bf16.gmra.mxu0 %v5947
      %v6163 = vpop.f32.mrf.mxu0
      %v6164 = vadd.f32 0.0, %v6163
      %v6165 = vpop.f32.mrf.mxu0
      %v6166 = vadd.f32 0.0, %v6165
      %6167 = vmatmul.bf16.gmra.mxu0 %v5950
      %v6168 = vpop.f32.mrf.mxu0
      %v6169 = vadd.f32 0.0, %v6168
      %v6170 = vpop.f32.mrf.mxu0
      %v6171 = vadd.f32 0.0, %v6170
      %6172 = vmatmul.bf16.gmra.mxu0 %v5953
      %v6173 = vpop.f32.mrf.mxu0
      %v6174 = vadd.f32 0.0, %v6173
      %v6175 = vpop.f32.mrf.mxu0
      %v6176 = vadd.f32 0.0, %v6175
      %6177 = vdwg.mxu0
      %6178 = vmatpush.bf16.msra.mxu0 %v6116
      %6179 = vmatpush.bf16.msra.mxu0 %v6115
      %6180 = vmatpush.bf16.msra.mxu0 %v6114
      %6181 = vmatpush.bf16.msra.mxu0 %v6113
      %6182 = vmatpush.bf16.msra.mxu0 %v6112
      %6183 = vmatpush.bf16.msra.mxu0 %v6111
      %6184 = vmatpush.bf16.msra.mxu0 %v6110
      %6185 = vmatpush.bf16.msra.mxu0 %v6109
      %6186 = vmatmul.bf16.gmra.mxu0 %v5945
      %v6187 = vpop.f32.mrf.mxu0
      %v6188 = vadd.f32 %v6159, %v6187
      %v6189 = vpop.f32.mrf.mxu0
      %v6190 = vadd.f32 %v6161, %v6189
      %6191 = vmatmul.bf16.gmra.mxu0 %v5948
      %v6192 = vpop.f32.mrf.mxu0
      %v6193 = vadd.f32 %v6164, %v6192
      %v6194 = vpop.f32.mrf.mxu0
      %v6195 = vadd.f32 %v6166, %v6194
      %6196 = vmatmul.bf16.gmra.mxu0 %v5951
      %v6197 = vpop.f32.mrf.mxu0
      %v6198 = vadd.f32 %v6169, %v6197
      %v6199 = vpop.f32.mrf.mxu0
      %v6200 = vadd.f32 %v6171, %v6199
      %6201 = vmatmul.bf16.gmra.mxu0 %v5954
      %v6202 = vpop.f32.mrf.mxu0
      %v6203 = vadd.f32 %v6174, %v6202
      %v6204 = vpop.f32.mrf.mxu0
      %v6205 = vadd.f32 %v6176, %v6204
      %6206 = vdwg.mxu0
      %6207 = vmatpush.bf16.msra.mxu0 %v6124
      %6208 = vmatpush.bf16.msra.mxu0 %v6123
      %6209 = vmatpush.bf16.msra.mxu0 %v6122
      %6210 = vmatpush.bf16.msra.mxu0 %v6121
      %6211 = vmatpush.bf16.msra.mxu0 %v6120
      %6212 = vmatpush.bf16.msra.mxu0 %v6119
      %6213 = vmatpush.bf16.msra.mxu0 %v6118
      %6214 = vmatpush.bf16.msra.mxu0 %v6117
      %6215 = vmatmul.bf16.gmra.mxu0 %v5946
      %v6216 = vpop.f32.mrf.mxu0
      %v6217 = vadd.f32 %v6188, %v6216
      %v6218 = vpop.f32.mrf.mxu0
      %v6219 = vadd.f32 %v6190, %v6218
      %6220 = vmatmul.bf16.gmra.mxu0 %v5949
      %v6221 = vpop.f32.mrf.mxu0
      %v6222 = vadd.f32 %v6193, %v6221
      %v6223 = vpop.f32.mrf.mxu0
      %v6224 = vadd.f32 %v6195, %v6223
      %6225 = vmatmul.bf16.gmra.mxu0 %v5952
      %v6226 = vpop.f32.mrf.mxu0
      %v6227 = vadd.f32 %v6198, %v6226
      %v6228 = vpop.f32.mrf.mxu0
      %v6229 = vadd.f32 %v6200, %v6228
      %6230 = vmatmul.bf16.gmra.mxu0 %v5955
      %v6231 = vpop.f32.mrf.mxu0
      %v6232 = vadd.f32 %v6203, %v6231
      %v6233 = vpop.f32.mrf.mxu0
      %v6234 = vadd.f32 %v6205, %v6233
      %6235 = vdwg.mxu0
      %v6236 = vadd.f32 %v5616, %v6217
      %v6237 = vadd.f32 %v5617, %v6219
      %v6238 = vadd.f32 %v5618, %v6222
      %v6239 = vadd.f32 %v5619, %v6224
      %v6240 = vadd.f32 %v5620, %v6227
      %v6241 = vadd.f32 %v5621, %v6229
      %v6242 = vadd.f32 %v5622, %v6232
      %v6243 = vadd.f32 %v5623, %v6234
      %s6244 = scalar_lea.vmem %s3, 192
      %v6245 = vld [vmem:[%s6244] sm:$0xff]
      %v6246 = vld [vmem:[%s6244 + $0x8] sm:$0xff]
      %v6247 = vld [vmem:[%s6244 + $0x10] sm:$0x3]
      %v6249 = vsel %vm1829, %v6247, 0
      %6251 = vmatpush.msra.mxu0 0.0
      %6252 = vmatpush.msra.mxu0 0.0
      %6253 = vmatpush.msra.mxu0 0.0
      %6254 = vmatpush.msra.mxu0 0.0
      %6255 = vmatpush.msra.mxu0 0.0
      %6256 = vmatpush.msra.mxu0 0.0
      %6257 = vmatpush.msra.mxu0 0.0
      %6258 = vmatpush.msra.mxu0 0.0
      %6259 = vmatpush.msra.mxu0 0.0
      %6260 = vmatpush.msra.mxu0 0.0
      %6261 = vmatpush.msra.mxu0 0.0
      %6262 = vmatpush.msra.mxu0 0.0
      %6263 = vmatpush.msra.mxu0 0.0
      %6264 = vmatpush.msra.mxu0 %v6249
      %6265 = vmatpush.msra.mxu0 %v6246
      %6266 = vmatpush.msra.mxu0 %v6245
      %6267 = vmatmul.f32.gmra.mxu0 %v1806
      %v6268 = vpop.f32.mrf.mxu0
      %v6269 = vadd.f32 0.0, %v6268
      %6270 = vmatmul.f32.gmra.mxu0 %v1809
      %v6271 = vpop.f32.mrf.mxu0
      %v6272 = vadd.f32 0.0, %v6271
      %6273 = vmatmul.f32.gmra.mxu0 %v1812
      %v6274 = vpop.f32.mrf.mxu0
      %v6275 = vadd.f32 0.0, %v6274
      %6276 = vmatmul.f32.gmra.mxu0 %v1815
      %v6277 = vpop.f32.mrf.mxu0
      %v6278 = vadd.f32 0.0, %v6277
      %6279 = vmatmul.f32.gmra.mxu0 %v1818
      %v6280 = vpop.f32.mrf.mxu0
      %v6281 = vadd.f32 0.0, %v6280
      %6282 = vmatmul.f32.gmra.mxu0 %v1821
      %v6283 = vpop.f32.mrf.mxu0
      %v6284 = vadd.f32 0.0, %v6283
      %6285 = vmatmul.f32.gmra.mxu0 %v1824
      %v6286 = vpop.f32.mrf.mxu0
      %v6287 = vadd.f32 0.0, %v6286
      %6288 = vmatmul.f32.gmra.mxu0 %v1827
      %v6289 = vpop.f32.mrf.mxu0
      %v6290 = vadd.f32 0.0, %v6289
      %6291 = vdwg.mxu0
      %v6292 = vld [vmem:[%s510 + $0x8] sm:$0xfc]
      %v6293 = vld [vmem:[%s510 + $0x18] sm:$0x3]
      %v6294 = vld [vmem:[%s510 + $0x28] sm:$0xfc]
      %v6295 = vld [vmem:[%s510 + $0x38] sm:$0x3]
      %v6296 = vld [vmem:[%s510 + $0x48] sm:$0xfc]
      %v6297 = vld [vmem:[%s510 + $0x58] sm:$0x3]
      %v6298 = vld [vmem:[%s510 + $0x68] sm:$0xfc]
      %v6299 = vld [vmem:[%s510 + $0x78] sm:$0x3]
      %v6300 = vld [vmem:[%s510 + $0x88] sm:$0xfc]
      %v6301 = vld [vmem:[%s510 + $0x98] sm:$0x3]
      %v6302 = vld [vmem:[%s510 + $0xa8] sm:$0xfc]
      %v6303 = vld [vmem:[%s510 + $0xb8] sm:$0x3]
      %v6304 = vld [vmem:[%s510 + $0xc8] sm:$0xfc]
      %v6305 = vld [vmem:[%s510 + $0xd8] sm:$0x3]
      %v6306 = vld [vmem:[%s510 + $0xe8] sm:$0xfc]
      %v6307 = vld [vmem:[%s510 + $0xf8] sm:$0x3]
      %v6324 = vrot.slane %v6292, 2
      %v6325 = vrot.slane %v6293, 2
      %v6326 = vsel %vm930, %v6324, %v6325
      %v6327 = vrot.slane %v6294, 2
      %v6328 = vrot.slane %v6295, 2
      %v6329 = vsel %vm930, %v6327, %v6328
      %v6330 = vrot.slane %v6296, 2
      %v6331 = vrot.slane %v6297, 2
      %v6332 = vsel %vm930, %v6330, %v6331
      %v6333 = vrot.slane %v6298, 2
      %v6334 = vrot.slane %v6299, 2
      %v6335 = vsel %vm930, %v6333, %v6334
      %v6336 = vrot.slane %v6300, 2
      %v6337 = vrot.slane %v6301, 2
      %v6338 = vsel %vm930, %v6336, %v6337
      %v6339 = vrot.slane %v6302, 2
      %v6340 = vrot.slane %v6303, 2
      %v6341 = vsel %vm930, %v6339, %v6340
      %v6342 = vrot.slane %v6304, 2
      %v6343 = vrot.slane %v6305, 2
      %v6344 = vsel %vm930, %v6342, %v6343
      %v6345 = vrot.slane %v6306, 2
      %v6346 = vrot.slane %v6307, 2
      %v6347 = vsel %vm930, %v6345, %v6346
      %v6356 = vmul.f32 %v6269, %v6326
      %v6357 = vmul.f32 %v6272, %v6329
      %v6358 = vmul.f32 %v6275, %v6332
      %v6359 = vmul.f32 %v6278, %v6335
      %v6360 = vmul.f32 %v6281, %v6338
      %v6361 = vmul.f32 %v6284, %v6341
      %v6362 = vmul.f32 %v6287, %v6344
      %v6363 = vmul.f32 %v6290, %v6347
      %v6364 = vadd.f32 %v5744, %v6356
      %v6365 = vadd.f32 %v5745, %v6357
      %v6366 = vadd.f32 %v5746, %v6358
      %v6367 = vadd.f32 %v5747, %v6359
      %v6368 = vadd.f32 %v5748, %v6360
      %v6369 = vadd.f32 %v5749, %v6361
      %v6370 = vadd.f32 %v5750, %v6362
      %v6371 = vadd.f32 %v5751, %v6363
      %v6372 = vld [vmem:[%s5299] sm:$0xfc]
      %v6373 = vld [vmem:[%s5299 + $0x8] sm:$0xfc]
      %v6374 = vld [vmem:[%s5299 + $0x10] sm:$0xfc]
      %v6375 = vld [vmem:[%s5299 + $0x18] sm:$0x3]
      %v6376 = vld [vmem:[%s5299 + $0x20] sm:$0x3]
      %v6377 = vld [vmem:[%s5299 + $0x28] sm:$0x3]
      %v6378 = vld [vmem:[%s5299 + $0x30] sm:$0xfc]
      %v6379 = vld [vmem:[%s5299 + $0x38] sm:$0xfc]
      %v6380 = vld [vmem:[%s5299 + $0x40] sm:$0xfc]
      %v6381 = vld [vmem:[%s5299 + $0x48] sm:$0x3]
      %v6382 = vld [vmem:[%s5299 + $0x50] sm:$0x3]
      %v6383 = vld [vmem:[%s5299 + $0x58] sm:$0x3]
      %v6384 = vld [vmem:[%s5299 + $0x60] sm:$0xfc]
      %v6385 = vld [vmem:[%s5299 + $0x68] sm:$0xfc]
      %v6386 = vld [vmem:[%s5299 + $0x70] sm:$0xfc]
      %v6387 = vld [vmem:[%s5299 + $0x78] sm:$0x3]
      %v6388 = vld [vmem:[%s5299 + $0x80] sm:$0x3]
      %v6389 = vld [vmem:[%s5299 + $0x88] sm:$0x3]
      %v6390 = vld [vmem:[%s5299 + $0x90] sm:$0xfc]
      %v6391 = vld [vmem:[%s5299 + $0x98] sm:$0xfc]
      %v6392 = vld [vmem:[%s5299 + $0xa0] sm:$0xfc]
      %v6393 = vld [vmem:[%s5299 + $0xa8] sm:$0x3]
      %v6394 = vld [vmem:[%s5299 + $0xb0] sm:$0x3]
      %v6395 = vld [vmem:[%s5299 + $0xb8] sm:$0x3]
      %v6396 = vld [vmem:[%s5299 + $0xc0] sm:$0xfc]
      %v6397 = vld [vmem:[%s5299 + $0xc8] sm:$0xfc]
      %v6398 = vld [vmem:[%s5299 + $0xd0] sm:$0xfc]
      %v6399 = vld [vmem:[%s5299 + $0xd8] sm:$0x3]
      %v6400 = vld [vmem:[%s5299 + $0xe0] sm:$0x3]
      %v6401 = vld [vmem:[%s5299 + $0xe8] sm:$0x3]
      %v6402 = vld [vmem:[%s5299 + $0xf0] sm:$0xfc]
      %v6403 = vld [vmem:[%s5299 + $0xf8] sm:$0xfc]
      %v6404 = vld [vmem:[%s5299 + $0x100] sm:$0xfc]
      %v6405 = vld [vmem:[%s5299 + $0x108] sm:$0x3]
      %v6406 = vld [vmem:[%s5299 + $0x110] sm:$0x3]
      %v6407 = vld [vmem:[%s5299 + $0x118] sm:$0x3]
      %v6408 = vld [vmem:[%s5299 + $0x120] sm:$0xfc]
      %v6409 = vld [vmem:[%s5299 + $0x128] sm:$0xfc]
      %v6410 = vld [vmem:[%s5299 + $0x130] sm:$0xfc]
      %v6411 = vld [vmem:[%s5299 + $0x138] sm:$0x3]
      %v6412 = vld [vmem:[%s5299 + $0x140] sm:$0x3]
      %v6413 = vld [vmem:[%s5299 + $0x148] sm:$0x3]
      %v6414 = vld [vmem:[%s5299 + $0x150] sm:$0xfc]
      %v6415 = vld [vmem:[%s5299 + $0x158] sm:$0xfc]
      %v6416 = vld [vmem:[%s5299 + $0x160] sm:$0xfc]
      %v6417 = vld [vmem:[%s5299 + $0x168] sm:$0x3]
      %v6418 = vld [vmem:[%s5299 + $0x170] sm:$0x3]
      %v6419 = vld [vmem:[%s5299 + $0x178] sm:$0x3]
      %v6468 = vrot.slane %v6372, 2
      %v6469 = vrot.slane %v6375, 2
      %v6470 = vsel %vm930, %v6468, %v6469
      %v6471 = vrot.slane %v6373, 2
      %v6472 = vrot.slane %v6376, 2
      %v6473 = vsel %vm930, %v6471, %v6472
      %v6474 = vrot.slane %v6374, 2
      %v6475 = vrot.slane %v6377, 2
      %v6476 = vsel %vm930, %v6474, %v6475
      %v6477 = vrot.slane %v6378, 2
      %v6478 = vrot.slane %v6381, 2
      %v6479 = vsel %vm930, %v6477, %v6478
      %v6480 = vrot.slane %v6379, 2
      %v6481 = vrot.slane %v6382, 2
      %v6482 = vsel %vm930, %v6480, %v6481
      %v6483 = vrot.slane %v6380, 2
      %v6484 = vrot.slane %v6383, 2
      %v6485 = vsel %vm930, %v6483, %v6484
      %v6486 = vrot.slane %v6384, 2
      %v6487 = vrot.slane %v6387, 2
      %v6488 = vsel %vm930, %v6486, %v6487
      %v6489 = vrot.slane %v6385, 2
      %v6490 = vrot.slane %v6388, 2
      %v6491 = vsel %vm930, %v6489, %v6490
      %v6492 = vrot.slane %v6386, 2
      %v6493 = vrot.slane %v6389, 2
      %v6494 = vsel %vm930, %v6492, %v6493
      %v6495 = vrot.slane %v6390, 2
      %v6496 = vrot.slane %v6393, 2
      %v6497 = vsel %vm930, %v6495, %v6496
      %v6498 = vrot.slane %v6391, 2
      %v6499 = vrot.slane %v6394, 2
      %v6500 = vsel %vm930, %v6498, %v6499
      %v6501 = vrot.slane %v6392, 2
      %v6502 = vrot.slane %v6395, 2
      %v6503 = vsel %vm930, %v6501, %v6502
      %v6504 = vrot.slane %v6396, 2
      %v6505 = vrot.slane %v6399, 2
      %v6506 = vsel %vm930, %v6504, %v6505
      %v6507 = vrot.slane %v6397, 2
      %v6508 = vrot.slane %v6400, 2
      %v6509 = vsel %vm930, %v6507, %v6508
      %v6510 = vrot.slane %v6398, 2
      %v6511 = vrot.slane %v6401, 2
      %v6512 = vsel %vm930, %v6510, %v6511
      %v6513 = vrot.slane %v6402, 2
      %v6514 = vrot.slane %v6405, 2
      %v6515 = vsel %vm930, %v6513, %v6514
      %v6516 = vrot.slane %v6403, 2
      %v6517 = vrot.slane %v6406, 2
      %v6518 = vsel %vm930, %v6516, %v6517
      %v6519 = vrot.slane %v6404, 2
      %v6520 = vrot.slane %v6407, 2
      %v6521 = vsel %vm930, %v6519, %v6520
      %v6522 = vrot.slane %v6408, 2
      %v6523 = vrot.slane %v6411, 2
      %v6524 = vsel %vm930, %v6522, %v6523
      %v6525 = vrot.slane %v6409, 2
      %v6526 = vrot.slane %v6412, 2
      %v6527 = vsel %vm930, %v6525, %v6526
      %v6528 = vrot.slane %v6410, 2
      %v6529 = vrot.slane %v6413, 2
      %v6530 = vsel %vm930, %v6528, %v6529
      %v6531 = vrot.slane %v6414, 2
      %v6532 = vrot.slane %v6417, 2
      %v6533 = vsel %vm930, %v6531, %v6532
      %v6534 = vrot.slane %v6415, 2
      %v6535 = vrot.slane %v6418, 2
      %v6536 = vsel %vm930, %v6534, %v6535
      %v6537 = vrot.slane %v6416, 2
      %v6538 = vrot.slane %v6419, 2
      %v6539 = vsel %vm930, %v6537, %v6538
      %v6564 = vpack.c.bf16 %v6479, %v6470
      %v6565 = vpack.c.bf16 %v6482, %v6473
      %v6566 = vpack.c.bf16 %v6485, %v6476
      %v6567 = vpack.c.bf16 %v6497, %v6488
      %v6568 = vpack.c.bf16 %v6500, %v6491
      %v6569 = vpack.c.bf16 %v6503, %v6494
      %v6570 = vpack.c.bf16 %v6515, %v6506
      %v6571 = vpack.c.bf16 %v6518, %v6509
      %v6572 = vpack.c.bf16 %v6521, %v6512
      %v6573 = vpack.c.bf16 %v6533, %v6524
      %v6574 = vpack.c.bf16 %v6536, %v6527
      %v6575 = vpack.c.bf16 %v6539, %v6530
      %s6576 = scalar_lea.vmem %s6, 1536
      %v6577 = vld [vmem:[%s6576] sm:$0xf]
      %v6578 = vld [vmem:[%s6576 + $0x4] sm:$0xf]
      %v6579 = vld [vmem:[%s6576 + $0x8] sm:$0xf]
      %v6580 = vld [vmem:[%s6576 + $0xc] sm:$0xf]
      %v6581 = vld [vmem:[%s6576 + $0x10] sm:$0xf]
      %v6582 = vld [vmem:[%s6576 + $0x14] sm:$0xf]
      %v6583 = vld [vmem:[%s6576 + $0x18] sm:$0xf]
      %v6584 = vld [vmem:[%s6576 + $0x1c] sm:$0xf]
      %v6585 = vld [vmem:[%s6576 + $0x20] sm:$0xf]
      %v6586 = vld [vmem:[%s6576 + $0x24] sm:$0xf]
      %v6587 = vld [vmem:[%s6576 + $0x28] sm:$0xf]
      %v6588 = vld [vmem:[%s6576 + $0x2c] sm:$0xf]
      %v6589 = vld [vmem:[%s6576 + $0x30] sm:$0xf]
      %v6590 = vld [vmem:[%s6576 + $0x34] sm:$0xf]
      %v6591 = vld [vmem:[%s6576 + $0x38] sm:$0xf]
      %v6592 = vld [vmem:[%s6576 + $0x3c] sm:$0xf]
      %v6593 = vld [vmem:[%s6576 + $0x40] sm:$0xf]
      %v6594 = vld [vmem:[%s6576 + $0x44] sm:$0xf]
      %v6595 = vld [vmem:[%s6576 + $0x48] sm:$0xf]
      %v6596 = vld [vmem:[%s6576 + $0x4c] sm:$0xf]
      %v6597 = vld [vmem:[%s6576 + $0x50] sm:$0xf]
      %v6598 = vld [vmem:[%s6576 + $0x54] sm:$0xf]
      %v6599 = vld [vmem:[%s6576 + $0x58] sm:$0xf]
      %v6600 = vld [vmem:[%s6576 + $0x5c] sm:$0xf]
      %v6601 = vld [vmem:[%s6576 + $0x60] sm:$0xf]
      %v6602 = vld [vmem:[%s6576 + $0x64] sm:$0xf]
      %v6603 = vld [vmem:[%s6576 + $0x68] sm:$0xf]
      %v6604 = vld [vmem:[%s6576 + $0x6c] sm:$0xf]
      %v6605 = vld [vmem:[%s6576 + $0x70] sm:$0xf]
      %v6606 = vld [vmem:[%s6576 + $0x74] sm:$0xf]
      %v6607 = vld [vmem:[%s6576 + $0x78] sm:$0xf]
      %v6608 = vld [vmem:[%s6576 + $0x7c] sm:$0xf]
      %v6609 = vld [vmem:[%s6576 + $0x80] sm:$0xf]
      %v6610 = vld [vmem:[%s6576 + $0x84] sm:$0xf]
      %v6611 = vld [vmem:[%s6576 + $0x88] sm:$0xf]
      %v6612 = vld [vmem:[%s6576 + $0x8c] sm:$0xf]
      %v6613 = vld [vmem:[%s6576 + $0x90] sm:$0xf]
      %v6614 = vld [vmem:[%s6576 + $0x94] sm:$0xf]
      %v6615 = vld [vmem:[%s6576 + $0x98] sm:$0xf]
      %v6616 = vld [vmem:[%s6576 + $0x9c] sm:$0xf]
      %v6617 = vld [vmem:[%s6576 + $0xa0] sm:$0xf]
      %v6618 = vld [vmem:[%s6576 + $0xa4] sm:$0xf]
      %v6619 = vld [vmem:[%s6576 + $0xa8] sm:$0xf]
      %v6620 = vld [vmem:[%s6576 + $0xac] sm:$0xf]
      %v6621 = vld [vmem:[%s6576 + $0xb0] sm:$0xf]
      %v6622 = vld [vmem:[%s6576 + $0xb4] sm:$0xf]
      %v6623 = vld [vmem:[%s6576 + $0xb8] sm:$0xf]
      %v6624 = vld [vmem:[%s6576 + $0xbc] sm:$0xf]
      %v6673 = vunpack.c.l.b16 %v6577
      %v6674 = vunpack.c.l.b16 %v6578
      %v6675 = vunpack.c.l.b16 %v6579
      %v6676 = vunpack.c.l.b16 %v6580
      %v6677 = vunpack.c.l.b16 %v6581
      %v6678 = vunpack.c.l.b16 %v6582
      %v6679 = vunpack.c.l.b16 %v6583
      %v6680 = vunpack.c.l.b16 %v6584
      %v6681 = vunpack.c.l.b16 %v6585
      %v6682 = vunpack.c.l.b16 %v6586
      %v6683 = vunpack.c.l.b16 %v6587
      %v6684 = vunpack.c.l.b16 %v6588
      %v6685 = vunpack.c.l.b16 %v6589
      %v6686 = vunpack.c.l.b16 %v6590
      %v6687 = vunpack.c.l.b16 %v6591
      %v6688 = vunpack.c.l.b16 %v6592
      %v6689 = vunpack.c.l.b16 %v6593
      %v6690 = vunpack.c.l.b16 %v6594
      %v6691 = vunpack.c.l.b16 %v6595
      %v6692 = vunpack.c.l.b16 %v6596
      %v6693 = vunpack.c.l.b16 %v6597
      %v6694 = vunpack.c.l.b16 %v6598
      %v6695 = vunpack.c.l.b16 %v6599
      %v6696 = vunpack.c.l.b16 %v6600
      %v6697 = vunpack.c.l.b16 %v6601
      %v6698 = vunpack.c.l.b16 %v6602
      %v6699 = vunpack.c.l.b16 %v6603
      %v6700 = vunpack.c.l.b16 %v6604
      %v6701 = vunpack.c.l.b16 %v6605
      %v6702 = vunpack.c.l.b16 %v6606
      %v6703 = vunpack.c.l.b16 %v6607
      %v6704 = vunpack.c.l.b16 %v6608
      %v6705 = vunpack.c.l.b16 %v6609
      %v6706 = vunpack.c.l.b16 %v6610
      %v6707 = vunpack.c.l.b16 %v6611
      %v6708 = vunpack.c.l.b16 %v6612
      %v6709 = vunpack.c.l.b16 %v6613
      %v6710 = vunpack.c.l.b16 %v6614
      %v6711 = vunpack.c.l.b16 %v6615
      %v6712 = vunpack.c.l.b16 %v6616
      %v6713 = vunpack.c.l.b16 %v6617
      %v6714 = vunpack.c.l.b16 %v6618
      %v6715 = vunpack.c.l.b16 %v6619
      %v6716 = vunpack.c.l.b16 %v6620
      %v6717 = vunpack.c.l.b16 %v6621
      %v6718 = vunpack.c.l.b16 %v6622
      %v6719 = vunpack.c.l.b16 %v6623
      %v6720 = vunpack.c.l.b16 %v6624
      %v6721 = vpack.c.b16 %v6674, %v6673
      %v6722 = vpack.c.b16 %v6676, %v6675
      %v6723 = vpack.c.b16 %v6678, %v6677
      %v6724 = vpack.c.b16 %v6680, %v6679
      %v6725 = vpack.c.b16 %v6682, %v6681
      %v6726 = vpack.c.b16 %v6684, %v6683
      %v6727 = vpack.c.b16 %v6686, %v6685
      %v6728 = vpack.c.b16 %v6688, %v6687
      %v6729 = vpack.c.b16 %v6690, %v6689
      %v6730 = vpack.c.b16 %v6692, %v6691
      %v6731 = vpack.c.b16 %v6694, %v6693
      %v6732 = vpack.c.b16 %v6696, %v6695
      %v6733 = vpack.c.b16 %v6698, %v6697
      %v6734 = vpack.c.b16 %v6700, %v6699
      %v6735 = vpack.c.b16 %v6702, %v6701
      %v6736 = vpack.c.b16 %v6704, %v6703
      %v6737 = vpack.c.b16 %v6706, %v6705
      %v6738 = vpack.c.b16 %v6708, %v6707
      %v6739 = vpack.c.b16 %v6710, %v6709
      %v6740 = vpack.c.b16 %v6712, %v6711
      %v6741 = vpack.c.b16 %v6714, %v6713
      %v6742 = vpack.c.b16 %v6716, %v6715
      %v6743 = vpack.c.b16 %v6718, %v6717
      %v6744 = vpack.c.b16 %v6720, %v6719
      %6769 = vmatpush.bf16.msra.mxu0 %v6728
      %6770 = vmatpush.bf16.msra.mxu0 %v6727
      %6771 = vmatpush.bf16.msra.mxu0 %v6726
      %6772 = vmatpush.bf16.msra.mxu0 %v6725
      %6773 = vmatpush.bf16.msra.mxu0 %v6724
      %6774 = vmatpush.bf16.msra.mxu0 %v6723
      %6775 = vmatpush.bf16.msra.mxu0 %v6722
      %6776 = vmatpush.bf16.msra.mxu0 %v6721
      %6777 = vmatmul.bf16.gmra.mxu0 %v6564
      %v6778 = vpop.f32.mrf.mxu0
      %v6779 = vadd.f32 0.0, %v6778
      %v6780 = vpop.f32.mrf.mxu0
      %v6781 = vadd.f32 0.0, %v6780
      %6782 = vmatmul.bf16.gmra.mxu0 %v6567
      %v6783 = vpop.f32.mrf.mxu0
      %v6784 = vadd.f32 0.0, %v6783
      %v6785 = vpop.f32.mrf.mxu0
      %v6786 = vadd.f32 0.0, %v6785
      %6787 = vmatmul.bf16.gmra.mxu0 %v6570
      %v6788 = vpop.f32.mrf.mxu0
      %v6789 = vadd.f32 0.0, %v6788
      %v6790 = vpop.f32.mrf.mxu0
      %v6791 = vadd.f32 0.0, %v6790
      %6792 = vmatmul.bf16.gmra.mxu0 %v6573
      %v6793 = vpop.f32.mrf.mxu0
      %v6794 = vadd.f32 0.0, %v6793
      %v6795 = vpop.f32.mrf.mxu0
      %v6796 = vadd.f32 0.0, %v6795
      %6797 = vdwg.mxu0
      %6798 = vmatpush.bf16.msra.mxu0 %v6736
      %6799 = vmatpush.bf16.msra.mxu0 %v6735
      %6800 = vmatpush.bf16.msra.mxu0 %v6734
      %6801 = vmatpush.bf16.msra.mxu0 %v6733
      %6802 = vmatpush.bf16.msra.mxu0 %v6732
      %6803 = vmatpush.bf16.msra.mxu0 %v6731
      %6804 = vmatpush.bf16.msra.mxu0 %v6730
      %6805 = vmatpush.bf16.msra.mxu0 %v6729
      %6806 = vmatmul.bf16.gmra.mxu0 %v6565
      %v6807 = vpop.f32.mrf.mxu0
      %v6808 = vadd.f32 %v6779, %v6807
      %v6809 = vpop.f32.mrf.mxu0
      %v6810 = vadd.f32 %v6781, %v6809
      %6811 = vmatmul.bf16.gmra.mxu0 %v6568
      %v6812 = vpop.f32.mrf.mxu0
      %v6813 = vadd.f32 %v6784, %v6812
      %v6814 = vpop.f32.mrf.mxu0
      %v6815 = vadd.f32 %v6786, %v6814
      %6816 = vmatmul.bf16.gmra.mxu0 %v6571
      %v6817 = vpop.f32.mrf.mxu0
      %v6818 = vadd.f32 %v6789, %v6817
      %v6819 = vpop.f32.mrf.mxu0
      %v6820 = vadd.f32 %v6791, %v6819
      %6821 = vmatmul.bf16.gmra.mxu0 %v6574
      %v6822 = vpop.f32.mrf.mxu0
      %v6823 = vadd.f32 %v6794, %v6822
      %v6824 = vpop.f32.mrf.mxu0
      %v6825 = vadd.f32 %v6796, %v6824
      %6826 = vdwg.mxu0
      %6827 = vmatpush.bf16.msra.mxu0 %v6744
      %6828 = vmatpush.bf16.msra.mxu0 %v6743
      %6829 = vmatpush.bf16.msra.mxu0 %v6742
      %6830 = vmatpush.bf16.msra.mxu0 %v6741
      %6831 = vmatpush.bf16.msra.mxu0 %v6740
      %6832 = vmatpush.bf16.msra.mxu0 %v6739
      %6833 = vmatpush.bf16.msra.mxu0 %v6738
      %6834 = vmatpush.bf16.msra.mxu0 %v6737
      %6835 = vmatmul.bf16.gmra.mxu0 %v6566
      %v6836 = vpop.f32.mrf.mxu0
      %v6837 = vadd.f32 %v6808, %v6836
      %v6838 = vpop.f32.mrf.mxu0
      %v6839 = vadd.f32 %v6810, %v6838
      %6840 = vmatmul.bf16.gmra.mxu0 %v6569
      %v6841 = vpop.f32.mrf.mxu0
      %v6842 = vadd.f32 %v6813, %v6841
      %v6843 = vpop.f32.mrf.mxu0
      %v6844 = vadd.f32 %v6815, %v6843
      %6845 = vmatmul.bf16.gmra.mxu0 %v6572
      %v6846 = vpop.f32.mrf.mxu0
      %v6847 = vadd.f32 %v6818, %v6846
      %v6848 = vpop.f32.mrf.mxu0
      %v6849 = vadd.f32 %v6820, %v6848
      %6850 = vmatmul.bf16.gmra.mxu0 %v6575
      %v6851 = vpop.f32.mrf.mxu0
      %v6852 = vadd.f32 %v6823, %v6851
      %v6853 = vpop.f32.mrf.mxu0
      %v6854 = vadd.f32 %v6825, %v6853
      %6855 = vdwg.mxu0
      %v6856 = vadd.f32 %v6236, %v6837
      %v6857 = vadd.f32 %v6237, %v6839
      %v6858 = vadd.f32 %v6238, %v6842
      %v6859 = vadd.f32 %v6239, %v6844
      %v6860 = vadd.f32 %v6240, %v6847
      %v6861 = vadd.f32 %v6241, %v6849
      %v6862 = vadd.f32 %v6242, %v6852
      %v6863 = vadd.f32 %v6243, %v6854
      %v6864 = vmul.f32 %v6364, %v1929
      %v6865 = vmul.f32 %v6365, %v1932
      %v6866 = vmul.f32 %v6366, %v1935
      %v6867 = vmul.f32 %v6367, %v1938
      %v6868 = vmul.f32 %v6368, %v1941
      %v6869 = vmul.f32 %v6369, %v1944
      %v6870 = vmul.f32 %v6370, %v1947
      %v6871 = vmul.f32 %v6371, %v1950
      %v6872 = vadd.f32 %v6864, %v6856
      %v6873 = vadd.f32 %v6865, %v6857
      %v6874 = vadd.f32 %v6866, %v6858
      %v6875 = vadd.f32 %v6867, %v6859
      %v6876 = vadd.f32 %v6868, %v6860
      %v6877 = vadd.f32 %v6869, %v6861
      %v6878 = vadd.f32 %v6870, %v6862
      %v6879 = vadd.f32 %v6871, %v6863
      %6880 = vst [vmem:[%s305] sm:$0xff] 0.0
      %6881 = vst [vmem:[%s305 + $0x8] sm:$0x3] 0.0
      %6882 = vst [vmem:[%s305 + $0x10] sm:$0xff] 0.0
      %6883 = vst [vmem:[%s305 + $0x18] sm:$0x3] 0.0
      %6884 = vst [vmem:[%s305 + $0x20] sm:$0xff] 0.0
      %6885 = vst [vmem:[%s305 + $0x28] sm:$0x3] 0.0
      %6886 = vst [vmem:[%s305 + $0x30] sm:$0xff] 0.0
      %6887 = vst [vmem:[%s305 + $0x38] sm:$0x3] 0.0
      %6888 = vst [vmem:[%s305 + $0x40] sm:$0xff] 0.0
      %6889 = vst [vmem:[%s305 + $0x48] sm:$0x3] 0.0
      %6890 = vst [vmem:[%s305 + $0x50] sm:$0xff] 0.0
      %6891 = vst [vmem:[%s305 + $0x58] sm:$0x3] 0.0
      %6892 = vst [vmem:[%s305 + $0x60] sm:$0xff] 0.0
      %6893 = vst [vmem:[%s305 + $0x68] sm:$0x3] 0.0
      %6894 = vst [vmem:[%s305 + $0x70] sm:$0xff] 0.0
      %6895 = vst [vmem:[%s305 + $0x78] sm:$0x3] 0.0
      %6896 = vst [vmem:[%s305 + $0x80] sm:$0xff] 0.0
      %6897 = vst [vmem:[%s305 + $0x88] sm:$0x3] 0.0
      %6898 = vst [vmem:[%s305 + $0x90] sm:$0xff] 0.0
      %6899 = vst [vmem:[%s305 + $0x98] sm:$0x3] 0.0
      %s6900 = scalar_lea.vmem %s305, 16
      %6901 = vst [vmem:[%s6900 + $0x1] sm:$0xff] %v6872
      %6902 = vst [vmem:[%s6900 + $0x11] sm:$0xff] %v6873
      %6903 = vst [vmem:[%s6900 + $0x21] sm:$0xff] %v6874
      %6904 = vst [vmem:[%s6900 + $0x31] sm:$0xff] %v6875
      %6905 = vst [vmem:[%s6900 + $0x41] sm:$0xff] %v6876
      %6906 = vst [vmem:[%s6900 + $0x51] sm:$0xff] %v6877
      %6907 = vst [vmem:[%s6900 + $0x61] sm:$0xff] %v6878
      %6908 = vst [vmem:[%s6900 + $0x71] sm:$0xff] %v6879
      %p6909 = scmp.lt.s32.totalorder %s19, 1
      %s6910 = scalar_select %p6909, %s19, 1
      %s6911 = smul.addr %s6910, 20
      %s6912 = smul.addr %s6911, 8
      %s6913 = scalar_lea.vmem %s8, %s6912
      // Predicated region
      $region53: #{single_forward.4} parent=51 // pred_check
        %p6914 = pneg %p210
      $region54: #{single_forward.4} parent=51 // pred_check_branch
        %6916 = sbr.rel (%p6914) target = $region56
      $region55: #{single_forward.4} parent=51 // pred_region
        _
      $region56: #{single_forward.4} parent=51 // pred_fallthru
        _
    $region52: #{single_forward.4} parent=5 // pred_fallthru
      _
    %p6917 = scmp.le.s32.totalorder 2, %s14
    // Predicated region
    $region57: #{single_forward.4} parent=5 // pred_check
      %p6918 = pneg %p6917
    $region58: #{single_forward.4} parent=5 // pred_check_branch
      %6920 = sbr.rel (%p6918) target = $region60
    $region59: #{single_forward.4} parent=5 // pred_region
      %s6921 = ssub.s32 %s14, 2
      // Predicated region
      $region61: #{single_forward.4} parent=59 // pred_check
        %p6922 = pneg %p216
      $region62: #{single_forward.4} parent=59 // pred_check_branch
        %6924 = sbr.rel (%p6922) target = $region64
      $region63: #{single_forward.4} parent=59 // pred_region
        %p6925 = scmp.lt.s32.totalorder %s20, 1
        %s6926 = scalar_select %p6925, %s20, 1
        %s6927 = smul.addr %s6926, 20
        %s6928 = smul.addr %s6927, 8
        %s6929 = scalar_lea.vmem %s8, %s6928
      $region64: #{single_forward.4} parent=59 // pred_fallthru
        _
    $region60: #{single_forward.4} parent=5 // pred_fallthru
      _
  $region6: #{single_forward.4} parent=0 // loop_footer
    %s18 = sadd.s32 1, %s14
  $region7: #{single_forward.4} parent=0 // loop_footer_branch
    %13 = sbr.rel target = $region3
  $region8: #{single_forward.4} parent=0 // loop_exit
    _

</llo_original>
